<compile_context>
chip_gen: v7x
topology: tpu7x:2x2x1
jax: 0.10.0
libtpu: 0.0.40
codegen_flags: <defaults>
</compile_context>

<pallas_src>
import math

import jax
import jax.numpy as jnp
from jax import lax
from jax.experimental import pallas as pl
from jax.experimental.pallas import tpu as pltpu

N_CLASS = 5
CP = 128  # all channel dims zero-padded to 128 -> lane-dense loads/stores


# ---------------------------------------------------------------------------
# Kernel 1: direct 3x3 valid conv + bias + ReLU (NHWC, one sample / grid step)
# ---------------------------------------------------------------------------
def _conv3x3_relu_kernel(x_ref, w_ref, b_ref, o_ref):
    # x_ref: (H, W, Cin)  bf16   (batch dim squeezed by BlockSpec)
    # w_ref: (9, Cin, Cout) bf16 (tap-major: k = dy*3 + dx), resident in VMEM
    # b_ref: (1, Cout) f32
    # o_ref: (Ho, Wo, Cout)
    Ho, Wo, Cout = o_ref.shape
    bias = b_ref[...]  # (1, Cout) f32

    def row_body(h, carry):
        acc = jnp.zeros((Wo, Cout), jnp.float32)
        for dy in range(3):
            # Load one input row; widen to f32 so the shifted window slices
            # below act on unpacked sublanes, then feed the MXU in bf16.
            row = x_ref[h + dy].astype(jnp.float32)               # (W, Cin)
            for dx in range(3):
                patch = row[dx:dx + Wo, :].astype(jnp.bfloat16)   # (Wo, Cin)
                acc = acc + jnp.dot(patch, w_ref[dy * 3 + dx],
                                    preferred_element_type=jnp.float32)
        y = jnp.maximum(acc + bias, 0.0)                          # f32 epilogue
        o_ref[h] = y.astype(o_ref.dtype)
        return carry

    lax.fori_loop(0, Ho, row_body, 0)


def conv3x3_relu(x, w, b, out_dtype=jnp.bfloat16):
    """x: (N, H, W, Cin) bf16; w: (9, Cin, Cout) bf16; b: (1, Cout) f32."""
    N, H, W, Cin = x.shape
    Ho, Wo = H - 2, W - 2
    Cout = w.shape[-1]
    return pl.pallas_call(
        _conv3x3_relu_kernel,
        out_shape=jax.ShapeDtypeStruct((N, Ho, Wo, Cout), out_dtype),
        grid=(N,),
        in_specs=[
            pl.BlockSpec((None, H, W, Cin), lambda n: (n, 0, 0, 0)),
            pl.BlockSpec((9, Cin, Cout), lambda n: (0, 0, 0)),   # weights resident
            pl.BlockSpec((1, Cout), lambda n: (0, 0)),
        ],
        out_specs=pl.BlockSpec((None, Ho, Wo, Cout), lambda n: (n, 0, 0, 0)),
        compiler_params=pltpu.CompilerParams(dimension_semantics=("parallel",)),
    )(x, w, b)


# ---------------------------------------------------------------------------
# Kernel 2: MaxPool2d(2,2,return_indices) -> MaxUnpool2d(2,2), fused.
# Window *columns* are folded into lanes (lanes [0:C]=left col, [C:2C]=right
# col); window *rows* are the adjacent H rows 2i / 2i+1.  Pure VPU masking,
# PyTorch first-max tie-break.
# ---------------------------------------------------------------------------
def _pool_unpool_kernel(v_ref, o_ref):
    # v_ref / o_ref: (H, W2, 2C)  (batch dim squeezed)
    H = v_ref.shape[0]
    C = v_ref.shape[-1] // 2

    def body(i, carry):
        top = v_ref[2 * i]          # (W2, 2C)
        bot = v_ref[2 * i + 1]
        a = top[:, :C]              # (0,0) of window
        b = top[:, C:]              # (0,1)
        c = bot[:, :C]              # (1,0)
        d = bot[:, C:]              # (1,1)
        m = jnp.maximum(jnp.maximum(a, b), jnp.maximum(c, d))
        ka = a == m
        kb = (b == m) & (~ka)
        kc = (c == m) & (~(ka | kb))
        kd = (d == m) & (~(ka | kb | kc))
        z = jnp.zeros_like(a)
        o_ref[2 * i] = jnp.concatenate(
            [jnp.where(ka, a, z), jnp.where(kb, b, z)], axis=-1).astype(o_ref.dtype)
        o_ref[2 * i + 1] = jnp.concatenate(
            [jnp.where(kc, c, z), jnp.where(kd, d, z)], axis=-1).astype(o_ref.dtype)
        return carry

    lax.fori_loop(0, H // 2, body, 0)


def maxpool_unpool_2x2(x):
    """x: (N, H, W, C) with H, W even."""
    N, H, W, C = x.shape
    assert H % 2 == 0 and W % 2 == 0
    W2 = W // 2
    v = x.reshape(N, H, W2, 2 * C)          # free trailing-dims reshape
    o = pl.pallas_call(
        _pool_unpool_kernel,
        out_shape=jax.ShapeDtypeStruct((N, H, W2, 2 * C), x.dtype),
        grid=(N,),
        in_specs=[pl.BlockSpec((None, H, W2, 2 * C), lambda n: (n, 0, 0, 0))],
        out_specs=pl.BlockSpec((None, H, W2, 2 * C), lambda n: (n, 0, 0, 0)),
        compiler_params=pltpu.CompilerParams(dimension_semantics=("parallel",)),
    )(v)
    return o.reshape(N, H, W, C)


# ---------------------------------------------------------------------------
# Parameters (deterministic, PyTorch-default-style uniform(+-1/sqrt(fan_in)))
# stored directly in the kernel layout: (9, Cin_pad, Cout_pad) bf16 + f32 bias.
# ---------------------------------------------------------------------------
def init_params(key):
    specs = [(3, 64), (64, 64), (64, 128), (128, 128), (128, 64), (64, N_CLASS)]
    params = []
    for cin, cout in specs:
        kw, kb, key = jax.random.split(key, 3)
        bound = 1.0 / math.sqrt(cin * 9)
        w_oihw = jax.random.uniform(kw, (cout, cin, 3, 3), jnp.float32, -bound, bound)
        b = jax.random.uniform(kb, (cout,), jnp.float32, -bound, bound)
        # (Cout, Cin, 3, 3) -> (dy, dx, Cin, Cout) -> (9, Cin, Cout), zero-pad to 128
        wt = jnp.transpose(w_oihw, (2, 3, 1, 0)).reshape(9, cin, cout)
        wt = jnp.pad(wt, ((0, 0), (0, CP - cin), (0, CP - cout))).astype(jnp.bfloat16)
        bp = jnp.pad(b, (0, CP - cout)).reshape(1, CP).astype(jnp.float32)
        params.append((wt, bp))
    return params


# ---------------------------------------------------------------------------
# Forward pass (mirrors Net.forward)
# ---------------------------------------------------------------------------
def net_forward(x_nchw, params):
    # NCHW -> NHWC, zero-pad channels to 128, bf16 activations between layers.
    x = jnp.transpose(x_nchw, (0, 2, 3, 1))
    x = jnp.pad(x, ((0, 0), (0, 0), (0, 0), (0, CP - x.shape[-1])))
    x = x.astype(jnp.bfloat16)
    (w1, b1), (w2, b2), (w3, b3), (w4, b4), (w5, b5), (w6, b6) = params
    x = conv3x3_relu(x, w1, b1)            # F.relu(conv1(x))
    x = conv3x3_relu(x, w2, b2)            # F.relu(conv2(x))
    x = maxpool_unpool_2x2(x)              # pool + unpool
    x = conv3x3_relu(x, w3, b3)            # F.relu(conv3(x))
    x = conv3x3_relu(x, w4, b4)            # F.relu(conv4(x))
    x = maxpool_unpool_2x2(x)              # pool + unpool
    x = conv3x3_relu(x, w5, b5)            # F.relu(conv5(x))
    x = conv3x3_relu(x, w6, b6, out_dtype=jnp.float32)   # F.relu(conv6(x))
    x = x[..., :N_CLASS]                   # drop channel padding (128 -> 5)
    return jnp.transpose(x, (0, 3, 1, 2))  # back to NCHW: (N, 5, H-12, W-12)


if __name__ == "__main__":
    key = jax.random.PRNGKey(0)
    kx, kp = jax.random.split(key)
    # NCHW input, matching the PyTorch module (3 input channels required).
    x = jax.random.normal(kx, (2, 3, 24, 24), jnp.float32)
    params = init_params(kp)
    fwd = jax.jit(net_forward)
    out = fwd(x, params)
    jax.block_until_ready(out)
    assert out.shape == (2, 5, 12, 12), out.shape
    assert bool(jnp.all(jnp.isfinite(out)))
    print("KERNEL_OK")
</pallas_src>

<mosaic_0001>
module attributes {stable_mosaic.version = 11 : i64} {
  func.func @_conv3x3_relu_kernel(%arg0: i32, %arg1: memref<1x24x24x128xbf16, #tpu.memory_space<vmem>>, %arg2: memref<9x128x128xbf16, #tpu.memory_space<vmem>>, %arg3: memref<1x128xf32, #tpu.memory_space<vmem>>, %arg4: memref<1x22x22x128xbf16, #tpu.memory_space<vmem>>) attributes {dimension_semantics = [#tpu.dimension_semantics<parallel>], iteration_bounds = array<i64: 2>, scalar_prefetch = 0 : i64, scratch_operands = 0 : i64, tpu.core_type = #tpu.core_type<tc>, window_params = [{transform_indices = @transform_0, window_bounds = array<i64: 1, 24, 24, 128>}, {pipeline_mode = #tpu.pipeline_mode<synchronous>, transform_indices = @transform_1, window_bounds = array<i64: 9, 128, 128>}, {pipeline_mode = #tpu.pipeline_mode<synchronous>, transform_indices = @transform_2, window_bounds = array<i64: 1, 128>}, {transform_indices = @transform_3, window_bounds = array<i64: 1, 22, 22, 128>}]} {
    %c0 = arith.constant 0 : index
    %c0_0 = arith.constant 0 : index
    %0 = vector.load %arg3[%c0, %c0_0] : memref<1x128xf32, #tpu.memory_space<vmem>>, vector<1x128xf32>
    %c0_i32 = arith.constant 0 : i32
    %c22_i32 = arith.constant 22 : i32
    %1 = arith.addi %c0_i32, %c22_i32 : i32
    %c1_i32 = arith.constant 1 : i32
    scf.for %arg5 = %c0_i32 to %1 step %c1_i32  : i32 {
      %cst = arith.constant 0.000000e+00 : f32
      %2 = vector.broadcast %cst : f32 to vector<22x128xf32>
      %c0_i32_2 = arith.constant 0 : i32
      %3 = arith.addi %arg5, %c0_i32_2 : i32
      %c0_3 = arith.constant 0 : index
      %4 = arith.index_cast %3 : i32 to index
      %c0_4 = arith.constant 0 : index
      %c0_5 = arith.constant 0 : index
      %5 = vector.load %arg1[%c0_3, %4, %c0_4, %c0_5] : memref<1x24x24x128xbf16, #tpu.memory_space<vmem>>, vector<1x1x24x128xbf16>
      %6 = vector.shape_cast %5 : vector<1x1x24x128xbf16> to vector<24x128xbf16>
      %7 = arith.extf %6 : vector<24x128xbf16> to vector<24x128xf32>
      %8 = vector.extract_strided_slice %7 {offsets = [0, 0], sizes = [22, 128], strides = [1, 1]} : vector<24x128xf32> to vector<22x128xf32>
      %9 = arith.truncf %8 : vector<22x128xf32> to vector<22x128xbf16>
      %c0_6 = arith.constant 0 : index
      %c0_7 = arith.constant 0 : index
      %c0_8 = arith.constant 0 : index
      %10 = vector.load %arg2[%c0_6, %c0_7, %c0_8] : memref<9x128x128xbf16, #tpu.memory_space<vmem>>, vector<1x128x128xbf16>
      %11 = vector.shape_cast %10 : vector<1x128x128xbf16> to vector<128x128xbf16>
      %cst_9 = arith.constant dense<0.000000e+00> : vector<22x128xf32>
      %12 = tpu.matmul %9, %11, %cst_9 {dimension_numbers = #tpu.dot_dimension_numbers<[1], [0], [0], [1], [0, 0, 1, 1], [], []>} : vector<22x128xbf16>, vector<128x128xbf16>, vector<22x128xf32> -> vector<22x128xf32>
      %13 = arith.addf %2, %12 : vector<22x128xf32>
      %14 = vector.extract_strided_slice %7 {offsets = [1, 0], sizes = [22, 128], strides = [1, 1]} : vector<24x128xf32> to vector<22x128xf32>
      %15 = arith.truncf %14 : vector<22x128xf32> to vector<22x128xbf16>
      %c1 = arith.constant 1 : index
      %c0_10 = arith.constant 0 : index
      %c0_11 = arith.constant 0 : index
      %16 = vector.load %arg2[%c1, %c0_10, %c0_11] : memref<9x128x128xbf16, #tpu.memory_space<vmem>>, vector<1x128x128xbf16>
      %17 = vector.shape_cast %16 : vector<1x128x128xbf16> to vector<128x128xbf16>
      %cst_12 = arith.constant dense<0.000000e+00> : vector<22x128xf32>
      %18 = tpu.matmul %15, %17, %cst_12 {dimension_numbers = #tpu.dot_dimension_numbers<[1], [0], [0], [1], [0, 0, 1, 1], [], []>} : vector<22x128xbf16>, vector<128x128xbf16>, vector<22x128xf32> -> vector<22x128xf32>
      %19 = arith.addf %13, %18 : vector<22x128xf32>
      %20 = vector.extract_strided_slice %7 {offsets = [2, 0], sizes = [22, 128], strides = [1, 1]} : vector<24x128xf32> to vector<22x128xf32>
      %21 = arith.truncf %20 : vector<22x128xf32> to vector<22x128xbf16>
      %c2 = arith.constant 2 : index
      %c0_13 = arith.constant 0 : index
      %c0_14 = arith.constant 0 : index
      %22 = vector.load %arg2[%c2, %c0_13, %c0_14] : memref<9x128x128xbf16, #tpu.memory_space<vmem>>, vector<1x128x128xbf16>
      %23 = vector.shape_cast %22 : vector<1x128x128xbf16> to vector<128x128xbf16>
      %cst_15 = arith.constant dense<0.000000e+00> : vector<22x128xf32>
      %24 = tpu.matmul %21, %23, %cst_15 {dimension_numbers = #tpu.dot_dimension_numbers<[1], [0], [0], [1], [0, 0, 1, 1], [], []>} : vector<22x128xbf16>, vector<128x128xbf16>, vector<22x128xf32> -> vector<22x128xf32>
      %25 = arith.addf %19, %24 : vector<22x128xf32>
      %c1_i32_16 = arith.constant 1 : i32
      %26 = arith.addi %arg5, %c1_i32_16 : i32
      %c0_17 = arith.constant 0 : index
      %27 = arith.index_cast %26 : i32 to index
      %c0_18 = arith.constant 0 : index
      %c0_19 = arith.constant 0 : index
      %28 = vector.load %arg1[%c0_17, %27, %c0_18, %c0_19] : memref<1x24x24x128xbf16, #tpu.memory_space<vmem>>, vector<1x1x24x128xbf16>
      %29 = vector.shape_cast %28 : vector<1x1x24x128xbf16> to vector<24x128xbf16>
      %30 = arith.extf %29 : vector<24x128xbf16> to vector<24x128xf32>
      %31 = vector.extract_strided_slice %30 {offsets = [0, 0], sizes = [22, 128], strides = [1, 1]} : vector<24x128xf32> to vector<22x128xf32>
      %32 = arith.truncf %31 : vector<22x128xf32> to vector<22x128xbf16>
      %c3 = arith.constant 3 : index
      %c0_20 = arith.constant 0 : index
      %c0_21 = arith.constant 0 : index
      %33 = vector.load %arg2[%c3, %c0_20, %c0_21] : memref<9x128x128xbf16, #tpu.memory_space<vmem>>, vector<1x128x128xbf16>
      %34 = vector.shape_cast %33 : vector<1x128x128xbf16> to vector<128x128xbf16>
      %cst_22 = arith.constant dense<0.000000e+00> : vector<22x128xf32>
      %35 = tpu.matmul %32, %34, %cst_22 {dimension_numbers = #tpu.dot_dimension_numbers<[1], [0], [0], [1], [0, 0, 1, 1], [], []>} : vector<22x128xbf16>, vector<128x128xbf16>, vector<22x128xf32> -> vector<22x128xf32>
      %36 = arith.addf %25, %35 : vector<22x128xf32>
      %37 = vector.extract_strided_slice %30 {offsets = [1, 0], sizes = [22, 128], strides = [1, 1]} : vector<24x128xf32> to vector<22x128xf32>
      %38 = arith.truncf %37 : vector<22x128xf32> to vector<22x128xbf16>
      %c4 = arith.constant 4 : index
      %c0_23 = arith.constant 0 : index
      %c0_24 = arith.constant 0 : index
      %39 = vector.load %arg2[%c4, %c0_23, %c0_24] : memref<9x128x128xbf16, #tpu.memory_space<vmem>>, vector<1x128x128xbf16>
      %40 = vector.shape_cast %39 : vector<1x128x128xbf16> to vector<128x128xbf16>
      %cst_25 = arith.constant dense<0.000000e+00> : vector<22x128xf32>
      %41 = tpu.matmul %38, %40, %cst_25 {dimension_numbers = #tpu.dot_dimension_numbers<[1], [0], [0], [1], [0, 0, 1, 1], [], []>} : vector<22x128xbf16>, vector<128x128xbf16>, vector<22x128xf32> -> vector<22x128xf32>
      %42 = arith.addf %36, %41 : vector<22x128xf32>
      %43 = vector.extract_strided_slice %30 {offsets = [2, 0], sizes = [22, 128], strides = [1, 1]} : vector<24x128xf32> to vector<22x128xf32>
      %44 = arith.truncf %43 : vector<22x128xf32> to vector<22x128xbf16>
      %c5 = arith.constant 5 : index
      %c0_26 = arith.constant 0 : index
      %c0_27 = arith.constant 0 : index
      %45 = vector.load %arg2[%c5, %c0_26, %c0_27] : memref<9x128x128xbf16, #tpu.memory_space<vmem>>, vector<1x128x128xbf16>
      %46 = vector.shape_cast %45 : vector<1x128x128xbf16> to vector<128x128xbf16>
      %cst_28 = arith.constant dense<0.000000e+00> : vector<22x128xf32>
      %47 = tpu.matmul %44, %46, %cst_28 {dimension_numbers = #tpu.dot_dimension_numbers<[1], [0], [0], [1], [0, 0, 1, 1], [], []>} : vector<22x128xbf16>, vector<128x128xbf16>, vector<22x128xf32> -> vector<22x128xf32>
      %48 = arith.addf %42, %47 : vector<22x128xf32>
      %c2_i32 = arith.constant 2 : i32
      %49 = arith.addi %arg5, %c2_i32 : i32
      %c0_29 = arith.constant 0 : index
      %50 = arith.index_cast %49 : i32 to index
      %c0_30 = arith.constant 0 : index
      %c0_31 = arith.constant 0 : index
      %51 = vector.load %arg1[%c0_29, %50, %c0_30, %c0_31] : memref<1x24x24x128xbf16, #tpu.memory_space<vmem>>, vector<1x1x24x128xbf16>
      %52 = vector.shape_cast %51 : vector<1x1x24x128xbf16> to vector<24x128xbf16>
      %53 = arith.extf %52 : vector<24x128xbf16> to vector<24x128xf32>
      %54 = vector.extract_strided_slice %53 {offsets = [0, 0], sizes = [22, 128], strides = [1, 1]} : vector<24x128xf32> to vector<22x128xf32>
      %55 = arith.truncf %54 : vector<22x128xf32> to vector<22x128xbf16>
      %c6 = arith.constant 6 : index
      %c0_32 = arith.constant 0 : index
      %c0_33 = arith.constant 0 : index
      %56 = vector.load %arg2[%c6, %c0_32, %c0_33] : memref<9x128x128xbf16, #tpu.memory_space<vmem>>, vector<1x128x128xbf16>
      %57 = vector.shape_cast %56 : vector<1x128x128xbf16> to vector<128x128xbf16>
      %cst_34 = arith.constant dense<0.000000e+00> : vector<22x128xf32>
      %58 = tpu.matmul %55, %57, %cst_34 {dimension_numbers = #tpu.dot_dimension_numbers<[1], [0], [0], [1], [0, 0, 1, 1], [], []>} : vector<22x128xbf16>, vector<128x128xbf16>, vector<22x128xf32> -> vector<22x128xf32>
      %59 = arith.addf %48, %58 : vector<22x128xf32>
      %60 = vector.extract_strided_slice %53 {offsets = [1, 0], sizes = [22, 128], strides = [1, 1]} : vector<24x128xf32> to vector<22x128xf32>
      %61 = arith.truncf %60 : vector<22x128xf32> to vector<22x128xbf16>
      %c7 = arith.constant 7 : index
      %c0_35 = arith.constant 0 : index
      %c0_36 = arith.constant 0 : index
      %62 = vector.load %arg2[%c7, %c0_35, %c0_36] : memref<9x128x128xbf16, #tpu.memory_space<vmem>>, vector<1x128x128xbf16>
      %63 = vector.shape_cast %62 : vector<1x128x128xbf16> to vector<128x128xbf16>
      %cst_37 = arith.constant dense<0.000000e+00> : vector<22x128xf32>
      %64 = tpu.matmul %61, %63, %cst_37 {dimension_numbers = #tpu.dot_dimension_numbers<[1], [0], [0], [1], [0, 0, 1, 1], [], []>} : vector<22x128xbf16>, vector<128x128xbf16>, vector<22x128xf32> -> vector<22x128xf32>
      %65 = arith.addf %59, %64 : vector<22x128xf32>
      %66 = vector.extract_strided_slice %53 {offsets = [2, 0], sizes = [22, 128], strides = [1, 1]} : vector<24x128xf32> to vector<22x128xf32>
      %67 = arith.truncf %66 : vector<22x128xf32> to vector<22x128xbf16>
      %c8 = arith.constant 8 : index
      %c0_38 = arith.constant 0 : index
      %c0_39 = arith.constant 0 : index
      %68 = vector.load %arg2[%c8, %c0_38, %c0_39] : memref<9x128x128xbf16, #tpu.memory_space<vmem>>, vector<1x128x128xbf16>
      %69 = vector.shape_cast %68 : vector<1x128x128xbf16> to vector<128x128xbf16>
      %cst_40 = arith.constant dense<0.000000e+00> : vector<22x128xf32>
      %70 = tpu.matmul %67, %69, %cst_40 {dimension_numbers = #tpu.dot_dimension_numbers<[1], [0], [0], [1], [0, 0, 1, 1], [], []>} : vector<22x128xbf16>, vector<128x128xbf16>, vector<22x128xf32> -> vector<22x128xf32>
      %71 = arith.addf %65, %70 : vector<22x128xf32>
      %72 = vector.broadcast %0 : vector<1x128xf32> to vector<22x128xf32>
      %73 = arith.addf %71, %72 : vector<22x128xf32>
      %cst_41 = arith.constant 0.000000e+00 : f32
      %74 = vector.broadcast %cst_41 : f32 to vector<22x128xf32>
      %75 = arith.maximumf %73, %74 : vector<22x128xf32>
      %76 = arith.truncf %75 : vector<22x128xf32> to vector<22x128xbf16>
      %c0_42 = arith.constant 0 : index
      %77 = arith.index_cast %arg5 : i32 to index
      %c0_43 = arith.constant 0 : index
      %c0_44 = arith.constant 0 : index
      %78 = vector.load %arg4[%c0_42, %77, %c0_43, %c0_44] : memref<1x22x22x128xbf16, #tpu.memory_space<vmem>>, vector<1x1x22x128xbf16>
      %79 = vector.shape_cast %78 : vector<1x1x22x128xbf16> to vector<22x128xbf16>
      %80 = vector.shape_cast %76 : vector<22x128xbf16> to vector<1x1x22x128xbf16>
      tpu.vector_store %arg4[%c0_42, %77, %c0_43, %c0_44], %80 {strides = array<i32>} : memref<1x22x22x128xbf16, #tpu.memory_space<vmem>>, vector<1x1x22x128xbf16>,
    }
    %c22_i32_1 = arith.constant 22 : i32
    return
  }
  func.func @transform_0(%arg0: i32) -> (i32, i32, i32, i32) {
    %c0_i32 = arith.constant 0 : i32
    %c0_i32_0 = arith.constant 0 : i32
    %c0_i32_1 = arith.constant 0 : i32
    %c0_i32_2 = arith.constant 0 : i32
    return %arg0, %c0_i32, %c0_i32_0, %c0_i32_1 : i32, i32, i32, i32
  }
  func.func @transform_1(%arg0: i32) -> (i32, i32, i32) {
    %c0_i32 = arith.constant 0 : i32
    %c0_i32_0 = arith.constant 0 : i32
    %c0_i32_1 = arith.constant 0 : i32
    %c0_i32_2 = arith.constant 0 : i32
    return %c0_i32, %c0_i32_0, %c0_i32_1 : i32, i32, i32
  }
  func.func @transform_2(%arg0: i32) -> (i32, i32) {
    %c0_i32 = arith.constant 0 : i32
    %c0_i32_0 = arith.constant 0 : i32
    %c0_i32_1 = arith.constant 0 : i32
    return %c0_i32, %c0_i32_0 : i32, i32
  }
  func.func @transform_3(%arg0: i32) -> (i32, i32, i32, i32) {
    %c0_i32 = arith.constant 0 : i32
    %c0_i32_0 = arith.constant 0 : i32
    %c0_i32_1 = arith.constant 0 : i32
    %c0_i32_2 = arith.constant 0 : i32
    return %arg0, %c0_i32, %c0_i32_0, %c0_i32_1 : i32, i32, i32, i32
  }
}

module attributes {stable_mosaic.version = 11 : i64} {
  func.func @_conv3x3_relu_kernel(%arg0: i32, %arg1: memref<1x22x22x128xbf16, #tpu.memory_space<vmem>>, %arg2: memref<9x128x128xbf16, #tpu.memory_space<vmem>>, %arg3: memref<1x128xf32, #tpu.memory_space<vmem>>, %arg4: memref<1x20x20x128xbf16, #tpu.memory_space<vmem>>) attributes {dimension_semantics = [#tpu.dimension_semantics<parallel>], iteration_bounds = array<i64: 2>, scalar_prefetch = 0 : i64, scratch_operands = 0 : i64, tpu.core_type = #tpu.core_type<tc>, window_params = [{transform_indices = @transform_0, window_bounds = array<i64: 1, 22, 22, 128>}, {pipeline_mode = #tpu.pipeline_mode<synchronous>, transform_indices = @transform_1, window_bounds = array<i64: 9, 128, 128>}, {pipeline_mode = #tpu.pipeline_mode<synchronous>, transform_indices = @transform_2, window_bounds = array<i64: 1, 128>}, {transform_indices = @transform_3, window_bounds = array<i64: 1, 20, 20, 128>}]} {
    %c0 = arith.constant 0 : index
    %c0_0 = arith.constant 0 : index
    %0 = vector.load %arg3[%c0, %c0_0] : memref<1x128xf32, #tpu.memory_space<vmem>>, vector<1x128xf32>
    %c0_i32 = arith.constant 0 : i32
    %c20_i32 = arith.constant 20 : i32
    %1 = arith.addi %c0_i32, %c20_i32 : i32
    %c1_i32 = arith.constant 1 : i32
    scf.for %arg5 = %c0_i32 to %1 step %c1_i32  : i32 {
      %cst = arith.constant 0.000000e+00 : f32
      %2 = vector.broadcast %cst : f32 to vector<20x128xf32>
      %c0_i32_2 = arith.constant 0 : i32
      %3 = arith.addi %arg5, %c0_i32_2 : i32
      %c0_3 = arith.constant 0 : index
      %4 = arith.index_cast %3 : i32 to index
      %c0_4 = arith.constant 0 : index
      %c0_5 = arith.constant 0 : index
      %5 = vector.load %arg1[%c0_3, %4, %c0_4, %c0_5] : memref<1x22x22x128xbf16, #tpu.memory_space<vmem>>, vector<1x1x22x128xbf16>
      %6 = vector.shape_cast %5 : vector<1x1x22x128xbf16> to vector<22x128xbf16>
      %7 = arith.extf %6 : vector<22x128xbf16> to vector<22x128xf32>
      %8 = vector.extract_strided_slice %7 {offsets = [0, 0], sizes = [20, 128], strides = [1, 1]} : vector<22x128xf32> to vector<20x128xf32>
      %9 = arith.truncf %8 : vector<20x128xf32> to vector<20x128xbf16>
      %c0_6 = arith.constant 0 : index
      %c0_7 = arith.constant 0 : index
      %c0_8 = arith.constant 0 : index
      %10 = vector.load %arg2[%c0_6, %c0_7, %c0_8] : memref<9x128x128xbf16, #tpu.memory_space<vmem>>, vector<1x128x128xbf16>
      %11 = vector.shape_cast %10 : vector<1x128x128xbf16> to vector<128x128xbf16>
      %cst_9 = arith.constant dense<0.000000e+00> : vector<20x128xf32>
      %12 = tpu.matmul %9, %11, %cst_9 {dimension_numbers = #tpu.dot_dimension_numbers<[1], [0], [0], [1], [0, 0, 1, 1], [], []>} : vector<20x128xbf16>, vector<128x128xbf16>, vector<20x128xf32> -> vector<20x128xf32>
      %13 = arith.addf %2, %12 : vector<20x128xf32>
      %14 = vector.extract_strided_slice %7 {offsets = [1, 0], sizes = [20, 128], strides = [1, 1]} : vector<22x128xf32> to vector<20x128xf32>
      %15 = arith.truncf %14 : vector<20x128xf32> to vector<20x128xbf16>
      %c1 = arith.constant 1 : index
      %c0_10 = arith.constant 0 : index
      %c0_11 = arith.constant 0 : index
      %16 = vector.load %arg2[%c1, %c0_10, %c0_11] : memref<9x128x128xbf16, #tpu.memory_space<vmem>>, vector<1x128x128xbf16>
      %17 = vector.shape_cast %16 : vector<1x128x128xbf16> to vector<128x128xbf16>
      %cst_12 = arith.constant dense<0.000000e+00> : vector<20x128xf32>
      %18 = tpu.matmul %15, %17, %cst_12 {dimension_numbers = #tpu.dot_dimension_numbers<[1], [0], [0], [1], [0, 0, 1, 1], [], []>} : vector<20x128xbf16>, vector<128x128xbf16>, vector<20x128xf32> -> vector<20x128xf32>
      %19 = arith.addf %13, %18 : vector<20x128xf32>
      %20 = vector.extract_strided_slice %7 {offsets = [2, 0], sizes = [20, 128], strides = [1, 1]} : vector<22x128xf32> to vector<20x128xf32>
      %21 = arith.truncf %20 : vector<20x128xf32> to vector<20x128xbf16>
      %c2 = arith.constant 2 : index
      %c0_13 = arith.constant 0 : index
      %c0_14 = arith.constant 0 : index
      %22 = vector.load %arg2[%c2, %c0_13, %c0_14] : memref<9x128x128xbf16, #tpu.memory_space<vmem>>, vector<1x128x128xbf16>
      %23 = vector.shape_cast %22 : vector<1x128x128xbf16> to vector<128x128xbf16>
      %cst_15 = arith.constant dense<0.000000e+00> : vector<20x128xf32>
      %24 = tpu.matmul %21, %23, %cst_15 {dimension_numbers = #tpu.dot_dimension_numbers<[1], [0], [0], [1], [0, 0, 1, 1], [], []>} : vector<20x128xbf16>, vector<128x128xbf16>, vector<20x128xf32> -> vector<20x128xf32>
      %25 = arith.addf %19, %24 : vector<20x128xf32>
      %c1_i32_16 = arith.constant 1 : i32
      %26 = arith.addi %arg5, %c1_i32_16 : i32
      %c0_17 = arith.constant 0 : index
      %27 = arith.index_cast %26 : i32 to index
      %c0_18 = arith.constant 0 : index
      %c0_19 = arith.constant 0 : index
      %28 = vector.load %arg1[%c0_17, %27, %c0_18, %c0_19] : memref<1x22x22x128xbf16, #tpu.memory_space<vmem>>, vector<1x1x22x128xbf16>
      %29 = vector.shape_cast %28 : vector<1x1x22x128xbf16> to vector<22x128xbf16>
      %30 = arith.extf %29 : vector<22x128xbf16> to vector<22x128xf32>
      %31 = vector.extract_strided_slice %30 {offsets = [0, 0], sizes = [20, 128], strides = [1, 1]} : vector<22x128xf32> to vector<20x128xf32>
      %32 = arith.truncf %31 : vector<20x128xf32> to vector<20x128xbf16>
      %c3 = arith.constant 3 : index
      %c0_20 = arith.constant 0 : index
      %c0_21 = arith.constant 0 : index
      %33 = vector.load %arg2[%c3, %c0_20, %c0_21] : memref<9x128x128xbf16, #tpu.memory_space<vmem>>, vector<1x128x128xbf16>
      %34 = vector.shape_cast %33 : vector<1x128x128xbf16> to vector<128x128xbf16>
      %cst_22 = arith.constant dense<0.000000e+00> : vector<20x128xf32>
      %35 = tpu.matmul %32, %34, %cst_22 {dimension_numbers = #tpu.dot_dimension_numbers<[1], [0], [0], [1], [0, 0, 1, 1], [], []>} : vector<20x128xbf16>, vector<128x128xbf16>, vector<20x128xf32> -> vector<20x128xf32>
      %36 = arith.addf %25, %35 : vector<20x128xf32>
      %37 = vector.extract_strided_slice %30 {offsets = [1, 0], sizes = [20, 128], strides = [1, 1]} : vector<22x128xf32> to vector<20x128xf32>
      %38 = arith.truncf %37 : vector<20x128xf32> to vector<20x128xbf16>
      %c4 = arith.constant 4 : index
      %c0_23 = arith.constant 0 : index
      %c0_24 = arith.constant 0 : index
      %39 = vector.load %arg2[%c4, %c0_23, %c0_24] : memref<9x128x128xbf16, #tpu.memory_space<vmem>>, vector<1x128x128xbf16>
      %40 = vector.shape_cast %39 : vector<1x128x128xbf16> to vector<128x128xbf16>
      %cst_25 = arith.constant dense<0.000000e+00> : vector<20x128xf32>
      %41 = tpu.matmul %38, %40, %cst_25 {dimension_numbers = #tpu.dot_dimension_numbers<[1], [0], [0], [1], [0, 0, 1, 1], [], []>} : vector<20x128xbf16>, vector<128x128xbf16>, vector<20x128xf32> -> vector<20x128xf32>
      %42 = arith.addf %36, %41 : vector<20x128xf32>
      %43 = vector.extract_strided_slice %30 {offsets = [2, 0], sizes = [20, 128], strides = [1, 1]} : vector<22x128xf32> to vector<20x128xf32>
      %44 = arith.truncf %43 : vector<20x128xf32> to vector<20x128xbf16>
      %c5 = arith.constant 5 : index
      %c0_26 = arith.constant 0 : index
      %c0_27 = arith.constant 0 : index
      %45 = vector.load %arg2[%c5, %c0_26, %c0_27] : memref<9x128x128xbf16, #tpu.memory_space<vmem>>, vector<1x128x128xbf16>
      %46 = vector.shape_cast %45 : vector<1x128x128xbf16> to vector<128x128xbf16>
      %cst_28 = arith.constant dense<0.000000e+00> : vector<20x128xf32>
      %47 = tpu.matmul %44, %46, %cst_28 {dimension_numbers = #tpu.dot_dimension_numbers<[1], [0], [0], [1], [0, 0, 1, 1], [], []>} : vector<20x128xbf16>, vector<128x128xbf16>, vector<20x128xf32> -> vector<20x128xf32>
      %48 = arith.addf %42, %47 : vector<20x128xf32>
      %c2_i32 = arith.constant 2 : i32
      %49 = arith.addi %arg5, %c2_i32 : i32
      %c0_29 = arith.constant 0 : index
      %50 = arith.index_cast %49 : i32 to index
      %c0_30 = arith.constant 0 : index
      %c0_31 = arith.constant 0 : index
      %51 = vector.load %arg1[%c0_29, %50, %c0_30, %c0_31] : memref<1x22x22x128xbf16, #tpu.memory_space<vmem>>, vector<1x1x22x128xbf16>
      %52 = vector.shape_cast %51 : vector<1x1x22x128xbf16> to vector<22x128xbf16>
      %53 = arith.extf %52 : vector<22x128xbf16> to vector<22x128xf32>
      %54 = vector.extract_strided_slice %53 {offsets = [0, 0], sizes = [20, 128], strides = [1, 1]} : vector<22x128xf32> to vector<20x128xf32>
      %55 = arith.truncf %54 : vector<20x128xf32> to vector<20x128xbf16>
      %c6 = arith.constant 6 : index
      %c0_32 = arith.constant 0 : index
      %c0_33 = arith.constant 0 : index
      %56 = vector.load %arg2[%c6, %c0_32, %c0_33] : memref<9x128x128xbf16, #tpu.memory_space<vmem>>, vector<1x128x128xbf16>
      %57 = vector.shape_cast %56 : vector<1x128x128xbf16> to vector<128x128xbf16>
      %cst_34 = arith.constant dense<0.000000e+00> : vector<20x128xf32>
      %58 = tpu.matmul %55, %57, %cst_34 {dimension_numbers = #tpu.dot_dimension_numbers<[1], [0], [0], [1], [0, 0, 1, 1], [], []>} : vector<20x128xbf16>, vector<128x128xbf16>, vector<20x128xf32> -> vector<20x128xf32>
      %59 = arith.addf %48, %58 : vector<20x128xf32>
      %60 = vector.extract_strided_slice %53 {offsets = [1, 0], sizes = [20, 128], strides = [1, 1]} : vector<22x128xf32> to vector<20x128xf32>
      %61 = arith.truncf %60 : vector<20x128xf32> to vector<20x128xbf16>
      %c7 = arith.constant 7 : index
      %c0_35 = arith.constant 0 : index
      %c0_36 = arith.constant 0 : index
      %62 = vector.load %arg2[%c7, %c0_35, %c0_36] : memref<9x128x128xbf16, #tpu.memory_space<vmem>>, vector<1x128x128xbf16>
      %63 = vector.shape_cast %62 : vector<1x128x128xbf16> to vector<128x128xbf16>
      %cst_37 = arith.constant dense<0.000000e+00> : vector<20x128xf32>
      %64 = tpu.matmul %61, %63, %cst_37 {dimension_numbers = #tpu.dot_dimension_numbers<[1], [0], [0], [1], [0, 0, 1, 1], [], []>} : vector<20x128xbf16>, vector<128x128xbf16>, vector<20x128xf32> -> vector<20x128xf32>
      %65 = arith.addf %59, %64 : vector<20x128xf32>
      %66 = vector.extract_strided_slice %53 {offsets = [2, 0], sizes = [20, 128], strides = [1, 1]} : vector<22x128xf32> to vector<20x128xf32>
      %67 = arith.truncf %66 : vector<20x128xf32> to vector<20x128xbf16>
      %c8 = arith.constant 8 : index
      %c0_38 = arith.constant 0 : index
      %c0_39 = arith.constant 0 : index
      %68 = vector.load %arg2[%c8, %c0_38, %c0_39] : memref<9x128x128xbf16, #tpu.memory_space<vmem>>, vector<1x128x128xbf16>
      %69 = vector.shape_cast %68 : vector<1x128x128xbf16> to vector<128x128xbf16>
      %cst_40 = arith.constant dense<0.000000e+00> : vector<20x128xf32>
      %70 = tpu.matmul %67, %69, %cst_40 {dimension_numbers = #tpu.dot_dimension_numbers<[1], [0], [0], [1], [0, 0, 1, 1], [], []>} : vector<20x128xbf16>, vector<128x128xbf16>, vector<20x128xf32> -> vector<20x128xf32>
      %71 = arith.addf %65, %70 : vector<20x128xf32>
      %72 = vector.broadcast %0 : vector<1x128xf32> to vector<20x128xf32>
      %73 = arith.addf %71, %72 : vector<20x128xf32>
      %cst_41 = arith.constant 0.000000e+00 : f32
      %74 = vector.broadcast %cst_41 : f32 to vector<20x128xf32>
      %75 = arith.maximumf %73, %74 : vector<20x128xf32>
      %76 = arith.truncf %75 : vector<20x128xf32> to vector<20x128xbf16>
      %c0_42 = arith.constant 0 : index
      %77 = arith.index_cast %arg5 : i32 to index
      %c0_43 = arith.constant 0 : index
      %c0_44 = arith.constant 0 : index
      %78 = vector.load %arg4[%c0_42, %77, %c0_43, %c0_44] : memref<1x20x20x128xbf16, #tpu.memory_space<vmem>>, vector<1x1x20x128xbf16>
      %79 = vector.shape_cast %78 : vector<1x1x20x128xbf16> to vector<20x128xbf16>
      %80 = vector.shape_cast %76 : vector<20x128xbf16> to vector<1x1x20x128xbf16>
      tpu.vector_store %arg4[%c0_42, %77, %c0_43, %c0_44], %80 {strides = array<i32>} : memref<1x20x20x128xbf16, #tpu.memory_space<vmem>>, vector<1x1x20x128xbf16>,
    }
    %c20_i32_1 = arith.constant 20 : i32
    return
  }
  func.func @transform_0(%arg0: i32) -> (i32, i32, i32, i32) {
    %c0_i32 = arith.constant 0 : i32
    %c0_i32_0 = arith.constant 0 : i32
    %c0_i32_1 = arith.constant 0 : i32
    %c0_i32_2 = arith.constant 0 : i32
    return %arg0, %c0_i32, %c0_i32_0, %c0_i32_1 : i32, i32, i32, i32
  }
  func.func @transform_1(%arg0: i32) -> (i32, i32, i32) {
    %c0_i32 = arith.constant 0 : i32
    %c0_i32_0 = arith.constant 0 : i32
    %c0_i32_1 = arith.constant 0 : i32
    %c0_i32_2 = arith.constant 0 : i32
    return %c0_i32, %c0_i32_0, %c0_i32_1 : i32, i32, i32
  }
  func.func @transform_2(%arg0: i32) -> (i32, i32) {
    %c0_i32 = arith.constant 0 : i32
    %c0_i32_0 = arith.constant 0 : i32
    %c0_i32_1 = arith.constant 0 : i32
    return %c0_i32, %c0_i32_0 : i32, i32
  }
  func.func @transform_3(%arg0: i32) -> (i32, i32, i32, i32) {
    %c0_i32 = arith.constant 0 : i32
    %c0_i32_0 = arith.constant 0 : i32
    %c0_i32_1 = arith.constant 0 : i32
    %c0_i32_2 = arith.constant 0 : i32
    return %arg0, %c0_i32, %c0_i32_0, %c0_i32_1 : i32, i32, i32, i32
  }
}

module attributes {stable_mosaic.version = 11 : i64} {
  func.func @_pool_unpool_kernel(%arg0: i32, %arg1: memref<1x20x10x256xbf16, #tpu.memory_space<vmem>>, %arg2: memref<1x20x10x256xbf16, #tpu.memory_space<vmem>>) attributes {dimension_semantics = [#tpu.dimension_semantics<parallel>], iteration_bounds = array<i64: 2>, scalar_prefetch = 0 : i64, scratch_operands = 0 : i64, tpu.core_type = #tpu.core_type<tc>, window_params = [{transform_indices = @transform_0, window_bounds = array<i64: 1, 20, 10, 256>}, {transform_indices = @transform_1, window_bounds = array<i64: 1, 20, 10, 256>}]} {
    %c0_i32 = arith.constant 0 : i32
    %c10_i32 = arith.constant 10 : i32
    %0 = arith.addi %c0_i32, %c10_i32 : i32
    %c1_i32 = arith.constant 1 : i32
    scf.for %arg3 = %c0_i32 to %0 step %c1_i32  : i32 {
      %c2_i32 = arith.constant 2 : i32
      %1 = arith.muli %c2_i32, %arg3 : i32
      %c0 = arith.constant 0 : index
      %2 = arith.index_cast %1 : i32 to index
      %c0_1 = arith.constant 0 : index
      %c0_2 = arith.constant 0 : index
      %3 = vector.load %arg1[%c0, %2, %c0_1, %c0_2] : memref<1x20x10x256xbf16, #tpu.memory_space<vmem>>, vector<1x1x10x256xbf16>
      %4 = vector.shape_cast %3 : vector<1x1x10x256xbf16> to vector<10x256xbf16>
      %c2_i32_3 = arith.constant 2 : i32
      %5 = arith.muli %c2_i32_3, %arg3 : i32
      %c1_i32_4 = arith.constant 1 : i32
      %6 = arith.addi %5, %c1_i32_4 : i32
      %c0_5 = arith.constant 0 : index
      %7 = arith.index_cast %6 : i32 to index
      %c0_6 = arith.constant 0 : index
      %c0_7 = arith.constant 0 : index
      %8 = vector.load %arg1[%c0_5, %7, %c0_6, %c0_7] : memref<1x20x10x256xbf16, #tpu.memory_space<vmem>>, vector<1x1x10x256xbf16>
      %9 = vector.shape_cast %8 : vector<1x1x10x256xbf16> to vector<10x256xbf16>
      %10 = vector.extract_strided_slice %4 {offsets = [0, 0], sizes = [10, 128], strides = [1, 1]} : vector<10x256xbf16> to vector<10x128xbf16>
      %11 = vector.extract_strided_slice %4 {offsets = [0, 128], sizes = [10, 128], strides = [1, 1]} : vector<10x256xbf16> to vector<10x128xbf16>
      %12 = vector.extract_strided_slice %9 {offsets = [0, 0], sizes = [10, 128], strides = [1, 1]} : vector<10x256xbf16> to vector<10x128xbf16>
      %13 = vector.extract_strided_slice %9 {offsets = [0, 128], sizes = [10, 128], strides = [1, 1]} : vector<10x256xbf16> to vector<10x128xbf16>
      %14 = arith.maximumf %10, %11 : vector<10x128xbf16>
      %15 = arith.maximumf %12, %13 : vector<10x128xbf16>
      %16 = arith.maximumf %14, %15 : vector<10x128xbf16>
      %17 = arith.cmpf oeq, %10, %16 : vector<10x128xbf16>
      %18 = arith.cmpf oeq, %11, %16 : vector<10x128xbf16>
      %cst = arith.constant dense<true> : vector<10x128xi1>
      %19 = arith.xori %17, %cst : vector<10x128xi1>
      %20 = arith.andi %18, %19 : vector<10x128xi1>
      %21 = arith.cmpf oeq, %12, %16 : vector<10x128xbf16>
      %22 = arith.ori %17, %20 : vector<10x128xi1>
      %cst_8 = arith.constant dense<true> : vector<10x128xi1>
      %23 = arith.xori %22, %cst_8 : vector<10x128xi1>
      %24 = arith.andi %21, %23 : vector<10x128xi1>
      %25 = arith.cmpf oeq, %13, %16 : vector<10x128xbf16>
      %26 = arith.ori %17, %20 : vector<10x128xi1>
      %27 = arith.ori %26, %24 : vector<10x128xi1>
      %cst_9 = arith.constant dense<true> : vector<10x128xi1>
      %28 = arith.xori %27, %cst_9 : vector<10x128xi1>
      %29 = arith.andi %25, %28 : vector<10x128xi1>
      %cst_10 = arith.constant 0.000000e+00 : bf16
      %30 = vector.broadcast %cst_10 : bf16 to vector<10x128xbf16>
      %31 = arith.select %17, %10, %30 : vector<10x128xi1>, vector<10x128xbf16>
      %32 = arith.select %20, %11, %30 : vector<10x128xi1>, vector<10x128xbf16>
      %33 = tpu.concatenate %31, %32 in 1 : vector<10x128xbf16>, vector<10x128xbf16> -> vector<10x256xbf16>
      %c2_i32_11 = arith.constant 2 : i32
      %34 = arith.muli %c2_i32_11, %arg3 : i32
      %c0_12 = arith.constant 0 : index
      %35 = arith.index_cast %34 : i32 to index
      %c0_13 = arith.constant 0 : index
      %c0_14 = arith.constant 0 : index
      %36 = vector.load %arg2[%c0_12, %35, %c0_13, %c0_14] : memref<1x20x10x256xbf16, #tpu.memory_space<vmem>>, vector<1x1x10x256xbf16>
      %37 = vector.shape_cast %36 : vector<1x1x10x256xbf16> to vector<10x256xbf16>
      %38 = vector.shape_cast %33 : vector<10x256xbf16> to vector<1x1x10x256xbf16>
      tpu.vector_store %arg2[%c0_12, %35, %c0_13, %c0_14], %38 {strides = array<i32>} : memref<1x20x10x256xbf16, #tpu.memory_space<vmem>>, vector<1x1x10x256xbf16>,
      %39 = arith.select %24, %12, %30 : vector<10x128xi1>, vector<10x128xbf16>
      %40 = arith.select %29, %13, %30 : vector<10x128xi1>, vector<10x128xbf16>
      %41 = tpu.concatenate %39, %40 in 1 : vector<10x128xbf16>, vector<10x128xbf16> -> vector<10x256xbf16>
      %c2_i32_15 = arith.constant 2 : i32
      %42 = arith.muli %c2_i32_15, %arg3 : i32
      %c1_i32_16 = arith.constant 1 : i32
      %43 = arith.addi %42, %c1_i32_16 : i32
      %c0_17 = arith.constant 0 : index
      %44 = arith.index_cast %43 : i32 to index
      %c0_18 = arith.constant 0 : index
      %c0_19 = arith.constant 0 : index
      %45 = vector.load %arg2[%c0_17, %44, %c0_18, %c0_19] : memref<1x20x10x256xbf16, #tpu.memory_space<vmem>>, vector<1x1x10x256xbf16>
      %46 = vector.shape_cast %45 : vector<1x1x10x256xbf16> to vector<10x256xbf16>
      %47 = vector.shape_cast %41 : vector<10x256xbf16> to vector<1x1x10x256xbf16>
      tpu.vector_store %arg2[%c0_17, %44, %c0_18, %c0_19], %47 {strides = array<i32>} : memref<1x20x10x256xbf16, #tpu.memory_space<vmem>>, vector<1x1x10x256xbf16>,
    }
    %c10_i32_0 = arith.constant 10 : i32
    return
  }
  func.func @transform_0(%arg0: i32) -> (i32, i32, i32, i32) {
    %c0_i32 = arith.constant 0 : i32
    %c0_i32_0 = arith.constant 0 : i32
    %c0_i32_1 = arith.constant 0 : i32
    %c0_i32_2 = arith.constant 0 : i32
    return %arg0, %c0_i32, %c0_i32_0, %c0_i32_1 : i32, i32, i32, i32
  }
  func.func @transform_1(%arg0: i32) -> (i32, i32, i32, i32) {
    %c0_i32 = arith.constant 0 : i32
    %c0_i32_0 = arith.constant 0 : i32
    %c0_i32_1 = arith.constant 0 : i32
    %c0_i32_2 = arith.constant 0 : i32
    return %arg0, %c0_i32, %c0_i32_0, %c0_i32_1 : i32, i32, i32, i32
  }
}

module attributes {stable_mosaic.version = 11 : i64} {
  func.func @_conv3x3_relu_kernel(%arg0: i32, %arg1: memref<1x20x20x128xbf16, #tpu.memory_space<vmem>>, %arg2: memref<9x128x128xbf16, #tpu.memory_space<vmem>>, %arg3: memref<1x128xf32, #tpu.memory_space<vmem>>, %arg4: memref<1x18x18x128xbf16, #tpu.memory_space<vmem>>) attributes {dimension_semantics = [#tpu.dimension_semantics<parallel>], iteration_bounds = array<i64: 2>, scalar_prefetch = 0 : i64, scratch_operands = 0 : i64, tpu.core_type = #tpu.core_type<tc>, window_params = [{transform_indices = @transform_0, window_bounds = array<i64: 1, 20, 20, 128>}, {pipeline_mode = #tpu.pipeline_mode<synchronous>, transform_indices = @transform_1, window_bounds = array<i64: 9, 128, 128>}, {pipeline_mode = #tpu.pipeline_mode<synchronous>, transform_indices = @transform_2, window_bounds = array<i64: 1, 128>}, {transform_indices = @transform_3, window_bounds = array<i64: 1, 18, 18, 128>}]} {
    %c0 = arith.constant 0 : index
    %c0_0 = arith.constant 0 : index
    %0 = vector.load %arg3[%c0, %c0_0] : memref<1x128xf32, #tpu.memory_space<vmem>>, vector<1x128xf32>
    %c0_i32 = arith.constant 0 : i32
    %c18_i32 = arith.constant 18 : i32
    %1 = arith.addi %c0_i32, %c18_i32 : i32
    %c1_i32 = arith.constant 1 : i32
    scf.for %arg5 = %c0_i32 to %1 step %c1_i32  : i32 {
      %cst = arith.constant 0.000000e+00 : f32
      %2 = vector.broadcast %cst : f32 to vector<18x128xf32>
      %c0_i32_2 = arith.constant 0 : i32
      %3 = arith.addi %arg5, %c0_i32_2 : i32
      %c0_3 = arith.constant 0 : index
      %4 = arith.index_cast %3 : i32 to index
      %c0_4 = arith.constant 0 : index
      %c0_5 = arith.constant 0 : index
      %5 = vector.load %arg1[%c0_3, %4, %c0_4, %c0_5] : memref<1x20x20x128xbf16, #tpu.memory_space<vmem>>, vector<1x1x20x128xbf16>
      %6 = vector.shape_cast %5 : vector<1x1x20x128xbf16> to vector<20x128xbf16>
      %7 = arith.extf %6 : vector<20x128xbf16> to vector<20x128xf32>
      %8 = vector.extract_strided_slice %7 {offsets = [0, 0], sizes = [18, 128], strides = [1, 1]} : vector<20x128xf32> to vector<18x128xf32>
      %9 = arith.truncf %8 : vector<18x128xf32> to vector<18x128xbf16>
      %c0_6 = arith.constant 0 : index
      %c0_7 = arith.constant 0 : index
      %c0_8 = arith.constant 0 : index
      %10 = vector.load %arg2[%c0_6, %c0_7, %c0_8] : memref<9x128x128xbf16, #tpu.memory_space<vmem>>, vector<1x128x128xbf16>
      %11 = vector.shape_cast %10 : vector<1x128x128xbf16> to vector<128x128xbf16>
      %cst_9 = arith.constant dense<0.000000e+00> : vector<18x128xf32>
      %12 = tpu.matmul %9, %11, %cst_9 {dimension_numbers = #tpu.dot_dimension_numbers<[1], [0], [0], [1], [0, 0, 1, 1], [], []>} : vector<18x128xbf16>, vector<128x128xbf16>, vector<18x128xf32> -> vector<18x128xf32>
      %13 = arith.addf %2, %12 : vector<18x128xf32>
      %14 = vector.extract_strided_slice %7 {offsets = [1, 0], sizes = [18, 128], strides = [1, 1]} : vector<20x128xf32> to vector<18x128xf32>
      %15 = arith.truncf %14 : vector<18x128xf32> to vector<18x128xbf16>
      %c1 = arith.constant 1 : index
      %c0_10 = arith.constant 0 : index
      %c0_11 = arith.constant 0 : index
      %16 = vector.load %arg2[%c1, %c0_10, %c0_11] : memref<9x128x128xbf16, #tpu.memory_space<vmem>>, vector<1x128x128xbf16>
      %17 = vector.shape_cast %16 : vector<1x128x128xbf16> to vector<128x128xbf16>
      %cst_12 = arith.constant dense<0.000000e+00> : vector<18x128xf32>
      %18 = tpu.matmul %15, %17, %cst_12 {dimension_numbers = #tpu.dot_dimension_numbers<[1], [0], [0], [1], [0, 0, 1, 1], [], []>} : vector<18x128xbf16>, vector<128x128xbf16>, vector<18x128xf32> -> vector<18x128xf32>
      %19 = arith.addf %13, %18 : vector<18x128xf32>
      %20 = vector.extract_strided_slice %7 {offsets = [2, 0], sizes = [18, 128], strides = [1, 1]} : vector<20x128xf32> to vector<18x128xf32>
      %21 = arith.truncf %20 : vector<18x128xf32> to vector<18x128xbf16>
      %c2 = arith.constant 2 : index
      %c0_13 = arith.constant 0 : index
      %c0_14 = arith.constant 0 : index
      %22 = vector.load %arg2[%c2, %c0_13, %c0_14] : memref<9x128x128xbf16, #tpu.memory_space<vmem>>, vector<1x128x128xbf16>
      %23 = vector.shape_cast %22 : vector<1x128x128xbf16> to vector<128x128xbf16>
      %cst_15 = arith.constant dense<0.000000e+00> : vector<18x128xf32>
      %24 = tpu.matmul %21, %23, %cst_15 {dimension_numbers = #tpu.dot_dimension_numbers<[1], [0], [0], [1], [0, 0, 1, 1], [], []>} : vector<18x128xbf16>, vector<128x128xbf16>, vector<18x128xf32> -> vector<18x128xf32>
      %25 = arith.addf %19, %24 : vector<18x128xf32>
      %c1_i32_16 = arith.constant 1 : i32
      %26 = arith.addi %arg5, %c1_i32_16 : i32
      %c0_17 = arith.constant 0 : index
      %27 = arith.index_cast %26 : i32 to index
      %c0_18 = arith.constant 0 : index
      %c0_19 = arith.constant 0 : index
      %28 = vector.load %arg1[%c0_17, %27, %c0_18, %c0_19] : memref<1x20x20x128xbf16, #tpu.memory_space<vmem>>, vector<1x1x20x128xbf16>
      %29 = vector.shape_cast %28 : vector<1x1x20x128xbf16> to vector<20x128xbf16>
      %30 = arith.extf %29 : vector<20x128xbf16> to vector<20x128xf32>
      %31 = vector.extract_strided_slice %30 {offsets = [0, 0], sizes = [18, 128], strides = [1, 1]} : vector<20x128xf32> to vector<18x128xf32>
      %32 = arith.truncf %31 : vector<18x128xf32> to vector<18x128xbf16>
      %c3 = arith.constant 3 : index
      %c0_20 = arith.constant 0 : index
      %c0_21 = arith.constant 0 : index
      %33 = vector.load %arg2[%c3, %c0_20, %c0_21] : memref<9x128x128xbf16, #tpu.memory_space<vmem>>, vector<1x128x128xbf16>
      %34 = vector.shape_cast %33 : vector<1x128x128xbf16> to vector<128x128xbf16>
      %cst_22 = arith.constant dense<0.000000e+00> : vector<18x128xf32>
      %35 = tpu.matmul %32, %34, %cst_22 {dimension_numbers = #tpu.dot_dimension_numbers<[1], [0], [0], [1], [0, 0, 1, 1], [], []>} : vector<18x128xbf16>, vector<128x128xbf16>, vector<18x128xf32> -> vector<18x128xf32>
      %36 = arith.addf %25, %35 : vector<18x128xf32>
      %37 = vector.extract_strided_slice %30 {offsets = [1, 0], sizes = [18, 128], strides = [1, 1]} : vector<20x128xf32> to vector<18x128xf32>
      %38 = arith.truncf %37 : vector<18x128xf32> to vector<18x128xbf16>
      %c4 = arith.constant 4 : index
      %c0_23 = arith.constant 0 : index
      %c0_24 = arith.constant 0 : index
      %39 = vector.load %arg2[%c4, %c0_23, %c0_24] : memref<9x128x128xbf16, #tpu.memory_space<vmem>>, vector<1x128x128xbf16>
      %40 = vector.shape_cast %39 : vector<1x128x128xbf16> to vector<128x128xbf16>
      %cst_25 = arith.constant dense<0.000000e+00> : vector<18x128xf32>
      %41 = tpu.matmul %38, %40, %cst_25 {dimension_numbers = #tpu.dot_dimension_numbers<[1], [0], [0], [1], [0, 0, 1, 1], [], []>} : vector<18x128xbf16>, vector<128x128xbf16>, vector<18x128xf32> -> vector<18x128xf32>
      %42 = arith.addf %36, %41 : vector<18x128xf32>
      %43 = vector.extract_strided_slice %30 {offsets = [2, 0], sizes = [18, 128], strides = [1, 1]} : vector<20x128xf32> to vector<18x128xf32>
      %44 = arith.truncf %43 : vector<18x128xf32> to vector<18x128xbf16>
      %c5 = arith.constant 5 : index
      %c0_26 = arith.constant 0 : index
      %c0_27 = arith.constant 0 : index
      %45 = vector.load %arg2[%c5, %c0_26, %c0_27] : memref<9x128x128xbf16, #tpu.memory_space<vmem>>, vector<1x128x128xbf16>
      %46 = vector.shape_cast %45 : vector<1x128x128xbf16> to vector<128x128xbf16>
      %cst_28 = arith.constant dense<0.000000e+00> : vector<18x128xf32>
      %47 = tpu.matmul %44, %46, %cst_28 {dimension_numbers = #tpu.dot_dimension_numbers<[1], [0], [0], [1], [0, 0, 1, 1], [], []>} : vector<18x128xbf16>, vector<128x128xbf16>, vector<18x128xf32> -> vector<18x128xf32>
      %48 = arith.addf %42, %47 : vector<18x128xf32>
      %c2_i32 = arith.constant 2 : i32
      %49 = arith.addi %arg5, %c2_i32 : i32
      %c0_29 = arith.constant 0 : index
      %50 = arith.index_cast %49 : i32 to index
      %c0_30 = arith.constant 0 : index
      %c0_31 = arith.constant 0 : index
      %51 = vector.load %arg1[%c0_29, %50, %c0_30, %c0_31] : memref<1x20x20x128xbf16, #tpu.memory_space<vmem>>, vector<1x1x20x128xbf16>
      %52 = vector.shape_cast %51 : vector<1x1x20x128xbf16> to vector<20x128xbf16>
      %53 = arith.extf %52 : vector<20x128xbf16> to vector<20x128xf32>
      %54 = vector.extract_strided_slice %53 {offsets = [0, 0], sizes = [18, 128], strides = [1, 1]} : vector<20x128xf32> to vector<18x128xf32>
      %55 = arith.truncf %54 : vector<18x128xf32> to vector<18x128xbf16>
      %c6 = arith.constant 6 : index
      %c0_32 = arith.constant 0 : index
      %c0_33 = arith.constant 0 : index
      %56 = vector.load %arg2[%c6, %c0_32, %c0_33] : memref<9x128x128xbf16, #tpu.memory_space<vmem>>, vector<1x128x128xbf16>
      %57 = vector.shape_cast %56 : vector<1x128x128xbf16> to vector<128x128xbf16>
      %cst_34 = arith.constant dense<0.000000e+00> : vector<18x128xf32>
      %58 = tpu.matmul %55, %57, %cst_34 {dimension_numbers = #tpu.dot_dimension_numbers<[1], [0], [0], [1], [0, 0, 1, 1], [], []>} : vector<18x128xbf16>, vector<128x128xbf16>, vector<18x128xf32> -> vector<18x128xf32>
      %59 = arith.addf %48, %58 : vector<18x128xf32>
      %60 = vector.extract_strided_slice %53 {offsets = [1, 0], sizes = [18, 128], strides = [1, 1]} : vector<20x128xf32> to vector<18x128xf32>
      %61 = arith.truncf %60 : vector<18x128xf32> to vector<18x128xbf16>
      %c7 = arith.constant 7 : index
      %c0_35 = arith.constant 0 : index
      %c0_36 = arith.constant 0 : index
      %62 = vector.load %arg2[%c7, %c0_35, %c0_36] : memref<9x128x128xbf16, #tpu.memory_space<vmem>>, vector<1x128x128xbf16>
      %63 = vector.shape_cast %62 : vector<1x128x128xbf16> to vector<128x128xbf16>
      %cst_37 = arith.constant dense<0.000000e+00> : vector<18x128xf32>
      %64 = tpu.matmul %61, %63, %cst_37 {dimension_numbers = #tpu.dot_dimension_numbers<[1], [0], [0], [1], [0, 0, 1, 1], [], []>} : vector<18x128xbf16>, vector<128x128xbf16>, vector<18x128xf32> -> vector<18x128xf32>
      %65 = arith.addf %59, %64 : vector<18x128xf32>
      %66 = vector.extract_strided_slice %53 {offsets = [2, 0], sizes = [18, 128], strides = [1, 1]} : vector<20x128xf32> to vector<18x128xf32>
      %67 = arith.truncf %66 : vector<18x128xf32> to vector<18x128xbf16>
      %c8 = arith.constant 8 : index
      %c0_38 = arith.constant 0 : index
      %c0_39 = arith.constant 0 : index
      %68 = vector.load %arg2[%c8, %c0_38, %c0_39] : memref<9x128x128xbf16, #tpu.memory_space<vmem>>, vector<1x128x128xbf16>
      %69 = vector.shape_cast %68 : vector<1x128x128xbf16> to vector<128x128xbf16>
      %cst_40 = arith.constant dense<0.000000e+00> : vector<18x128xf32>
      %70 = tpu.matmul %67, %69, %cst_40 {dimension_numbers = #tpu.dot_dimension_numbers<[1], [0], [0], [1], [0, 0, 1, 1], [], []>} : vector<18x128xbf16>, vector<128x128xbf16>, vector<18x128xf32> -> vector<18x128xf32>
      %71 = arith.addf %65, %70 : vector<18x128xf32>
      %72 = vector.broadcast %0 : vector<1x128xf32> to vector<18x128xf32>
      %73 = arith.addf %71, %72 : vector<18x128xf32>
      %cst_41 = arith.constant 0.000000e+00 : f32
      %74 = vector.broadcast %cst_41 : f32 to vector<18x128xf32>
      %75 = arith.maximumf %73, %74 : vector<18x128xf32>
      %76 = arith.truncf %75 : vector<18x128xf32> to vector<18x128xbf16>
      %c0_42 = arith.constant 0 : index
      %77 = arith.index_cast %arg5 : i32 to index
      %c0_43 = arith.constant 0 : index
      %c0_44 = arith.constant 0 : index
      %78 = vector.load %arg4[%c0_42, %77, %c0_43, %c0_44] : memref<1x18x18x128xbf16, #tpu.memory_space<vmem>>, vector<1x1x18x128xbf16>
      %79 = vector.shape_cast %78 : vector<1x1x18x128xbf16> to vector<18x128xbf16>
      %80 = vector.shape_cast %76 : vector<18x128xbf16> to vector<1x1x18x128xbf16>
      tpu.vector_store %arg4[%c0_42, %77, %c0_43, %c0_44], %80 {strides = array<i32>} : memref<1x18x18x128xbf16, #tpu.memory_space<vmem>>, vector<1x1x18x128xbf16>,
    }
    %c18_i32_1 = arith.constant 18 : i32
    return
  }
  func.func @transform_0(%arg0: i32) -> (i32, i32, i32, i32) {
    %c0_i32 = arith.constant 0 : i32
    %c0_i32_0 = arith.constant 0 : i32
    %c0_i32_1 = arith.constant 0 : i32
    %c0_i32_2 = arith.constant 0 : i32
    return %arg0, %c0_i32, %c0_i32_0, %c0_i32_1 : i32, i32, i32, i32
  }
  func.func @transform_1(%arg0: i32) -> (i32, i32, i32) {
    %c0_i32 = arith.constant 0 : i32
    %c0_i32_0 = arith.constant 0 : i32
    %c0_i32_1 = arith.constant 0 : i32
    %c0_i32_2 = arith.constant 0 : i32
    return %c0_i32, %c0_i32_0, %c0_i32_1 : i32, i32, i32
  }
  func.func @transform_2(%arg0: i32) -> (i32, i32) {
    %c0_i32 = arith.constant 0 : i32
    %c0_i32_0 = arith.constant 0 : i32
    %c0_i32_1 = arith.constant 0 : i32
    return %c0_i32, %c0_i32_0 : i32, i32
  }
  func.func @transform_3(%arg0: i32) -> (i32, i32, i32, i32) {
    %c0_i32 = arith.constant 0 : i32
    %c0_i32_0 = arith.constant 0 : i32
    %c0_i32_1 = arith.constant 0 : i32
    %c0_i32_2 = arith.constant 0 : i32
    return %arg0, %c0_i32, %c0_i32_0, %c0_i32_1 : i32, i32, i32, i32
  }
}

module attributes {stable_mosaic.version = 11 : i64} {
  func.func @_conv3x3_relu_kernel(%arg0: i32, %arg1: memref<1x18x18x128xbf16, #tpu.memory_space<vmem>>, %arg2: memref<9x128x128xbf16, #tpu.memory_space<vmem>>, %arg3: memref<1x128xf32, #tpu.memory_space<vmem>>, %arg4: memref<1x16x16x128xbf16, #tpu.memory_space<vmem>>) attributes {dimension_semantics = [#tpu.dimension_semantics<parallel>], iteration_bounds = array<i64: 2>, scalar_prefetch = 0 : i64, scratch_operands = 0 : i64, tpu.core_type = #tpu.core_type<tc>, window_params = [{transform_indices = @transform_0, window_bounds = array<i64: 1, 18, 18, 128>}, {pipeline_mode = #tpu.pipeline_mode<synchronous>, transform_indices = @transform_1, window_bounds = array<i64: 9, 128, 128>}, {pipeline_mode = #tpu.pipeline_mode<synchronous>, transform_indices = @transform_2, window_bounds = array<i64: 1, 128>}, {transform_indices = @transform_3, window_bounds = array<i64: 1, 16, 16, 128>}]} {
    %c0 = arith.constant 0 : index
    %c0_0 = arith.constant 0 : index
    %0 = vector.load %arg3[%c0, %c0_0] : memref<1x128xf32, #tpu.memory_space<vmem>>, vector<1x128xf32>
    %c0_i32 = arith.constant 0 : i32
    %c16_i32 = arith.constant 16 : i32
    %1 = arith.addi %c0_i32, %c16_i32 : i32
    %c1_i32 = arith.constant 1 : i32
    scf.for %arg5 = %c0_i32 to %1 step %c1_i32  : i32 {
      %cst = arith.constant 0.000000e+00 : f32
      %2 = vector.broadcast %cst : f32 to vector<16x128xf32>
      %c0_i32_2 = arith.constant 0 : i32
      %3 = arith.addi %arg5, %c0_i32_2 : i32
      %c0_3 = arith.constant 0 : index
      %4 = arith.index_cast %3 : i32 to index
      %c0_4 = arith.constant 0 : index
      %c0_5 = arith.constant 0 : index
      %5 = vector.load %arg1[%c0_3, %4, %c0_4, %c0_5] : memref<1x18x18x128xbf16, #tpu.memory_space<vmem>>, vector<1x1x18x128xbf16>
      %6 = vector.shape_cast %5 : vector<1x1x18x128xbf16> to vector<18x128xbf16>
      %7 = arith.extf %6 : vector<18x128xbf16> to vector<18x128xf32>
      %8 = vector.extract_strided_slice %7 {offsets = [0, 0], sizes = [16, 128], strides = [1, 1]} : vector<18x128xf32> to vector<16x128xf32>
      %9 = arith.truncf %8 : vector<16x128xf32> to vector<16x128xbf16>
      %c0_6 = arith.constant 0 : index
      %c0_7 = arith.constant 0 : index
      %c0_8 = arith.constant 0 : index
      %10 = vector.load %arg2[%c0_6, %c0_7, %c0_8] : memref<9x128x128xbf16, #tpu.memory_space<vmem>>, vector<1x128x128xbf16>
      %11 = vector.shape_cast %10 : vector<1x128x128xbf16> to vector<128x128xbf16>
      %cst_9 = arith.constant dense<0.000000e+00> : vector<16x128xf32>
      %12 = tpu.matmul %9, %11, %cst_9 {dimension_numbers = #tpu.dot_dimension_numbers<[1], [0], [0], [1], [0, 0, 1, 1], [], []>} : vector<16x128xbf16>, vector<128x128xbf16>, vector<16x128xf32> -> vector<16x128xf32>
      %13 = arith.addf %2, %12 : vector<16x128xf32>
      %14 = vector.extract_strided_slice %7 {offsets = [1, 0], sizes = [16, 128], strides = [1, 1]} : vector<18x128xf32> to vector<16x128xf32>
      %15 = arith.truncf %14 : vector<16x128xf32> to vector<16x128xbf16>
      %c1 = arith.constant 1 : index
      %c0_10 = arith.constant 0 : index
      %c0_11 = arith.constant 0 : index
      %16 = vector.load %arg2[%c1, %c0_10, %c0_11] : memref<9x128x128xbf16, #tpu.memory_space<vmem>>, vector<1x128x128xbf16>
      %17 = vector.shape_cast %16 : vector<1x128x128xbf16> to vector<128x128xbf16>
      %cst_12 = arith.constant dense<0.000000e+00> : vector<16x128xf32>
      %18 = tpu.matmul %15, %17, %cst_12 {dimension_numbers = #tpu.dot_dimension_numbers<[1], [0], [0], [1], [0, 0, 1, 1], [], []>} : vector<16x128xbf16>, vector<128x128xbf16>, vector<16x128xf32> -> vector<16x128xf32>
      %19 = arith.addf %13, %18 : vector<16x128xf32>
      %20 = vector.extract_strided_slice %7 {offsets = [2, 0], sizes = [16, 128], strides = [1, 1]} : vector<18x128xf32> to vector<16x128xf32>
      %21 = arith.truncf %20 : vector<16x128xf32> to vector<16x128xbf16>
      %c2 = arith.constant 2 : index
      %c0_13 = arith.constant 0 : index
      %c0_14 = arith.constant 0 : index
      %22 = vector.load %arg2[%c2, %c0_13, %c0_14] : memref<9x128x128xbf16, #tpu.memory_space<vmem>>, vector<1x128x128xbf16>
      %23 = vector.shape_cast %22 : vector<1x128x128xbf16> to vector<128x128xbf16>
      %cst_15 = arith.constant dense<0.000000e+00> : vector<16x128xf32>
      %24 = tpu.matmul %21, %23, %cst_15 {dimension_numbers = #tpu.dot_dimension_numbers<[1], [0], [0], [1], [0, 0, 1, 1], [], []>} : vector<16x128xbf16>, vector<128x128xbf16>, vector<16x128xf32> -> vector<16x128xf32>
      %25 = arith.addf %19, %24 : vector<16x128xf32>
      %c1_i32_16 = arith.constant 1 : i32
      %26 = arith.addi %arg5, %c1_i32_16 : i32
      %c0_17 = arith.constant 0 : index
      %27 = arith.index_cast %26 : i32 to index
      %c0_18 = arith.constant 0 : index
      %c0_19 = arith.constant 0 : index
      %28 = vector.load %arg1[%c0_17, %27, %c0_18, %c0_19] : memref<1x18x18x128xbf16, #tpu.memory_space<vmem>>, vector<1x1x18x128xbf16>
      %29 = vector.shape_cast %28 : vector<1x1x18x128xbf16> to vector<18x128xbf16>
      %30 = arith.extf %29 : vector<18x128xbf16> to vector<18x128xf32>
      %31 = vector.extract_strided_slice %30 {offsets = [0, 0], sizes = [16, 128], strides = [1, 1]} : vector<18x128xf32> to vector<16x128xf32>
      %32 = arith.truncf %31 : vector<16x128xf32> to vector<16x128xbf16>
      %c3 = arith.constant 3 : index
      %c0_20 = arith.constant 0 : index
      %c0_21 = arith.constant 0 : index
      %33 = vector.load %arg2[%c3, %c0_20, %c0_21] : memref<9x128x128xbf16, #tpu.memory_space<vmem>>, vector<1x128x128xbf16>
      %34 = vector.shape_cast %33 : vector<1x128x128xbf16> to vector<128x128xbf16>
      %cst_22 = arith.constant dense<0.000000e+00> : vector<16x128xf32>
      %35 = tpu.matmul %32, %34, %cst_22 {dimension_numbers = #tpu.dot_dimension_numbers<[1], [0], [0], [1], [0, 0, 1, 1], [], []>} : vector<16x128xbf16>, vector<128x128xbf16>, vector<16x128xf32> -> vector<16x128xf32>
      %36 = arith.addf %25, %35 : vector<16x128xf32>
      %37 = vector.extract_strided_slice %30 {offsets = [1, 0], sizes = [16, 128], strides = [1, 1]} : vector<18x128xf32> to vector<16x128xf32>
      %38 = arith.truncf %37 : vector<16x128xf32> to vector<16x128xbf16>
      %c4 = arith.constant 4 : index
      %c0_23 = arith.constant 0 : index
      %c0_24 = arith.constant 0 : index
      %39 = vector.load %arg2[%c4, %c0_23, %c0_24] : memref<9x128x128xbf16, #tpu.memory_space<vmem>>, vector<1x128x128xbf16>
      %40 = vector.shape_cast %39 : vector<1x128x128xbf16> to vector<128x128xbf16>
      %cst_25 = arith.constant dense<0.000000e+00> : vector<16x128xf32>
      %41 = tpu.matmul %38, %40, %cst_25 {dimension_numbers = #tpu.dot_dimension_numbers<[1], [0], [0], [1], [0, 0, 1, 1], [], []>} : vector<16x128xbf16>, vector<128x128xbf16>, vector<16x128xf32> -> vector<16x128xf32>
      %42 = arith.addf %36, %41 : vector<16x128xf32>
      %43 = vector.extract_strided_slice %30 {offsets = [2, 0], sizes = [16, 128], strides = [1, 1]} : vector<18x128xf32> to vector<16x128xf32>
      %44 = arith.truncf %43 : vector<16x128xf32> to vector<16x128xbf16>
      %c5 = arith.constant 5 : index
      %c0_26 = arith.constant 0 : index
      %c0_27 = arith.constant 0 : index
      %45 = vector.load %arg2[%c5, %c0_26, %c0_27] : memref<9x128x128xbf16, #tpu.memory_space<vmem>>, vector<1x128x128xbf16>
      %46 = vector.shape_cast %45 : vector<1x128x128xbf16> to vector<128x128xbf16>
      %cst_28 = arith.constant dense<0.000000e+00> : vector<16x128xf32>
      %47 = tpu.matmul %44, %46, %cst_28 {dimension_numbers = #tpu.dot_dimension_numbers<[1], [0], [0], [1], [0, 0, 1, 1], [], []>} : vector<16x128xbf16>, vector<128x128xbf16>, vector<16x128xf32> -> vector<16x128xf32>
      %48 = arith.addf %42, %47 : vector<16x128xf32>
      %c2_i32 = arith.constant 2 : i32
      %49 = arith.addi %arg5, %c2_i32 : i32
      %c0_29 = arith.constant 0 : index
      %50 = arith.index_cast %49 : i32 to index
      %c0_30 = arith.constant 0 : index
      %c0_31 = arith.constant 0 : index
      %51 = vector.load %arg1[%c0_29, %50, %c0_30, %c0_31] : memref<1x18x18x128xbf16, #tpu.memory_space<vmem>>, vector<1x1x18x128xbf16>
      %52 = vector.shape_cast %51 : vector<1x1x18x128xbf16> to vector<18x128xbf16>
      %53 = arith.extf %52 : vector<18x128xbf16> to vector<18x128xf32>
      %54 = vector.extract_strided_slice %53 {offsets = [0, 0], sizes = [16, 128], strides = [1, 1]} : vector<18x128xf32> to vector<16x128xf32>
      %55 = arith.truncf %54 : vector<16x128xf32> to vector<16x128xbf16>
      %c6 = arith.constant 6 : index
      %c0_32 = arith.constant 0 : index
      %c0_33 = arith.constant 0 : index
      %56 = vector.load %arg2[%c6, %c0_32, %c0_33] : memref<9x128x128xbf16, #tpu.memory_space<vmem>>, vector<1x128x128xbf16>
      %57 = vector.shape_cast %56 : vector<1x128x128xbf16> to vector<128x128xbf16>
      %cst_34 = arith.constant dense<0.000000e+00> : vector<16x128xf32>
      %58 = tpu.matmul %55, %57, %cst_34 {dimension_numbers = #tpu.dot_dimension_numbers<[1], [0], [0], [1], [0, 0, 1, 1], [], []>} : vector<16x128xbf16>, vector<128x128xbf16>, vector<16x128xf32> -> vector<16x128xf32>
      %59 = arith.addf %48, %58 : vector<16x128xf32>
      %60 = vector.extract_strided_slice %53 {offsets = [1, 0], sizes = [16, 128], strides = [1, 1]} : vector<18x128xf32> to vector<16x128xf32>
      %61 = arith.truncf %60 : vector<16x128xf32> to vector<16x128xbf16>
      %c7 = arith.constant 7 : index
      %c0_35 = arith.constant 0 : index
      %c0_36 = arith.constant 0 : index
      %62 = vector.load %arg2[%c7, %c0_35, %c0_36] : memref<9x128x128xbf16, #tpu.memory_space<vmem>>, vector<1x128x128xbf16>
      %63 = vector.shape_cast %62 : vector<1x128x128xbf16> to vector<128x128xbf16>
      %cst_37 = arith.constant dense<0.000000e+00> : vector<16x128xf32>
      %64 = tpu.matmul %61, %63, %cst_37 {dimension_numbers = #tpu.dot_dimension_numbers<[1], [0], [0], [1], [0, 0, 1, 1], [], []>} : vector<16x128xbf16>, vector<128x128xbf16>, vector<16x128xf32> -> vector<16x128xf32>
      %65 = arith.addf %59, %64 : vector<16x128xf32>
      %66 = vector.extract_strided_slice %53 {offsets = [2, 0], sizes = [16, 128], strides = [1, 1]} : vector<18x128xf32> to vector<16x128xf32>
      %67 = arith.truncf %66 : vector<16x128xf32> to vector<16x128xbf16>
      %c8 = arith.constant 8 : index
      %c0_38 = arith.constant 0 : index
      %c0_39 = arith.constant 0 : index
      %68 = vector.load %arg2[%c8, %c0_38, %c0_39] : memref<9x128x128xbf16, #tpu.memory_space<vmem>>, vector<1x128x128xbf16>
      %69 = vector.shape_cast %68 : vector<1x128x128xbf16> to vector<128x128xbf16>
      %cst_40 = arith.constant dense<0.000000e+00> : vector<16x128xf32>
      %70 = tpu.matmul %67, %69, %cst_40 {dimension_numbers = #tpu.dot_dimension_numbers<[1], [0], [0], [1], [0, 0, 1, 1], [], []>} : vector<16x128xbf16>, vector<128x128xbf16>, vector<16x128xf32> -> vector<16x128xf32>
      %71 = arith.addf %65, %70 : vector<16x128xf32>
      %72 = vector.broadcast %0 : vector<1x128xf32> to vector<16x128xf32>
      %73 = arith.addf %71, %72 : vector<16x128xf32>
      %cst_41 = arith.constant 0.000000e+00 : f32
      %74 = vector.broadcast %cst_41 : f32 to vector<16x128xf32>
      %75 = arith.maximumf %73, %74 : vector<16x128xf32>
      %76 = arith.truncf %75 : vector<16x128xf32> to vector<16x128xbf16>
      %c0_42 = arith.constant 0 : index
      %77 = arith.index_cast %arg5 : i32 to index
      %c0_43 = arith.constant 0 : index
      %c0_44 = arith.constant 0 : index
      %78 = vector.load %arg4[%c0_42, %77, %c0_43, %c0_44] : memref<1x16x16x128xbf16, #tpu.memory_space<vmem>>, vector<1x1x16x128xbf16>
      %79 = vector.shape_cast %78 : vector<1x1x16x128xbf16> to vector<16x128xbf16>
      %80 = vector.shape_cast %76 : vector<16x128xbf16> to vector<1x1x16x128xbf16>
      tpu.vector_store %arg4[%c0_42, %77, %c0_43, %c0_44], %80 {strides = array<i32>} : memref<1x16x16x128xbf16, #tpu.memory_space<vmem>>, vector<1x1x16x128xbf16>,
    }
    %c16_i32_1 = arith.constant 16 : i32
    return
  }
  func.func @transform_0(%arg0: i32) -> (i32, i32, i32, i32) {
    %c0_i32 = arith.constant 0 : i32
    %c0_i32_0 = arith.constant 0 : i32
    %c0_i32_1 = arith.constant 0 : i32
    %c0_i32_2 = arith.constant 0 : i32
    return %arg0, %c0_i32, %c0_i32_0, %c0_i32_1 : i32, i32, i32, i32
  }
  func.func @transform_1(%arg0: i32) -> (i32, i32, i32) {
    %c0_i32 = arith.constant 0 : i32
    %c0_i32_0 = arith.constant 0 : i32
    %c0_i32_1 = arith.constant 0 : i32
    %c0_i32_2 = arith.constant 0 : i32
    return %c0_i32, %c0_i32_0, %c0_i32_1 : i32, i32, i32
  }
  func.func @transform_2(%arg0: i32) -> (i32, i32) {
    %c0_i32 = arith.constant 0 : i32
    %c0_i32_0 = arith.constant 0 : i32
    %c0_i32_1 = arith.constant 0 : i32
    return %c0_i32, %c0_i32_0 : i32, i32
  }
  func.func @transform_3(%arg0: i32) -> (i32, i32, i32, i32) {
    %c0_i32 = arith.constant 0 : i32
    %c0_i32_0 = arith.constant 0 : i32
    %c0_i32_1 = arith.constant 0 : i32
    %c0_i32_2 = arith.constant 0 : i32
    return %arg0, %c0_i32, %c0_i32_0, %c0_i32_1 : i32, i32, i32, i32
  }
}

module attributes {stable_mosaic.version = 11 : i64} {
  func.func @_pool_unpool_kernel(%arg0: i32, %arg1: memref<1x16x8x256xbf16, #tpu.memory_space<vmem>>, %arg2: memref<1x16x8x256xbf16, #tpu.memory_space<vmem>>) attributes {dimension_semantics = [#tpu.dimension_semantics<parallel>], iteration_bounds = array<i64: 2>, scalar_prefetch = 0 : i64, scratch_operands = 0 : i64, tpu.core_type = #tpu.core_type<tc>, window_params = [{transform_indices = @transform_0, window_bounds = array<i64: 1, 16, 8, 256>}, {transform_indices = @transform_1, window_bounds = array<i64: 1, 16, 8, 256>}]} {
    %c0_i32 = arith.constant 0 : i32
    %c8_i32 = arith.constant 8 : i32
    %0 = arith.addi %c0_i32, %c8_i32 : i32
    %c1_i32 = arith.constant 1 : i32
    scf.for %arg3 = %c0_i32 to %0 step %c1_i32  : i32 {
      %c2_i32 = arith.constant 2 : i32
      %1 = arith.muli %c2_i32, %arg3 : i32
      %c0 = arith.constant 0 : index
      %2 = arith.index_cast %1 : i32 to index
      %c0_1 = arith.constant 0 : index
      %c0_2 = arith.constant 0 : index
      %3 = vector.load %arg1[%c0, %2, %c0_1, %c0_2] : memref<1x16x8x256xbf16, #tpu.memory_space<vmem>>, vector<1x1x8x256xbf16>
      %4 = vector.shape_cast %3 : vector<1x1x8x256xbf16> to vector<8x256xbf16>
      %c2_i32_3 = arith.constant 2 : i32
      %5 = arith.muli %c2_i32_3, %arg3 : i32
      %c1_i32_4 = arith.constant 1 : i32
      %6 = arith.addi %5, %c1_i32_4 : i32
      %c0_5 = arith.constant 0 : index
      %7 = arith.index_cast %6 : i32 to index
      %c0_6 = arith.constant 0 : index
      %c0_7 = arith.constant 0 : index
      %8 = vector.load %arg1[%c0_5, %7, %c0_6, %c0_7] : memref<1x16x8x256xbf16, #tpu.memory_space<vmem>>, vector<1x1x8x256xbf16>
      %9 = vector.shape_cast %8 : vector<1x1x8x256xbf16> to vector<8x256xbf16>
      %10 = vector.extract_strided_slice %4 {offsets = [0, 0], sizes = [8, 128], strides = [1, 1]} : vector<8x256xbf16> to vector<8x128xbf16>
      %11 = vector.extract_strided_slice %4 {offsets = [0, 128], sizes = [8, 128], strides = [1, 1]} : vector<8x256xbf16> to vector<8x128xbf16>
      %12 = vector.extract_strided_slice %9 {offsets = [0, 0], sizes = [8, 128], strides = [1, 1]} : vector<8x256xbf16> to vector<8x128xbf16>
      %13 = vector.extract_strided_slice %9 {offsets = [0, 128], sizes = [8, 128], strides = [1, 1]} : vector<8x256xbf16> to vector<8x128xbf16>
      %14 = arith.maximumf %10, %11 : vector<8x128xbf16>
      %15 = arith.maximumf %12, %13 : vector<8x128xbf16>
      %16 = arith.maximumf %14, %15 : vector<8x128xbf16>
      %17 = arith.cmpf oeq, %10, %16 : vector<8x128xbf16>
      %18 = arith.cmpf oeq, %11, %16 : vector<8x128xbf16>
      %cst = arith.constant dense<true> : vector<8x128xi1>
      %19 = arith.xori %17, %cst : vector<8x128xi1>
      %20 = arith.andi %18, %19 : vector<8x128xi1>
      %21 = arith.cmpf oeq, %12, %16 : vector<8x128xbf16>
      %22 = arith.ori %17, %20 : vector<8x128xi1>
      %cst_8 = arith.constant dense<true> : vector<8x128xi1>
      %23 = arith.xori %22, %cst_8 : vector<8x128xi1>
      %24 = arith.andi %21, %23 : vector<8x128xi1>
      %25 = arith.cmpf oeq, %13, %16 : vector<8x128xbf16>
      %26 = arith.ori %17, %20 : vector<8x128xi1>
      %27 = arith.ori %26, %24 : vector<8x128xi1>
      %cst_9 = arith.constant dense<true> : vector<8x128xi1>
      %28 = arith.xori %27, %cst_9 : vector<8x128xi1>
      %29 = arith.andi %25, %28 : vector<8x128xi1>
      %cst_10 = arith.constant 0.000000e+00 : bf16
      %30 = vector.broadcast %cst_10 : bf16 to vector<8x128xbf16>
      %31 = arith.select %17, %10, %30 : vector<8x128xi1>, vector<8x128xbf16>
      %32 = arith.select %20, %11, %30 : vector<8x128xi1>, vector<8x128xbf16>
      %33 = tpu.concatenate %31, %32 in 1 : vector<8x128xbf16>, vector<8x128xbf16> -> vector<8x256xbf16>
      %c2_i32_11 = arith.constant 2 : i32
      %34 = arith.muli %c2_i32_11, %arg3 : i32
      %c0_12 = arith.constant 0 : index
      %35 = arith.index_cast %34 : i32 to index
      %c0_13 = arith.constant 0 : index
      %c0_14 = arith.constant 0 : index
      %36 = vector.load %arg2[%c0_12, %35, %c0_13, %c0_14] : memref<1x16x8x256xbf16, #tpu.memory_space<vmem>>, vector<1x1x8x256xbf16>
      %37 = vector.shape_cast %36 : vector<1x1x8x256xbf16> to vector<8x256xbf16>
      %38 = vector.shape_cast %33 : vector<8x256xbf16> to vector<1x1x8x256xbf16>
      tpu.vector_store %arg2[%c0_12, %35, %c0_13, %c0_14], %38 {strides = array<i32>} : memref<1x16x8x256xbf16, #tpu.memory_space<vmem>>, vector<1x1x8x256xbf16>,
      %39 = arith.select %24, %12, %30 : vector<8x128xi1>, vector<8x128xbf16>
      %40 = arith.select %29, %13, %30 : vector<8x128xi1>, vector<8x128xbf16>
      %41 = tpu.concatenate %39, %40 in 1 : vector<8x128xbf16>, vector<8x128xbf16> -> vector<8x256xbf16>
      %c2_i32_15 = arith.constant 2 : i32
      %42 = arith.muli %c2_i32_15, %arg3 : i32
      %c1_i32_16 = arith.constant 1 : i32
      %43 = arith.addi %42, %c1_i32_16 : i32
      %c0_17 = arith.constant 0 : index
      %44 = arith.index_cast %43 : i32 to index
      %c0_18 = arith.constant 0 : index
      %c0_19 = arith.constant 0 : index
      %45 = vector.load %arg2[%c0_17, %44, %c0_18, %c0_19] : memref<1x16x8x256xbf16, #tpu.memory_space<vmem>>, vector<1x1x8x256xbf16>
      %46 = vector.shape_cast %45 : vector<1x1x8x256xbf16> to vector<8x256xbf16>
      %47 = vector.shape_cast %41 : vector<8x256xbf16> to vector<1x1x8x256xbf16>
      tpu.vector_store %arg2[%c0_17, %44, %c0_18, %c0_19], %47 {strides = array<i32>} : memref<1x16x8x256xbf16, #tpu.memory_space<vmem>>, vector<1x1x8x256xbf16>,
    }
    %c8_i32_0 = arith.constant 8 : i32
    return
  }
  func.func @transform_0(%arg0: i32) -> (i32, i32, i32, i32) {
    %c0_i32 = arith.constant 0 : i32
    %c0_i32_0 = arith.constant 0 : i32
    %c0_i32_1 = arith.constant 0 : i32
    %c0_i32_2 = arith.constant 0 : i32
    return %arg0, %c0_i32, %c0_i32_0, %c0_i32_1 : i32, i32, i32, i32
  }
  func.func @transform_1(%arg0: i32) -> (i32, i32, i32, i32) {
    %c0_i32 = arith.constant 0 : i32
    %c0_i32_0 = arith.constant 0 : i32
    %c0_i32_1 = arith.constant 0 : i32
    %c0_i32_2 = arith.constant 0 : i32
    return %arg0, %c0_i32, %c0_i32_0, %c0_i32_1 : i32, i32, i32, i32
  }
}

module attributes {stable_mosaic.version = 11 : i64} {
  func.func @_conv3x3_relu_kernel(%arg0: i32, %arg1: memref<1x16x16x128xbf16, #tpu.memory_space<vmem>>, %arg2: memref<9x128x128xbf16, #tpu.memory_space<vmem>>, %arg3: memref<1x128xf32, #tpu.memory_space<vmem>>, %arg4: memref<1x14x14x128xbf16, #tpu.memory_space<vmem>>) attributes {dimension_semantics = [#tpu.dimension_semantics<parallel>], iteration_bounds = array<i64: 2>, scalar_prefetch = 0 : i64, scratch_operands = 0 : i64, tpu.core_type = #tpu.core_type<tc>, window_params = [{transform_indices = @transform_0, window_bounds = array<i64: 1, 16, 16, 128>}, {pipeline_mode = #tpu.pipeline_mode<synchronous>, transform_indices = @transform_1, window_bounds = array<i64: 9, 128, 128>}, {pipeline_mode = #tpu.pipeline_mode<synchronous>, transform_indices = @transform_2, window_bounds = array<i64: 1, 128>}, {transform_indices = @transform_3, window_bounds = array<i64: 1, 14, 14, 128>}]} {
    %c0 = arith.constant 0 : index
    %c0_0 = arith.constant 0 : index
    %0 = vector.load %arg3[%c0, %c0_0] : memref<1x128xf32, #tpu.memory_space<vmem>>, vector<1x128xf32>
    %c0_i32 = arith.constant 0 : i32
    %c14_i32 = arith.constant 14 : i32
    %1 = arith.addi %c0_i32, %c14_i32 : i32
    %c1_i32 = arith.constant 1 : i32
    scf.for %arg5 = %c0_i32 to %1 step %c1_i32  : i32 {
      %cst = arith.constant 0.000000e+00 : f32
      %2 = vector.broadcast %cst : f32 to vector<14x128xf32>
      %c0_i32_2 = arith.constant 0 : i32
      %3 = arith.addi %arg5, %c0_i32_2 : i32
      %c0_3 = arith.constant 0 : index
      %4 = arith.index_cast %3 : i32 to index
      %c0_4 = arith.constant 0 : index
      %c0_5 = arith.constant 0 : index
      %5 = vector.load %arg1[%c0_3, %4, %c0_4, %c0_5] : memref<1x16x16x128xbf16, #tpu.memory_space<vmem>>, vector<1x1x16x128xbf16>
      %6 = vector.shape_cast %5 : vector<1x1x16x128xbf16> to vector<16x128xbf16>
      %7 = arith.extf %6 : vector<16x128xbf16> to vector<16x128xf32>
      %8 = vector.extract_strided_slice %7 {offsets = [0, 0], sizes = [14, 128], strides = [1, 1]} : vector<16x128xf32> to vector<14x128xf32>
      %9 = arith.truncf %8 : vector<14x128xf32> to vector<14x128xbf16>
      %c0_6 = arith.constant 0 : index
      %c0_7 = arith.constant 0 : index
      %c0_8 = arith.constant 0 : index
      %10 = vector.load %arg2[%c0_6, %c0_7, %c0_8] : memref<9x128x128xbf16, #tpu.memory_space<vmem>>, vector<1x128x128xbf16>
      %11 = vector.shape_cast %10 : vector<1x128x128xbf16> to vector<128x128xbf16>
      %cst_9 = arith.constant dense<0.000000e+00> : vector<14x128xf32>
      %12 = tpu.matmul %9, %11, %cst_9 {dimension_numbers = #tpu.dot_dimension_numbers<[1], [0], [0], [1], [0, 0, 1, 1], [], []>} : vector<14x128xbf16>, vector<128x128xbf16>, vector<14x128xf32> -> vector<14x128xf32>
      %13 = arith.addf %2, %12 : vector<14x128xf32>
      %14 = vector.extract_strided_slice %7 {offsets = [1, 0], sizes = [14, 128], strides = [1, 1]} : vector<16x128xf32> to vector<14x128xf32>
      %15 = arith.truncf %14 : vector<14x128xf32> to vector<14x128xbf16>
      %c1 = arith.constant 1 : index
      %c0_10 = arith.constant 0 : index
      %c0_11 = arith.constant 0 : index
      %16 = vector.load %arg2[%c1, %c0_10, %c0_11] : memref<9x128x128xbf16, #tpu.memory_space<vmem>>, vector<1x128x128xbf16>
      %17 = vector.shape_cast %16 : vector<1x128x128xbf16> to vector<128x128xbf16>
      %cst_12 = arith.constant dense<0.000000e+00> : vector<14x128xf32>
      %18 = tpu.matmul %15, %17, %cst_12 {dimension_numbers = #tpu.dot_dimension_numbers<[1], [0], [0], [1], [0, 0, 1, 1], [], []>} : vector<14x128xbf16>, vector<128x128xbf16>, vector<14x128xf32> -> vector<14x128xf32>
      %19 = arith.addf %13, %18 : vector<14x128xf32>
      %20 = vector.extract_strided_slice %7 {offsets = [2, 0], sizes = [14, 128], strides = [1, 1]} : vector<16x128xf32> to vector<14x128xf32>
      %21 = arith.truncf %20 : vector<14x128xf32> to vector<14x128xbf16>
      %c2 = arith.constant 2 : index
      %c0_13 = arith.constant 0 : index
      %c0_14 = arith.constant 0 : index
      %22 = vector.load %arg2[%c2, %c0_13, %c0_14] : memref<9x128x128xbf16, #tpu.memory_space<vmem>>, vector<1x128x128xbf16>
      %23 = vector.shape_cast %22 : vector<1x128x128xbf16> to vector<128x128xbf16>
      %cst_15 = arith.constant dense<0.000000e+00> : vector<14x128xf32>
      %24 = tpu.matmul %21, %23, %cst_15 {dimension_numbers = #tpu.dot_dimension_numbers<[1], [0], [0], [1], [0, 0, 1, 1], [], []>} : vector<14x128xbf16>, vector<128x128xbf16>, vector<14x128xf32> -> vector<14x128xf32>
      %25 = arith.addf %19, %24 : vector<14x128xf32>
      %c1_i32_16 = arith.constant 1 : i32
      %26 = arith.addi %arg5, %c1_i32_16 : i32
      %c0_17 = arith.constant 0 : index
      %27 = arith.index_cast %26 : i32 to index
      %c0_18 = arith.constant 0 : index
      %c0_19 = arith.constant 0 : index
      %28 = vector.load %arg1[%c0_17, %27, %c0_18, %c0_19] : memref<1x16x16x128xbf16, #tpu.memory_space<vmem>>, vector<1x1x16x128xbf16>
      %29 = vector.shape_cast %28 : vector<1x1x16x128xbf16> to vector<16x128xbf16>
      %30 = arith.extf %29 : vector<16x128xbf16> to vector<16x128xf32>
      %31 = vector.extract_strided_slice %30 {offsets = [0, 0], sizes = [14, 128], strides = [1, 1]} : vector<16x128xf32> to vector<14x128xf32>
      %32 = arith.truncf %31 : vector<14x128xf32> to vector<14x128xbf16>
      %c3 = arith.constant 3 : index
      %c0_20 = arith.constant 0 : index
      %c0_21 = arith.constant 0 : index
      %33 = vector.load %arg2[%c3, %c0_20, %c0_21] : memref<9x128x128xbf16, #tpu.memory_space<vmem>>, vector<1x128x128xbf16>
      %34 = vector.shape_cast %33 : vector<1x128x128xbf16> to vector<128x128xbf16>
      %cst_22 = arith.constant dense<0.000000e+00> : vector<14x128xf32>
      %35 = tpu.matmul %32, %34, %cst_22 {dimension_numbers = #tpu.dot_dimension_numbers<[1], [0], [0], [1], [0, 0, 1, 1], [], []>} : vector<14x128xbf16>, vector<128x128xbf16>, vector<14x128xf32> -> vector<14x128xf32>
      %36 = arith.addf %25, %35 : vector<14x128xf32>
      %37 = vector.extract_strided_slice %30 {offsets = [1, 0], sizes = [14, 128], strides = [1, 1]} : vector<16x128xf32> to vector<14x128xf32>
      %38 = arith.truncf %37 : vector<14x128xf32> to vector<14x128xbf16>
      %c4 = arith.constant 4 : index
      %c0_23 = arith.constant 0 : index
      %c0_24 = arith.constant 0 : index
      %39 = vector.load %arg2[%c4, %c0_23, %c0_24] : memref<9x128x128xbf16, #tpu.memory_space<vmem>>, vector<1x128x128xbf16>
      %40 = vector.shape_cast %39 : vector<1x128x128xbf16> to vector<128x128xbf16>
      %cst_25 = arith.constant dense<0.000000e+00> : vector<14x128xf32>
      %41 = tpu.matmul %38, %40, %cst_25 {dimension_numbers = #tpu.dot_dimension_numbers<[1], [0], [0], [1], [0, 0, 1, 1], [], []>} : vector<14x128xbf16>, vector<128x128xbf16>, vector<14x128xf32> -> vector<14x128xf32>
      %42 = arith.addf %36, %41 : vector<14x128xf32>
      %43 = vector.extract_strided_slice %30 {offsets = [2, 0], sizes = [14, 128], strides = [1, 1]} : vector<16x128xf32> to vector<14x128xf32>
      %44 = arith.truncf %43 : vector<14x128xf32> to vector<14x128xbf16>
      %c5 = arith.constant 5 : index
      %c0_26 = arith.constant 0 : index
      %c0_27 = arith.constant 0 : index
      %45 = vector.load %arg2[%c5, %c0_26, %c0_27] : memref<9x128x128xbf16, #tpu.memory_space<vmem>>, vector<1x128x128xbf16>
      %46 = vector.shape_cast %45 : vector<1x128x128xbf16> to vector<128x128xbf16>
      %cst_28 = arith.constant dense<0.000000e+00> : vector<14x128xf32>
      %47 = tpu.matmul %44, %46, %cst_28 {dimension_numbers = #tpu.dot_dimension_numbers<[1], [0], [0], [1], [0, 0, 1, 1], [], []>} : vector<14x128xbf16>, vector<128x128xbf16>, vector<14x128xf32> -> vector<14x128xf32>
      %48 = arith.addf %42, %47 : vector<14x128xf32>
      %c2_i32 = arith.constant 2 : i32
      %49 = arith.addi %arg5, %c2_i32 : i32
      %c0_29 = arith.constant 0 : index
      %50 = arith.index_cast %49 : i32 to index
      %c0_30 = arith.constant 0 : index
      %c0_31 = arith.constant 0 : index
      %51 = vector.load %arg1[%c0_29, %50, %c0_30, %c0_31] : memref<1x16x16x128xbf16, #tpu.memory_space<vmem>>, vector<1x1x16x128xbf16>
      %52 = vector.shape_cast %51 : vector<1x1x16x128xbf16> to vector<16x128xbf16>
      %53 = arith.extf %52 : vector<16x128xbf16> to vector<16x128xf32>
      %54 = vector.extract_strided_slice %53 {offsets = [0, 0], sizes = [14, 128], strides = [1, 1]} : vector<16x128xf32> to vector<14x128xf32>
      %55 = arith.truncf %54 : vector<14x128xf32> to vector<14x128xbf16>
      %c6 = arith.constant 6 : index
      %c0_32 = arith.constant 0 : index
      %c0_33 = arith.constant 0 : index
      %56 = vector.load %arg2[%c6, %c0_32, %c0_33] : memref<9x128x128xbf16, #tpu.memory_space<vmem>>, vector<1x128x128xbf16>
      %57 = vector.shape_cast %56 : vector<1x128x128xbf16> to vector<128x128xbf16>
      %cst_34 = arith.constant dense<0.000000e+00> : vector<14x128xf32>
      %58 = tpu.matmul %55, %57, %cst_34 {dimension_numbers = #tpu.dot_dimension_numbers<[1], [0], [0], [1], [0, 0, 1, 1], [], []>} : vector<14x128xbf16>, vector<128x128xbf16>, vector<14x128xf32> -> vector<14x128xf32>
      %59 = arith.addf %48, %58 : vector<14x128xf32>
      %60 = vector.extract_strided_slice %53 {offsets = [1, 0], sizes = [14, 128], strides = [1, 1]} : vector<16x128xf32> to vector<14x128xf32>
      %61 = arith.truncf %60 : vector<14x128xf32> to vector<14x128xbf16>
      %c7 = arith.constant 7 : index
      %c0_35 = arith.constant 0 : index
      %c0_36 = arith.constant 0 : index
      %62 = vector.load %arg2[%c7, %c0_35, %c0_36] : memref<9x128x128xbf16, #tpu.memory_space<vmem>>, vector<1x128x128xbf16>
      %63 = vector.shape_cast %62 : vector<1x128x128xbf16> to vector<128x128xbf16>
      %cst_37 = arith.constant dense<0.000000e+00> : vector<14x128xf32>
      %64 = tpu.matmul %61, %63, %cst_37 {dimension_numbers = #tpu.dot_dimension_numbers<[1], [0], [0], [1], [0, 0, 1, 1], [], []>} : vector<14x128xbf16>, vector<128x128xbf16>, vector<14x128xf32> -> vector<14x128xf32>
      %65 = arith.addf %59, %64 : vector<14x128xf32>
      %66 = vector.extract_strided_slice %53 {offsets = [2, 0], sizes = [14, 128], strides = [1, 1]} : vector<16x128xf32> to vector<14x128xf32>
      %67 = arith.truncf %66 : vector<14x128xf32> to vector<14x128xbf16>
      %c8 = arith.constant 8 : index
      %c0_38 = arith.constant 0 : index
      %c0_39 = arith.constant 0 : index
      %68 = vector.load %arg2[%c8, %c0_38, %c0_39] : memref<9x128x128xbf16, #tpu.memory_space<vmem>>, vector<1x128x128xbf16>
      %69 = vector.shape_cast %68 : vector<1x128x128xbf16> to vector<128x128xbf16>
      %cst_40 = arith.constant dense<0.000000e+00> : vector<14x128xf32>
      %70 = tpu.matmul %67, %69, %cst_40 {dimension_numbers = #tpu.dot_dimension_numbers<[1], [0], [0], [1], [0, 0, 1, 1], [], []>} : vector<14x128xbf16>, vector<128x128xbf16>, vector<14x128xf32> -> vector<14x128xf32>
      %71 = arith.addf %65, %70 : vector<14x128xf32>
      %72 = vector.broadcast %0 : vector<1x128xf32> to vector<14x128xf32>
      %73 = arith.addf %71, %72 : vector<14x128xf32>
      %cst_41 = arith.constant 0.000000e+00 : f32
      %74 = vector.broadcast %cst_41 : f32 to vector<14x128xf32>
      %75 = arith.maximumf %73, %74 : vector<14x128xf32>
      %76 = arith.truncf %75 : vector<14x128xf32> to vector<14x128xbf16>
      %c0_42 = arith.constant 0 : index
      %77 = arith.index_cast %arg5 : i32 to index
      %c0_43 = arith.constant 0 : index
      %c0_44 = arith.constant 0 : index
      %78 = vector.load %arg4[%c0_42, %77, %c0_43, %c0_44] : memref<1x14x14x128xbf16, #tpu.memory_space<vmem>>, vector<1x1x14x128xbf16>
      %79 = vector.shape_cast %78 : vector<1x1x14x128xbf16> to vector<14x128xbf16>
      %80 = vector.shape_cast %76 : vector<14x128xbf16> to vector<1x1x14x128xbf16>
      tpu.vector_store %arg4[%c0_42, %77, %c0_43, %c0_44], %80 {strides = array<i32>} : memref<1x14x14x128xbf16, #tpu.memory_space<vmem>>, vector<1x1x14x128xbf16>,
    }
    %c14_i32_1 = arith.constant 14 : i32
    return
  }
  func.func @transform_0(%arg0: i32) -> (i32, i32, i32, i32) {
    %c0_i32 = arith.constant 0 : i32
    %c0_i32_0 = arith.constant 0 : i32
    %c0_i32_1 = arith.constant 0 : i32
    %c0_i32_2 = arith.constant 0 : i32
    return %arg0, %c0_i32, %c0_i32_0, %c0_i32_1 : i32, i32, i32, i32
  }
  func.func @transform_1(%arg0: i32) -> (i32, i32, i32) {
    %c0_i32 = arith.constant 0 : i32
    %c0_i32_0 = arith.constant 0 : i32
    %c0_i32_1 = arith.constant 0 : i32
    %c0_i32_2 = arith.constant 0 : i32
    return %c0_i32, %c0_i32_0, %c0_i32_1 : i32, i32, i32
  }
  func.func @transform_2(%arg0: i32) -> (i32, i32) {
    %c0_i32 = arith.constant 0 : i32
    %c0_i32_0 = arith.constant 0 : i32
    %c0_i32_1 = arith.constant 0 : i32
    return %c0_i32, %c0_i32_0 : i32, i32
  }
  func.func @transform_3(%arg0: i32) -> (i32, i32, i32, i32) {
    %c0_i32 = arith.constant 0 : i32
    %c0_i32_0 = arith.constant 0 : i32
    %c0_i32_1 = arith.constant 0 : i32
    %c0_i32_2 = arith.constant 0 : i32
    return %arg0, %c0_i32, %c0_i32_0, %c0_i32_1 : i32, i32, i32, i32
  }
}

module attributes {stable_mosaic.version = 11 : i64} {
  func.func @_conv3x3_relu_kernel(%arg0: i32, %arg1: memref<1x14x14x128xbf16, #tpu.memory_space<vmem>>, %arg2: memref<9x128x128xbf16, #tpu.memory_space<vmem>>, %arg3: memref<1x128xf32, #tpu.memory_space<vmem>>, %arg4: memref<1x12x12x128xf32, #tpu.memory_space<vmem>>) attributes {dimension_semantics = [#tpu.dimension_semantics<parallel>], iteration_bounds = array<i64: 2>, scalar_prefetch = 0 : i64, scratch_operands = 0 : i64, tpu.core_type = #tpu.core_type<tc>, window_params = [{transform_indices = @transform_0, window_bounds = array<i64: 1, 14, 14, 128>}, {pipeline_mode = #tpu.pipeline_mode<synchronous>, transform_indices = @transform_1, window_bounds = array<i64: 9, 128, 128>}, {pipeline_mode = #tpu.pipeline_mode<synchronous>, transform_indices = @transform_2, window_bounds = array<i64: 1, 128>}, {transform_indices = @transform_3, window_bounds = array<i64: 1, 12, 12, 128>}]} {
    %c0 = arith.constant 0 : index
    %c0_0 = arith.constant 0 : index
    %0 = vector.load %arg3[%c0, %c0_0] : memref<1x128xf32, #tpu.memory_space<vmem>>, vector<1x128xf32>
    %c0_i32 = arith.constant 0 : i32
    %c12_i32 = arith.constant 12 : i32
    %1 = arith.addi %c0_i32, %c12_i32 : i32
    %c1_i32 = arith.constant 1 : i32
    scf.for %arg5 = %c0_i32 to %1 step %c1_i32  : i32 {
      %cst = arith.constant 0.000000e+00 : f32
      %2 = vector.broadcast %cst : f32 to vector<12x128xf32>
      %c0_i32_2 = arith.constant 0 : i32
      %3 = arith.addi %arg5, %c0_i32_2 : i32
      %c0_3 = arith.constant 0 : index
      %4 = arith.index_cast %3 : i32 to index
      %c0_4 = arith.constant 0 : index
      %c0_5 = arith.constant 0 : index
      %5 = vector.load %arg1[%c0_3, %4, %c0_4, %c0_5] : memref<1x14x14x128xbf16, #tpu.memory_space<vmem>>, vector<1x1x14x128xbf16>
      %6 = vector.shape_cast %5 : vector<1x1x14x128xbf16> to vector<14x128xbf16>
      %7 = arith.extf %6 : vector<14x128xbf16> to vector<14x128xf32>
      %8 = vector.extract_strided_slice %7 {offsets = [0, 0], sizes = [12, 128], strides = [1, 1]} : vector<14x128xf32> to vector<12x128xf32>
      %9 = arith.truncf %8 : vector<12x128xf32> to vector<12x128xbf16>
      %c0_6 = arith.constant 0 : index
      %c0_7 = arith.constant 0 : index
      %c0_8 = arith.constant 0 : index
      %10 = vector.load %arg2[%c0_6, %c0_7, %c0_8] : memref<9x128x128xbf16, #tpu.memory_space<vmem>>, vector<1x128x128xbf16>
      %11 = vector.shape_cast %10 : vector<1x128x128xbf16> to vector<128x128xbf16>
      %cst_9 = arith.constant dense<0.000000e+00> : vector<12x128xf32>
      %12 = tpu.matmul %9, %11, %cst_9 {dimension_numbers = #tpu.dot_dimension_numbers<[1], [0], [0], [1], [0, 0, 1, 1], [], []>} : vector<12x128xbf16>, vector<128x128xbf16>, vector<12x128xf32> -> vector<12x128xf32>
      %13 = arith.addf %2, %12 : vector<12x128xf32>
      %14 = vector.extract_strided_slice %7 {offsets = [1, 0], sizes = [12, 128], strides = [1, 1]} : vector<14x128xf32> to vector<12x128xf32>
      %15 = arith.truncf %14 : vector<12x128xf32> to vector<12x128xbf16>
      %c1 = arith.constant 1 : index
      %c0_10 = arith.constant 0 : index
      %c0_11 = arith.constant 0 : index
      %16 = vector.load %arg2[%c1, %c0_10, %c0_11] : memref<9x128x128xbf16, #tpu.memory_space<vmem>>, vector<1x128x128xbf16>
      %17 = vector.shape_cast %16 : vector<1x128x128xbf16> to vector<128x128xbf16>
      %cst_12 = arith.constant dense<0.000000e+00> : vector<12x128xf32>
      %18 = tpu.matmul %15, %17, %cst_12 {dimension_numbers = #tpu.dot_dimension_numbers<[1], [0], [0], [1], [0, 0, 1, 1], [], []>} : vector<12x128xbf16>, vector<128x128xbf16>, vector<12x128xf32> -> vector<12x128xf32>
      %19 = arith.addf %13, %18 : vector<12x128xf32>
      %20 = vector.extract_strided_slice %7 {offsets = [2, 0], sizes = [12, 128], strides = [1, 1]} : vector<14x128xf32> to vector<12x128xf32>
      %21 = arith.truncf %20 : vector<12x128xf32> to vector<12x128xbf16>
      %c2 = arith.constant 2 : index
      %c0_13 = arith.constant 0 : index
      %c0_14 = arith.constant 0 : index
      %22 = vector.load %arg2[%c2, %c0_13, %c0_14] : memref<9x128x128xbf16, #tpu.memory_space<vmem>>, vector<1x128x128xbf16>
      %23 = vector.shape_cast %22 : vector<1x128x128xbf16> to vector<128x128xbf16>
      %cst_15 = arith.constant dense<0.000000e+00> : vector<12x128xf32>
      %24 = tpu.matmul %21, %23, %cst_15 {dimension_numbers = #tpu.dot_dimension_numbers<[1], [0], [0], [1], [0, 0, 1, 1], [], []>} : vector<12x128xbf16>, vector<128x128xbf16>, vector<12x128xf32> -> vector<12x128xf32>
      %25 = arith.addf %19, %24 : vector<12x128xf32>
      %c1_i32_16 = arith.constant 1 : i32
      %26 = arith.addi %arg5, %c1_i32_16 : i32
      %c0_17 = arith.constant 0 : index
      %27 = arith.index_cast %26 : i32 to index
      %c0_18 = arith.constant 0 : index
      %c0_19 = arith.constant 0 : index
      %28 = vector.load %arg1[%c0_17, %27, %c0_18, %c0_19] : memref<1x14x14x128xbf16, #tpu.memory_space<vmem>>, vector<1x1x14x128xbf16>
      %29 = vector.shape_cast %28 : vector<1x1x14x128xbf16> to vector<14x128xbf16>
      %30 = arith.extf %29 : vector<14x128xbf16> to vector<14x128xf32>
      %31 = vector.extract_strided_slice %30 {offsets = [0, 0], sizes = [12, 128], strides = [1, 1]} : vector<14x128xf32> to vector<12x128xf32>
      %32 = arith.truncf %31 : vector<12x128xf32> to vector<12x128xbf16>
      %c3 = arith.constant 3 : index
      %c0_20 = arith.constant 0 : index
      %c0_21 = arith.constant 0 : index
      %33 = vector.load %arg2[%c3, %c0_20, %c0_21] : memref<9x128x128xbf16, #tpu.memory_space<vmem>>, vector<1x128x128xbf16>
      %34 = vector.shape_cast %33 : vector<1x128x128xbf16> to vector<128x128xbf16>
      %cst_22 = arith.constant dense<0.000000e+00> : vector<12x128xf32>
      %35 = tpu.matmul %32, %34, %cst_22 {dimension_numbers = #tpu.dot_dimension_numbers<[1], [0], [0], [1], [0, 0, 1, 1], [], []>} : vector<12x128xbf16>, vector<128x128xbf16>, vector<12x128xf32> -> vector<12x128xf32>
      %36 = arith.addf %25, %35 : vector<12x128xf32>
      %37 = vector.extract_strided_slice %30 {offsets = [1, 0], sizes = [12, 128], strides = [1, 1]} : vector<14x128xf32> to vector<12x128xf32>
      %38 = arith.truncf %37 : vector<12x128xf32> to vector<12x128xbf16>
      %c4 = arith.constant 4 : index
      %c0_23 = arith.constant 0 : index
      %c0_24 = arith.constant 0 : index
      %39 = vector.load %arg2[%c4, %c0_23, %c0_24] : memref<9x128x128xbf16, #tpu.memory_space<vmem>>, vector<1x128x128xbf16>
      %40 = vector.shape_cast %39 : vector<1x128x128xbf16> to vector<128x128xbf16>
      %cst_25 = arith.constant dense<0.000000e+00> : vector<12x128xf32>
      %41 = tpu.matmul %38, %40, %cst_25 {dimension_numbers = #tpu.dot_dimension_numbers<[1], [0], [0], [1], [0, 0, 1, 1], [], []>} : vector<12x128xbf16>, vector<128x128xbf16>, vector<12x128xf32> -> vector<12x128xf32>
      %42 = arith.addf %36, %41 : vector<12x128xf32>
      %43 = vector.extract_strided_slice %30 {offsets = [2, 0], sizes = [12, 128], strides = [1, 1]} : vector<14x128xf32> to vector<12x128xf32>
      %44 = arith.truncf %43 : vector<12x128xf32> to vector<12x128xbf16>
      %c5 = arith.constant 5 : index
      %c0_26 = arith.constant 0 : index
      %c0_27 = arith.constant 0 : index
      %45 = vector.load %arg2[%c5, %c0_26, %c0_27] : memref<9x128x128xbf16, #tpu.memory_space<vmem>>, vector<1x128x128xbf16>
      %46 = vector.shape_cast %45 : vector<1x128x128xbf16> to vector<128x128xbf16>
      %cst_28 = arith.constant dense<0.000000e+00> : vector<12x128xf32>
      %47 = tpu.matmul %44, %46, %cst_28 {dimension_numbers = #tpu.dot_dimension_numbers<[1], [0], [0], [1], [0, 0, 1, 1], [], []>} : vector<12x128xbf16>, vector<128x128xbf16>, vector<12x128xf32> -> vector<12x128xf32>
      %48 = arith.addf %42, %47 : vector<12x128xf32>
      %c2_i32 = arith.constant 2 : i32
      %49 = arith.addi %arg5, %c2_i32 : i32
      %c0_29 = arith.constant 0 : index
      %50 = arith.index_cast %49 : i32 to index
      %c0_30 = arith.constant 0 : index
      %c0_31 = arith.constant 0 : index
      %51 = vector.load %arg1[%c0_29, %50, %c0_30, %c0_31] : memref<1x14x14x128xbf16, #tpu.memory_space<vmem>>, vector<1x1x14x128xbf16>
      %52 = vector.shape_cast %51 : vector<1x1x14x128xbf16> to vector<14x128xbf16>
      %53 = arith.extf %52 : vector<14x128xbf16> to vector<14x128xf32>
      %54 = vector.extract_strided_slice %53 {offsets = [0, 0], sizes = [12, 128], strides = [1, 1]} : vector<14x128xf32> to vector<12x128xf32>
      %55 = arith.truncf %54 : vector<12x128xf32> to vector<12x128xbf16>
      %c6 = arith.constant 6 : index
      %c0_32 = arith.constant 0 : index
      %c0_33 = arith.constant 0 : index
      %56 = vector.load %arg2[%c6, %c0_32, %c0_33] : memref<9x128x128xbf16, #tpu.memory_space<vmem>>, vector<1x128x128xbf16>
      %57 = vector.shape_cast %56 : vector<1x128x128xbf16> to vector<128x128xbf16>
      %cst_34 = arith.constant dense<0.000000e+00> : vector<12x128xf32>
      %58 = tpu.matmul %55, %57, %cst_34 {dimension_numbers = #tpu.dot_dimension_numbers<[1], [0], [0], [1], [0, 0, 1, 1], [], []>} : vector<12x128xbf16>, vector<128x128xbf16>, vector<12x128xf32> -> vector<12x128xf32>
      %59 = arith.addf %48, %58 : vector<12x128xf32>
      %60 = vector.extract_strided_slice %53 {offsets = [1, 0], sizes = [12, 128], strides = [1, 1]} : vector<14x128xf32> to vector<12x128xf32>
      %61 = arith.truncf %60 : vector<12x128xf32> to vector<12x128xbf16>
      %c7 = arith.constant 7 : index
      %c0_35 = arith.constant 0 : index
      %c0_36 = arith.constant 0 : index
      %62 = vector.load %arg2[%c7, %c0_35, %c0_36] : memref<9x128x128xbf16, #tpu.memory_space<vmem>>, vector<1x128x128xbf16>
      %63 = vector.shape_cast %62 : vector<1x128x128xbf16> to vector<128x128xbf16>
      %cst_37 = arith.constant dense<0.000000e+00> : vector<12x128xf32>
      %64 = tpu.matmul %61, %63, %cst_37 {dimension_numbers = #tpu.dot_dimension_numbers<[1], [0], [0], [1], [0, 0, 1, 1], [], []>} : vector<12x128xbf16>, vector<128x128xbf16>, vector<12x128xf32> -> vector<12x128xf32>
      %65 = arith.addf %59, %64 : vector<12x128xf32>
      %66 = vector.extract_strided_slice %53 {offsets = [2, 0], sizes = [12, 128], strides = [1, 1]} : vector<14x128xf32> to vector<12x128xf32>
      %67 = arith.truncf %66 : vector<12x128xf32> to vector<12x128xbf16>
      %c8 = arith.constant 8 : index
      %c0_38 = arith.constant 0 : index
      %c0_39 = arith.constant 0 : index
      %68 = vector.load %arg2[%c8, %c0_38, %c0_39] : memref<9x128x128xbf16, #tpu.memory_space<vmem>>, vector<1x128x128xbf16>
      %69 = vector.shape_cast %68 : vector<1x128x128xbf16> to vector<128x128xbf16>
      %cst_40 = arith.constant dense<0.000000e+00> : vector<12x128xf32>
      %70 = tpu.matmul %67, %69, %cst_40 {dimension_numbers = #tpu.dot_dimension_numbers<[1], [0], [0], [1], [0, 0, 1, 1], [], []>} : vector<12x128xbf16>, vector<128x128xbf16>, vector<12x128xf32> -> vector<12x128xf32>
      %71 = arith.addf %65, %70 : vector<12x128xf32>
      %72 = vector.broadcast %0 : vector<1x128xf32> to vector<12x128xf32>
      %73 = arith.addf %71, %72 : vector<12x128xf32>
      %cst_41 = arith.constant 0.000000e+00 : f32
      %74 = vector.broadcast %cst_41 : f32 to vector<12x128xf32>
      %75 = arith.maximumf %73, %74 : vector<12x128xf32>
      %c0_42 = arith.constant 0 : index
      %76 = arith.index_cast %arg5 : i32 to index
      %c0_43 = arith.constant 0 : index
      %c0_44 = arith.constant 0 : index
      %77 = vector.load %arg4[%c0_42, %76, %c0_43, %c0_44] : memref<1x12x12x128xf32, #tpu.memory_space<vmem>>, vector<1x1x12x128xf32>
      %78 = vector.shape_cast %77 : vector<1x1x12x128xf32> to vector<12x128xf32>
      %79 = vector.shape_cast %75 : vector<12x128xf32> to vector<1x1x12x128xf32>
      tpu.vector_store %arg4[%c0_42, %76, %c0_43, %c0_44], %79 {strides = array<i32>} : memref<1x12x12x128xf32, #tpu.memory_space<vmem>>, vector<1x1x12x128xf32>,
    }
    %c12_i32_1 = arith.constant 12 : i32
    return
  }
  func.func @transform_0(%arg0: i32) -> (i32, i32, i32, i32) {
    %c0_i32 = arith.constant 0 : i32
    %c0_i32_0 = arith.constant 0 : i32
    %c0_i32_1 = arith.constant 0 : i32
    %c0_i32_2 = arith.constant 0 : i32
    return %arg0, %c0_i32, %c0_i32_0, %c0_i32_1 : i32, i32, i32, i32
  }
  func.func @transform_1(%arg0: i32) -> (i32, i32, i32) {
    %c0_i32 = arith.constant 0 : i32
    %c0_i32_0 = arith.constant 0 : i32
    %c0_i32_1 = arith.constant 0 : i32
    %c0_i32_2 = arith.constant 0 : i32
    return %c0_i32, %c0_i32_0, %c0_i32_1 : i32, i32, i32
  }
  func.func @transform_2(%arg0: i32) -> (i32, i32) {
    %c0_i32 = arith.constant 0 : i32
    %c0_i32_0 = arith.constant 0 : i32
    %c0_i32_1 = arith.constant 0 : i32
    return %c0_i32, %c0_i32_0 : i32, i32
  }
  func.func @transform_3(%arg0: i32) -> (i32, i32, i32, i32) {
    %c0_i32 = arith.constant 0 : i32
    %c0_i32_0 = arith.constant 0 : i32
    %c0_i32_1 = arith.constant 0 : i32
    %c0_i32_2 = arith.constant 0 : i32
    return %arg0, %c0_i32, %c0_i32_0, %c0_i32_1 : i32, i32, i32, i32
  }
}

</mosaic_0001>

<llo_original>
// kernel: net_forward.10
$region0: #{net_forward.10}
  #allocation0 [shape = 'u32[]', space=smem, size = 0x4, offset = 0x4, fixed_abs, tag = 'smem constant byte address 0x4 - core index']
  #allocation1 [shape = 'u32[144,128]{1,0:T(1,128)}', space=vmem, size = 0x12000, scoped, tag = 'internal scratch']
  %s0 = inlined_call_operand.vmem [shape: bf16[2,20,10,256], index: 0, kind: input, shape index: {}]
  %s1 = inlined_call_operand.vmem [shape: bf16[2,20,10,256], index: 1, kind: output, shape index: {}]
  %s2 = sld [smem:[#allocation0]]
  $region44: #{net_forward.10} parent=0
    _
  %s4 = ssub.s32 1, %s2
  %s5 = scalar_select 0, %s4, %s2
  loop: start=0, step=1, limit=4
  $region2: #{net_forward.10} parent=0 // loop_pre_header
    _
  $region3: #{net_forward.10} parent=0 // loop_header
    %s7 = sphi 0, %s11
    %p8 = scmp.ge.s32.totalorder %s7, 4
    %s17 = sphi 0, %s19
    %s20 = sphi 0, %s17
    %s21 = sphi 0, %s20
    %s37 = sphi 0, %s21
    %s43 = sphi 0, %s45
    %s46 = sphi 0, %s43
    %s47 = sphi 0, %s46
    %s63 = sphi 0, %s47
  $region4: #{net_forward.10} parent=0 // loop_header_branch
    %10 = sbr.rel (%p8) target = $region8
  $region5: #{net_forward.10} parent=0 // loop_body
    %s12 = ssub.s32 %s7, 1
    %s13 = ssub.s32 %s7, 2
    %s14 = sadd.s32 %s7, 1
    %s15 = ssub.s32 %s7, %s14
    %p16 = scmp.eq.s32.totalorder %s15, 0
    %s18 = sadd.s32 %s17, 1
    %s19 = scalar_select %p16, %s17, %s18
    %p22 = pneg %p16
    %p23 = scmp.eq.s32.totalorder %s7, 1
    %p24 = por %p22, %p23
    %p25 = scmp.ne.s32.totalorder %s17, %s20
    %p26 = scmp.eq.s32.totalorder %s7, 0
    %p27 = por %p25, %p26
    %p28 = scmp.ne.s32.totalorder %s17, %s20
    %p29 = scmp.eq.s32.totalorder %s12, 1
    %p30 = por %p28, %p29
    %p31 = scmp.ne.s32.totalorder %s20, %s21
    %p32 = scmp.eq.s32.totalorder %s12, 0
    %p33 = por %p31, %p32
    %p34 = scmp.ne.s32.totalorder %s20, %s21
    %p35 = scmp.eq.s32.totalorder %s13, 1
    %p36 = por %p34, %p35
    %p38 = scmp.ne.s32.totalorder %s21, %s37
    %p39 = scmp.eq.s32.totalorder %s13, 0
    %p40 = por %p38, %p39
    %s41 = ssub.s32 %s7, %s14
    %p42 = scmp.eq.s32.totalorder %s41, 0
    %s44 = sadd.s32 %s43, 1
    %s45 = scalar_select %p42, %s43, %s44
    %p48 = pneg %p42
    %p49 = scmp.eq.s32.totalorder %s7, 1
    %p50 = por %p48, %p49
    %p51 = scmp.ne.s32.totalorder %s43, %s46
    %p52 = scmp.eq.s32.totalorder %s7, 0
    %p53 = por %p51, %p52
    %p54 = scmp.ne.s32.totalorder %s43, %s46
    %p55 = scmp.eq.s32.totalorder %s12, 1
    %p56 = por %p54, %p55
    %p57 = scmp.ne.s32.totalorder %s46, %s47
    %p58 = scmp.eq.s32.totalorder %s12, 0
    %p59 = por %p57, %p58
    %p60 = scmp.ne.s32.totalorder %s46, %s47
    %p61 = scmp.eq.s32.totalorder %s13, 1
    %p62 = por %p60, %p61
    %p64 = scmp.ne.s32.totalorder %s47, %s63
    %p65 = scmp.eq.s32.totalorder %s13, 0
    %p66 = por %p64, %p65
    %p67 = scmp.le.s32.totalorder 1, %s7
    %p68 = scmp.lt.s32.totalorder %s7, 3
    %p69 = pnand %p67, %p68
    %p70 = pneg %p69
    // Predicated region
    $region9: #{net_forward.10} parent=5 // pred_check
      _
    $region10: #{net_forward.10} parent=5 // pred_check_branch
      %72 = sbr.rel (%p69) target = $region12
    $region11: #{net_forward.10} parent=5 // pred_region
      %s73 = ssub.s32 %s7, 1
    $region12: #{net_forward.10} parent=5 // pred_fallthru
      _
    %p74 = scmp.lt.s32.totalorder %s7, 2
    // Predicated region
    $region13: #{net_forward.10} parent=5 // pred_check
      %p75 = pneg %p74
    $region14: #{net_forward.10} parent=5 // pred_check_branch
      %77 = sbr.rel (%p75) target = $region16
    $region15: #{net_forward.10} parent=5 // pred_region
      // Predicated region
      $region17: #{net_forward.10} parent=15 // pred_check
        %p78 = pneg %p27
      $region18: #{net_forward.10} parent=15 // pred_check_branch
        %80 = sbr.rel (%p78) target = $region20
      $region19: #{net_forward.10} parent=15 // pred_region
        %p81 = scmp.lt.s32.totalorder %s7, 1
        %s82 = scalar_select %p81, %s7, 1
        %s83 = smul.addr %s82, 80
        %s84 = smul.addr %s83, 4
        %s85 = scalar_lea.vmem %s0, %s84
      $region20: #{net_forward.10} parent=15 // pred_fallthru
        _
    $region16: #{net_forward.10} parent=5 // pred_fallthru
      _
    %p86 = scmp.le.s32.totalorder 1, %s7
    %p87 = scmp.lt.s32.totalorder %s7, 3
    %p88 = pnand %p86, %p87
    %p89 = pneg %p88
    // Predicated region
    $region21: #{net_forward.10} parent=5 // pred_check
      _
    $region22: #{net_forward.10} parent=5 // pred_check_branch
      %91 = sbr.rel (%p88) target = $region24
    $region23: #{net_forward.10} parent=5 // pred_region
      %s92 = ssub.s32 %s7, 1
      %p93 = scmp.lt.s32.totalorder %s12, 1
      %s94 = scalar_select %p93, %s12, 1
      %s95 = smul.addr %s94, 80
      %s96 = smul.addr %s95, 4
      %s97 = scalar_lea.vmem %s0, %s96
      %p98 = pneg %p33
      %p99 = pneg %p30
      %p100 = pneg %p59
      %p101 = pneg %p56
      %p102 = scmp.lt.s32.totalorder %s12, 1
      %s103 = scalar_select %p102, %s12, 1
      %s104 = smul.addr %s103, 80
      %s105 = smul.addr %s104, 4
      %s106 = scalar_lea.vmem %s1, %s105
      %p107 = scmp.lt.s32.totalorder %s12, 1
      %s108 = scalar_select %p107, %s12, 1
      %s109 = smul.addr %s108, 80
      %s110 = smul.addr %s109, 4
      %s111 = scalar_lea.vmem %s0, %s110
      %p112 = scmp.lt.s32.totalorder %s12, 1
      %s113 = scalar_select %p112, %s12, 1
      %s114 = smul.addr %s113, 80
      %s115 = smul.addr %s114, 4
      %s116 = scalar_lea.vmem %s1, %s115
      loop: start=0, step=1, limit=10
      $region25: #{net_forward.10} parent=23 // loop_pre_header
        _
      $region26: #{net_forward.10} parent=23 // loop_header
        %s119 = sphi 0, %s123
        %p120 = scmp.ge.s32.totalorder %s119, 10
      $region27: #{net_forward.10} parent=23 // loop_header_branch
        %122 = sbr.rel (%p120) target = $region31
      $region28: #{net_forward.10} parent=23 // loop_body
        %s124 = smul.u32 %s119, 2
        %s125 = smul.u32 %s124, 4
        %s126 = smul.addr %s125, 4
        %s127 = scalar_lea.vmem %s111, %s126
        %v128 = vld [vmem:[%s127] sm:$0xff]
        %v129 = vld [vmem:[%s127 + $0x8] sm:$0x11]
        %s130 = sadd.s32 %s124, 1
        %s131 = smul.u32 %s130, 4
        %s132 = smul.addr %s131, 4
        %s133 = scalar_lea.vmem %s111, %s132
        %v134 = vld [vmem:[%s133] sm:$0xff]
        %v135 = vld [vmem:[%s133 + $0x8] sm:$0x11]
        %v138 = vrot.slane %v128, 4
        %v139 = vrot.slane %v129, 4
        %v142 = vmax.bf16 %v128, %v138
        %v143 = vmax.bf16 %v129, %v139
        %v146 = vrot.slane %v134, 4
        %v147 = vrot.slane %v135, 4
        %v150 = vmax.bf16 %v134, %v146
        %v151 = vmax.bf16 %v135, %v147
        %v152 = vmax.bf16 %v142, %v150
        %v153 = vmax.bf16 %v143, %v151
        %vm154 = vcmp.eq.bf16.partialorder %v128, %v152
        %vm155 = vcmp.eq.bf16.partialorder %v129, %v153
        %vm156 = vcmp.eq.bf16.partialorder %v138, %v152
        %vm157 = vcmp.eq.bf16.partialorder %v139, %v153
        %vm158 = vmxor %vm154, 1
        %vm159 = vmxor %vm155, 1
        %vm160 = vmand %vm156, %vm158
        %vm161 = vmand %vm157, %vm159
        %vm162 = vcmp.eq.bf16.partialorder %v134, %v152
        %vm163 = vcmp.eq.bf16.partialorder %v135, %v153
        %vm164 = vmor %vm154, %vm160
        %vm165 = vmor %vm155, %vm161
        %vm166 = vmxor %vm164, 1
        %vm167 = vmxor %vm165, 1
        %vm168 = vmand %vm162, %vm166
        %vm169 = vmand %vm163, %vm167
        %vm170 = vcmp.eq.bf16.partialorder %v146, %v152
        %vm171 = vcmp.eq.bf16.partialorder %v147, %v153
        %vm172 = vmor %vm164, %vm168
        %vm173 = vmor %vm165, %vm169
        %vm174 = vmxor %vm172, 1
        %vm175 = vmxor %vm173, 1
        %vm176 = vmand %vm170, %vm174
        %vm177 = vmand %vm171, %vm175
        %v178 = vsel %vm154, %v128, 0
        %v179 = vsel %vm155, %v129, 0
        %v180 = vsel %vm160, %v138, 0
        %v181 = vsel %vm161, %v139, 0
        %v184 = vunpack.c.l.b16 %v178
        %v185 = vunpack.c.l.b16 %v179
        %v188 = vunpack.c.l.b16 %v180
        %v189 = vunpack.c.l.b16 %v181
        %v190 = vpack.c.b16 %v188, %v184
        %v191 = vpack.c.b16 %v189, %v185
        %s194 = smul.addr %s125, 4
        %s195 = scalar_lea.vmem %s116, %s194
        %196 = vst [vmem:[%s195] sm:$0xff] %v190
        %197 = vst [vmem:[%s195 + $0x8] sm:$0x11] %v191
        %v198 = vsel %vm168, %v134, 0
        %v199 = vsel %vm169, %v135, 0
        %v200 = vsel %vm176, %v146, 0
        %v201 = vsel %vm177, %v147, 0
        %v204 = vunpack.c.l.b16 %v198
        %v205 = vunpack.c.l.b16 %v199
        %v208 = vunpack.c.l.b16 %v200
        %v209 = vunpack.c.l.b16 %v201
        %v210 = vpack.c.b16 %v208, %v204
        %v211 = vpack.c.b16 %v209, %v205
        %s214 = smul.addr %s131, 4
        %s215 = scalar_lea.vmem %s116, %s214
        %216 = vst [vmem:[%s215] sm:$0xff] %v210
        %217 = vst [vmem:[%s215 + $0x8] sm:$0x11] %v211
      $region29: #{net_forward.10} parent=23 // loop_footer
        %s123 = sadd.s32 1, %s119
      $region30: #{net_forward.10} parent=23 // loop_footer_branch
        %118 = sbr.rel target = $region26
      $region31: #{net_forward.10} parent=23 // loop_exit
        _
      %p218 = scmp.lt.s32.totalorder %s12, 1
      %s219 = scalar_select %p218, %s12, 1
      %s220 = smul.addr %s219, 80
      %s221 = smul.addr %s220, 4
      %s222 = scalar_lea.vmem %s1, %s221
      // Predicated region
      $region32: #{net_forward.10} parent=23 // pred_check
        %p223 = pneg %p56
      $region33: #{net_forward.10} parent=23 // pred_check_branch
        %225 = sbr.rel (%p223) target = $region35
      $region34: #{net_forward.10} parent=23 // pred_region
        _
      $region35: #{net_forward.10} parent=23 // pred_fallthru
        _
    $region24: #{net_forward.10} parent=5 // pred_fallthru
      _
    %p226 = scmp.le.s32.totalorder 2, %s7
    // Predicated region
    $region36: #{net_forward.10} parent=5 // pred_check
      %p227 = pneg %p226
    $region37: #{net_forward.10} parent=5 // pred_check_branch
      %229 = sbr.rel (%p227) target = $region39
    $region38: #{net_forward.10} parent=5 // pred_region
      %s230 = ssub.s32 %s7, 2
      // Predicated region
      $region40: #{net_forward.10} parent=38 // pred_check
        %p231 = pneg %p62
      $region41: #{net_forward.10} parent=38 // pred_check_branch
        %233 = sbr.rel (%p231) target = $region43
      $region42: #{net_forward.10} parent=38 // pred_region
        %p234 = scmp.lt.s32.totalorder %s13, 1
        %s235 = scalar_select %p234, %s13, 1
        %s236 = smul.addr %s235, 80
        %s237 = smul.addr %s236, 4
        %s238 = scalar_lea.vmem %s1, %s237
      $region43: #{net_forward.10} parent=38 // pred_fallthru
        _
    $region39: #{net_forward.10} parent=5 // pred_fallthru
      _
  $region6: #{net_forward.10} parent=0 // loop_footer
    %s11 = sadd.s32 1, %s7
  $region7: #{net_forward.10} parent=0 // loop_footer_branch
    %6 = sbr.rel target = $region3
  $region8: #{net_forward.10} parent=0 // loop_exit
    _

// kernel: net_forward.8
$region0: #{net_forward.8}
  #allocation0 [shape = 'u32[]', space=smem, size = 0x4, offset = 0x4, fixed_abs, tag = 'smem constant byte address 0x4 - core index']
  #allocation1 [shape = 'u32[144,128]{1,0:T(1,128)}', space=vmem, size = 0x12000, scoped, tag = 'internal scratch']
  %s0 = inlined_call_operand.vmem [shape: bf16[2,24,24,128], index: 0, kind: input, shape index: {}]
  %s1 = inlined_call_operand.vmem [shape: bf16[9,128,128], index: 1, kind: input, shape index: {}]
  %s2 = inlined_call_operand.vmem [shape: f32[1,128], index: 2, kind: input, shape index: {}]
  %s3 = inlined_call_operand.vmem [shape: bf16[2,22,22,128], index: 3, kind: output, shape index: {}]
  %s4 = sld [smem:[#allocation0]]
  $region52: #{net_forward.8} parent=0
    _
  %s6 = ssub.s32 1, %s4
  %s7 = scalar_select 0, %s6, %s4
  loop: start=0, step=1, limit=4
  $region2: #{net_forward.8} parent=0 // loop_pre_header
    _
  $region3: #{net_forward.8} parent=0 // loop_header
    %s9 = sphi 0, %s13
    %p10 = scmp.ge.s32.totalorder %s9, 4
    %s19 = sphi 0, %s21
    %s22 = sphi 0, %s19
    %s23 = sphi 0, %s22
    %s39 = sphi 0, %s23
    %s43 = sphi 0, %s43
    %s45 = sphi 0, %s43
    %s46 = sphi 0, %s45
    %s60 = sphi 0, %s46
    %s64 = sphi 0, %s64
    %s66 = sphi 0, %s64
    %s67 = sphi 0, %s66
    %s81 = sphi 0, %s67
    %s87 = sphi 0, %s89
    %s90 = sphi 0, %s87
    %s91 = sphi 0, %s90
    %s107 = sphi 0, %s91
  $region4: #{net_forward.8} parent=0 // loop_header_branch
    %12 = sbr.rel (%p10) target = $region8
  $region5: #{net_forward.8} parent=0 // loop_body
    %s14 = ssub.s32 %s9, 1
    %s15 = ssub.s32 %s9, 2
    %s16 = sadd.s32 %s9, 1
    %s17 = ssub.s32 %s9, %s16
    %p18 = scmp.eq.s32.totalorder %s17, 0
    %s20 = sadd.s32 %s19, 1
    %s21 = scalar_select %p18, %s19, %s20
    %p24 = pneg %p18
    %p25 = scmp.eq.s32.totalorder %s9, 1
    %p26 = por %p24, %p25
    %p27 = scmp.ne.s32.totalorder %s19, %s22
    %p28 = scmp.eq.s32.totalorder %s9, 0
    %p29 = por %p27, %p28
    %p30 = scmp.ne.s32.totalorder %s19, %s22
    %p31 = scmp.eq.s32.totalorder %s14, 1
    %p32 = por %p30, %p31
    %p33 = scmp.ne.s32.totalorder %s22, %s23
    %p34 = scmp.eq.s32.totalorder %s14, 0
    %p35 = por %p33, %p34
    %p36 = scmp.ne.s32.totalorder %s22, %s23
    %p37 = scmp.eq.s32.totalorder %s15, 1
    %p38 = por %p36, %p37
    %p40 = scmp.ne.s32.totalorder %s23, %s39
    %p41 = scmp.eq.s32.totalorder %s15, 0
    %p42 = por %p40, %p41
    %s44 = sadd.s32 %s43, 1
    %p47 = scmp.eq.s32.totalorder %s9, 1
    %p48 = scmp.ne.s32.totalorder %s43, %s45
    %p49 = scmp.eq.s32.totalorder %s9, 0
    %p50 = por %p48, %p49
    %p51 = scmp.ne.s32.totalorder %s43, %s45
    %p52 = scmp.eq.s32.totalorder %s14, 1
    %p53 = por %p51, %p52
    %p54 = scmp.ne.s32.totalorder %s45, %s46
    %p55 = scmp.eq.s32.totalorder %s14, 0
    %p56 = por %p54, %p55
    %p57 = scmp.ne.s32.totalorder %s45, %s46
    %p58 = scmp.eq.s32.totalorder %s15, 1
    %p59 = por %p57, %p58
    %p61 = scmp.ne.s32.totalorder %s46, %s60
    %p62 = scmp.eq.s32.totalorder %s15, 0
    %p63 = por %p61, %p62
    %s65 = sadd.s32 %s64, 1
    %p68 = scmp.eq.s32.totalorder %s9, 1
    %p69 = scmp.ne.s32.totalorder %s64, %s66
    %p70 = scmp.eq.s32.totalorder %s9, 0
    %p71 = por %p69, %p70
    %p72 = scmp.ne.s32.totalorder %s64, %s66
    %p73 = scmp.eq.s32.totalorder %s14, 1
    %p74 = por %p72, %p73
    %p75 = scmp.ne.s32.totalorder %s66, %s67
    %p76 = scmp.eq.s32.totalorder %s14, 0
    %p77 = por %p75, %p76
    %p78 = scmp.ne.s32.totalorder %s66, %s67
    %p79 = scmp.eq.s32.totalorder %s15, 1
    %p80 = por %p78, %p79
    %p82 = scmp.ne.s32.totalorder %s67, %s81
    %p83 = scmp.eq.s32.totalorder %s15, 0
    %p84 = por %p82, %p83
    %s85 = ssub.s32 %s9, %s16
    %p86 = scmp.eq.s32.totalorder %s85, 0
    %s88 = sadd.s32 %s87, 1
    %s89 = scalar_select %p86, %s87, %s88
    %p92 = pneg %p86
    %p93 = scmp.eq.s32.totalorder %s9, 1
    %p94 = por %p92, %p93
    %p95 = scmp.ne.s32.totalorder %s87, %s90
    %p96 = scmp.eq.s32.totalorder %s9, 0
    %p97 = por %p95, %p96
    %p98 = scmp.ne.s32.totalorder %s87, %s90
    %p99 = scmp.eq.s32.totalorder %s14, 1
    %p100 = por %p98, %p99
    %p101 = scmp.ne.s32.totalorder %s90, %s91
    %p102 = scmp.eq.s32.totalorder %s14, 0
    %p103 = por %p101, %p102
    %p104 = scmp.ne.s32.totalorder %s90, %s91
    %p105 = scmp.eq.s32.totalorder %s15, 1
    %p106 = por %p104, %p105
    %p108 = scmp.ne.s32.totalorder %s91, %s107
    %p109 = scmp.eq.s32.totalorder %s15, 0
    %p110 = por %p108, %p109
    %p111 = scmp.le.s32.totalorder 1, %s9
    %p112 = scmp.lt.s32.totalorder %s9, 3
    %p113 = pnand %p111, %p112
    %p114 = pneg %p113
    // Predicated region
    $region9: #{net_forward.8} parent=5 // pred_check
      _
    $region10: #{net_forward.8} parent=5 // pred_check_branch
      %116 = sbr.rel (%p113) target = $region12
    $region11: #{net_forward.8} parent=5 // pred_region
      %s117 = ssub.s32 %s9, 1
      // Predicated region
      $region13: #{net_forward.8} parent=11 // pred_check
        %p118 = pneg %p56
      $region14: #{net_forward.8} parent=11 // pred_check_branch
        %120 = sbr.rel (%p118) target = $region16
      $region15: #{net_forward.8} parent=11 // pred_region
        _
      $region16: #{net_forward.8} parent=11 // pred_fallthru
        _
      // Predicated region
      $region17: #{net_forward.8} parent=11 // pred_check
        %p121 = pneg %p77
      $region18: #{net_forward.8} parent=11 // pred_check_branch
        %123 = sbr.rel (%p121) target = $region20
      $region19: #{net_forward.8} parent=11 // pred_region
        _
      $region20: #{net_forward.8} parent=11 // pred_fallthru
        _
    $region12: #{net_forward.8} parent=5 // pred_fallthru
      _
    %p124 = scmp.lt.s32.totalorder %s9, 2
    // Predicated region
    $region21: #{net_forward.8} parent=5 // pred_check
      %p125 = pneg %p124
    $region22: #{net_forward.8} parent=5 // pred_check_branch
      %127 = sbr.rel (%p125) target = $region24
    $region23: #{net_forward.8} parent=5 // pred_region
      // Predicated region
      $region25: #{net_forward.8} parent=23 // pred_check
        %p128 = pneg %p29
      $region26: #{net_forward.8} parent=23 // pred_check_branch
        %130 = sbr.rel (%p128) target = $region28
      $region27: #{net_forward.8} parent=23 // pred_region
        %p131 = scmp.lt.s32.totalorder %s9, 1
        %s132 = scalar_select %p131, %s9, 1
        %s133 = smul.addr %s132, 72
        %s134 = smul.addr %s133, 4
        %s135 = scalar_lea.vmem %s0, %s134
      $region28: #{net_forward.8} parent=23 // pred_fallthru
        _
    $region24: #{net_forward.8} parent=5 // pred_fallthru
      _
    %p136 = scmp.le.s32.totalorder 1, %s9
    %p137 = scmp.lt.s32.totalorder %s9, 3
    %p138 = pnand %p136, %p137
    %p139 = pneg %p138
    // Predicated region
    $region29: #{net_forward.8} parent=5 // pred_check
      _
    $region30: #{net_forward.8} parent=5 // pred_check_branch
      %141 = sbr.rel (%p138) target = $region32
    $region31: #{net_forward.8} parent=5 // pred_region
      %s142 = ssub.s32 %s9, 1
      %p143 = scmp.lt.s32.totalorder %s14, 1
      %s144 = scalar_select %p143, %s14, 1
      %s145 = smul.addr %s144, 72
      %s146 = smul.addr %s145, 4
      %s147 = scalar_lea.vmem %s0, %s146
      %p148 = pneg %p35
      %p149 = pneg %p32
      %p150 = pneg %p56
      %p151 = pneg %p53
      %p152 = pneg %p77
      %p153 = pneg %p74
      %p154 = pneg %p103
      %p155 = pneg %p100
      %p156 = scmp.lt.s32.totalorder %s14, 1
      %s157 = scalar_select %p156, %s14, 1
      %s158 = smul.addr %s157, 66
      %s159 = smul.addr %s158, 4
      %s160 = scalar_lea.vmem %s3, %s159
      %p161 = scmp.lt.s32.totalorder %s14, 1
      %s162 = scalar_select %p161, %s14, 1
      %s163 = smul.addr %s162, 72
      %s164 = smul.addr %s163, 4
      %s165 = scalar_lea.vmem %s0, %s164
      %p166 = scmp.lt.s32.totalorder %s14, 1
      %s167 = scalar_select %p166, %s14, 1
      %s168 = smul.addr %s167, 66
      %s169 = smul.addr %s168, 4
      %s170 = scalar_lea.vmem %s3, %s169
      %v172 = vld [vmem:[%s2] sm:$0x1]
      loop: start=0, step=1, limit=22
      $region33: #{net_forward.8} parent=31 // loop_pre_header
        _
      $region34: #{net_forward.8} parent=31 // loop_header
        %s174 = sphi 0, %s178
        %p175 = scmp.ge.s32.totalorder %s174, 22
      $region35: #{net_forward.8} parent=31 // loop_header_branch
        %177 = sbr.rel (%p175) target = $region39
      $region36: #{net_forward.8} parent=31 // loop_body
        %s179 = smul.u32 %s174, 3
        %s180 = smul.addr %s179, 4
        %s181 = scalar_lea.vmem %s165, %s180
        %v182 = vld [vmem:[%s181] sm:$0xf]
        %v183 = vld [vmem:[%s181 + $0x4] sm:$0xf]
        %v184 = vld [vmem:[%s181 + $0x8] sm:$0xf]
        %v185 = vunpack.c.l.bf16 %v182
        %v186 = vunpack.c.l.bf16 %v183
        %v187 = vunpack.c.l.bf16 %v184
        %v188 = vpack.c.bf16 %v186, %v185
        %v189 = vpack.c.bf16 %v187, %v187
        %v190 = vld [vmem:[%s1] sm:$0xf]
        %v191 = vld [vmem:[%s1 + $0x4] sm:$0xf]
        %v192 = vld [vmem:[%s1 + $0x8] sm:$0xf]
        %v193 = vld [vmem:[%s1 + $0xc] sm:$0xf]
        %v194 = vld [vmem:[%s1 + $0x10] sm:$0xf]
        %v195 = vld [vmem:[%s1 + $0x14] sm:$0xf]
        %v196 = vld [vmem:[%s1 + $0x18] sm:$0xf]
        %v197 = vld [vmem:[%s1 + $0x1c] sm:$0xf]
        %v198 = vld [vmem:[%s1 + $0x20] sm:$0xf]
        %v199 = vld [vmem:[%s1 + $0x24] sm:$0xf]
        %v200 = vld [vmem:[%s1 + $0x28] sm:$0xf]
        %v201 = vld [vmem:[%s1 + $0x2c] sm:$0xf]
        %v202 = vld [vmem:[%s1 + $0x30] sm:$0xf]
        %v203 = vld [vmem:[%s1 + $0x34] sm:$0xf]
        %v204 = vld [vmem:[%s1 + $0x38] sm:$0xf]
        %v205 = vld [vmem:[%s1 + $0x3c] sm:$0xf]
        %s206 = scalar_lea.vmem %s1, 64
        %v207 = vld [vmem:[%s206] sm:$0xf]
        %v208 = vld [vmem:[%s206 + $0x4] sm:$0xf]
        %v209 = vld [vmem:[%s206 + $0x8] sm:$0xf]
        %v210 = vld [vmem:[%s206 + $0xc] sm:$0xf]
        %v211 = vld [vmem:[%s206 + $0x10] sm:$0xf]
        %v212 = vld [vmem:[%s206 + $0x14] sm:$0xf]
        %v213 = vld [vmem:[%s206 + $0x18] sm:$0xf]
        %v214 = vld [vmem:[%s206 + $0x1c] sm:$0xf]
        %v215 = vld [vmem:[%s206 + $0x20] sm:$0xf]
        %v216 = vld [vmem:[%s206 + $0x24] sm:$0xf]
        %v217 = vld [vmem:[%s206 + $0x28] sm:$0xf]
        %v218 = vld [vmem:[%s206 + $0x2c] sm:$0xf]
        %v219 = vld [vmem:[%s206 + $0x30] sm:$0xf]
        %v220 = vld [vmem:[%s206 + $0x34] sm:$0xf]
        %v221 = vld [vmem:[%s206 + $0x38] sm:$0xf]
        %v222 = vld [vmem:[%s206 + $0x3c] sm:$0xf]
        %vm223 = vsmask.f32 7424
        %v225 = vshrl.u32 %v188, 16
        %v227 = vshll.u32 %v188, 16
        %v229 = vrot.slane %v227, 1
        %v230 = vor.u32 %v225, %v229
        %v232 = vshll.u32 %v189, 16
        %v234 = vrot.slane %v232, 1
        %v235 = vsel %vm223, %v230, %v234
        %v236 = vshrl.u32 %v189, 16
        %v238 = vor.u32 %v236, %v234
        %v257 = vunpack.c.l.b16 %v207
        %v258 = vunpack.c.l.b16 %v208
        %v259 = vunpack.c.l.b16 %v209
        %v260 = vunpack.c.l.b16 %v210
        %v261 = vunpack.c.l.b16 %v211
        %v262 = vunpack.c.l.b16 %v212
        %v263 = vunpack.c.l.b16 %v213
        %v264 = vunpack.c.l.b16 %v214
        %v265 = vunpack.c.l.b16 %v215
        %v266 = vunpack.c.l.b16 %v216
        %v267 = vunpack.c.l.b16 %v217
        %v268 = vunpack.c.l.b16 %v218
        %v269 = vunpack.c.l.b16 %v219
        %v270 = vunpack.c.l.b16 %v220
        %v271 = vunpack.c.l.b16 %v221
        %v272 = vunpack.c.l.b16 %v222
        %v273 = vpack.c.b16 %v258, %v257
        %v274 = vpack.c.b16 %v260, %v259
        %v275 = vpack.c.b16 %v262, %v261
        %v276 = vpack.c.b16 %v264, %v263
        %v277 = vpack.c.b16 %v266, %v265
        %v278 = vpack.c.b16 %v268, %v267
        %v279 = vpack.c.b16 %v270, %v269
        %v280 = vpack.c.b16 %v272, %v271
        %289 = vmatprep.subr.bf16.mxu0 0
        %290 = vmatpush1.bf16.msra.mxu0 %v273
        %291 = vmatprep.subr.bf16.mxu0 0
        %292 = vmatpush1.bf16.msra.mxu0 %v274
        %293 = vmatprep.subr.bf16.mxu0 0
        %294 = vmatpush1.bf16.msra.mxu0 %v275
        %295 = vmatprep.subr.bf16.mxu0 0
        %296 = vmatpush1.bf16.msra.mxu0 %v276
        %297 = vmatprep.subr.bf16.mxu0 0
        %298 = vmatpush1.bf16.msra.mxu0 %v277
        %299 = vmatprep.subr.bf16.mxu0 0
        %300 = vmatpush1.bf16.msra.mxu0 %v278
        %301 = vmatprep.subr.bf16.mxu0 0
        %302 = vmatpush1.bf16.msra.mxu0 %v279
        %303 = vmatprep.subr.bf16.mxu0 0
        %304 = vmatpush1.bf16.msra.mxu0 %v280
        %305 = vmatprep.subr.bf16.mxu0 0
        %306 = vmatpush1.bf16.msra.mxu0 0
        %307 = vmatprep.subr.bf16.mxu0 0
        %308 = vmatpush1.bf16.msra.mxu0 0
        %309 = vmatprep.subr.bf16.mxu0 0
        %310 = vmatpush1.bf16.msra.mxu0 0
        %311 = vmatprep.subr.bf16.mxu0 0
        %312 = vmatpush1.bf16.msra.mxu0 0
        %313 = vmatprep.subr.bf16.mxu0 0
        %314 = vmatpush1.bf16.msra.mxu0 0
        %315 = vmatprep.subr.bf16.mxu0 0
        %316 = vmatpush1.bf16.msra.mxu0 0
        %317 = vmatprep.subr.bf16.mxu0 0
        %318 = vmatpush1.bf16.msra.mxu0 0
        %319 = vmatprep.subr.bf16.mxu0 0
        %320 = vmatpush1.bf16.msra.mxu0 0
        %321 = vmatprep.mubr.bf16.mxu0 0
        %322 = vmatmul.mubr.bf16.gmra.mrb[0].mxu0 %v235
        %v323 = vpop.f32.mrb[0].mxu0
        %v324 = vadd.f32 0.0, %v323
        %v325 = vpop.f32.mrb[0].mxu0
        %v326 = vpop.f32.mrb[0].mxu0
        %v327 = vadd.f32 0.0, %v326
        %v328 = vpop.f32.mrb[0].mxu0
        %329 = vmatprep.mubr.bf16.mxu0 0
        %330 = vmatmul.mubr.bf16.gmra.mrb[0].mxu0 %v238
        %v331 = vpop.f32.mrb[0].mxu0
        %v332 = vadd.f32 0.0, %v331
        %v333 = vpop.f32.mrb[0].mxu0
        %v334 = vpop.f32.mrb[0].mxu0
        %v335 = vpop.f32.mrb[0].mxu0
        %336 = vdwg.mxu0
        %v353 = vunpack.c.l.b16 %v190
        %v354 = vunpack.c.l.b16 %v191
        %v355 = vunpack.c.l.b16 %v192
        %v356 = vunpack.c.l.b16 %v193
        %v357 = vunpack.c.l.b16 %v194
        %v358 = vunpack.c.l.b16 %v195
        %v359 = vunpack.c.l.b16 %v196
        %v360 = vunpack.c.l.b16 %v197
        %v361 = vunpack.c.l.b16 %v198
        %v362 = vunpack.c.l.b16 %v199
        %v363 = vunpack.c.l.b16 %v200
        %v364 = vunpack.c.l.b16 %v201
        %v365 = vunpack.c.l.b16 %v202
        %v366 = vunpack.c.l.b16 %v203
        %v367 = vunpack.c.l.b16 %v204
        %v368 = vunpack.c.l.b16 %v205
        %v369 = vpack.c.b16 %v354, %v353
        %v370 = vpack.c.b16 %v356, %v355
        %v371 = vpack.c.b16 %v358, %v357
        %v372 = vpack.c.b16 %v360, %v359
        %v373 = vpack.c.b16 %v362, %v361
        %v374 = vpack.c.b16 %v364, %v363
        %v375 = vpack.c.b16 %v366, %v365
        %v376 = vpack.c.b16 %v368, %v367
        %385 = vmatprep.subr.bf16.mxu0 0
        %386 = vmatpush1.bf16.msra.mxu0 %v369
        %387 = vmatprep.subr.bf16.mxu0 0
        %388 = vmatpush1.bf16.msra.mxu0 %v370
        %389 = vmatprep.subr.bf16.mxu0 0
        %390 = vmatpush1.bf16.msra.mxu0 %v371
        %391 = vmatprep.subr.bf16.mxu0 0
        %392 = vmatpush1.bf16.msra.mxu0 %v372
        %393 = vmatprep.subr.bf16.mxu0 0
        %394 = vmatpush1.bf16.msra.mxu0 %v373
        %395 = vmatprep.subr.bf16.mxu0 0
        %396 = vmatpush1.bf16.msra.mxu0 %v374
        %397 = vmatprep.subr.bf16.mxu0 0
        %398 = vmatpush1.bf16.msra.mxu0 %v375
        %399 = vmatprep.subr.bf16.mxu0 0
        %400 = vmatpush1.bf16.msra.mxu0 %v376
        %401 = vmatprep.subr.bf16.mxu0 0
        %402 = vmatpush1.bf16.msra.mxu0 0
        %403 = vmatprep.subr.bf16.mxu0 0
        %404 = vmatpush1.bf16.msra.mxu0 0
        %405 = vmatprep.subr.bf16.mxu0 0
        %406 = vmatpush1.bf16.msra.mxu0 0
        %407 = vmatprep.subr.bf16.mxu0 0
        %408 = vmatpush1.bf16.msra.mxu0 0
        %409 = vmatprep.subr.bf16.mxu0 0
        %410 = vmatpush1.bf16.msra.mxu0 0
        %411 = vmatprep.subr.bf16.mxu0 0
        %412 = vmatpush1.bf16.msra.mxu0 0
        %413 = vmatprep.subr.bf16.mxu0 0
        %414 = vmatpush1.bf16.msra.mxu0 0
        %415 = vmatprep.subr.bf16.mxu0 0
        %416 = vmatpush1.bf16.msra.mxu0 0
        %417 = vmatprep.mubr.bf16.mxu0 0
        %418 = vmatmul.mubr.bf16.gmra.mrb[0].mxu0 %v188
        %v419 = vpop.f32.mrb[0].mxu0
        %v420 = vadd.f32 %v324, %v419
        %v421 = vpop.f32.mrb[0].mxu0
        %v422 = vpop.f32.mrb[0].mxu0
        %v423 = vadd.f32 %v327, %v422
        %v424 = vpop.f32.mrb[0].mxu0
        %425 = vmatprep.mubr.bf16.mxu0 0
        %426 = vmatmul.mubr.bf16.gmra.mrb[0].mxu0 %v189
        %v427 = vpop.f32.mrb[0].mxu0
        %v428 = vadd.f32 %v332, %v427
        %v429 = vpop.f32.mrb[0].mxu0
        %v430 = vpop.f32.mrb[0].mxu0
        %v431 = vpop.f32.mrb[0].mxu0
        %432 = vdwg.mxu0
        %s433 = scalar_lea.vmem %s1, 128
        %v434 = vld [vmem:[%s433] sm:$0xf]
        %v435 = vld [vmem:[%s433 + $0x4] sm:$0xf]
        %v436 = vld [vmem:[%s433 + $0x8] sm:$0xf]
        %v437 = vld [vmem:[%s433 + $0xc] sm:$0xf]
        %v438 = vld [vmem:[%s433 + $0x10] sm:$0xf]
        %v439 = vld [vmem:[%s433 + $0x14] sm:$0xf]
        %v440 = vld [vmem:[%s433 + $0x18] sm:$0xf]
        %v441 = vld [vmem:[%s433 + $0x1c] sm:$0xf]
        %v442 = vld [vmem:[%s433 + $0x20] sm:$0xf]
        %v443 = vld [vmem:[%s433 + $0x24] sm:$0xf]
        %v444 = vld [vmem:[%s433 + $0x28] sm:$0xf]
        %v445 = vld [vmem:[%s433 + $0x2c] sm:$0xf]
        %v446 = vld [vmem:[%s433 + $0x30] sm:$0xf]
        %v447 = vld [vmem:[%s433 + $0x34] sm:$0xf]
        %v448 = vld [vmem:[%s433 + $0x38] sm:$0xf]
        %v449 = vld [vmem:[%s433 + $0x3c] sm:$0xf]
        %vm452 = vcmask 1046528
        %v453 = vrot.slane %v188, 1
        %v454 = vrot.slane %v189, 1
        %v455 = vsel %vm452, %v453, %v454
        %v474 = vunpack.c.l.b16 %v434
        %v475 = vunpack.c.l.b16 %v435
        %v476 = vunpack.c.l.b16 %v436
        %v477 = vunpack.c.l.b16 %v437
        %v478 = vunpack.c.l.b16 %v438
        %v479 = vunpack.c.l.b16 %v439
        %v480 = vunpack.c.l.b16 %v440
        %v481 = vunpack.c.l.b16 %v441
        %v482 = vunpack.c.l.b16 %v442
        %v483 = vunpack.c.l.b16 %v443
        %v484 = vunpack.c.l.b16 %v444
        %v485 = vunpack.c.l.b16 %v445
        %v486 = vunpack.c.l.b16 %v446
        %v487 = vunpack.c.l.b16 %v447
        %v488 = vunpack.c.l.b16 %v448
        %v489 = vunpack.c.l.b16 %v449
        %v490 = vpack.c.b16 %v475, %v474
        %v491 = vpack.c.b16 %v477, %v476
        %v492 = vpack.c.b16 %v479, %v478
        %v493 = vpack.c.b16 %v481, %v480
        %v494 = vpack.c.b16 %v483, %v482
        %v495 = vpack.c.b16 %v485, %v484
        %v496 = vpack.c.b16 %v487, %v486
        %v497 = vpack.c.b16 %v489, %v488
        %506 = vmatprep.subr.bf16.mxu0 0
        %507 = vmatpush1.bf16.msra.mxu0 %v490
        %508 = vmatprep.subr.bf16.mxu0 0
        %509 = vmatpush1.bf16.msra.mxu0 %v491
        %510 = vmatprep.subr.bf16.mxu0 0
        %511 = vmatpush1.bf16.msra.mxu0 %v492
        %512 = vmatprep.subr.bf16.mxu0 0
        %513 = vmatpush1.bf16.msra.mxu0 %v493
        %514 = vmatprep.subr.bf16.mxu0 0
        %515 = vmatpush1.bf16.msra.mxu0 %v494
        %516 = vmatprep.subr.bf16.mxu0 0
        %517 = vmatpush1.bf16.msra.mxu0 %v495
        %518 = vmatprep.subr.bf16.mxu0 0
        %519 = vmatpush1.bf16.msra.mxu0 %v496
        %520 = vmatprep.subr.bf16.mxu0 0
        %521 = vmatpush1.bf16.msra.mxu0 %v497
        %522 = vmatprep.subr.bf16.mxu0 0
        %523 = vmatpush1.bf16.msra.mxu0 0
        %524 = vmatprep.subr.bf16.mxu0 0
        %525 = vmatpush1.bf16.msra.mxu0 0
        %526 = vmatprep.subr.bf16.mxu0 0
        %527 = vmatpush1.bf16.msra.mxu0 0
        %528 = vmatprep.subr.bf16.mxu0 0
        %529 = vmatpush1.bf16.msra.mxu0 0
        %530 = vmatprep.subr.bf16.mxu0 0
        %531 = vmatpush1.bf16.msra.mxu0 0
        %532 = vmatprep.subr.bf16.mxu0 0
        %533 = vmatpush1.bf16.msra.mxu0 0
        %534 = vmatprep.subr.bf16.mxu0 0
        %535 = vmatpush1.bf16.msra.mxu0 0
        %536 = vmatprep.subr.bf16.mxu0 0
        %537 = vmatpush1.bf16.msra.mxu0 0
        %538 = vmatprep.mubr.bf16.mxu0 0
        %539 = vmatmul.mubr.bf16.gmra.mrb[0].mxu0 %v455
        %v540 = vpop.f32.mrb[0].mxu0
        %v541 = vadd.f32 0.0, %v540
        %v542 = vpop.f32.mrb[0].mxu0
        %v543 = vpop.f32.mrb[0].mxu0
        %v544 = vadd.f32 0.0, %v543
        %v545 = vpop.f32.mrb[0].mxu0
        %546 = vmatprep.mubr.bf16.mxu0 0
        %547 = vmatmul.mubr.bf16.gmra.mrb[0].mxu0 %v454
        %v548 = vpop.f32.mrb[0].mxu0
        %v549 = vadd.f32 0.0, %v548
        %v550 = vpop.f32.mrb[0].mxu0
        %v551 = vpop.f32.mrb[0].mxu0
        %v552 = vpop.f32.mrb[0].mxu0
        %553 = vdwg.mxu0
        %v554 = vadd.f32 %v420, %v541
        %v555 = vadd.f32 %v423, %v544
        %v556 = vadd.f32 %v428, %v549
        %s557 = sadd.s32 %s174, 1
        %s558 = smul.u32 %s557, 3
        %s559 = smul.addr %s558, 4
        %s560 = scalar_lea.vmem %s165, %s559
        %v561 = vld [vmem:[%s560] sm:$0xf]
        %v562 = vld [vmem:[%s560 + $0x4] sm:$0xf]
        %v563 = vld [vmem:[%s560 + $0x8] sm:$0xf]
        %v564 = vunpack.c.l.bf16 %v561
        %v565 = vunpack.c.l.bf16 %v562
        %v566 = vunpack.c.l.bf16 %v563
        %v567 = vpack.c.bf16 %v565, %v564
        %v568 = vpack.c.bf16 %v566, %v566
        %s569 = scalar_lea.vmem %s1, 192
        %v570 = vld [vmem:[%s569] sm:$0xf]
        %v571 = vld [vmem:[%s569 + $0x4] sm:$0xf]
        %v572 = vld [vmem:[%s569 + $0x8] sm:$0xf]
        %v573 = vld [vmem:[%s569 + $0xc] sm:$0xf]
        %v574 = vld [vmem:[%s569 + $0x10] sm:$0xf]
        %v575 = vld [vmem:[%s569 + $0x14] sm:$0xf]
        %v576 = vld [vmem:[%s569 + $0x18] sm:$0xf]
        %v577 = vld [vmem:[%s569 + $0x1c] sm:$0xf]
        %v578 = vld [vmem:[%s569 + $0x20] sm:$0xf]
        %v579 = vld [vmem:[%s569 + $0x24] sm:$0xf]
        %v580 = vld [vmem:[%s569 + $0x28] sm:$0xf]
        %v581 = vld [vmem:[%s569 + $0x2c] sm:$0xf]
        %v582 = vld [vmem:[%s569 + $0x30] sm:$0xf]
        %v583 = vld [vmem:[%s569 + $0x34] sm:$0xf]
        %v584 = vld [vmem:[%s569 + $0x38] sm:$0xf]
        %v585 = vld [vmem:[%s569 + $0x3c] sm:$0xf]
        %v602 = vunpack.c.l.b16 %v570
        %v603 = vunpack.c.l.b16 %v571
        %v604 = vunpack.c.l.b16 %v572
        %v605 = vunpack.c.l.b16 %v573
        %v606 = vunpack.c.l.b16 %v574
        %v607 = vunpack.c.l.b16 %v575
        %v608 = vunpack.c.l.b16 %v576
        %v609 = vunpack.c.l.b16 %v577
        %v610 = vunpack.c.l.b16 %v578
        %v611 = vunpack.c.l.b16 %v579
        %v612 = vunpack.c.l.b16 %v580
        %v613 = vunpack.c.l.b16 %v581
        %v614 = vunpack.c.l.b16 %v582
        %v615 = vunpack.c.l.b16 %v583
        %v616 = vunpack.c.l.b16 %v584
        %v617 = vunpack.c.l.b16 %v585
        %v618 = vpack.c.b16 %v603, %v602
        %v619 = vpack.c.b16 %v605, %v604
        %v620 = vpack.c.b16 %v607, %v606
        %v621 = vpack.c.b16 %v609, %v608
        %v622 = vpack.c.b16 %v611, %v610
        %v623 = vpack.c.b16 %v613, %v612
        %v624 = vpack.c.b16 %v615, %v614
        %v625 = vpack.c.b16 %v617, %v616
        %634 = vmatprep.subr.bf16.mxu0 0
        %635 = vmatpush1.bf16.msra.mxu0 %v618
        %636 = vmatprep.subr.bf16.mxu0 0
        %637 = vmatpush1.bf16.msra.mxu0 %v619
        %638 = vmatprep.subr.bf16.mxu0 0
        %639 = vmatpush1.bf16.msra.mxu0 %v620
        %640 = vmatprep.subr.bf16.mxu0 0
        %641 = vmatpush1.bf16.msra.mxu0 %v621
        %642 = vmatprep.subr.bf16.mxu0 0
        %643 = vmatpush1.bf16.msra.mxu0 %v622
        %644 = vmatprep.subr.bf16.mxu0 0
        %645 = vmatpush1.bf16.msra.mxu0 %v623
        %646 = vmatprep.subr.bf16.mxu0 0
        %647 = vmatpush1.bf16.msra.mxu0 %v624
        %648 = vmatprep.subr.bf16.mxu0 0
        %649 = vmatpush1.bf16.msra.mxu0 %v625
        %650 = vmatprep.subr.bf16.mxu0 0
        %651 = vmatpush1.bf16.msra.mxu0 0
        %652 = vmatprep.subr.bf16.mxu0 0
        %653 = vmatpush1.bf16.msra.mxu0 0
        %654 = vmatprep.subr.bf16.mxu0 0
        %655 = vmatpush1.bf16.msra.mxu0 0
        %656 = vmatprep.subr.bf16.mxu0 0
        %657 = vmatpush1.bf16.msra.mxu0 0
        %658 = vmatprep.subr.bf16.mxu0 0
        %659 = vmatpush1.bf16.msra.mxu0 0
        %660 = vmatprep.subr.bf16.mxu0 0
        %661 = vmatpush1.bf16.msra.mxu0 0
        %662 = vmatprep.subr.bf16.mxu0 0
        %663 = vmatpush1.bf16.msra.mxu0 0
        %664 = vmatprep.subr.bf16.mxu0 0
        %665 = vmatpush1.bf16.msra.mxu0 0
        %666 = vmatprep.mubr.bf16.mxu0 0
        %667 = vmatmul.mubr.bf16.gmra.mrb[0].mxu0 %v567
        %v668 = vpop.f32.mrb[0].mxu0
        %v669 = vadd.f32 0.0, %v668
        %v670 = vpop.f32.mrb[0].mxu0
        %v671 = vpop.f32.mrb[0].mxu0
        %v672 = vadd.f32 0.0, %v671
        %v673 = vpop.f32.mrb[0].mxu0
        %674 = vmatprep.mubr.bf16.mxu0 0
        %675 = vmatmul.mubr.bf16.gmra.mrb[0].mxu0 %v568
        %v676 = vpop.f32.mrb[0].mxu0
        %v677 = vadd.f32 0.0, %v676
        %v678 = vpop.f32.mrb[0].mxu0
        %v679 = vpop.f32.mrb[0].mxu0
        %v680 = vpop.f32.mrb[0].mxu0
        %681 = vdwg.mxu0
        %v682 = vadd.f32 %v554, %v669
        %v683 = vadd.f32 %v555, %v672
        %v684 = vadd.f32 %v556, %v677
        %s685 = scalar_lea.vmem %s1, 256
        %v686 = vld [vmem:[%s685] sm:$0xf]
        %v687 = vld [vmem:[%s685 + $0x4] sm:$0xf]
        %v688 = vld [vmem:[%s685 + $0x8] sm:$0xf]
        %v689 = vld [vmem:[%s685 + $0xc] sm:$0xf]
        %v690 = vld [vmem:[%s685 + $0x10] sm:$0xf]
        %v691 = vld [vmem:[%s685 + $0x14] sm:$0xf]
        %v692 = vld [vmem:[%s685 + $0x18] sm:$0xf]
        %v693 = vld [vmem:[%s685 + $0x1c] sm:$0xf]
        %v694 = vld [vmem:[%s685 + $0x20] sm:$0xf]
        %v695 = vld [vmem:[%s685 + $0x24] sm:$0xf]
        %v696 = vld [vmem:[%s685 + $0x28] sm:$0xf]
        %v697 = vld [vmem:[%s685 + $0x2c] sm:$0xf]
        %v698 = vld [vmem:[%s685 + $0x30] sm:$0xf]
        %v699 = vld [vmem:[%s685 + $0x34] sm:$0xf]
        %v700 = vld [vmem:[%s685 + $0x38] sm:$0xf]
        %v701 = vld [vmem:[%s685 + $0x3c] sm:$0xf]
        %v703 = vshrl.u32 %v567, 16
        %v705 = vshll.u32 %v567, 16
        %v707 = vrot.slane %v705, 1
        %v708 = vor.u32 %v703, %v707
        %v710 = vshll.u32 %v568, 16
        %v712 = vrot.slane %v710, 1
        %v713 = vsel %vm223, %v708, %v712
        %v714 = vshrl.u32 %v568, 16
        %v716 = vor.u32 %v714, %v712
        %v735 = vunpack.c.l.b16 %v686
        %v736 = vunpack.c.l.b16 %v687
        %v737 = vunpack.c.l.b16 %v688
        %v738 = vunpack.c.l.b16 %v689
        %v739 = vunpack.c.l.b16 %v690
        %v740 = vunpack.c.l.b16 %v691
        %v741 = vunpack.c.l.b16 %v692
        %v742 = vunpack.c.l.b16 %v693
        %v743 = vunpack.c.l.b16 %v694
        %v744 = vunpack.c.l.b16 %v695
        %v745 = vunpack.c.l.b16 %v696
        %v746 = vunpack.c.l.b16 %v697
        %v747 = vunpack.c.l.b16 %v698
        %v748 = vunpack.c.l.b16 %v699
        %v749 = vunpack.c.l.b16 %v700
        %v750 = vunpack.c.l.b16 %v701
        %v751 = vpack.c.b16 %v736, %v735
        %v752 = vpack.c.b16 %v738, %v737
        %v753 = vpack.c.b16 %v740, %v739
        %v754 = vpack.c.b16 %v742, %v741
        %v755 = vpack.c.b16 %v744, %v743
        %v756 = vpack.c.b16 %v746, %v745
        %v757 = vpack.c.b16 %v748, %v747
        %v758 = vpack.c.b16 %v750, %v749
        %767 = vmatprep.subr.bf16.mxu0 0
        %768 = vmatpush1.bf16.msra.mxu0 %v751
        %769 = vmatprep.subr.bf16.mxu0 0
        %770 = vmatpush1.bf16.msra.mxu0 %v752
        %771 = vmatprep.subr.bf16.mxu0 0
        %772 = vmatpush1.bf16.msra.mxu0 %v753
        %773 = vmatprep.subr.bf16.mxu0 0
        %774 = vmatpush1.bf16.msra.mxu0 %v754
        %775 = vmatprep.subr.bf16.mxu0 0
        %776 = vmatpush1.bf16.msra.mxu0 %v755
        %777 = vmatprep.subr.bf16.mxu0 0
        %778 = vmatpush1.bf16.msra.mxu0 %v756
        %779 = vmatprep.subr.bf16.mxu0 0
        %780 = vmatpush1.bf16.msra.mxu0 %v757
        %781 = vmatprep.subr.bf16.mxu0 0
        %782 = vmatpush1.bf16.msra.mxu0 %v758
        %783 = vmatprep.subr.bf16.mxu0 0
        %784 = vmatpush1.bf16.msra.mxu0 0
        %785 = vmatprep.subr.bf16.mxu0 0
        %786 = vmatpush1.bf16.msra.mxu0 0
        %787 = vmatprep.subr.bf16.mxu0 0
        %788 = vmatpush1.bf16.msra.mxu0 0
        %789 = vmatprep.subr.bf16.mxu0 0
        %790 = vmatpush1.bf16.msra.mxu0 0
        %791 = vmatprep.subr.bf16.mxu0 0
        %792 = vmatpush1.bf16.msra.mxu0 0
        %793 = vmatprep.subr.bf16.mxu0 0
        %794 = vmatpush1.bf16.msra.mxu0 0
        %795 = vmatprep.subr.bf16.mxu0 0
        %796 = vmatpush1.bf16.msra.mxu0 0
        %797 = vmatprep.subr.bf16.mxu0 0
        %798 = vmatpush1.bf16.msra.mxu0 0
        %799 = vmatprep.mubr.bf16.mxu0 0
        %800 = vmatmul.mubr.bf16.gmra.mrb[0].mxu0 %v713
        %v801 = vpop.f32.mrb[0].mxu0
        %v802 = vadd.f32 0.0, %v801
        %v803 = vpop.f32.mrb[0].mxu0
        %v804 = vpop.f32.mrb[0].mxu0
        %v805 = vadd.f32 0.0, %v804
        %v806 = vpop.f32.mrb[0].mxu0
        %807 = vmatprep.mubr.bf16.mxu0 0
        %808 = vmatmul.mubr.bf16.gmra.mrb[0].mxu0 %v716
        %v809 = vpop.f32.mrb[0].mxu0
        %v810 = vadd.f32 0.0, %v809
        %v811 = vpop.f32.mrb[0].mxu0
        %v812 = vpop.f32.mrb[0].mxu0
        %v813 = vpop.f32.mrb[0].mxu0
        %814 = vdwg.mxu0
        %v815 = vadd.f32 %v682, %v802
        %v816 = vadd.f32 %v683, %v805
        %v817 = vadd.f32 %v684, %v810
        %s818 = scalar_lea.vmem %s1, 320
        %v819 = vld [vmem:[%s818] sm:$0xf]
        %v820 = vld [vmem:[%s818 + $0x4] sm:$0xf]
        %v821 = vld [vmem:[%s818 + $0x8] sm:$0xf]
        %v822 = vld [vmem:[%s818 + $0xc] sm:$0xf]
        %v823 = vld [vmem:[%s818 + $0x10] sm:$0xf]
        %v824 = vld [vmem:[%s818 + $0x14] sm:$0xf]
        %v825 = vld [vmem:[%s818 + $0x18] sm:$0xf]
        %v826 = vld [vmem:[%s818 + $0x1c] sm:$0xf]
        %v827 = vld [vmem:[%s818 + $0x20] sm:$0xf]
        %v828 = vld [vmem:[%s818 + $0x24] sm:$0xf]
        %v829 = vld [vmem:[%s818 + $0x28] sm:$0xf]
        %v830 = vld [vmem:[%s818 + $0x2c] sm:$0xf]
        %v831 = vld [vmem:[%s818 + $0x30] sm:$0xf]
        %v832 = vld [vmem:[%s818 + $0x34] sm:$0xf]
        %v833 = vld [vmem:[%s818 + $0x38] sm:$0xf]
        %v834 = vld [vmem:[%s818 + $0x3c] sm:$0xf]
        %v837 = vrot.slane %v567, 1
        %v838 = vrot.slane %v568, 1
        %v839 = vsel %vm452, %v837, %v838
        %v858 = vunpack.c.l.b16 %v819
        %v859 = vunpack.c.l.b16 %v820
        %v860 = vunpack.c.l.b16 %v821
        %v861 = vunpack.c.l.b16 %v822
        %v862 = vunpack.c.l.b16 %v823
        %v863 = vunpack.c.l.b16 %v824
        %v864 = vunpack.c.l.b16 %v825
        %v865 = vunpack.c.l.b16 %v826
        %v866 = vunpack.c.l.b16 %v827
        %v867 = vunpack.c.l.b16 %v828
        %v868 = vunpack.c.l.b16 %v829
        %v869 = vunpack.c.l.b16 %v830
        %v870 = vunpack.c.l.b16 %v831
        %v871 = vunpack.c.l.b16 %v832
        %v872 = vunpack.c.l.b16 %v833
        %v873 = vunpack.c.l.b16 %v834
        %v874 = vpack.c.b16 %v859, %v858
        %v875 = vpack.c.b16 %v861, %v860
        %v876 = vpack.c.b16 %v863, %v862
        %v877 = vpack.c.b16 %v865, %v864
        %v878 = vpack.c.b16 %v867, %v866
        %v879 = vpack.c.b16 %v869, %v868
        %v880 = vpack.c.b16 %v871, %v870
        %v881 = vpack.c.b16 %v873, %v872
        %890 = vmatprep.subr.bf16.mxu0 0
        %891 = vmatpush1.bf16.msra.mxu0 %v874
        %892 = vmatprep.subr.bf16.mxu0 0
        %893 = vmatpush1.bf16.msra.mxu0 %v875
        %894 = vmatprep.subr.bf16.mxu0 0
        %895 = vmatpush1.bf16.msra.mxu0 %v876
        %896 = vmatprep.subr.bf16.mxu0 0
        %897 = vmatpush1.bf16.msra.mxu0 %v877
        %898 = vmatprep.subr.bf16.mxu0 0
        %899 = vmatpush1.bf16.msra.mxu0 %v878
        %900 = vmatprep.subr.bf16.mxu0 0
        %901 = vmatpush1.bf16.msra.mxu0 %v879
        %902 = vmatprep.subr.bf16.mxu0 0
        %903 = vmatpush1.bf16.msra.mxu0 %v880
        %904 = vmatprep.subr.bf16.mxu0 0
        %905 = vmatpush1.bf16.msra.mxu0 %v881
        %906 = vmatprep.subr.bf16.mxu0 0
        %907 = vmatpush1.bf16.msra.mxu0 0
        %908 = vmatprep.subr.bf16.mxu0 0
        %909 = vmatpush1.bf16.msra.mxu0 0
        %910 = vmatprep.subr.bf16.mxu0 0
        %911 = vmatpush1.bf16.msra.mxu0 0
        %912 = vmatprep.subr.bf16.mxu0 0
        %913 = vmatpush1.bf16.msra.mxu0 0
        %914 = vmatprep.subr.bf16.mxu0 0
        %915 = vmatpush1.bf16.msra.mxu0 0
        %916 = vmatprep.subr.bf16.mxu0 0
        %917 = vmatpush1.bf16.msra.mxu0 0
        %918 = vmatprep.subr.bf16.mxu0 0
        %919 = vmatpush1.bf16.msra.mxu0 0
        %920 = vmatprep.subr.bf16.mxu0 0
        %921 = vmatpush1.bf16.msra.mxu0 0
        %922 = vmatprep.mubr.bf16.mxu0 0
        %923 = vmatmul.mubr.bf16.gmra.mrb[0].mxu0 %v839
        %v924 = vpop.f32.mrb[0].mxu0
        %v925 = vadd.f32 0.0, %v924
        %v926 = vpop.f32.mrb[0].mxu0
        %v927 = vpop.f32.mrb[0].mxu0
        %v928 = vadd.f32 0.0, %v927
        %v929 = vpop.f32.mrb[0].mxu0
        %930 = vmatprep.mubr.bf16.mxu0 0
        %931 = vmatmul.mubr.bf16.gmra.mrb[0].mxu0 %v838
        %v932 = vpop.f32.mrb[0].mxu0
        %v933 = vadd.f32 0.0, %v932
        %v934 = vpop.f32.mrb[0].mxu0
        %v935 = vpop.f32.mrb[0].mxu0
        %v936 = vpop.f32.mrb[0].mxu0
        %937 = vdwg.mxu0
        %v938 = vadd.f32 %v815, %v925
        %v939 = vadd.f32 %v816, %v928
        %v940 = vadd.f32 %v817, %v933
        %s941 = sadd.s32 %s174, 2
        %s942 = smul.u32 %s941, 3
        %s943 = smul.addr %s942, 4
        %s944 = scalar_lea.vmem %s165, %s943
        %v945 = vld [vmem:[%s944] sm:$0xf]
        %v946 = vld [vmem:[%s944 + $0x4] sm:$0xf]
        %v947 = vld [vmem:[%s944 + $0x8] sm:$0xf]
        %v948 = vunpack.c.l.bf16 %v945
        %v949 = vunpack.c.l.bf16 %v946
        %v950 = vunpack.c.l.bf16 %v947
        %v951 = vpack.c.bf16 %v949, %v948
        %v952 = vpack.c.bf16 %v950, %v950
        %s953 = scalar_lea.vmem %s1, 384
        %v954 = vld [vmem:[%s953] sm:$0xf]
        %v955 = vld [vmem:[%s953 + $0x4] sm:$0xf]
        %v956 = vld [vmem:[%s953 + $0x8] sm:$0xf]
        %v957 = vld [vmem:[%s953 + $0xc] sm:$0xf]
        %v958 = vld [vmem:[%s953 + $0x10] sm:$0xf]
        %v959 = vld [vmem:[%s953 + $0x14] sm:$0xf]
        %v960 = vld [vmem:[%s953 + $0x18] sm:$0xf]
        %v961 = vld [vmem:[%s953 + $0x1c] sm:$0xf]
        %v962 = vld [vmem:[%s953 + $0x20] sm:$0xf]
        %v963 = vld [vmem:[%s953 + $0x24] sm:$0xf]
        %v964 = vld [vmem:[%s953 + $0x28] sm:$0xf]
        %v965 = vld [vmem:[%s953 + $0x2c] sm:$0xf]
        %v966 = vld [vmem:[%s953 + $0x30] sm:$0xf]
        %v967 = vld [vmem:[%s953 + $0x34] sm:$0xf]
        %v968 = vld [vmem:[%s953 + $0x38] sm:$0xf]
        %v969 = vld [vmem:[%s953 + $0x3c] sm:$0xf]
        %v986 = vunpack.c.l.b16 %v954
        %v987 = vunpack.c.l.b16 %v955
        %v988 = vunpack.c.l.b16 %v956
        %v989 = vunpack.c.l.b16 %v957
        %v990 = vunpack.c.l.b16 %v958
        %v991 = vunpack.c.l.b16 %v959
        %v992 = vunpack.c.l.b16 %v960
        %v993 = vunpack.c.l.b16 %v961
        %v994 = vunpack.c.l.b16 %v962
        %v995 = vunpack.c.l.b16 %v963
        %v996 = vunpack.c.l.b16 %v964
        %v997 = vunpack.c.l.b16 %v965
        %v998 = vunpack.c.l.b16 %v966
        %v999 = vunpack.c.l.b16 %v967
        %v1000 = vunpack.c.l.b16 %v968
        %v1001 = vunpack.c.l.b16 %v969
        %v1002 = vpack.c.b16 %v987, %v986
        %v1003 = vpack.c.b16 %v989, %v988
        %v1004 = vpack.c.b16 %v991, %v990
        %v1005 = vpack.c.b16 %v993, %v992
        %v1006 = vpack.c.b16 %v995, %v994
        %v1007 = vpack.c.b16 %v997, %v996
        %v1008 = vpack.c.b16 %v999, %v998
        %v1009 = vpack.c.b16 %v1001, %v1000
        %1018 = vmatprep.subr.bf16.mxu0 0
        %1019 = vmatpush1.bf16.msra.mxu0 %v1002
        %1020 = vmatprep.subr.bf16.mxu0 0
        %1021 = vmatpush1.bf16.msra.mxu0 %v1003
        %1022 = vmatprep.subr.bf16.mxu0 0
        %1023 = vmatpush1.bf16.msra.mxu0 %v1004
        %1024 = vmatprep.subr.bf16.mxu0 0
        %1025 = vmatpush1.bf16.msra.mxu0 %v1005
        %1026 = vmatprep.subr.bf16.mxu0 0
        %1027 = vmatpush1.bf16.msra.mxu0 %v1006
        %1028 = vmatprep.subr.bf16.mxu0 0
        %1029 = vmatpush1.bf16.msra.mxu0 %v1007
        %1030 = vmatprep.subr.bf16.mxu0 0
        %1031 = vmatpush1.bf16.msra.mxu0 %v1008
        %1032 = vmatprep.subr.bf16.mxu0 0
        %1033 = vmatpush1.bf16.msra.mxu0 %v1009
        %1034 = vmatprep.subr.bf16.mxu0 0
        %1035 = vmatpush1.bf16.msra.mxu0 0
        %1036 = vmatprep.subr.bf16.mxu0 0
        %1037 = vmatpush1.bf16.msra.mxu0 0
        %1038 = vmatprep.subr.bf16.mxu0 0
        %1039 = vmatpush1.bf16.msra.mxu0 0
        %1040 = vmatprep.subr.bf16.mxu0 0
        %1041 = vmatpush1.bf16.msra.mxu0 0
        %1042 = vmatprep.subr.bf16.mxu0 0
        %1043 = vmatpush1.bf16.msra.mxu0 0
        %1044 = vmatprep.subr.bf16.mxu0 0
        %1045 = vmatpush1.bf16.msra.mxu0 0
        %1046 = vmatprep.subr.bf16.mxu0 0
        %1047 = vmatpush1.bf16.msra.mxu0 0
        %1048 = vmatprep.subr.bf16.mxu0 0
        %1049 = vmatpush1.bf16.msra.mxu0 0
        %1050 = vmatprep.mubr.bf16.mxu0 0
        %1051 = vmatmul.mubr.bf16.gmra.mrb[0].mxu0 %v951
        %v1052 = vpop.f32.mrb[0].mxu0
        %v1053 = vadd.f32 0.0, %v1052
        %v1054 = vpop.f32.mrb[0].mxu0
        %v1055 = vpop.f32.mrb[0].mxu0
        %v1056 = vadd.f32 0.0, %v1055
        %v1057 = vpop.f32.mrb[0].mxu0
        %1058 = vmatprep.mubr.bf16.mxu0 0
        %1059 = vmatmul.mubr.bf16.gmra.mrb[0].mxu0 %v952
        %v1060 = vpop.f32.mrb[0].mxu0
        %v1061 = vadd.f32 0.0, %v1060
        %v1062 = vpop.f32.mrb[0].mxu0
        %v1063 = vpop.f32.mrb[0].mxu0
        %v1064 = vpop.f32.mrb[0].mxu0
        %1065 = vdwg.mxu0
        %v1066 = vadd.f32 %v938, %v1053
        %v1067 = vadd.f32 %v939, %v1056
        %v1068 = vadd.f32 %v940, %v1061
        %s1069 = scalar_lea.vmem %s1, 448
        %v1070 = vld [vmem:[%s1069] sm:$0xf]
        %v1071 = vld [vmem:[%s1069 + $0x4] sm:$0xf]
        %v1072 = vld [vmem:[%s1069 + $0x8] sm:$0xf]
        %v1073 = vld [vmem:[%s1069 + $0xc] sm:$0xf]
        %v1074 = vld [vmem:[%s1069 + $0x10] sm:$0xf]
        %v1075 = vld [vmem:[%s1069 + $0x14] sm:$0xf]
        %v1076 = vld [vmem:[%s1069 + $0x18] sm:$0xf]
        %v1077 = vld [vmem:[%s1069 + $0x1c] sm:$0xf]
        %v1078 = vld [vmem:[%s1069 + $0x20] sm:$0xf]
        %v1079 = vld [vmem:[%s1069 + $0x24] sm:$0xf]
        %v1080 = vld [vmem:[%s1069 + $0x28] sm:$0xf]
        %v1081 = vld [vmem:[%s1069 + $0x2c] sm:$0xf]
        %v1082 = vld [vmem:[%s1069 + $0x30] sm:$0xf]
        %v1083 = vld [vmem:[%s1069 + $0x34] sm:$0xf]
        %v1084 = vld [vmem:[%s1069 + $0x38] sm:$0xf]
        %v1085 = vld [vmem:[%s1069 + $0x3c] sm:$0xf]
        %v1087 = vshrl.u32 %v951, 16
        %v1089 = vshll.u32 %v951, 16
        %v1091 = vrot.slane %v1089, 1
        %v1092 = vor.u32 %v1087, %v1091
        %v1094 = vshll.u32 %v952, 16
        %v1096 = vrot.slane %v1094, 1
        %v1097 = vsel %vm223, %v1092, %v1096
        %v1098 = vshrl.u32 %v952, 16
        %v1100 = vor.u32 %v1098, %v1096
        %v1119 = vunpack.c.l.b16 %v1070
        %v1120 = vunpack.c.l.b16 %v1071
        %v1121 = vunpack.c.l.b16 %v1072
        %v1122 = vunpack.c.l.b16 %v1073
        %v1123 = vunpack.c.l.b16 %v1074
        %v1124 = vunpack.c.l.b16 %v1075
        %v1125 = vunpack.c.l.b16 %v1076
        %v1126 = vunpack.c.l.b16 %v1077
        %v1127 = vunpack.c.l.b16 %v1078
        %v1128 = vunpack.c.l.b16 %v1079
        %v1129 = vunpack.c.l.b16 %v1080
        %v1130 = vunpack.c.l.b16 %v1081
        %v1131 = vunpack.c.l.b16 %v1082
        %v1132 = vunpack.c.l.b16 %v1083
        %v1133 = vunpack.c.l.b16 %v1084
        %v1134 = vunpack.c.l.b16 %v1085
        %v1135 = vpack.c.b16 %v1120, %v1119
        %v1136 = vpack.c.b16 %v1122, %v1121
        %v1137 = vpack.c.b16 %v1124, %v1123
        %v1138 = vpack.c.b16 %v1126, %v1125
        %v1139 = vpack.c.b16 %v1128, %v1127
        %v1140 = vpack.c.b16 %v1130, %v1129
        %v1141 = vpack.c.b16 %v1132, %v1131
        %v1142 = vpack.c.b16 %v1134, %v1133
        %1151 = vmatprep.subr.bf16.mxu0 0
        %1152 = vmatpush1.bf16.msra.mxu0 %v1135
        %1153 = vmatprep.subr.bf16.mxu0 0
        %1154 = vmatpush1.bf16.msra.mxu0 %v1136
        %1155 = vmatprep.subr.bf16.mxu0 0
        %1156 = vmatpush1.bf16.msra.mxu0 %v1137
        %1157 = vmatprep.subr.bf16.mxu0 0
        %1158 = vmatpush1.bf16.msra.mxu0 %v1138
        %1159 = vmatprep.subr.bf16.mxu0 0
        %1160 = vmatpush1.bf16.msra.mxu0 %v1139
        %1161 = vmatprep.subr.bf16.mxu0 0
        %1162 = vmatpush1.bf16.msra.mxu0 %v1140
        %1163 = vmatprep.subr.bf16.mxu0 0
        %1164 = vmatpush1.bf16.msra.mxu0 %v1141
        %1165 = vmatprep.subr.bf16.mxu0 0
        %1166 = vmatpush1.bf16.msra.mxu0 %v1142
        %1167 = vmatprep.subr.bf16.mxu0 0
        %1168 = vmatpush1.bf16.msra.mxu0 0
        %1169 = vmatprep.subr.bf16.mxu0 0
        %1170 = vmatpush1.bf16.msra.mxu0 0
        %1171 = vmatprep.subr.bf16.mxu0 0
        %1172 = vmatpush1.bf16.msra.mxu0 0
        %1173 = vmatprep.subr.bf16.mxu0 0
        %1174 = vmatpush1.bf16.msra.mxu0 0
        %1175 = vmatprep.subr.bf16.mxu0 0
        %1176 = vmatpush1.bf16.msra.mxu0 0
        %1177 = vmatprep.subr.bf16.mxu0 0
        %1178 = vmatpush1.bf16.msra.mxu0 0
        %1179 = vmatprep.subr.bf16.mxu0 0
        %1180 = vmatpush1.bf16.msra.mxu0 0
        %1181 = vmatprep.subr.bf16.mxu0 0
        %1182 = vmatpush1.bf16.msra.mxu0 0
        %1183 = vmatprep.mubr.bf16.mxu0 0
        %1184 = vmatmul.mubr.bf16.gmra.mrb[0].mxu0 %v1097
        %v1185 = vpop.f32.mrb[0].mxu0
        %v1186 = vadd.f32 0.0, %v1185
        %v1187 = vpop.f32.mrb[0].mxu0
        %v1188 = vpop.f32.mrb[0].mxu0
        %v1189 = vadd.f32 0.0, %v1188
        %v1190 = vpop.f32.mrb[0].mxu0
        %1191 = vmatprep.mubr.bf16.mxu0 0
        %1192 = vmatmul.mubr.bf16.gmra.mrb[0].mxu0 %v1100
        %v1193 = vpop.f32.mrb[0].mxu0
        %v1194 = vadd.f32 0.0, %v1193
        %v1195 = vpop.f32.mrb[0].mxu0
        %v1196 = vpop.f32.mrb[0].mxu0
        %v1197 = vpop.f32.mrb[0].mxu0
        %1198 = vdwg.mxu0
        %v1199 = vadd.f32 %v1066, %v1186
        %v1200 = vadd.f32 %v1067, %v1189
        %v1201 = vadd.f32 %v1068, %v1194
        %s1202 = scalar_lea.vmem %s1, 512
        %v1203 = vld [vmem:[%s1202] sm:$0xf]
        %v1204 = vld [vmem:[%s1202 + $0x4] sm:$0xf]
        %v1205 = vld [vmem:[%s1202 + $0x8] sm:$0xf]
        %v1206 = vld [vmem:[%s1202 + $0xc] sm:$0xf]
        %v1207 = vld [vmem:[%s1202 + $0x10] sm:$0xf]
        %v1208 = vld [vmem:[%s1202 + $0x14] sm:$0xf]
        %v1209 = vld [vmem:[%s1202 + $0x18] sm:$0xf]
        %v1210 = vld [vmem:[%s1202 + $0x1c] sm:$0xf]
        %v1211 = vld [vmem:[%s1202 + $0x20] sm:$0xf]
        %v1212 = vld [vmem:[%s1202 + $0x24] sm:$0xf]
        %v1213 = vld [vmem:[%s1202 + $0x28] sm:$0xf]
        %v1214 = vld [vmem:[%s1202 + $0x2c] sm:$0xf]
        %v1215 = vld [vmem:[%s1202 + $0x30] sm:$0xf]
        %v1216 = vld [vmem:[%s1202 + $0x34] sm:$0xf]
        %v1217 = vld [vmem:[%s1202 + $0x38] sm:$0xf]
        %v1218 = vld [vmem:[%s1202 + $0x3c] sm:$0xf]
        %v1221 = vrot.slane %v951, 1
        %v1222 = vrot.slane %v952, 1
        %v1223 = vsel %vm452, %v1221, %v1222
        %v1242 = vunpack.c.l.b16 %v1203
        %v1243 = vunpack.c.l.b16 %v1204
        %v1244 = vunpack.c.l.b16 %v1205
        %v1245 = vunpack.c.l.b16 %v1206
        %v1246 = vunpack.c.l.b16 %v1207
        %v1247 = vunpack.c.l.b16 %v1208
        %v1248 = vunpack.c.l.b16 %v1209
        %v1249 = vunpack.c.l.b16 %v1210
        %v1250 = vunpack.c.l.b16 %v1211
        %v1251 = vunpack.c.l.b16 %v1212
        %v1252 = vunpack.c.l.b16 %v1213
        %v1253 = vunpack.c.l.b16 %v1214
        %v1254 = vunpack.c.l.b16 %v1215
        %v1255 = vunpack.c.l.b16 %v1216
        %v1256 = vunpack.c.l.b16 %v1217
        %v1257 = vunpack.c.l.b16 %v1218
        %v1258 = vpack.c.b16 %v1243, %v1242
        %v1259 = vpack.c.b16 %v1245, %v1244
        %v1260 = vpack.c.b16 %v1247, %v1246
        %v1261 = vpack.c.b16 %v1249, %v1248
        %v1262 = vpack.c.b16 %v1251, %v1250
        %v1263 = vpack.c.b16 %v1253, %v1252
        %v1264 = vpack.c.b16 %v1255, %v1254
        %v1265 = vpack.c.b16 %v1257, %v1256
        %1274 = vmatprep.subr.bf16.mxu0 0
        %1275 = vmatpush1.bf16.msra.mxu0 %v1258
        %1276 = vmatprep.subr.bf16.mxu0 0
        %1277 = vmatpush1.bf16.msra.mxu0 %v1259
        %1278 = vmatprep.subr.bf16.mxu0 0
        %1279 = vmatpush1.bf16.msra.mxu0 %v1260
        %1280 = vmatprep.subr.bf16.mxu0 0
        %1281 = vmatpush1.bf16.msra.mxu0 %v1261
        %1282 = vmatprep.subr.bf16.mxu0 0
        %1283 = vmatpush1.bf16.msra.mxu0 %v1262
        %1284 = vmatprep.subr.bf16.mxu0 0
        %1285 = vmatpush1.bf16.msra.mxu0 %v1263
        %1286 = vmatprep.subr.bf16.mxu0 0
        %1287 = vmatpush1.bf16.msra.mxu0 %v1264
        %1288 = vmatprep.subr.bf16.mxu0 0
        %1289 = vmatpush1.bf16.msra.mxu0 %v1265
        %1290 = vmatprep.subr.bf16.mxu0 0
        %1291 = vmatpush1.bf16.msra.mxu0 0
        %1292 = vmatprep.subr.bf16.mxu0 0
        %1293 = vmatpush1.bf16.msra.mxu0 0
        %1294 = vmatprep.subr.bf16.mxu0 0
        %1295 = vmatpush1.bf16.msra.mxu0 0
        %1296 = vmatprep.subr.bf16.mxu0 0
        %1297 = vmatpush1.bf16.msra.mxu0 0
        %1298 = vmatprep.subr.bf16.mxu0 0
        %1299 = vmatpush1.bf16.msra.mxu0 0
        %1300 = vmatprep.subr.bf16.mxu0 0
        %1301 = vmatpush1.bf16.msra.mxu0 0
        %1302 = vmatprep.subr.bf16.mxu0 0
        %1303 = vmatpush1.bf16.msra.mxu0 0
        %1304 = vmatprep.subr.bf16.mxu0 0
        %1305 = vmatpush1.bf16.msra.mxu0 0
        %1306 = vmatprep.mubr.bf16.mxu0 0
        %1307 = vmatmul.mubr.bf16.gmra.mrb[0].mxu0 %v1223
        %v1308 = vpop.f32.mrb[0].mxu0
        %v1309 = vadd.f32 0.0, %v1308
        %v1310 = vpop.f32.mrb[0].mxu0
        %v1311 = vpop.f32.mrb[0].mxu0
        %v1312 = vadd.f32 0.0, %v1311
        %v1313 = vpop.f32.mrb[0].mxu0
        %1314 = vmatprep.mubr.bf16.mxu0 0
        %1315 = vmatmul.mubr.bf16.gmra.mrb[0].mxu0 %v1222
        %v1316 = vpop.f32.mrb[0].mxu0
        %v1317 = vadd.f32 0.0, %v1316
        %v1318 = vpop.f32.mrb[0].mxu0
        %v1319 = vpop.f32.mrb[0].mxu0
        %v1320 = vpop.f32.mrb[0].mxu0
        %1321 = vdwg.mxu0
        %v1322 = vadd.f32 %v1199, %v1309
        %v1323 = vadd.f32 %v1200, %v1312
        %v1324 = vadd.f32 %v1201, %v1317
        %v1326 = vlaneseq
        %v1327 = vshrl.u32 %v1326, 7
        %v1328 = vsub.s32 0, %v1327
        %v1329 = vrot.slane %v172, %v1328
        %v1331 = vadd.f32 %v1322, %v1329
        %v1332 = vadd.f32 %v1323, %v1329
        %v1333 = vadd.f32 %v1324, %v1329
        %v1334 = vmax.f32 %v1331, 0.0
        %v1335 = vmax.f32 %v1332, 0.0
        %v1336 = vmax.f32 %v1333, 0.0
        %v1337 = vpack.c.bf16 %v1335, %v1334
        %v1338 = vpack.c.bf16 %v1336, %v1336
        %v1341 = vunpack.c.l.b16 %v1337
        %v1342 = vunpack.c.h.b16 %v1337
        %v1343 = vunpack.c.l.b16 %v1338
        %v1344 = vpack.c.b16 %v1341, %v1341
        %v1345 = vpack.c.b16 %v1342, %v1342
        %v1346 = vpack.c.b16 %v1343, %v1343
        %s1350 = smul.addr %s179, 4
        %s1351 = scalar_lea.vmem %s170, %s1350
        %1352 = vst [vmem:[%s1351] sm:$0xf] %v1344
        %1353 = vst [vmem:[%s1351 + $0x4] sm:$0xf] %v1345
        %1354 = vst [vmem:[%s1351 + $0x8] sm:$0x7] %v1346
      $region37: #{net_forward.8} parent=31 // loop_footer
        %s178 = sadd.s32 1, %s174
      $region38: #{net_forward.8} parent=31 // loop_footer_branch
        %173 = sbr.rel target = $region34
      $region39: #{net_forward.8} parent=31 // loop_exit
        _
      %p1355 = scmp.lt.s32.totalorder %s14, 1
      %s1356 = scalar_select %p1355, %s14, 1
      %s1357 = smul.addr %s1356, 66
      %s1358 = smul.addr %s1357, 4
      %s1359 = scalar_lea.vmem %s3, %s1358
      // Predicated region
      $region40: #{net_forward.8} parent=31 // pred_check
        %p1360 = pneg %p100
      $region41: #{net_forward.8} parent=31 // pred_check_branch
        %1362 = sbr.rel (%p1360) target = $region43
      $region42: #{net_forward.8} parent=31 // pred_region
        _
      $region43: #{net_forward.8} parent=31 // pred_fallthru
        _
    $region32: #{net_forward.8} parent=5 // pred_fallthru
      _
    %p1363 = scmp.le.s32.totalorder 2, %s9
    // Predicated region
    $region44: #{net_forward.8} parent=5 // pred_check
      %p1364 = pneg %p1363
    $region45: #{net_forward.8} parent=5 // pred_check_branch
      %1366 = sbr.rel (%p1364) target = $region47
    $region46: #{net_forward.8} parent=5 // pred_region
      %s1367 = ssub.s32 %s9, 2
      // Predicated region
      $region48: #{net_forward.8} parent=46 // pred_check
        %p1368 = pneg %p106
      $region49: #{net_forward.8} parent=46 // pred_check_branch
        %1370 = sbr.rel (%p1368) target = $region51
      $region50: #{net_forward.8} parent=46 // pred_region
        %p1371 = scmp.lt.s32.totalorder %s15, 1
        %s1372 = scalar_select %p1371, %s15, 1
        %s1373 = smul.addr %s1372, 66
        %s1374 = smul.addr %s1373, 4
        %s1375 = scalar_lea.vmem %s3, %s1374
      $region51: #{net_forward.8} parent=46 // pred_fallthru
        _
    $region47: #{net_forward.8} parent=5 // pred_fallthru
      _
  $region6: #{net_forward.8} parent=0 // loop_footer
    %s13 = sadd.s32 1, %s9
  $region7: #{net_forward.8} parent=0 // loop_footer_branch
    %8 = sbr.rel target = $region3
  $region8: #{net_forward.8} parent=0 // loop_exit
    _

// kernel: net_forward.9
$region0: #{net_forward.9}
  #allocation0 [shape = 'u32[]', space=smem, size = 0x4, offset = 0x4, fixed_abs, tag = 'smem constant byte address 0x4 - core index']
  #allocation1 [shape = 'u32[144,128]{1,0:T(1,128)}', space=vmem, size = 0x12000, scoped, tag = 'internal scratch']
  %s0 = inlined_call_operand.vmem [shape: bf16[2,22,22,128], index: 0, kind: input, shape index: {}]
  %s1 = inlined_call_operand.vmem [shape: bf16[9,128,128], index: 1, kind: input, shape index: {}]
  %s2 = inlined_call_operand.vmem [shape: f32[1,128], index: 2, kind: input, shape index: {}]
  %s3 = inlined_call_operand.vmem [shape: bf16[2,20,20,128], index: 3, kind: output, shape index: {}]
  %s4 = sld [smem:[#allocation0]]
  $region52: #{net_forward.9} parent=0
    _
  %s6 = ssub.s32 1, %s4
  %s7 = scalar_select 0, %s6, %s4
  loop: start=0, step=1, limit=4
  $region2: #{net_forward.9} parent=0 // loop_pre_header
    _
  $region3: #{net_forward.9} parent=0 // loop_header
    %s9 = sphi 0, %s13
    %p10 = scmp.ge.s32.totalorder %s9, 4
    %s19 = sphi 0, %s21
    %s22 = sphi 0, %s19
    %s23 = sphi 0, %s22
    %s39 = sphi 0, %s23
    %s43 = sphi 0, %s43
    %s45 = sphi 0, %s43
    %s46 = sphi 0, %s45
    %s60 = sphi 0, %s46
    %s64 = sphi 0, %s64
    %s66 = sphi 0, %s64
    %s67 = sphi 0, %s66
    %s81 = sphi 0, %s67
    %s87 = sphi 0, %s89
    %s90 = sphi 0, %s87
    %s91 = sphi 0, %s90
    %s107 = sphi 0, %s91
  $region4: #{net_forward.9} parent=0 // loop_header_branch
    %12 = sbr.rel (%p10) target = $region8
  $region5: #{net_forward.9} parent=0 // loop_body
    %s14 = ssub.s32 %s9, 1
    %s15 = ssub.s32 %s9, 2
    %s16 = sadd.s32 %s9, 1
    %s17 = ssub.s32 %s9, %s16
    %p18 = scmp.eq.s32.totalorder %s17, 0
    %s20 = sadd.s32 %s19, 1
    %s21 = scalar_select %p18, %s19, %s20
    %p24 = pneg %p18
    %p25 = scmp.eq.s32.totalorder %s9, 1
    %p26 = por %p24, %p25
    %p27 = scmp.ne.s32.totalorder %s19, %s22
    %p28 = scmp.eq.s32.totalorder %s9, 0
    %p29 = por %p27, %p28
    %p30 = scmp.ne.s32.totalorder %s19, %s22
    %p31 = scmp.eq.s32.totalorder %s14, 1
    %p32 = por %p30, %p31
    %p33 = scmp.ne.s32.totalorder %s22, %s23
    %p34 = scmp.eq.s32.totalorder %s14, 0
    %p35 = por %p33, %p34
    %p36 = scmp.ne.s32.totalorder %s22, %s23
    %p37 = scmp.eq.s32.totalorder %s15, 1
    %p38 = por %p36, %p37
    %p40 = scmp.ne.s32.totalorder %s23, %s39
    %p41 = scmp.eq.s32.totalorder %s15, 0
    %p42 = por %p40, %p41
    %s44 = sadd.s32 %s43, 1
    %p47 = scmp.eq.s32.totalorder %s9, 1
    %p48 = scmp.ne.s32.totalorder %s43, %s45
    %p49 = scmp.eq.s32.totalorder %s9, 0
    %p50 = por %p48, %p49
    %p51 = scmp.ne.s32.totalorder %s43, %s45
    %p52 = scmp.eq.s32.totalorder %s14, 1
    %p53 = por %p51, %p52
    %p54 = scmp.ne.s32.totalorder %s45, %s46
    %p55 = scmp.eq.s32.totalorder %s14, 0
    %p56 = por %p54, %p55
    %p57 = scmp.ne.s32.totalorder %s45, %s46
    %p58 = scmp.eq.s32.totalorder %s15, 1
    %p59 = por %p57, %p58
    %p61 = scmp.ne.s32.totalorder %s46, %s60
    %p62 = scmp.eq.s32.totalorder %s15, 0
    %p63 = por %p61, %p62
    %s65 = sadd.s32 %s64, 1
    %p68 = scmp.eq.s32.totalorder %s9, 1
    %p69 = scmp.ne.s32.totalorder %s64, %s66
    %p70 = scmp.eq.s32.totalorder %s9, 0
    %p71 = por %p69, %p70
    %p72 = scmp.ne.s32.totalorder %s64, %s66
    %p73 = scmp.eq.s32.totalorder %s14, 1
    %p74 = por %p72, %p73
    %p75 = scmp.ne.s32.totalorder %s66, %s67
    %p76 = scmp.eq.s32.totalorder %s14, 0
    %p77 = por %p75, %p76
    %p78 = scmp.ne.s32.totalorder %s66, %s67
    %p79 = scmp.eq.s32.totalorder %s15, 1
    %p80 = por %p78, %p79
    %p82 = scmp.ne.s32.totalorder %s67, %s81
    %p83 = scmp.eq.s32.totalorder %s15, 0
    %p84 = por %p82, %p83
    %s85 = ssub.s32 %s9, %s16
    %p86 = scmp.eq.s32.totalorder %s85, 0
    %s88 = sadd.s32 %s87, 1
    %s89 = scalar_select %p86, %s87, %s88
    %p92 = pneg %p86
    %p93 = scmp.eq.s32.totalorder %s9, 1
    %p94 = por %p92, %p93
    %p95 = scmp.ne.s32.totalorder %s87, %s90
    %p96 = scmp.eq.s32.totalorder %s9, 0
    %p97 = por %p95, %p96
    %p98 = scmp.ne.s32.totalorder %s87, %s90
    %p99 = scmp.eq.s32.totalorder %s14, 1
    %p100 = por %p98, %p99
    %p101 = scmp.ne.s32.totalorder %s90, %s91
    %p102 = scmp.eq.s32.totalorder %s14, 0
    %p103 = por %p101, %p102
    %p104 = scmp.ne.s32.totalorder %s90, %s91
    %p105 = scmp.eq.s32.totalorder %s15, 1
    %p106 = por %p104, %p105
    %p108 = scmp.ne.s32.totalorder %s91, %s107
    %p109 = scmp.eq.s32.totalorder %s15, 0
    %p110 = por %p108, %p109
    %p111 = scmp.le.s32.totalorder 1, %s9
    %p112 = scmp.lt.s32.totalorder %s9, 3
    %p113 = pnand %p111, %p112
    %p114 = pneg %p113
    // Predicated region
    $region9: #{net_forward.9} parent=5 // pred_check
      _
    $region10: #{net_forward.9} parent=5 // pred_check_branch
      %116 = sbr.rel (%p113) target = $region12
    $region11: #{net_forward.9} parent=5 // pred_region
      %s117 = ssub.s32 %s9, 1
      // Predicated region
      $region13: #{net_forward.9} parent=11 // pred_check
        %p118 = pneg %p56
      $region14: #{net_forward.9} parent=11 // pred_check_branch
        %120 = sbr.rel (%p118) target = $region16
      $region15: #{net_forward.9} parent=11 // pred_region
        _
      $region16: #{net_forward.9} parent=11 // pred_fallthru
        _
      // Predicated region
      $region17: #{net_forward.9} parent=11 // pred_check
        %p121 = pneg %p77
      $region18: #{net_forward.9} parent=11 // pred_check_branch
        %123 = sbr.rel (%p121) target = $region20
      $region19: #{net_forward.9} parent=11 // pred_region
        _
      $region20: #{net_forward.9} parent=11 // pred_fallthru
        _
    $region12: #{net_forward.9} parent=5 // pred_fallthru
      _
    %p124 = scmp.lt.s32.totalorder %s9, 2
    // Predicated region
    $region21: #{net_forward.9} parent=5 // pred_check
      %p125 = pneg %p124
    $region22: #{net_forward.9} parent=5 // pred_check_branch
      %127 = sbr.rel (%p125) target = $region24
    $region23: #{net_forward.9} parent=5 // pred_region
      // Predicated region
      $region25: #{net_forward.9} parent=23 // pred_check
        %p128 = pneg %p29
      $region26: #{net_forward.9} parent=23 // pred_check_branch
        %130 = sbr.rel (%p128) target = $region28
      $region27: #{net_forward.9} parent=23 // pred_region
        %p131 = scmp.lt.s32.totalorder %s9, 1
        %s132 = scalar_select %p131, %s9, 1
        %s133 = smul.addr %s132, 66
        %s134 = smul.addr %s133, 4
        %s135 = scalar_lea.vmem %s0, %s134
      $region28: #{net_forward.9} parent=23 // pred_fallthru
        _
    $region24: #{net_forward.9} parent=5 // pred_fallthru
      _
    %p136 = scmp.le.s32.totalorder 1, %s9
    %p137 = scmp.lt.s32.totalorder %s9, 3
    %p138 = pnand %p136, %p137
    %p139 = pneg %p138
    // Predicated region
    $region29: #{net_forward.9} parent=5 // pred_check
      _
    $region30: #{net_forward.9} parent=5 // pred_check_branch
      %141 = sbr.rel (%p138) target = $region32
    $region31: #{net_forward.9} parent=5 // pred_region
      %s142 = ssub.s32 %s9, 1
      %p143 = scmp.lt.s32.totalorder %s14, 1
      %s144 = scalar_select %p143, %s14, 1
      %s145 = smul.addr %s144, 66
      %s146 = smul.addr %s145, 4
      %s147 = scalar_lea.vmem %s0, %s146
      %p148 = pneg %p35
      %p149 = pneg %p32
      %p150 = pneg %p56
      %p151 = pneg %p53
      %p152 = pneg %p77
      %p153 = pneg %p74
      %p154 = pneg %p103
      %p155 = pneg %p100
      %p156 = scmp.lt.s32.totalorder %s14, 1
      %s157 = scalar_select %p156, %s14, 1
      %s158 = smul.addr %s157, 60
      %s159 = smul.addr %s158, 4
      %s160 = scalar_lea.vmem %s3, %s159
      %p161 = scmp.lt.s32.totalorder %s14, 1
      %s162 = scalar_select %p161, %s14, 1
      %s163 = smul.addr %s162, 66
      %s164 = smul.addr %s163, 4
      %s165 = scalar_lea.vmem %s0, %s164
      %p166 = scmp.lt.s32.totalorder %s14, 1
      %s167 = scalar_select %p166, %s14, 1
      %s168 = smul.addr %s167, 60
      %s169 = smul.addr %s168, 4
      %s170 = scalar_lea.vmem %s3, %s169
      %v172 = vld [vmem:[%s2] sm:$0x1]
      loop: start=0, step=1, limit=20
      $region33: #{net_forward.9} parent=31 // loop_pre_header
        _
      $region34: #{net_forward.9} parent=31 // loop_header
        %s174 = sphi 0, %s178
        %p175 = scmp.ge.s32.totalorder %s174, 20
      $region35: #{net_forward.9} parent=31 // loop_header_branch
        %177 = sbr.rel (%p175) target = $region39
      $region36: #{net_forward.9} parent=31 // loop_body
        %s179 = smul.u32 %s174, 3
        %s180 = smul.addr %s179, 4
        %s181 = scalar_lea.vmem %s165, %s180
        %v182 = vld [vmem:[%s181] sm:$0xf]
        %v183 = vld [vmem:[%s181 + $0x4] sm:$0xf]
        %v184 = vld [vmem:[%s181 + $0x8] sm:$0x7]
        %v185 = vunpack.c.l.bf16 %v182
        %v186 = vunpack.c.l.bf16 %v183
        %v187 = vunpack.c.l.bf16 %v184
        %v188 = vpack.c.bf16 %v186, %v185
        %v189 = vpack.c.bf16 %v187, %v187
        %v190 = vld [vmem:[%s1] sm:$0xf]
        %v191 = vld [vmem:[%s1 + $0x4] sm:$0xf]
        %v192 = vld [vmem:[%s1 + $0x8] sm:$0xf]
        %v193 = vld [vmem:[%s1 + $0xc] sm:$0xf]
        %v194 = vld [vmem:[%s1 + $0x10] sm:$0xf]
        %v195 = vld [vmem:[%s1 + $0x14] sm:$0xf]
        %v196 = vld [vmem:[%s1 + $0x18] sm:$0xf]
        %v197 = vld [vmem:[%s1 + $0x1c] sm:$0xf]
        %v198 = vld [vmem:[%s1 + $0x20] sm:$0xf]
        %v199 = vld [vmem:[%s1 + $0x24] sm:$0xf]
        %v200 = vld [vmem:[%s1 + $0x28] sm:$0xf]
        %v201 = vld [vmem:[%s1 + $0x2c] sm:$0xf]
        %v202 = vld [vmem:[%s1 + $0x30] sm:$0xf]
        %v203 = vld [vmem:[%s1 + $0x34] sm:$0xf]
        %v204 = vld [vmem:[%s1 + $0x38] sm:$0xf]
        %v205 = vld [vmem:[%s1 + $0x3c] sm:$0xf]
        %s206 = scalar_lea.vmem %s1, 64
        %v207 = vld [vmem:[%s206] sm:$0xf]
        %v208 = vld [vmem:[%s206 + $0x4] sm:$0xf]
        %v209 = vld [vmem:[%s206 + $0x8] sm:$0xf]
        %v210 = vld [vmem:[%s206 + $0xc] sm:$0xf]
        %v211 = vld [vmem:[%s206 + $0x10] sm:$0xf]
        %v212 = vld [vmem:[%s206 + $0x14] sm:$0xf]
        %v213 = vld [vmem:[%s206 + $0x18] sm:$0xf]
        %v214 = vld [vmem:[%s206 + $0x1c] sm:$0xf]
        %v215 = vld [vmem:[%s206 + $0x20] sm:$0xf]
        %v216 = vld [vmem:[%s206 + $0x24] sm:$0xf]
        %v217 = vld [vmem:[%s206 + $0x28] sm:$0xf]
        %v218 = vld [vmem:[%s206 + $0x2c] sm:$0xf]
        %v219 = vld [vmem:[%s206 + $0x30] sm:$0xf]
        %v220 = vld [vmem:[%s206 + $0x34] sm:$0xf]
        %v221 = vld [vmem:[%s206 + $0x38] sm:$0xf]
        %v222 = vld [vmem:[%s206 + $0x3c] sm:$0xf]
        %vm223 = vsmask.f32 7424
        %v225 = vshrl.u32 %v188, 16
        %v227 = vshll.u32 %v188, 16
        %v229 = vrot.slane %v227, 1
        %v230 = vor.u32 %v225, %v229
        %v232 = vshll.u32 %v189, 16
        %v234 = vrot.slane %v232, 1
        %v235 = vsel %vm223, %v230, %v234
        %v236 = vshrl.u32 %v189, 16
        %v238 = vor.u32 %v236, %v234
        %v257 = vunpack.c.l.b16 %v207
        %v258 = vunpack.c.l.b16 %v208
        %v259 = vunpack.c.l.b16 %v209
        %v260 = vunpack.c.l.b16 %v210
        %v261 = vunpack.c.l.b16 %v211
        %v262 = vunpack.c.l.b16 %v212
        %v263 = vunpack.c.l.b16 %v213
        %v264 = vunpack.c.l.b16 %v214
        %v265 = vunpack.c.l.b16 %v215
        %v266 = vunpack.c.l.b16 %v216
        %v267 = vunpack.c.l.b16 %v217
        %v268 = vunpack.c.l.b16 %v218
        %v269 = vunpack.c.l.b16 %v219
        %v270 = vunpack.c.l.b16 %v220
        %v271 = vunpack.c.l.b16 %v221
        %v272 = vunpack.c.l.b16 %v222
        %v273 = vpack.c.b16 %v258, %v257
        %v274 = vpack.c.b16 %v260, %v259
        %v275 = vpack.c.b16 %v262, %v261
        %v276 = vpack.c.b16 %v264, %v263
        %v277 = vpack.c.b16 %v266, %v265
        %v278 = vpack.c.b16 %v268, %v267
        %v279 = vpack.c.b16 %v270, %v269
        %v280 = vpack.c.b16 %v272, %v271
        %289 = vmatprep.subr.bf16.mxu0 0
        %290 = vmatpush1.bf16.msra.mxu0 %v273
        %291 = vmatprep.subr.bf16.mxu0 0
        %292 = vmatpush1.bf16.msra.mxu0 %v274
        %293 = vmatprep.subr.bf16.mxu0 0
        %294 = vmatpush1.bf16.msra.mxu0 %v275
        %295 = vmatprep.subr.bf16.mxu0 0
        %296 = vmatpush1.bf16.msra.mxu0 %v276
        %297 = vmatprep.subr.bf16.mxu0 0
        %298 = vmatpush1.bf16.msra.mxu0 %v277
        %299 = vmatprep.subr.bf16.mxu0 0
        %300 = vmatpush1.bf16.msra.mxu0 %v278
        %301 = vmatprep.subr.bf16.mxu0 0
        %302 = vmatpush1.bf16.msra.mxu0 %v279
        %303 = vmatprep.subr.bf16.mxu0 0
        %304 = vmatpush1.bf16.msra.mxu0 %v280
        %305 = vmatprep.subr.bf16.mxu0 0
        %306 = vmatpush1.bf16.msra.mxu0 0
        %307 = vmatprep.subr.bf16.mxu0 0
        %308 = vmatpush1.bf16.msra.mxu0 0
        %309 = vmatprep.subr.bf16.mxu0 0
        %310 = vmatpush1.bf16.msra.mxu0 0
        %311 = vmatprep.subr.bf16.mxu0 0
        %312 = vmatpush1.bf16.msra.mxu0 0
        %313 = vmatprep.subr.bf16.mxu0 0
        %314 = vmatpush1.bf16.msra.mxu0 0
        %315 = vmatprep.subr.bf16.mxu0 0
        %316 = vmatpush1.bf16.msra.mxu0 0
        %317 = vmatprep.subr.bf16.mxu0 0
        %318 = vmatpush1.bf16.msra.mxu0 0
        %319 = vmatprep.subr.bf16.mxu0 0
        %320 = vmatpush1.bf16.msra.mxu0 0
        %321 = vmatprep.mubr.bf16.mxu0 0
        %322 = vmatmul.mubr.bf16.gmra.mrb[0].mxu0 %v235
        %v323 = vpop.f32.mrb[0].mxu0
        %v324 = vadd.f32 0.0, %v323
        %v325 = vpop.f32.mrb[0].mxu0
        %v326 = vpop.f32.mrb[0].mxu0
        %v327 = vadd.f32 0.0, %v326
        %v328 = vpop.f32.mrb[0].mxu0
        %329 = vmatprep.mubr.bf16.mxu0 0
        %330 = vmatmul.mubr.bf16.gmra.mrb[0].mxu0 %v238
        %v331 = vpop.f32.mrb[0].mxu0
        %v332 = vadd.f32 0.0, %v331
        %v333 = vpop.f32.mrb[0].mxu0
        %v334 = vpop.f32.mrb[0].mxu0
        %v335 = vpop.f32.mrb[0].mxu0
        %336 = vdwg.mxu0
        %v353 = vunpack.c.l.b16 %v190
        %v354 = vunpack.c.l.b16 %v191
        %v355 = vunpack.c.l.b16 %v192
        %v356 = vunpack.c.l.b16 %v193
        %v357 = vunpack.c.l.b16 %v194
        %v358 = vunpack.c.l.b16 %v195
        %v359 = vunpack.c.l.b16 %v196
        %v360 = vunpack.c.l.b16 %v197
        %v361 = vunpack.c.l.b16 %v198
        %v362 = vunpack.c.l.b16 %v199
        %v363 = vunpack.c.l.b16 %v200
        %v364 = vunpack.c.l.b16 %v201
        %v365 = vunpack.c.l.b16 %v202
        %v366 = vunpack.c.l.b16 %v203
        %v367 = vunpack.c.l.b16 %v204
        %v368 = vunpack.c.l.b16 %v205
        %v369 = vpack.c.b16 %v354, %v353
        %v370 = vpack.c.b16 %v356, %v355
        %v371 = vpack.c.b16 %v358, %v357
        %v372 = vpack.c.b16 %v360, %v359
        %v373 = vpack.c.b16 %v362, %v361
        %v374 = vpack.c.b16 %v364, %v363
        %v375 = vpack.c.b16 %v366, %v365
        %v376 = vpack.c.b16 %v368, %v367
        %385 = vmatprep.subr.bf16.mxu0 0
        %386 = vmatpush1.bf16.msra.mxu0 %v369
        %387 = vmatprep.subr.bf16.mxu0 0
        %388 = vmatpush1.bf16.msra.mxu0 %v370
        %389 = vmatprep.subr.bf16.mxu0 0
        %390 = vmatpush1.bf16.msra.mxu0 %v371
        %391 = vmatprep.subr.bf16.mxu0 0
        %392 = vmatpush1.bf16.msra.mxu0 %v372
        %393 = vmatprep.subr.bf16.mxu0 0
        %394 = vmatpush1.bf16.msra.mxu0 %v373
        %395 = vmatprep.subr.bf16.mxu0 0
        %396 = vmatpush1.bf16.msra.mxu0 %v374
        %397 = vmatprep.subr.bf16.mxu0 0
        %398 = vmatpush1.bf16.msra.mxu0 %v375
        %399 = vmatprep.subr.bf16.mxu0 0
        %400 = vmatpush1.bf16.msra.mxu0 %v376
        %401 = vmatprep.subr.bf16.mxu0 0
        %402 = vmatpush1.bf16.msra.mxu0 0
        %403 = vmatprep.subr.bf16.mxu0 0
        %404 = vmatpush1.bf16.msra.mxu0 0
        %405 = vmatprep.subr.bf16.mxu0 0
        %406 = vmatpush1.bf16.msra.mxu0 0
        %407 = vmatprep.subr.bf16.mxu0 0
        %408 = vmatpush1.bf16.msra.mxu0 0
        %409 = vmatprep.subr.bf16.mxu0 0
        %410 = vmatpush1.bf16.msra.mxu0 0
        %411 = vmatprep.subr.bf16.mxu0 0
        %412 = vmatpush1.bf16.msra.mxu0 0
        %413 = vmatprep.subr.bf16.mxu0 0
        %414 = vmatpush1.bf16.msra.mxu0 0
        %415 = vmatprep.subr.bf16.mxu0 0
        %416 = vmatpush1.bf16.msra.mxu0 0
        %417 = vmatprep.mubr.bf16.mxu0 0
        %418 = vmatmul.mubr.bf16.gmra.mrb[0].mxu0 %v188
        %v419 = vpop.f32.mrb[0].mxu0
        %v420 = vadd.f32 %v324, %v419
        %v421 = vpop.f32.mrb[0].mxu0
        %v422 = vpop.f32.mrb[0].mxu0
        %v423 = vadd.f32 %v327, %v422
        %v424 = vpop.f32.mrb[0].mxu0
        %425 = vmatprep.mubr.bf16.mxu0 0
        %426 = vmatmul.mubr.bf16.gmra.mrb[0].mxu0 %v189
        %v427 = vpop.f32.mrb[0].mxu0
        %v428 = vadd.f32 %v332, %v427
        %v429 = vpop.f32.mrb[0].mxu0
        %v430 = vpop.f32.mrb[0].mxu0
        %v431 = vpop.f32.mrb[0].mxu0
        %432 = vdwg.mxu0
        %s433 = scalar_lea.vmem %s1, 128
        %v434 = vld [vmem:[%s433] sm:$0xf]
        %v435 = vld [vmem:[%s433 + $0x4] sm:$0xf]
        %v436 = vld [vmem:[%s433 + $0x8] sm:$0xf]
        %v437 = vld [vmem:[%s433 + $0xc] sm:$0xf]
        %v438 = vld [vmem:[%s433 + $0x10] sm:$0xf]
        %v439 = vld [vmem:[%s433 + $0x14] sm:$0xf]
        %v440 = vld [vmem:[%s433 + $0x18] sm:$0xf]
        %v441 = vld [vmem:[%s433 + $0x1c] sm:$0xf]
        %v442 = vld [vmem:[%s433 + $0x20] sm:$0xf]
        %v443 = vld [vmem:[%s433 + $0x24] sm:$0xf]
        %v444 = vld [vmem:[%s433 + $0x28] sm:$0xf]
        %v445 = vld [vmem:[%s433 + $0x2c] sm:$0xf]
        %v446 = vld [vmem:[%s433 + $0x30] sm:$0xf]
        %v447 = vld [vmem:[%s433 + $0x34] sm:$0xf]
        %v448 = vld [vmem:[%s433 + $0x38] sm:$0xf]
        %v449 = vld [vmem:[%s433 + $0x3c] sm:$0xf]
        %vm452 = vcmask 1046528
        %v453 = vrot.slane %v188, 1
        %v454 = vrot.slane %v189, 1
        %v455 = vsel %vm452, %v453, %v454
        %v474 = vunpack.c.l.b16 %v434
        %v475 = vunpack.c.l.b16 %v435
        %v476 = vunpack.c.l.b16 %v436
        %v477 = vunpack.c.l.b16 %v437
        %v478 = vunpack.c.l.b16 %v438
        %v479 = vunpack.c.l.b16 %v439
        %v480 = vunpack.c.l.b16 %v440
        %v481 = vunpack.c.l.b16 %v441
        %v482 = vunpack.c.l.b16 %v442
        %v483 = vunpack.c.l.b16 %v443
        %v484 = vunpack.c.l.b16 %v444
        %v485 = vunpack.c.l.b16 %v445
        %v486 = vunpack.c.l.b16 %v446
        %v487 = vunpack.c.l.b16 %v447
        %v488 = vunpack.c.l.b16 %v448
        %v489 = vunpack.c.l.b16 %v449
        %v490 = vpack.c.b16 %v475, %v474
        %v491 = vpack.c.b16 %v477, %v476
        %v492 = vpack.c.b16 %v479, %v478
        %v493 = vpack.c.b16 %v481, %v480
        %v494 = vpack.c.b16 %v483, %v482
        %v495 = vpack.c.b16 %v485, %v484
        %v496 = vpack.c.b16 %v487, %v486
        %v497 = vpack.c.b16 %v489, %v488
        %506 = vmatprep.subr.bf16.mxu0 0
        %507 = vmatpush1.bf16.msra.mxu0 %v490
        %508 = vmatprep.subr.bf16.mxu0 0
        %509 = vmatpush1.bf16.msra.mxu0 %v491
        %510 = vmatprep.subr.bf16.mxu0 0
        %511 = vmatpush1.bf16.msra.mxu0 %v492
        %512 = vmatprep.subr.bf16.mxu0 0
        %513 = vmatpush1.bf16.msra.mxu0 %v493
        %514 = vmatprep.subr.bf16.mxu0 0
        %515 = vmatpush1.bf16.msra.mxu0 %v494
        %516 = vmatprep.subr.bf16.mxu0 0
        %517 = vmatpush1.bf16.msra.mxu0 %v495
        %518 = vmatprep.subr.bf16.mxu0 0
        %519 = vmatpush1.bf16.msra.mxu0 %v496
        %520 = vmatprep.subr.bf16.mxu0 0
        %521 = vmatpush1.bf16.msra.mxu0 %v497
        %522 = vmatprep.subr.bf16.mxu0 0
        %523 = vmatpush1.bf16.msra.mxu0 0
        %524 = vmatprep.subr.bf16.mxu0 0
        %525 = vmatpush1.bf16.msra.mxu0 0
        %526 = vmatprep.subr.bf16.mxu0 0
        %527 = vmatpush1.bf16.msra.mxu0 0
        %528 = vmatprep.subr.bf16.mxu0 0
        %529 = vmatpush1.bf16.msra.mxu0 0
        %530 = vmatprep.subr.bf16.mxu0 0
        %531 = vmatpush1.bf16.msra.mxu0 0
        %532 = vmatprep.subr.bf16.mxu0 0
        %533 = vmatpush1.bf16.msra.mxu0 0
        %534 = vmatprep.subr.bf16.mxu0 0
        %535 = vmatpush1.bf16.msra.mxu0 0
        %536 = vmatprep.subr.bf16.mxu0 0
        %537 = vmatpush1.bf16.msra.mxu0 0
        %538 = vmatprep.mubr.bf16.mxu0 0
        %539 = vmatmul.mubr.bf16.gmra.mrb[0].mxu0 %v455
        %v540 = vpop.f32.mrb[0].mxu0
        %v541 = vadd.f32 0.0, %v540
        %v542 = vpop.f32.mrb[0].mxu0
        %v543 = vpop.f32.mrb[0].mxu0
        %v544 = vadd.f32 0.0, %v543
        %v545 = vpop.f32.mrb[0].mxu0
        %546 = vmatprep.mubr.bf16.mxu0 0
        %547 = vmatmul.mubr.bf16.gmra.mrb[0].mxu0 %v454
        %v548 = vpop.f32.mrb[0].mxu0
        %v549 = vadd.f32 0.0, %v548
        %v550 = vpop.f32.mrb[0].mxu0
        %v551 = vpop.f32.mrb[0].mxu0
        %v552 = vpop.f32.mrb[0].mxu0
        %553 = vdwg.mxu0
        %v554 = vadd.f32 %v420, %v541
        %v555 = vadd.f32 %v423, %v544
        %v556 = vadd.f32 %v428, %v549
        %s557 = sadd.s32 %s174, 1
        %s558 = smul.u32 %s557, 3
        %s559 = smul.addr %s558, 4
        %s560 = scalar_lea.vmem %s165, %s559
        %v561 = vld [vmem:[%s560] sm:$0xf]
        %v562 = vld [vmem:[%s560 + $0x4] sm:$0xf]
        %v563 = vld [vmem:[%s560 + $0x8] sm:$0x7]
        %v564 = vunpack.c.l.bf16 %v561
        %v565 = vunpack.c.l.bf16 %v562
        %v566 = vunpack.c.l.bf16 %v563
        %v567 = vpack.c.bf16 %v565, %v564
        %v568 = vpack.c.bf16 %v566, %v566
        %s569 = scalar_lea.vmem %s1, 192
        %v570 = vld [vmem:[%s569] sm:$0xf]
        %v571 = vld [vmem:[%s569 + $0x4] sm:$0xf]
        %v572 = vld [vmem:[%s569 + $0x8] sm:$0xf]
        %v573 = vld [vmem:[%s569 + $0xc] sm:$0xf]
        %v574 = vld [vmem:[%s569 + $0x10] sm:$0xf]
        %v575 = vld [vmem:[%s569 + $0x14] sm:$0xf]
        %v576 = vld [vmem:[%s569 + $0x18] sm:$0xf]
        %v577 = vld [vmem:[%s569 + $0x1c] sm:$0xf]
        %v578 = vld [vmem:[%s569 + $0x20] sm:$0xf]
        %v579 = vld [vmem:[%s569 + $0x24] sm:$0xf]
        %v580 = vld [vmem:[%s569 + $0x28] sm:$0xf]
        %v581 = vld [vmem:[%s569 + $0x2c] sm:$0xf]
        %v582 = vld [vmem:[%s569 + $0x30] sm:$0xf]
        %v583 = vld [vmem:[%s569 + $0x34] sm:$0xf]
        %v584 = vld [vmem:[%s569 + $0x38] sm:$0xf]
        %v585 = vld [vmem:[%s569 + $0x3c] sm:$0xf]
        %v602 = vunpack.c.l.b16 %v570
        %v603 = vunpack.c.l.b16 %v571
        %v604 = vunpack.c.l.b16 %v572
        %v605 = vunpack.c.l.b16 %v573
        %v606 = vunpack.c.l.b16 %v574
        %v607 = vunpack.c.l.b16 %v575
        %v608 = vunpack.c.l.b16 %v576
        %v609 = vunpack.c.l.b16 %v577
        %v610 = vunpack.c.l.b16 %v578
        %v611 = vunpack.c.l.b16 %v579
        %v612 = vunpack.c.l.b16 %v580
        %v613 = vunpack.c.l.b16 %v581
        %v614 = vunpack.c.l.b16 %v582
        %v615 = vunpack.c.l.b16 %v583
        %v616 = vunpack.c.l.b16 %v584
        %v617 = vunpack.c.l.b16 %v585
        %v618 = vpack.c.b16 %v603, %v602
        %v619 = vpack.c.b16 %v605, %v604
        %v620 = vpack.c.b16 %v607, %v606
        %v621 = vpack.c.b16 %v609, %v608
        %v622 = vpack.c.b16 %v611, %v610
        %v623 = vpack.c.b16 %v613, %v612
        %v624 = vpack.c.b16 %v615, %v614
        %v625 = vpack.c.b16 %v617, %v616
        %634 = vmatprep.subr.bf16.mxu0 0
        %635 = vmatpush1.bf16.msra.mxu0 %v618
        %636 = vmatprep.subr.bf16.mxu0 0
        %637 = vmatpush1.bf16.msra.mxu0 %v619
        %638 = vmatprep.subr.bf16.mxu0 0
        %639 = vmatpush1.bf16.msra.mxu0 %v620
        %640 = vmatprep.subr.bf16.mxu0 0
        %641 = vmatpush1.bf16.msra.mxu0 %v621
        %642 = vmatprep.subr.bf16.mxu0 0
        %643 = vmatpush1.bf16.msra.mxu0 %v622
        %644 = vmatprep.subr.bf16.mxu0 0
        %645 = vmatpush1.bf16.msra.mxu0 %v623
        %646 = vmatprep.subr.bf16.mxu0 0
        %647 = vmatpush1.bf16.msra.mxu0 %v624
        %648 = vmatprep.subr.bf16.mxu0 0
        %649 = vmatpush1.bf16.msra.mxu0 %v625
        %650 = vmatprep.subr.bf16.mxu0 0
        %651 = vmatpush1.bf16.msra.mxu0 0
        %652 = vmatprep.subr.bf16.mxu0 0
        %653 = vmatpush1.bf16.msra.mxu0 0
        %654 = vmatprep.subr.bf16.mxu0 0
        %655 = vmatpush1.bf16.msra.mxu0 0
        %656 = vmatprep.subr.bf16.mxu0 0
        %657 = vmatpush1.bf16.msra.mxu0 0
        %658 = vmatprep.subr.bf16.mxu0 0
        %659 = vmatpush1.bf16.msra.mxu0 0
        %660 = vmatprep.subr.bf16.mxu0 0
        %661 = vmatpush1.bf16.msra.mxu0 0
        %662 = vmatprep.subr.bf16.mxu0 0
        %663 = vmatpush1.bf16.msra.mxu0 0
        %664 = vmatprep.subr.bf16.mxu0 0
        %665 = vmatpush1.bf16.msra.mxu0 0
        %666 = vmatprep.mubr.bf16.mxu0 0
        %667 = vmatmul.mubr.bf16.gmra.mrb[0].mxu0 %v567
        %v668 = vpop.f32.mrb[0].mxu0
        %v669 = vadd.f32 0.0, %v668
        %v670 = vpop.f32.mrb[0].mxu0
        %v671 = vpop.f32.mrb[0].mxu0
        %v672 = vadd.f32 0.0, %v671
        %v673 = vpop.f32.mrb[0].mxu0
        %674 = vmatprep.mubr.bf16.mxu0 0
        %675 = vmatmul.mubr.bf16.gmra.mrb[0].mxu0 %v568
        %v676 = vpop.f32.mrb[0].mxu0
        %v677 = vadd.f32 0.0, %v676
        %v678 = vpop.f32.mrb[0].mxu0
        %v679 = vpop.f32.mrb[0].mxu0
        %v680 = vpop.f32.mrb[0].mxu0
        %681 = vdwg.mxu0
        %v682 = vadd.f32 %v554, %v669
        %v683 = vadd.f32 %v555, %v672
        %v684 = vadd.f32 %v556, %v677
        %s685 = scalar_lea.vmem %s1, 256
        %v686 = vld [vmem:[%s685] sm:$0xf]
        %v687 = vld [vmem:[%s685 + $0x4] sm:$0xf]
        %v688 = vld [vmem:[%s685 + $0x8] sm:$0xf]
        %v689 = vld [vmem:[%s685 + $0xc] sm:$0xf]
        %v690 = vld [vmem:[%s685 + $0x10] sm:$0xf]
        %v691 = vld [vmem:[%s685 + $0x14] sm:$0xf]
        %v692 = vld [vmem:[%s685 + $0x18] sm:$0xf]
        %v693 = vld [vmem:[%s685 + $0x1c] sm:$0xf]
        %v694 = vld [vmem:[%s685 + $0x20] sm:$0xf]
        %v695 = vld [vmem:[%s685 + $0x24] sm:$0xf]
        %v696 = vld [vmem:[%s685 + $0x28] sm:$0xf]
        %v697 = vld [vmem:[%s685 + $0x2c] sm:$0xf]
        %v698 = vld [vmem:[%s685 + $0x30] sm:$0xf]
        %v699 = vld [vmem:[%s685 + $0x34] sm:$0xf]
        %v700 = vld [vmem:[%s685 + $0x38] sm:$0xf]
        %v701 = vld [vmem:[%s685 + $0x3c] sm:$0xf]
        %v703 = vshrl.u32 %v567, 16
        %v705 = vshll.u32 %v567, 16
        %v707 = vrot.slane %v705, 1
        %v708 = vor.u32 %v703, %v707
        %v710 = vshll.u32 %v568, 16
        %v712 = vrot.slane %v710, 1
        %v713 = vsel %vm223, %v708, %v712
        %v714 = vshrl.u32 %v568, 16
        %v716 = vor.u32 %v714, %v712
        %v735 = vunpack.c.l.b16 %v686
        %v736 = vunpack.c.l.b16 %v687
        %v737 = vunpack.c.l.b16 %v688
        %v738 = vunpack.c.l.b16 %v689
        %v739 = vunpack.c.l.b16 %v690
        %v740 = vunpack.c.l.b16 %v691
        %v741 = vunpack.c.l.b16 %v692
        %v742 = vunpack.c.l.b16 %v693
        %v743 = vunpack.c.l.b16 %v694
        %v744 = vunpack.c.l.b16 %v695
        %v745 = vunpack.c.l.b16 %v696
        %v746 = vunpack.c.l.b16 %v697
        %v747 = vunpack.c.l.b16 %v698
        %v748 = vunpack.c.l.b16 %v699
        %v749 = vunpack.c.l.b16 %v700
        %v750 = vunpack.c.l.b16 %v701
        %v751 = vpack.c.b16 %v736, %v735
        %v752 = vpack.c.b16 %v738, %v737
        %v753 = vpack.c.b16 %v740, %v739
        %v754 = vpack.c.b16 %v742, %v741
        %v755 = vpack.c.b16 %v744, %v743
        %v756 = vpack.c.b16 %v746, %v745
        %v757 = vpack.c.b16 %v748, %v747
        %v758 = vpack.c.b16 %v750, %v749
        %767 = vmatprep.subr.bf16.mxu0 0
        %768 = vmatpush1.bf16.msra.mxu0 %v751
        %769 = vmatprep.subr.bf16.mxu0 0
        %770 = vmatpush1.bf16.msra.mxu0 %v752
        %771 = vmatprep.subr.bf16.mxu0 0
        %772 = vmatpush1.bf16.msra.mxu0 %v753
        %773 = vmatprep.subr.bf16.mxu0 0
        %774 = vmatpush1.bf16.msra.mxu0 %v754
        %775 = vmatprep.subr.bf16.mxu0 0
        %776 = vmatpush1.bf16.msra.mxu0 %v755
        %777 = vmatprep.subr.bf16.mxu0 0
        %778 = vmatpush1.bf16.msra.mxu0 %v756
        %779 = vmatprep.subr.bf16.mxu0 0
        %780 = vmatpush1.bf16.msra.mxu0 %v757
        %781 = vmatprep.subr.bf16.mxu0 0
        %782 = vmatpush1.bf16.msra.mxu0 %v758
        %783 = vmatprep.subr.bf16.mxu0 0
        %784 = vmatpush1.bf16.msra.mxu0 0
        %785 = vmatprep.subr.bf16.mxu0 0
        %786 = vmatpush1.bf16.msra.mxu0 0
        %787 = vmatprep.subr.bf16.mxu0 0
        %788 = vmatpush1.bf16.msra.mxu0 0
        %789 = vmatprep.subr.bf16.mxu0 0
        %790 = vmatpush1.bf16.msra.mxu0 0
        %791 = vmatprep.subr.bf16.mxu0 0
        %792 = vmatpush1.bf16.msra.mxu0 0
        %793 = vmatprep.subr.bf16.mxu0 0
        %794 = vmatpush1.bf16.msra.mxu0 0
        %795 = vmatprep.subr.bf16.mxu0 0
        %796 = vmatpush1.bf16.msra.mxu0 0
        %797 = vmatprep.subr.bf16.mxu0 0
        %798 = vmatpush1.bf16.msra.mxu0 0
        %799 = vmatprep.mubr.bf16.mxu0 0
        %800 = vmatmul.mubr.bf16.gmra.mrb[0].mxu0 %v713
        %v801 = vpop.f32.mrb[0].mxu0
        %v802 = vadd.f32 0.0, %v801
        %v803 = vpop.f32.mrb[0].mxu0
        %v804 = vpop.f32.mrb[0].mxu0
        %v805 = vadd.f32 0.0, %v804
        %v806 = vpop.f32.mrb[0].mxu0
        %807 = vmatprep.mubr.bf16.mxu0 0
        %808 = vmatmul.mubr.bf16.gmra.mrb[0].mxu0 %v716
        %v809 = vpop.f32.mrb[0].mxu0
        %v810 = vadd.f32 0.0, %v809
        %v811 = vpop.f32.mrb[0].mxu0
        %v812 = vpop.f32.mrb[0].mxu0
        %v813 = vpop.f32.mrb[0].mxu0
        %814 = vdwg.mxu0
        %v815 = vadd.f32 %v682, %v802
        %v816 = vadd.f32 %v683, %v805
        %v817 = vadd.f32 %v684, %v810
        %s818 = scalar_lea.vmem %s1, 320
        %v819 = vld [vmem:[%s818] sm:$0xf]
        %v820 = vld [vmem:[%s818 + $0x4] sm:$0xf]
        %v821 = vld [vmem:[%s818 + $0x8] sm:$0xf]
        %v822 = vld [vmem:[%s818 + $0xc] sm:$0xf]
        %v823 = vld [vmem:[%s818 + $0x10] sm:$0xf]
        %v824 = vld [vmem:[%s818 + $0x14] sm:$0xf]
        %v825 = vld [vmem:[%s818 + $0x18] sm:$0xf]
        %v826 = vld [vmem:[%s818 + $0x1c] sm:$0xf]
        %v827 = vld [vmem:[%s818 + $0x20] sm:$0xf]
        %v828 = vld [vmem:[%s818 + $0x24] sm:$0xf]
        %v829 = vld [vmem:[%s818 + $0x28] sm:$0xf]
        %v830 = vld [vmem:[%s818 + $0x2c] sm:$0xf]
        %v831 = vld [vmem:[%s818 + $0x30] sm:$0xf]
        %v832 = vld [vmem:[%s818 + $0x34] sm:$0xf]
        %v833 = vld [vmem:[%s818 + $0x38] sm:$0xf]
        %v834 = vld [vmem:[%s818 + $0x3c] sm:$0xf]
        %v837 = vrot.slane %v567, 1
        %v838 = vrot.slane %v568, 1
        %v839 = vsel %vm452, %v837, %v838
        %v858 = vunpack.c.l.b16 %v819
        %v859 = vunpack.c.l.b16 %v820
        %v860 = vunpack.c.l.b16 %v821
        %v861 = vunpack.c.l.b16 %v822
        %v862 = vunpack.c.l.b16 %v823
        %v863 = vunpack.c.l.b16 %v824
        %v864 = vunpack.c.l.b16 %v825
        %v865 = vunpack.c.l.b16 %v826
        %v866 = vunpack.c.l.b16 %v827
        %v867 = vunpack.c.l.b16 %v828
        %v868 = vunpack.c.l.b16 %v829
        %v869 = vunpack.c.l.b16 %v830
        %v870 = vunpack.c.l.b16 %v831
        %v871 = vunpack.c.l.b16 %v832
        %v872 = vunpack.c.l.b16 %v833
        %v873 = vunpack.c.l.b16 %v834
        %v874 = vpack.c.b16 %v859, %v858
        %v875 = vpack.c.b16 %v861, %v860
        %v876 = vpack.c.b16 %v863, %v862
        %v877 = vpack.c.b16 %v865, %v864
        %v878 = vpack.c.b16 %v867, %v866
        %v879 = vpack.c.b16 %v869, %v868
        %v880 = vpack.c.b16 %v871, %v870
        %v881 = vpack.c.b16 %v873, %v872
        %890 = vmatprep.subr.bf16.mxu0 0
        %891 = vmatpush1.bf16.msra.mxu0 %v874
        %892 = vmatprep.subr.bf16.mxu0 0
        %893 = vmatpush1.bf16.msra.mxu0 %v875
        %894 = vmatprep.subr.bf16.mxu0 0
        %895 = vmatpush1.bf16.msra.mxu0 %v876
        %896 = vmatprep.subr.bf16.mxu0 0
        %897 = vmatpush1.bf16.msra.mxu0 %v877
        %898 = vmatprep.subr.bf16.mxu0 0
        %899 = vmatpush1.bf16.msra.mxu0 %v878
        %900 = vmatprep.subr.bf16.mxu0 0
        %901 = vmatpush1.bf16.msra.mxu0 %v879
        %902 = vmatprep.subr.bf16.mxu0 0
        %903 = vmatpush1.bf16.msra.mxu0 %v880
        %904 = vmatprep.subr.bf16.mxu0 0
        %905 = vmatpush1.bf16.msra.mxu0 %v881
        %906 = vmatprep.subr.bf16.mxu0 0
        %907 = vmatpush1.bf16.msra.mxu0 0
        %908 = vmatprep.subr.bf16.mxu0 0
        %909 = vmatpush1.bf16.msra.mxu0 0
        %910 = vmatprep.subr.bf16.mxu0 0
        %911 = vmatpush1.bf16.msra.mxu0 0
        %912 = vmatprep.subr.bf16.mxu0 0
        %913 = vmatpush1.bf16.msra.mxu0 0
        %914 = vmatprep.subr.bf16.mxu0 0
        %915 = vmatpush1.bf16.msra.mxu0 0
        %916 = vmatprep.subr.bf16.mxu0 0
        %917 = vmatpush1.bf16.msra.mxu0 0
        %918 = vmatprep.subr.bf16.mxu0 0
        %919 = vmatpush1.bf16.msra.mxu0 0
        %920 = vmatprep.subr.bf16.mxu0 0
        %921 = vmatpush1.bf16.msra.mxu0 0
        %922 = vmatprep.mubr.bf16.mxu0 0
        %923 = vmatmul.mubr.bf16.gmra.mrb[0].mxu0 %v839
        %v924 = vpop.f32.mrb[0].mxu0
        %v925 = vadd.f32 0.0, %v924
        %v926 = vpop.f32.mrb[0].mxu0
        %v927 = vpop.f32.mrb[0].mxu0
        %v928 = vadd.f32 0.0, %v927
        %v929 = vpop.f32.mrb[0].mxu0
        %930 = vmatprep.mubr.bf16.mxu0 0
        %931 = vmatmul.mubr.bf16.gmra.mrb[0].mxu0 %v838
        %v932 = vpop.f32.mrb[0].mxu0
        %v933 = vadd.f32 0.0, %v932
        %v934 = vpop.f32.mrb[0].mxu0
        %v935 = vpop.f32.mrb[0].mxu0
        %v936 = vpop.f32.mrb[0].mxu0
        %937 = vdwg.mxu0
        %v938 = vadd.f32 %v815, %v925
        %v939 = vadd.f32 %v816, %v928
        %v940 = vadd.f32 %v817, %v933
        %s941 = sadd.s32 %s174, 2
        %s942 = smul.u32 %s941, 3
        %s943 = smul.addr %s942, 4
        %s944 = scalar_lea.vmem %s165, %s943
        %v945 = vld [vmem:[%s944] sm:$0xf]
        %v946 = vld [vmem:[%s944 + $0x4] sm:$0xf]
        %v947 = vld [vmem:[%s944 + $0x8] sm:$0x7]
        %v948 = vunpack.c.l.bf16 %v945
        %v949 = vunpack.c.l.bf16 %v946
        %v950 = vunpack.c.l.bf16 %v947
        %v951 = vpack.c.bf16 %v949, %v948
        %v952 = vpack.c.bf16 %v950, %v950
        %s953 = scalar_lea.vmem %s1, 384
        %v954 = vld [vmem:[%s953] sm:$0xf]
        %v955 = vld [vmem:[%s953 + $0x4] sm:$0xf]
        %v956 = vld [vmem:[%s953 + $0x8] sm:$0xf]
        %v957 = vld [vmem:[%s953 + $0xc] sm:$0xf]
        %v958 = vld [vmem:[%s953 + $0x10] sm:$0xf]
        %v959 = vld [vmem:[%s953 + $0x14] sm:$0xf]
        %v960 = vld [vmem:[%s953 + $0x18] sm:$0xf]
        %v961 = vld [vmem:[%s953 + $0x1c] sm:$0xf]
        %v962 = vld [vmem:[%s953 + $0x20] sm:$0xf]
        %v963 = vld [vmem:[%s953 + $0x24] sm:$0xf]
        %v964 = vld [vmem:[%s953 + $0x28] sm:$0xf]
        %v965 = vld [vmem:[%s953 + $0x2c] sm:$0xf]
        %v966 = vld [vmem:[%s953 + $0x30] sm:$0xf]
        %v967 = vld [vmem:[%s953 + $0x34] sm:$0xf]
        %v968 = vld [vmem:[%s953 + $0x38] sm:$0xf]
        %v969 = vld [vmem:[%s953 + $0x3c] sm:$0xf]
        %v986 = vunpack.c.l.b16 %v954
        %v987 = vunpack.c.l.b16 %v955
        %v988 = vunpack.c.l.b16 %v956
        %v989 = vunpack.c.l.b16 %v957
        %v990 = vunpack.c.l.b16 %v958
        %v991 = vunpack.c.l.b16 %v959
        %v992 = vunpack.c.l.b16 %v960
        %v993 = vunpack.c.l.b16 %v961
        %v994 = vunpack.c.l.b16 %v962
        %v995 = vunpack.c.l.b16 %v963
        %v996 = vunpack.c.l.b16 %v964
        %v997 = vunpack.c.l.b16 %v965
        %v998 = vunpack.c.l.b16 %v966
        %v999 = vunpack.c.l.b16 %v967
        %v1000 = vunpack.c.l.b16 %v968
        %v1001 = vunpack.c.l.b16 %v969
        %v1002 = vpack.c.b16 %v987, %v986
        %v1003 = vpack.c.b16 %v989, %v988
        %v1004 = vpack.c.b16 %v991, %v990
        %v1005 = vpack.c.b16 %v993, %v992
        %v1006 = vpack.c.b16 %v995, %v994
        %v1007 = vpack.c.b16 %v997, %v996
        %v1008 = vpack.c.b16 %v999, %v998
        %v1009 = vpack.c.b16 %v1001, %v1000
        %1018 = vmatprep.subr.bf16.mxu0 0
        %1019 = vmatpush1.bf16.msra.mxu0 %v1002
        %1020 = vmatprep.subr.bf16.mxu0 0
        %1021 = vmatpush1.bf16.msra.mxu0 %v1003
        %1022 = vmatprep.subr.bf16.mxu0 0
        %1023 = vmatpush1.bf16.msra.mxu0 %v1004
        %1024 = vmatprep.subr.bf16.mxu0 0
        %1025 = vmatpush1.bf16.msra.mxu0 %v1005
        %1026 = vmatprep.subr.bf16.mxu0 0
        %1027 = vmatpush1.bf16.msra.mxu0 %v1006
        %1028 = vmatprep.subr.bf16.mxu0 0
        %1029 = vmatpush1.bf16.msra.mxu0 %v1007
        %1030 = vmatprep.subr.bf16.mxu0 0
        %1031 = vmatpush1.bf16.msra.mxu0 %v1008
        %1032 = vmatprep.subr.bf16.mxu0 0
        %1033 = vmatpush1.bf16.msra.mxu0 %v1009
        %1034 = vmatprep.subr.bf16.mxu0 0
        %1035 = vmatpush1.bf16.msra.mxu0 0
        %1036 = vmatprep.subr.bf16.mxu0 0
        %1037 = vmatpush1.bf16.msra.mxu0 0
        %1038 = vmatprep.subr.bf16.mxu0 0
        %1039 = vmatpush1.bf16.msra.mxu0 0
        %1040 = vmatprep.subr.bf16.mxu0 0
        %1041 = vmatpush1.bf16.msra.mxu0 0
        %1042 = vmatprep.subr.bf16.mxu0 0
        %1043 = vmatpush1.bf16.msra.mxu0 0
        %1044 = vmatprep.subr.bf16.mxu0 0
        %1045 = vmatpush1.bf16.msra.mxu0 0
        %1046 = vmatprep.subr.bf16.mxu0 0
        %1047 = vmatpush1.bf16.msra.mxu0 0
        %1048 = vmatprep.subr.bf16.mxu0 0
        %1049 = vmatpush1.bf16.msra.mxu0 0
        %1050 = vmatprep.mubr.bf16.mxu0 0
        %1051 = vmatmul.mubr.bf16.gmra.mrb[0].mxu0 %v951
        %v1052 = vpop.f32.mrb[0].mxu0
        %v1053 = vadd.f32 0.0, %v1052
        %v1054 = vpop.f32.mrb[0].mxu0
        %v1055 = vpop.f32.mrb[0].mxu0
        %v1056 = vadd.f32 0.0, %v1055
        %v1057 = vpop.f32.mrb[0].mxu0
        %1058 = vmatprep.mubr.bf16.mxu0 0
        %1059 = vmatmul.mubr.bf16.gmra.mrb[0].mxu0 %v952
        %v1060 = vpop.f32.mrb[0].mxu0
        %v1061 = vadd.f32 0.0, %v1060
        %v1062 = vpop.f32.mrb[0].mxu0
        %v1063 = vpop.f32.mrb[0].mxu0
        %v1064 = vpop.f32.mrb[0].mxu0
        %1065 = vdwg.mxu0
        %v1066 = vadd.f32 %v938, %v1053
        %v1067 = vadd.f32 %v939, %v1056
        %v1068 = vadd.f32 %v940, %v1061
        %s1069 = scalar_lea.vmem %s1, 448
        %v1070 = vld [vmem:[%s1069] sm:$0xf]
        %v1071 = vld [vmem:[%s1069 + $0x4] sm:$0xf]
        %v1072 = vld [vmem:[%s1069 + $0x8] sm:$0xf]
        %v1073 = vld [vmem:[%s1069 + $0xc] sm:$0xf]
        %v1074 = vld [vmem:[%s1069 + $0x10] sm:$0xf]
        %v1075 = vld [vmem:[%s1069 + $0x14] sm:$0xf]
        %v1076 = vld [vmem:[%s1069 + $0x18] sm:$0xf]
        %v1077 = vld [vmem:[%s1069 + $0x1c] sm:$0xf]
        %v1078 = vld [vmem:[%s1069 + $0x20] sm:$0xf]
        %v1079 = vld [vmem:[%s1069 + $0x24] sm:$0xf]
        %v1080 = vld [vmem:[%s1069 + $0x28] sm:$0xf]
        %v1081 = vld [vmem:[%s1069 + $0x2c] sm:$0xf]
        %v1082 = vld [vmem:[%s1069 + $0x30] sm:$0xf]
        %v1083 = vld [vmem:[%s1069 + $0x34] sm:$0xf]
        %v1084 = vld [vmem:[%s1069 + $0x38] sm:$0xf]
        %v1085 = vld [vmem:[%s1069 + $0x3c] sm:$0xf]
        %v1087 = vshrl.u32 %v951, 16
        %v1089 = vshll.u32 %v951, 16
        %v1091 = vrot.slane %v1089, 1
        %v1092 = vor.u32 %v1087, %v1091
        %v1094 = vshll.u32 %v952, 16
        %v1096 = vrot.slane %v1094, 1
        %v1097 = vsel %vm223, %v1092, %v1096
        %v1098 = vshrl.u32 %v952, 16
        %v1100 = vor.u32 %v1098, %v1096
        %v1119 = vunpack.c.l.b16 %v1070
        %v1120 = vunpack.c.l.b16 %v1071
        %v1121 = vunpack.c.l.b16 %v1072
        %v1122 = vunpack.c.l.b16 %v1073
        %v1123 = vunpack.c.l.b16 %v1074
        %v1124 = vunpack.c.l.b16 %v1075
        %v1125 = vunpack.c.l.b16 %v1076
        %v1126 = vunpack.c.l.b16 %v1077
        %v1127 = vunpack.c.l.b16 %v1078
        %v1128 = vunpack.c.l.b16 %v1079
        %v1129 = vunpack.c.l.b16 %v1080
        %v1130 = vunpack.c.l.b16 %v1081
        %v1131 = vunpack.c.l.b16 %v1082
        %v1132 = vunpack.c.l.b16 %v1083
        %v1133 = vunpack.c.l.b16 %v1084
        %v1134 = vunpack.c.l.b16 %v1085
        %v1135 = vpack.c.b16 %v1120, %v1119
        %v1136 = vpack.c.b16 %v1122, %v1121
        %v1137 = vpack.c.b16 %v1124, %v1123
        %v1138 = vpack.c.b16 %v1126, %v1125
        %v1139 = vpack.c.b16 %v1128, %v1127
        %v1140 = vpack.c.b16 %v1130, %v1129
        %v1141 = vpack.c.b16 %v1132, %v1131
        %v1142 = vpack.c.b16 %v1134, %v1133
        %1151 = vmatprep.subr.bf16.mxu0 0
        %1152 = vmatpush1.bf16.msra.mxu0 %v1135
        %1153 = vmatprep.subr.bf16.mxu0 0
        %1154 = vmatpush1.bf16.msra.mxu0 %v1136
        %1155 = vmatprep.subr.bf16.mxu0 0
        %1156 = vmatpush1.bf16.msra.mxu0 %v1137
        %1157 = vmatprep.subr.bf16.mxu0 0
        %1158 = vmatpush1.bf16.msra.mxu0 %v1138
        %1159 = vmatprep.subr.bf16.mxu0 0
        %1160 = vmatpush1.bf16.msra.mxu0 %v1139
        %1161 = vmatprep.subr.bf16.mxu0 0
        %1162 = vmatpush1.bf16.msra.mxu0 %v1140
        %1163 = vmatprep.subr.bf16.mxu0 0
        %1164 = vmatpush1.bf16.msra.mxu0 %v1141
        %1165 = vmatprep.subr.bf16.mxu0 0
        %1166 = vmatpush1.bf16.msra.mxu0 %v1142
        %1167 = vmatprep.subr.bf16.mxu0 0
        %1168 = vmatpush1.bf16.msra.mxu0 0
        %1169 = vmatprep.subr.bf16.mxu0 0
        %1170 = vmatpush1.bf16.msra.mxu0 0
        %1171 = vmatprep.subr.bf16.mxu0 0
        %1172 = vmatpush1.bf16.msra.mxu0 0
        %1173 = vmatprep.subr.bf16.mxu0 0
        %1174 = vmatpush1.bf16.msra.mxu0 0
        %1175 = vmatprep.subr.bf16.mxu0 0
        %1176 = vmatpush1.bf16.msra.mxu0 0
        %1177 = vmatprep.subr.bf16.mxu0 0
        %1178 = vmatpush1.bf16.msra.mxu0 0
        %1179 = vmatprep.subr.bf16.mxu0 0
        %1180 = vmatpush1.bf16.msra.mxu0 0
        %1181 = vmatprep.subr.bf16.mxu0 0
        %1182 = vmatpush1.bf16.msra.mxu0 0
        %1183 = vmatprep.mubr.bf16.mxu0 0
        %1184 = vmatmul.mubr.bf16.gmra.mrb[0].mxu0 %v1097
        %v1185 = vpop.f32.mrb[0].mxu0
        %v1186 = vadd.f32 0.0, %v1185
        %v1187 = vpop.f32.mrb[0].mxu0
        %v1188 = vpop.f32.mrb[0].mxu0
        %v1189 = vadd.f32 0.0, %v1188
        %v1190 = vpop.f32.mrb[0].mxu0
        %1191 = vmatprep.mubr.bf16.mxu0 0
        %1192 = vmatmul.mubr.bf16.gmra.mrb[0].mxu0 %v1100
        %v1193 = vpop.f32.mrb[0].mxu0
        %v1194 = vadd.f32 0.0, %v1193
        %v1195 = vpop.f32.mrb[0].mxu0
        %v1196 = vpop.f32.mrb[0].mxu0
        %v1197 = vpop.f32.mrb[0].mxu0
        %1198 = vdwg.mxu0
        %v1199 = vadd.f32 %v1066, %v1186
        %v1200 = vadd.f32 %v1067, %v1189
        %v1201 = vadd.f32 %v1068, %v1194
        %s1202 = scalar_lea.vmem %s1, 512
        %v1203 = vld [vmem:[%s1202] sm:$0xf]
        %v1204 = vld [vmem:[%s1202 + $0x4] sm:$0xf]
        %v1205 = vld [vmem:[%s1202 + $0x8] sm:$0xf]
        %v1206 = vld [vmem:[%s1202 + $0xc] sm:$0xf]
        %v1207 = vld [vmem:[%s1202 + $0x10] sm:$0xf]
        %v1208 = vld [vmem:[%s1202 + $0x14] sm:$0xf]
        %v1209 = vld [vmem:[%s1202 + $0x18] sm:$0xf]
        %v1210 = vld [vmem:[%s1202 + $0x1c] sm:$0xf]
        %v1211 = vld [vmem:[%s1202 + $0x20] sm:$0xf]
        %v1212 = vld [vmem:[%s1202 + $0x24] sm:$0xf]
        %v1213 = vld [vmem:[%s1202 + $0x28] sm:$0xf]
        %v1214 = vld [vmem:[%s1202 + $0x2c] sm:$0xf]
        %v1215 = vld [vmem:[%s1202 + $0x30] sm:$0xf]
        %v1216 = vld [vmem:[%s1202 + $0x34] sm:$0xf]
        %v1217 = vld [vmem:[%s1202 + $0x38] sm:$0xf]
        %v1218 = vld [vmem:[%s1202 + $0x3c] sm:$0xf]
        %v1221 = vrot.slane %v951, 1
        %v1222 = vrot.slane %v952, 1
        %v1223 = vsel %vm452, %v1221, %v1222
        %v1242 = vunpack.c.l.b16 %v1203
        %v1243 = vunpack.c.l.b16 %v1204
        %v1244 = vunpack.c.l.b16 %v1205
        %v1245 = vunpack.c.l.b16 %v1206
        %v1246 = vunpack.c.l.b16 %v1207
        %v1247 = vunpack.c.l.b16 %v1208
        %v1248 = vunpack.c.l.b16 %v1209
        %v1249 = vunpack.c.l.b16 %v1210
        %v1250 = vunpack.c.l.b16 %v1211
        %v1251 = vunpack.c.l.b16 %v1212
        %v1252 = vunpack.c.l.b16 %v1213
        %v1253 = vunpack.c.l.b16 %v1214
        %v1254 = vunpack.c.l.b16 %v1215
        %v1255 = vunpack.c.l.b16 %v1216
        %v1256 = vunpack.c.l.b16 %v1217
        %v1257 = vunpack.c.l.b16 %v1218
        %v1258 = vpack.c.b16 %v1243, %v1242
        %v1259 = vpack.c.b16 %v1245, %v1244
        %v1260 = vpack.c.b16 %v1247, %v1246
        %v1261 = vpack.c.b16 %v1249, %v1248
        %v1262 = vpack.c.b16 %v1251, %v1250
        %v1263 = vpack.c.b16 %v1253, %v1252
        %v1264 = vpack.c.b16 %v1255, %v1254
        %v1265 = vpack.c.b16 %v1257, %v1256
        %1274 = vmatprep.subr.bf16.mxu0 0
        %1275 = vmatpush1.bf16.msra.mxu0 %v1258
        %1276 = vmatprep.subr.bf16.mxu0 0
        %1277 = vmatpush1.bf16.msra.mxu0 %v1259
        %1278 = vmatprep.subr.bf16.mxu0 0
        %1279 = vmatpush1.bf16.msra.mxu0 %v1260
        %1280 = vmatprep.subr.bf16.mxu0 0
        %1281 = vmatpush1.bf16.msra.mxu0 %v1261
        %1282 = vmatprep.subr.bf16.mxu0 0
        %1283 = vmatpush1.bf16.msra.mxu0 %v1262
        %1284 = vmatprep.subr.bf16.mxu0 0
        %1285 = vmatpush1.bf16.msra.mxu0 %v1263
        %1286 = vmatprep.subr.bf16.mxu0 0
        %1287 = vmatpush1.bf16.msra.mxu0 %v1264
        %1288 = vmatprep.subr.bf16.mxu0 0
        %1289 = vmatpush1.bf16.msra.mxu0 %v1265
        %1290 = vmatprep.subr.bf16.mxu0 0
        %1291 = vmatpush1.bf16.msra.mxu0 0
        %1292 = vmatprep.subr.bf16.mxu0 0
        %1293 = vmatpush1.bf16.msra.mxu0 0
        %1294 = vmatprep.subr.bf16.mxu0 0
        %1295 = vmatpush1.bf16.msra.mxu0 0
        %1296 = vmatprep.subr.bf16.mxu0 0
        %1297 = vmatpush1.bf16.msra.mxu0 0
        %1298 = vmatprep.subr.bf16.mxu0 0
        %1299 = vmatpush1.bf16.msra.mxu0 0
        %1300 = vmatprep.subr.bf16.mxu0 0
        %1301 = vmatpush1.bf16.msra.mxu0 0
        %1302 = vmatprep.subr.bf16.mxu0 0
        %1303 = vmatpush1.bf16.msra.mxu0 0
        %1304 = vmatprep.subr.bf16.mxu0 0
        %1305 = vmatpush1.bf16.msra.mxu0 0
        %1306 = vmatprep.mubr.bf16.mxu0 0
        %1307 = vmatmul.mubr.bf16.gmra.mrb[0].mxu0 %v1223
        %v1308 = vpop.f32.mrb[0].mxu0
        %v1309 = vadd.f32 0.0, %v1308
        %v1310 = vpop.f32.mrb[0].mxu0
        %v1311 = vpop.f32.mrb[0].mxu0
        %v1312 = vadd.f32 0.0, %v1311
        %v1313 = vpop.f32.mrb[0].mxu0
        %1314 = vmatprep.mubr.bf16.mxu0 0
        %1315 = vmatmul.mubr.bf16.gmra.mrb[0].mxu0 %v1222
        %v1316 = vpop.f32.mrb[0].mxu0
        %v1317 = vadd.f32 0.0, %v1316
        %v1318 = vpop.f32.mrb[0].mxu0
        %v1319 = vpop.f32.mrb[0].mxu0
        %v1320 = vpop.f32.mrb[0].mxu0
        %1321 = vdwg.mxu0
        %v1322 = vadd.f32 %v1199, %v1309
        %v1323 = vadd.f32 %v1200, %v1312
        %v1324 = vadd.f32 %v1201, %v1317
        %v1326 = vlaneseq
        %v1327 = vshrl.u32 %v1326, 7
        %v1328 = vsub.s32 0, %v1327
        %v1329 = vrot.slane %v172, %v1328
        %v1331 = vadd.f32 %v1322, %v1329
        %v1332 = vadd.f32 %v1323, %v1329
        %v1333 = vadd.f32 %v1324, %v1329
        %v1334 = vmax.f32 %v1331, 0.0
        %v1335 = vmax.f32 %v1332, 0.0
        %v1336 = vmax.f32 %v1333, 0.0
        %v1337 = vpack.c.bf16 %v1335, %v1334
        %v1338 = vpack.c.bf16 %v1336, %v1336
        %v1341 = vunpack.c.l.b16 %v1337
        %v1342 = vunpack.c.h.b16 %v1337
        %v1343 = vunpack.c.l.b16 %v1338
        %v1344 = vpack.c.b16 %v1341, %v1341
        %v1345 = vpack.c.b16 %v1342, %v1342
        %v1346 = vpack.c.b16 %v1343, %v1343
        %s1350 = smul.addr %s179, 4
        %s1351 = scalar_lea.vmem %s170, %s1350
        %1352 = vst [vmem:[%s1351] sm:$0xf] %v1344
        %1353 = vst [vmem:[%s1351 + $0x4] sm:$0xf] %v1345
        %1354 = vst [vmem:[%s1351 + $0x8] sm:$0x3] %v1346
      $region37: #{net_forward.9} parent=31 // loop_footer
        %s178 = sadd.s32 1, %s174
      $region38: #{net_forward.9} parent=31 // loop_footer_branch
        %173 = sbr.rel target = $region34
      $region39: #{net_forward.9} parent=31 // loop_exit
        _
      %p1355 = scmp.lt.s32.totalorder %s14, 1
      %s1356 = scalar_select %p1355, %s14, 1
      %s1357 = smul.addr %s1356, 60
      %s1358 = smul.addr %s1357, 4
      %s1359 = scalar_lea.vmem %s3, %s1358
      // Predicated region
      $region40: #{net_forward.9} parent=31 // pred_check
        %p1360 = pneg %p100
      $region41: #{net_forward.9} parent=31 // pred_check_branch
        %1362 = sbr.rel (%p1360) target = $region43
      $region42: #{net_forward.9} parent=31 // pred_region
        _
      $region43: #{net_forward.9} parent=31 // pred_fallthru
        _
    $region32: #{net_forward.9} parent=5 // pred_fallthru
      _
    %p1363 = scmp.le.s32.totalorder 2, %s9
    // Predicated region
    $region44: #{net_forward.9} parent=5 // pred_check
      %p1364 = pneg %p1363
    $region45: #{net_forward.9} parent=5 // pred_check_branch
      %1366 = sbr.rel (%p1364) target = $region47
    $region46: #{net_forward.9} parent=5 // pred_region
      %s1367 = ssub.s32 %s9, 2
      // Predicated region
      $region48: #{net_forward.9} parent=46 // pred_check
        %p1368 = pneg %p106
      $region49: #{net_forward.9} parent=46 // pred_check_branch
        %1370 = sbr.rel (%p1368) target = $region51
      $region50: #{net_forward.9} parent=46 // pred_region
        %p1371 = scmp.lt.s32.totalorder %s15, 1
        %s1372 = scalar_select %p1371, %s15, 1
        %s1373 = smul.addr %s1372, 60
        %s1374 = smul.addr %s1373, 4
        %s1375 = scalar_lea.vmem %s3, %s1374
      $region51: #{net_forward.9} parent=46 // pred_fallthru
        _
    $region47: #{net_forward.9} parent=5 // pred_fallthru
      _
  $region6: #{net_forward.9} parent=0 // loop_footer
    %s13 = sadd.s32 1, %s9
  $region7: #{net_forward.9} parent=0 // loop_footer_branch
    %8 = sbr.rel target = $region3
  $region8: #{net_forward.9} parent=0 // loop_exit
    _

// kernel: net_forward.11
$region0: #{net_forward.11}
  #allocation0 [shape = 'u32[]', space=smem, size = 0x4, offset = 0x4, fixed_abs, tag = 'smem constant byte address 0x4 - core index']
  #allocation1 [shape = 'u32[144,128]{1,0:T(1,128)}', space=vmem, size = 0x12000, scoped, tag = 'internal scratch']
  %s0 = inlined_call_operand.vmem [shape: bf16[2,20,20,128], index: 0, kind: input, shape index: {}]
  %s1 = inlined_call_operand.vmem [shape: bf16[9,128,128], index: 1, kind: input, shape index: {}]
  %s2 = inlined_call_operand.vmem [shape: f32[1,128], index: 2, kind: input, shape index: {}]
  %s3 = inlined_call_operand.vmem [shape: bf16[2,18,18,128], index: 3, kind: output, shape index: {}]
  %s4 = sld [smem:[#allocation0]]
  $region52: #{net_forward.11} parent=0
    _
  %s6 = ssub.s32 1, %s4
  %s7 = scalar_select 0, %s6, %s4
  loop: start=0, step=1, limit=4
  $region2: #{net_forward.11} parent=0 // loop_pre_header
    _
  $region3: #{net_forward.11} parent=0 // loop_header
    %s9 = sphi 0, %s13
    %p10 = scmp.ge.s32.totalorder %s9, 4
    %s19 = sphi 0, %s21
    %s22 = sphi 0, %s19
    %s23 = sphi 0, %s22
    %s39 = sphi 0, %s23
    %s43 = sphi 0, %s43
    %s45 = sphi 0, %s43
    %s46 = sphi 0, %s45
    %s60 = sphi 0, %s46
    %s64 = sphi 0, %s64
    %s66 = sphi 0, %s64
    %s67 = sphi 0, %s66
    %s81 = sphi 0, %s67
    %s87 = sphi 0, %s89
    %s90 = sphi 0, %s87
    %s91 = sphi 0, %s90
    %s107 = sphi 0, %s91
  $region4: #{net_forward.11} parent=0 // loop_header_branch
    %12 = sbr.rel (%p10) target = $region8
  $region5: #{net_forward.11} parent=0 // loop_body
    %s14 = ssub.s32 %s9, 1
    %s15 = ssub.s32 %s9, 2
    %s16 = sadd.s32 %s9, 1
    %s17 = ssub.s32 %s9, %s16
    %p18 = scmp.eq.s32.totalorder %s17, 0
    %s20 = sadd.s32 %s19, 1
    %s21 = scalar_select %p18, %s19, %s20
    %p24 = pneg %p18
    %p25 = scmp.eq.s32.totalorder %s9, 1
    %p26 = por %p24, %p25
    %p27 = scmp.ne.s32.totalorder %s19, %s22
    %p28 = scmp.eq.s32.totalorder %s9, 0
    %p29 = por %p27, %p28
    %p30 = scmp.ne.s32.totalorder %s19, %s22
    %p31 = scmp.eq.s32.totalorder %s14, 1
    %p32 = por %p30, %p31
    %p33 = scmp.ne.s32.totalorder %s22, %s23
    %p34 = scmp.eq.s32.totalorder %s14, 0
    %p35 = por %p33, %p34
    %p36 = scmp.ne.s32.totalorder %s22, %s23
    %p37 = scmp.eq.s32.totalorder %s15, 1
    %p38 = por %p36, %p37
    %p40 = scmp.ne.s32.totalorder %s23, %s39
    %p41 = scmp.eq.s32.totalorder %s15, 0
    %p42 = por %p40, %p41
    %s44 = sadd.s32 %s43, 1
    %p47 = scmp.eq.s32.totalorder %s9, 1
    %p48 = scmp.ne.s32.totalorder %s43, %s45
    %p49 = scmp.eq.s32.totalorder %s9, 0
    %p50 = por %p48, %p49
    %p51 = scmp.ne.s32.totalorder %s43, %s45
    %p52 = scmp.eq.s32.totalorder %s14, 1
    %p53 = por %p51, %p52
    %p54 = scmp.ne.s32.totalorder %s45, %s46
    %p55 = scmp.eq.s32.totalorder %s14, 0
    %p56 = por %p54, %p55
    %p57 = scmp.ne.s32.totalorder %s45, %s46
    %p58 = scmp.eq.s32.totalorder %s15, 1
    %p59 = por %p57, %p58
    %p61 = scmp.ne.s32.totalorder %s46, %s60
    %p62 = scmp.eq.s32.totalorder %s15, 0
    %p63 = por %p61, %p62
    %s65 = sadd.s32 %s64, 1
    %p68 = scmp.eq.s32.totalorder %s9, 1
    %p69 = scmp.ne.s32.totalorder %s64, %s66
    %p70 = scmp.eq.s32.totalorder %s9, 0
    %p71 = por %p69, %p70
    %p72 = scmp.ne.s32.totalorder %s64, %s66
    %p73 = scmp.eq.s32.totalorder %s14, 1
    %p74 = por %p72, %p73
    %p75 = scmp.ne.s32.totalorder %s66, %s67
    %p76 = scmp.eq.s32.totalorder %s14, 0
    %p77 = por %p75, %p76
    %p78 = scmp.ne.s32.totalorder %s66, %s67
    %p79 = scmp.eq.s32.totalorder %s15, 1
    %p80 = por %p78, %p79
    %p82 = scmp.ne.s32.totalorder %s67, %s81
    %p83 = scmp.eq.s32.totalorder %s15, 0
    %p84 = por %p82, %p83
    %s85 = ssub.s32 %s9, %s16
    %p86 = scmp.eq.s32.totalorder %s85, 0
    %s88 = sadd.s32 %s87, 1
    %s89 = scalar_select %p86, %s87, %s88
    %p92 = pneg %p86
    %p93 = scmp.eq.s32.totalorder %s9, 1
    %p94 = por %p92, %p93
    %p95 = scmp.ne.s32.totalorder %s87, %s90
    %p96 = scmp.eq.s32.totalorder %s9, 0
    %p97 = por %p95, %p96
    %p98 = scmp.ne.s32.totalorder %s87, %s90
    %p99 = scmp.eq.s32.totalorder %s14, 1
    %p100 = por %p98, %p99
    %p101 = scmp.ne.s32.totalorder %s90, %s91
    %p102 = scmp.eq.s32.totalorder %s14, 0
    %p103 = por %p101, %p102
    %p104 = scmp.ne.s32.totalorder %s90, %s91
    %p105 = scmp.eq.s32.totalorder %s15, 1
    %p106 = por %p104, %p105
    %p108 = scmp.ne.s32.totalorder %s91, %s107
    %p109 = scmp.eq.s32.totalorder %s15, 0
    %p110 = por %p108, %p109
    %p111 = scmp.le.s32.totalorder 1, %s9
    %p112 = scmp.lt.s32.totalorder %s9, 3
    %p113 = pnand %p111, %p112
    %p114 = pneg %p113
    // Predicated region
    $region9: #{net_forward.11} parent=5 // pred_check
      _
    $region10: #{net_forward.11} parent=5 // pred_check_branch
      %116 = sbr.rel (%p113) target = $region12
    $region11: #{net_forward.11} parent=5 // pred_region
      %s117 = ssub.s32 %s9, 1
      // Predicated region
      $region13: #{net_forward.11} parent=11 // pred_check
        %p118 = pneg %p56
      $region14: #{net_forward.11} parent=11 // pred_check_branch
        %120 = sbr.rel (%p118) target = $region16
      $region15: #{net_forward.11} parent=11 // pred_region
        _
      $region16: #{net_forward.11} parent=11 // pred_fallthru
        _
      // Predicated region
      $region17: #{net_forward.11} parent=11 // pred_check
        %p121 = pneg %p77
      $region18: #{net_forward.11} parent=11 // pred_check_branch
        %123 = sbr.rel (%p121) target = $region20
      $region19: #{net_forward.11} parent=11 // pred_region
        _
      $region20: #{net_forward.11} parent=11 // pred_fallthru
        _
    $region12: #{net_forward.11} parent=5 // pred_fallthru
      _
    %p124 = scmp.lt.s32.totalorder %s9, 2
    // Predicated region
    $region21: #{net_forward.11} parent=5 // pred_check
      %p125 = pneg %p124
    $region22: #{net_forward.11} parent=5 // pred_check_branch
      %127 = sbr.rel (%p125) target = $region24
    $region23: #{net_forward.11} parent=5 // pred_region
      // Predicated region
      $region25: #{net_forward.11} parent=23 // pred_check
        %p128 = pneg %p29
      $region26: #{net_forward.11} parent=23 // pred_check_branch
        %130 = sbr.rel (%p128) target = $region28
      $region27: #{net_forward.11} parent=23 // pred_region
        %p131 = scmp.lt.s32.totalorder %s9, 1
        %s132 = scalar_select %p131, %s9, 1
        %s133 = smul.addr %s132, 60
        %s134 = smul.addr %s133, 4
        %s135 = scalar_lea.vmem %s0, %s134
      $region28: #{net_forward.11} parent=23 // pred_fallthru
        _
    $region24: #{net_forward.11} parent=5 // pred_fallthru
      _
    %p136 = scmp.le.s32.totalorder 1, %s9
    %p137 = scmp.lt.s32.totalorder %s9, 3
    %p138 = pnand %p136, %p137
    %p139 = pneg %p138
    // Predicated region
    $region29: #{net_forward.11} parent=5 // pred_check
      _
    $region30: #{net_forward.11} parent=5 // pred_check_branch
      %141 = sbr.rel (%p138) target = $region32
    $region31: #{net_forward.11} parent=5 // pred_region
      %s142 = ssub.s32 %s9, 1
      %p143 = scmp.lt.s32.totalorder %s14, 1
      %s144 = scalar_select %p143, %s14, 1
      %s145 = smul.addr %s144, 60
      %s146 = smul.addr %s145, 4
      %s147 = scalar_lea.vmem %s0, %s146
      %p148 = pneg %p35
      %p149 = pneg %p32
      %p150 = pneg %p56
      %p151 = pneg %p53
      %p152 = pneg %p77
      %p153 = pneg %p74
      %p154 = pneg %p103
      %p155 = pneg %p100
      %p156 = scmp.lt.s32.totalorder %s14, 1
      %s157 = scalar_select %p156, %s14, 1
      %s158 = smul.addr %s157, 54
      %s159 = smul.addr %s158, 4
      %s160 = scalar_lea.vmem %s3, %s159
      %p161 = scmp.lt.s32.totalorder %s14, 1
      %s162 = scalar_select %p161, %s14, 1
      %s163 = smul.addr %s162, 60
      %s164 = smul.addr %s163, 4
      %s165 = scalar_lea.vmem %s0, %s164
      %p166 = scmp.lt.s32.totalorder %s14, 1
      %s167 = scalar_select %p166, %s14, 1
      %s168 = smul.addr %s167, 54
      %s169 = smul.addr %s168, 4
      %s170 = scalar_lea.vmem %s3, %s169
      %v172 = vld [vmem:[%s2] sm:$0x1]
      loop: start=0, step=1, limit=18
      $region33: #{net_forward.11} parent=31 // loop_pre_header
        _
      $region34: #{net_forward.11} parent=31 // loop_header
        %s174 = sphi 0, %s178
        %p175 = scmp.ge.s32.totalorder %s174, 18
      $region35: #{net_forward.11} parent=31 // loop_header_branch
        %177 = sbr.rel (%p175) target = $region39
      $region36: #{net_forward.11} parent=31 // loop_body
        %s179 = smul.u32 %s174, 3
        %s180 = smul.addr %s179, 4
        %s181 = scalar_lea.vmem %s165, %s180
        %v182 = vld [vmem:[%s181] sm:$0xf]
        %v183 = vld [vmem:[%s181 + $0x4] sm:$0xf]
        %v184 = vld [vmem:[%s181 + $0x8] sm:$0x3]
        %v185 = vunpack.c.l.bf16 %v182
        %v186 = vunpack.c.l.bf16 %v183
        %v187 = vunpack.c.l.bf16 %v184
        %v188 = vpack.c.bf16 %v186, %v185
        %v189 = vpack.c.bf16 %v187, %v187
        %v190 = vld [vmem:[%s1] sm:$0xf]
        %v191 = vld [vmem:[%s1 + $0x4] sm:$0xf]
        %v192 = vld [vmem:[%s1 + $0x8] sm:$0xf]
        %v193 = vld [vmem:[%s1 + $0xc] sm:$0xf]
        %v194 = vld [vmem:[%s1 + $0x10] sm:$0xf]
        %v195 = vld [vmem:[%s1 + $0x14] sm:$0xf]
        %v196 = vld [vmem:[%s1 + $0x18] sm:$0xf]
        %v197 = vld [vmem:[%s1 + $0x1c] sm:$0xf]
        %v198 = vld [vmem:[%s1 + $0x20] sm:$0xf]
        %v199 = vld [vmem:[%s1 + $0x24] sm:$0xf]
        %v200 = vld [vmem:[%s1 + $0x28] sm:$0xf]
        %v201 = vld [vmem:[%s1 + $0x2c] sm:$0xf]
        %v202 = vld [vmem:[%s1 + $0x30] sm:$0xf]
        %v203 = vld [vmem:[%s1 + $0x34] sm:$0xf]
        %v204 = vld [vmem:[%s1 + $0x38] sm:$0xf]
        %v205 = vld [vmem:[%s1 + $0x3c] sm:$0xf]
        %s206 = scalar_lea.vmem %s1, 64
        %v207 = vld [vmem:[%s206] sm:$0xf]
        %v208 = vld [vmem:[%s206 + $0x4] sm:$0xf]
        %v209 = vld [vmem:[%s206 + $0x8] sm:$0xf]
        %v210 = vld [vmem:[%s206 + $0xc] sm:$0xf]
        %v211 = vld [vmem:[%s206 + $0x10] sm:$0xf]
        %v212 = vld [vmem:[%s206 + $0x14] sm:$0xf]
        %v213 = vld [vmem:[%s206 + $0x18] sm:$0xf]
        %v214 = vld [vmem:[%s206 + $0x1c] sm:$0xf]
        %v215 = vld [vmem:[%s206 + $0x20] sm:$0xf]
        %v216 = vld [vmem:[%s206 + $0x24] sm:$0xf]
        %v217 = vld [vmem:[%s206 + $0x28] sm:$0xf]
        %v218 = vld [vmem:[%s206 + $0x2c] sm:$0xf]
        %v219 = vld [vmem:[%s206 + $0x30] sm:$0xf]
        %v220 = vld [vmem:[%s206 + $0x34] sm:$0xf]
        %v221 = vld [vmem:[%s206 + $0x38] sm:$0xf]
        %v222 = vld [vmem:[%s206 + $0x3c] sm:$0xf]
        %vm223 = vsmask.f32 7424
        %v225 = vshrl.u32 %v188, 16
        %v227 = vshll.u32 %v188, 16
        %v229 = vrot.slane %v227, 1
        %v230 = vor.u32 %v225, %v229
        %v232 = vshll.u32 %v189, 16
        %v234 = vrot.slane %v232, 1
        %v235 = vsel %vm223, %v230, %v234
        %v236 = vshrl.u32 %v189, 16
        %v238 = vor.u32 %v236, %v234
        %v257 = vunpack.c.l.b16 %v207
        %v258 = vunpack.c.l.b16 %v208
        %v259 = vunpack.c.l.b16 %v209
        %v260 = vunpack.c.l.b16 %v210
        %v261 = vunpack.c.l.b16 %v211
        %v262 = vunpack.c.l.b16 %v212
        %v263 = vunpack.c.l.b16 %v213
        %v264 = vunpack.c.l.b16 %v214
        %v265 = vunpack.c.l.b16 %v215
        %v266 = vunpack.c.l.b16 %v216
        %v267 = vunpack.c.l.b16 %v217
        %v268 = vunpack.c.l.b16 %v218
        %v269 = vunpack.c.l.b16 %v219
        %v270 = vunpack.c.l.b16 %v220
        %v271 = vunpack.c.l.b16 %v221
        %v272 = vunpack.c.l.b16 %v222
        %v273 = vpack.c.b16 %v258, %v257
        %v274 = vpack.c.b16 %v260, %v259
        %v275 = vpack.c.b16 %v262, %v261
        %v276 = vpack.c.b16 %v264, %v263
        %v277 = vpack.c.b16 %v266, %v265
        %v278 = vpack.c.b16 %v268, %v267
        %v279 = vpack.c.b16 %v270, %v269
        %v280 = vpack.c.b16 %v272, %v271
        %289 = vmatprep.subr.bf16.mxu0 0
        %290 = vmatpush1.bf16.msra.mxu0 %v273
        %291 = vmatprep.subr.bf16.mxu0 0
        %292 = vmatpush1.bf16.msra.mxu0 %v274
        %293 = vmatprep.subr.bf16.mxu0 0
        %294 = vmatpush1.bf16.msra.mxu0 %v275
        %295 = vmatprep.subr.bf16.mxu0 0
        %296 = vmatpush1.bf16.msra.mxu0 %v276
        %297 = vmatprep.subr.bf16.mxu0 0
        %298 = vmatpush1.bf16.msra.mxu0 %v277
        %299 = vmatprep.subr.bf16.mxu0 0
        %300 = vmatpush1.bf16.msra.mxu0 %v278
        %301 = vmatprep.subr.bf16.mxu0 0
        %302 = vmatpush1.bf16.msra.mxu0 %v279
        %303 = vmatprep.subr.bf16.mxu0 0
        %304 = vmatpush1.bf16.msra.mxu0 %v280
        %305 = vmatprep.subr.bf16.mxu0 0
        %306 = vmatpush1.bf16.msra.mxu0 0
        %307 = vmatprep.subr.bf16.mxu0 0
        %308 = vmatpush1.bf16.msra.mxu0 0
        %309 = vmatprep.subr.bf16.mxu0 0
        %310 = vmatpush1.bf16.msra.mxu0 0
        %311 = vmatprep.subr.bf16.mxu0 0
        %312 = vmatpush1.bf16.msra.mxu0 0
        %313 = vmatprep.subr.bf16.mxu0 0
        %314 = vmatpush1.bf16.msra.mxu0 0
        %315 = vmatprep.subr.bf16.mxu0 0
        %316 = vmatpush1.bf16.msra.mxu0 0
        %317 = vmatprep.subr.bf16.mxu0 0
        %318 = vmatpush1.bf16.msra.mxu0 0
        %319 = vmatprep.subr.bf16.mxu0 0
        %320 = vmatpush1.bf16.msra.mxu0 0
        %321 = vmatprep.mubr.bf16.mxu0 0
        %322 = vmatmul.mubr.bf16.gmra.mrb[0].mxu0 %v235
        %v323 = vpop.f32.mrb[0].mxu0
        %v324 = vadd.f32 0.0, %v323
        %v325 = vpop.f32.mrb[0].mxu0
        %v326 = vpop.f32.mrb[0].mxu0
        %v327 = vadd.f32 0.0, %v326
        %v328 = vpop.f32.mrb[0].mxu0
        %329 = vmatprep.mubr.bf16.mxu0 0
        %330 = vmatmul.mubr.bf16.gmra.mrb[0].mxu0 %v238
        %v331 = vpop.f32.mrb[0].mxu0
        %v332 = vadd.f32 0.0, %v331
        %v333 = vpop.f32.mrb[0].mxu0
        %v334 = vpop.f32.mrb[0].mxu0
        %v335 = vpop.f32.mrb[0].mxu0
        %336 = vdwg.mxu0
        %v353 = vunpack.c.l.b16 %v190
        %v354 = vunpack.c.l.b16 %v191
        %v355 = vunpack.c.l.b16 %v192
        %v356 = vunpack.c.l.b16 %v193
        %v357 = vunpack.c.l.b16 %v194
        %v358 = vunpack.c.l.b16 %v195
        %v359 = vunpack.c.l.b16 %v196
        %v360 = vunpack.c.l.b16 %v197
        %v361 = vunpack.c.l.b16 %v198
        %v362 = vunpack.c.l.b16 %v199
        %v363 = vunpack.c.l.b16 %v200
        %v364 = vunpack.c.l.b16 %v201
        %v365 = vunpack.c.l.b16 %v202
        %v366 = vunpack.c.l.b16 %v203
        %v367 = vunpack.c.l.b16 %v204
        %v368 = vunpack.c.l.b16 %v205
        %v369 = vpack.c.b16 %v354, %v353
        %v370 = vpack.c.b16 %v356, %v355
        %v371 = vpack.c.b16 %v358, %v357
        %v372 = vpack.c.b16 %v360, %v359
        %v373 = vpack.c.b16 %v362, %v361
        %v374 = vpack.c.b16 %v364, %v363
        %v375 = vpack.c.b16 %v366, %v365
        %v376 = vpack.c.b16 %v368, %v367
        %385 = vmatprep.subr.bf16.mxu0 0
        %386 = vmatpush1.bf16.msra.mxu0 %v369
        %387 = vmatprep.subr.bf16.mxu0 0
        %388 = vmatpush1.bf16.msra.mxu0 %v370
        %389 = vmatprep.subr.bf16.mxu0 0
        %390 = vmatpush1.bf16.msra.mxu0 %v371
        %391 = vmatprep.subr.bf16.mxu0 0
        %392 = vmatpush1.bf16.msra.mxu0 %v372
        %393 = vmatprep.subr.bf16.mxu0 0
        %394 = vmatpush1.bf16.msra.mxu0 %v373
        %395 = vmatprep.subr.bf16.mxu0 0
        %396 = vmatpush1.bf16.msra.mxu0 %v374
        %397 = vmatprep.subr.bf16.mxu0 0
        %398 = vmatpush1.bf16.msra.mxu0 %v375
        %399 = vmatprep.subr.bf16.mxu0 0
        %400 = vmatpush1.bf16.msra.mxu0 %v376
        %401 = vmatprep.subr.bf16.mxu0 0
        %402 = vmatpush1.bf16.msra.mxu0 0
        %403 = vmatprep.subr.bf16.mxu0 0
        %404 = vmatpush1.bf16.msra.mxu0 0
        %405 = vmatprep.subr.bf16.mxu0 0
        %406 = vmatpush1.bf16.msra.mxu0 0
        %407 = vmatprep.subr.bf16.mxu0 0
        %408 = vmatpush1.bf16.msra.mxu0 0
        %409 = vmatprep.subr.bf16.mxu0 0
        %410 = vmatpush1.bf16.msra.mxu0 0
        %411 = vmatprep.subr.bf16.mxu0 0
        %412 = vmatpush1.bf16.msra.mxu0 0
        %413 = vmatprep.subr.bf16.mxu0 0
        %414 = vmatpush1.bf16.msra.mxu0 0
        %415 = vmatprep.subr.bf16.mxu0 0
        %416 = vmatpush1.bf16.msra.mxu0 0
        %417 = vmatprep.mubr.bf16.mxu0 0
        %418 = vmatmul.mubr.bf16.gmra.mrb[0].mxu0 %v188
        %v419 = vpop.f32.mrb[0].mxu0
        %v420 = vadd.f32 %v324, %v419
        %v421 = vpop.f32.mrb[0].mxu0
        %v422 = vpop.f32.mrb[0].mxu0
        %v423 = vadd.f32 %v327, %v422
        %v424 = vpop.f32.mrb[0].mxu0
        %425 = vmatprep.mubr.bf16.mxu0 0
        %426 = vmatmul.mubr.bf16.gmra.mrb[0].mxu0 %v189
        %v427 = vpop.f32.mrb[0].mxu0
        %v428 = vadd.f32 %v332, %v427
        %v429 = vpop.f32.mrb[0].mxu0
        %v430 = vpop.f32.mrb[0].mxu0
        %v431 = vpop.f32.mrb[0].mxu0
        %432 = vdwg.mxu0
        %s433 = scalar_lea.vmem %s1, 128
        %v434 = vld [vmem:[%s433] sm:$0xf]
        %v435 = vld [vmem:[%s433 + $0x4] sm:$0xf]
        %v436 = vld [vmem:[%s433 + $0x8] sm:$0xf]
        %v437 = vld [vmem:[%s433 + $0xc] sm:$0xf]
        %v438 = vld [vmem:[%s433 + $0x10] sm:$0xf]
        %v439 = vld [vmem:[%s433 + $0x14] sm:$0xf]
        %v440 = vld [vmem:[%s433 + $0x18] sm:$0xf]
        %v441 = vld [vmem:[%s433 + $0x1c] sm:$0xf]
        %v442 = vld [vmem:[%s433 + $0x20] sm:$0xf]
        %v443 = vld [vmem:[%s433 + $0x24] sm:$0xf]
        %v444 = vld [vmem:[%s433 + $0x28] sm:$0xf]
        %v445 = vld [vmem:[%s433 + $0x2c] sm:$0xf]
        %v446 = vld [vmem:[%s433 + $0x30] sm:$0xf]
        %v447 = vld [vmem:[%s433 + $0x34] sm:$0xf]
        %v448 = vld [vmem:[%s433 + $0x38] sm:$0xf]
        %v449 = vld [vmem:[%s433 + $0x3c] sm:$0xf]
        %vm452 = vcmask 1046528
        %v453 = vrot.slane %v188, 1
        %v454 = vrot.slane %v189, 1
        %v455 = vsel %vm452, %v453, %v454
        %v474 = vunpack.c.l.b16 %v434
        %v475 = vunpack.c.l.b16 %v435
        %v476 = vunpack.c.l.b16 %v436
        %v477 = vunpack.c.l.b16 %v437
        %v478 = vunpack.c.l.b16 %v438
        %v479 = vunpack.c.l.b16 %v439
        %v480 = vunpack.c.l.b16 %v440
        %v481 = vunpack.c.l.b16 %v441
        %v482 = vunpack.c.l.b16 %v442
        %v483 = vunpack.c.l.b16 %v443
        %v484 = vunpack.c.l.b16 %v444
        %v485 = vunpack.c.l.b16 %v445
        %v486 = vunpack.c.l.b16 %v446
        %v487 = vunpack.c.l.b16 %v447
        %v488 = vunpack.c.l.b16 %v448
        %v489 = vunpack.c.l.b16 %v449
        %v490 = vpack.c.b16 %v475, %v474
        %v491 = vpack.c.b16 %v477, %v476
        %v492 = vpack.c.b16 %v479, %v478
        %v493 = vpack.c.b16 %v481, %v480
        %v494 = vpack.c.b16 %v483, %v482
        %v495 = vpack.c.b16 %v485, %v484
        %v496 = vpack.c.b16 %v487, %v486
        %v497 = vpack.c.b16 %v489, %v488
        %506 = vmatprep.subr.bf16.mxu0 0
        %507 = vmatpush1.bf16.msra.mxu0 %v490
        %508 = vmatprep.subr.bf16.mxu0 0
        %509 = vmatpush1.bf16.msra.mxu0 %v491
        %510 = vmatprep.subr.bf16.mxu0 0
        %511 = vmatpush1.bf16.msra.mxu0 %v492
        %512 = vmatprep.subr.bf16.mxu0 0
        %513 = vmatpush1.bf16.msra.mxu0 %v493
        %514 = vmatprep.subr.bf16.mxu0 0
        %515 = vmatpush1.bf16.msra.mxu0 %v494
        %516 = vmatprep.subr.bf16.mxu0 0
        %517 = vmatpush1.bf16.msra.mxu0 %v495
        %518 = vmatprep.subr.bf16.mxu0 0
        %519 = vmatpush1.bf16.msra.mxu0 %v496
        %520 = vmatprep.subr.bf16.mxu0 0
        %521 = vmatpush1.bf16.msra.mxu0 %v497
        %522 = vmatprep.subr.bf16.mxu0 0
        %523 = vmatpush1.bf16.msra.mxu0 0
        %524 = vmatprep.subr.bf16.mxu0 0
        %525 = vmatpush1.bf16.msra.mxu0 0
        %526 = vmatprep.subr.bf16.mxu0 0
        %527 = vmatpush1.bf16.msra.mxu0 0
        %528 = vmatprep.subr.bf16.mxu0 0
        %529 = vmatpush1.bf16.msra.mxu0 0
        %530 = vmatprep.subr.bf16.mxu0 0
        %531 = vmatpush1.bf16.msra.mxu0 0
        %532 = vmatprep.subr.bf16.mxu0 0
        %533 = vmatpush1.bf16.msra.mxu0 0
        %534 = vmatprep.subr.bf16.mxu0 0
        %535 = vmatpush1.bf16.msra.mxu0 0
        %536 = vmatprep.subr.bf16.mxu0 0
        %537 = vmatpush1.bf16.msra.mxu0 0
        %538 = vmatprep.mubr.bf16.mxu0 0
        %539 = vmatmul.mubr.bf16.gmra.mrb[0].mxu0 %v455
        %v540 = vpop.f32.mrb[0].mxu0
        %v541 = vadd.f32 0.0, %v540
        %v542 = vpop.f32.mrb[0].mxu0
        %v543 = vpop.f32.mrb[0].mxu0
        %v544 = vadd.f32 0.0, %v543
        %v545 = vpop.f32.mrb[0].mxu0
        %546 = vmatprep.mubr.bf16.mxu0 0
        %547 = vmatmul.mubr.bf16.gmra.mrb[0].mxu0 %v454
        %v548 = vpop.f32.mrb[0].mxu0
        %v549 = vadd.f32 0.0, %v548
        %v550 = vpop.f32.mrb[0].mxu0
        %v551 = vpop.f32.mrb[0].mxu0
        %v552 = vpop.f32.mrb[0].mxu0
        %553 = vdwg.mxu0
        %v554 = vadd.f32 %v420, %v541
        %v555 = vadd.f32 %v423, %v544
        %v556 = vadd.f32 %v428, %v549
        %s557 = sadd.s32 %s174, 1
        %s558 = smul.u32 %s557, 3
        %s559 = smul.addr %s558, 4
        %s560 = scalar_lea.vmem %s165, %s559
        %v561 = vld [vmem:[%s560] sm:$0xf]
        %v562 = vld [vmem:[%s560 + $0x4] sm:$0xf]
        %v563 = vld [vmem:[%s560 + $0x8] sm:$0x3]
        %v564 = vunpack.c.l.bf16 %v561
        %v565 = vunpack.c.l.bf16 %v562
        %v566 = vunpack.c.l.bf16 %v563
        %v567 = vpack.c.bf16 %v565, %v564
        %v568 = vpack.c.bf16 %v566, %v566
        %s569 = scalar_lea.vmem %s1, 192
        %v570 = vld [vmem:[%s569] sm:$0xf]
        %v571 = vld [vmem:[%s569 + $0x4] sm:$0xf]
        %v572 = vld [vmem:[%s569 + $0x8] sm:$0xf]
        %v573 = vld [vmem:[%s569 + $0xc] sm:$0xf]
        %v574 = vld [vmem:[%s569 + $0x10] sm:$0xf]
        %v575 = vld [vmem:[%s569 + $0x14] sm:$0xf]
        %v576 = vld [vmem:[%s569 + $0x18] sm:$0xf]
        %v577 = vld [vmem:[%s569 + $0x1c] sm:$0xf]
        %v578 = vld [vmem:[%s569 + $0x20] sm:$0xf]
        %v579 = vld [vmem:[%s569 + $0x24] sm:$0xf]
        %v580 = vld [vmem:[%s569 + $0x28] sm:$0xf]
        %v581 = vld [vmem:[%s569 + $0x2c] sm:$0xf]
        %v582 = vld [vmem:[%s569 + $0x30] sm:$0xf]
        %v583 = vld [vmem:[%s569 + $0x34] sm:$0xf]
        %v584 = vld [vmem:[%s569 + $0x38] sm:$0xf]
        %v585 = vld [vmem:[%s569 + $0x3c] sm:$0xf]
        %v602 = vunpack.c.l.b16 %v570
        %v603 = vunpack.c.l.b16 %v571
        %v604 = vunpack.c.l.b16 %v572
        %v605 = vunpack.c.l.b16 %v573
        %v606 = vunpack.c.l.b16 %v574
        %v607 = vunpack.c.l.b16 %v575
        %v608 = vunpack.c.l.b16 %v576
        %v609 = vunpack.c.l.b16 %v577
        %v610 = vunpack.c.l.b16 %v578
        %v611 = vunpack.c.l.b16 %v579
        %v612 = vunpack.c.l.b16 %v580
        %v613 = vunpack.c.l.b16 %v581
        %v614 = vunpack.c.l.b16 %v582
        %v615 = vunpack.c.l.b16 %v583
        %v616 = vunpack.c.l.b16 %v584
        %v617 = vunpack.c.l.b16 %v585
        %v618 = vpack.c.b16 %v603, %v602
        %v619 = vpack.c.b16 %v605, %v604
        %v620 = vpack.c.b16 %v607, %v606
        %v621 = vpack.c.b16 %v609, %v608
        %v622 = vpack.c.b16 %v611, %v610
        %v623 = vpack.c.b16 %v613, %v612
        %v624 = vpack.c.b16 %v615, %v614
        %v625 = vpack.c.b16 %v617, %v616
        %634 = vmatprep.subr.bf16.mxu0 0
        %635 = vmatpush1.bf16.msra.mxu0 %v618
        %636 = vmatprep.subr.bf16.mxu0 0
        %637 = vmatpush1.bf16.msra.mxu0 %v619
        %638 = vmatprep.subr.bf16.mxu0 0
        %639 = vmatpush1.bf16.msra.mxu0 %v620
        %640 = vmatprep.subr.bf16.mxu0 0
        %641 = vmatpush1.bf16.msra.mxu0 %v621
        %642 = vmatprep.subr.bf16.mxu0 0
        %643 = vmatpush1.bf16.msra.mxu0 %v622
        %644 = vmatprep.subr.bf16.mxu0 0
        %645 = vmatpush1.bf16.msra.mxu0 %v623
        %646 = vmatprep.subr.bf16.mxu0 0
        %647 = vmatpush1.bf16.msra.mxu0 %v624
        %648 = vmatprep.subr.bf16.mxu0 0
        %649 = vmatpush1.bf16.msra.mxu0 %v625
        %650 = vmatprep.subr.bf16.mxu0 0
        %651 = vmatpush1.bf16.msra.mxu0 0
        %652 = vmatprep.subr.bf16.mxu0 0
        %653 = vmatpush1.bf16.msra.mxu0 0
        %654 = vmatprep.subr.bf16.mxu0 0
        %655 = vmatpush1.bf16.msra.mxu0 0
        %656 = vmatprep.subr.bf16.mxu0 0
        %657 = vmatpush1.bf16.msra.mxu0 0
        %658 = vmatprep.subr.bf16.mxu0 0
        %659 = vmatpush1.bf16.msra.mxu0 0
        %660 = vmatprep.subr.bf16.mxu0 0
        %661 = vmatpush1.bf16.msra.mxu0 0
        %662 = vmatprep.subr.bf16.mxu0 0
        %663 = vmatpush1.bf16.msra.mxu0 0
        %664 = vmatprep.subr.bf16.mxu0 0
        %665 = vmatpush1.bf16.msra.mxu0 0
        %666 = vmatprep.mubr.bf16.mxu0 0
        %667 = vmatmul.mubr.bf16.gmra.mrb[0].mxu0 %v567
        %v668 = vpop.f32.mrb[0].mxu0
        %v669 = vadd.f32 0.0, %v668
        %v670 = vpop.f32.mrb[0].mxu0
        %v671 = vpop.f32.mrb[0].mxu0
        %v672 = vadd.f32 0.0, %v671
        %v673 = vpop.f32.mrb[0].mxu0
        %674 = vmatprep.mubr.bf16.mxu0 0
        %675 = vmatmul.mubr.bf16.gmra.mrb[0].mxu0 %v568
        %v676 = vpop.f32.mrb[0].mxu0
        %v677 = vadd.f32 0.0, %v676
        %v678 = vpop.f32.mrb[0].mxu0
        %v679 = vpop.f32.mrb[0].mxu0
        %v680 = vpop.f32.mrb[0].mxu0
        %681 = vdwg.mxu0
        %v682 = vadd.f32 %v554, %v669
        %v683 = vadd.f32 %v555, %v672
        %v684 = vadd.f32 %v556, %v677
        %s685 = scalar_lea.vmem %s1, 256
        %v686 = vld [vmem:[%s685] sm:$0xf]
        %v687 = vld [vmem:[%s685 + $0x4] sm:$0xf]
        %v688 = vld [vmem:[%s685 + $0x8] sm:$0xf]
        %v689 = vld [vmem:[%s685 + $0xc] sm:$0xf]
        %v690 = vld [vmem:[%s685 + $0x10] sm:$0xf]
        %v691 = vld [vmem:[%s685 + $0x14] sm:$0xf]
        %v692 = vld [vmem:[%s685 + $0x18] sm:$0xf]
        %v693 = vld [vmem:[%s685 + $0x1c] sm:$0xf]
        %v694 = vld [vmem:[%s685 + $0x20] sm:$0xf]
        %v695 = vld [vmem:[%s685 + $0x24] sm:$0xf]
        %v696 = vld [vmem:[%s685 + $0x28] sm:$0xf]
        %v697 = vld [vmem:[%s685 + $0x2c] sm:$0xf]
        %v698 = vld [vmem:[%s685 + $0x30] sm:$0xf]
        %v699 = vld [vmem:[%s685 + $0x34] sm:$0xf]
        %v700 = vld [vmem:[%s685 + $0x38] sm:$0xf]
        %v701 = vld [vmem:[%s685 + $0x3c] sm:$0xf]
        %v703 = vshrl.u32 %v567, 16
        %v705 = vshll.u32 %v567, 16
        %v707 = vrot.slane %v705, 1
        %v708 = vor.u32 %v703, %v707
        %v710 = vshll.u32 %v568, 16
        %v712 = vrot.slane %v710, 1
        %v713 = vsel %vm223, %v708, %v712
        %v714 = vshrl.u32 %v568, 16
        %v716 = vor.u32 %v714, %v712
        %v735 = vunpack.c.l.b16 %v686
        %v736 = vunpack.c.l.b16 %v687
        %v737 = vunpack.c.l.b16 %v688
        %v738 = vunpack.c.l.b16 %v689
        %v739 = vunpack.c.l.b16 %v690
        %v740 = vunpack.c.l.b16 %v691
        %v741 = vunpack.c.l.b16 %v692
        %v742 = vunpack.c.l.b16 %v693
        %v743 = vunpack.c.l.b16 %v694
        %v744 = vunpack.c.l.b16 %v695
        %v745 = vunpack.c.l.b16 %v696
        %v746 = vunpack.c.l.b16 %v697
        %v747 = vunpack.c.l.b16 %v698
        %v748 = vunpack.c.l.b16 %v699
        %v749 = vunpack.c.l.b16 %v700
        %v750 = vunpack.c.l.b16 %v701
        %v751 = vpack.c.b16 %v736, %v735
        %v752 = vpack.c.b16 %v738, %v737
        %v753 = vpack.c.b16 %v740, %v739
        %v754 = vpack.c.b16 %v742, %v741
        %v755 = vpack.c.b16 %v744, %v743
        %v756 = vpack.c.b16 %v746, %v745
        %v757 = vpack.c.b16 %v748, %v747
        %v758 = vpack.c.b16 %v750, %v749
        %767 = vmatprep.subr.bf16.mxu0 0
        %768 = vmatpush1.bf16.msra.mxu0 %v751
        %769 = vmatprep.subr.bf16.mxu0 0
        %770 = vmatpush1.bf16.msra.mxu0 %v752
        %771 = vmatprep.subr.bf16.mxu0 0
        %772 = vmatpush1.bf16.msra.mxu0 %v753
        %773 = vmatprep.subr.bf16.mxu0 0
        %774 = vmatpush1.bf16.msra.mxu0 %v754
        %775 = vmatprep.subr.bf16.mxu0 0
        %776 = vmatpush1.bf16.msra.mxu0 %v755
        %777 = vmatprep.subr.bf16.mxu0 0
        %778 = vmatpush1.bf16.msra.mxu0 %v756
        %779 = vmatprep.subr.bf16.mxu0 0
        %780 = vmatpush1.bf16.msra.mxu0 %v757
        %781 = vmatprep.subr.bf16.mxu0 0
        %782 = vmatpush1.bf16.msra.mxu0 %v758
        %783 = vmatprep.subr.bf16.mxu0 0
        %784 = vmatpush1.bf16.msra.mxu0 0
        %785 = vmatprep.subr.bf16.mxu0 0
        %786 = vmatpush1.bf16.msra.mxu0 0
        %787 = vmatprep.subr.bf16.mxu0 0
        %788 = vmatpush1.bf16.msra.mxu0 0
        %789 = vmatprep.subr.bf16.mxu0 0
        %790 = vmatpush1.bf16.msra.mxu0 0
        %791 = vmatprep.subr.bf16.mxu0 0
        %792 = vmatpush1.bf16.msra.mxu0 0
        %793 = vmatprep.subr.bf16.mxu0 0
        %794 = vmatpush1.bf16.msra.mxu0 0
        %795 = vmatprep.subr.bf16.mxu0 0
        %796 = vmatpush1.bf16.msra.mxu0 0
        %797 = vmatprep.subr.bf16.mxu0 0
        %798 = vmatpush1.bf16.msra.mxu0 0
        %799 = vmatprep.mubr.bf16.mxu0 0
        %800 = vmatmul.mubr.bf16.gmra.mrb[0].mxu0 %v713
        %v801 = vpop.f32.mrb[0].mxu0
        %v802 = vadd.f32 0.0, %v801
        %v803 = vpop.f32.mrb[0].mxu0
        %v804 = vpop.f32.mrb[0].mxu0
        %v805 = vadd.f32 0.0, %v804
        %v806 = vpop.f32.mrb[0].mxu0
        %807 = vmatprep.mubr.bf16.mxu0 0
        %808 = vmatmul.mubr.bf16.gmra.mrb[0].mxu0 %v716
        %v809 = vpop.f32.mrb[0].mxu0
        %v810 = vadd.f32 0.0, %v809
        %v811 = vpop.f32.mrb[0].mxu0
        %v812 = vpop.f32.mrb[0].mxu0
        %v813 = vpop.f32.mrb[0].mxu0
        %814 = vdwg.mxu0
        %v815 = vadd.f32 %v682, %v802
        %v816 = vadd.f32 %v683, %v805
        %v817 = vadd.f32 %v684, %v810
        %s818 = scalar_lea.vmem %s1, 320
        %v819 = vld [vmem:[%s818] sm:$0xf]
        %v820 = vld [vmem:[%s818 + $0x4] sm:$0xf]
        %v821 = vld [vmem:[%s818 + $0x8] sm:$0xf]
        %v822 = vld [vmem:[%s818 + $0xc] sm:$0xf]
        %v823 = vld [vmem:[%s818 + $0x10] sm:$0xf]
        %v824 = vld [vmem:[%s818 + $0x14] sm:$0xf]
        %v825 = vld [vmem:[%s818 + $0x18] sm:$0xf]
        %v826 = vld [vmem:[%s818 + $0x1c] sm:$0xf]
        %v827 = vld [vmem:[%s818 + $0x20] sm:$0xf]
        %v828 = vld [vmem:[%s818 + $0x24] sm:$0xf]
        %v829 = vld [vmem:[%s818 + $0x28] sm:$0xf]
        %v830 = vld [vmem:[%s818 + $0x2c] sm:$0xf]
        %v831 = vld [vmem:[%s818 + $0x30] sm:$0xf]
        %v832 = vld [vmem:[%s818 + $0x34] sm:$0xf]
        %v833 = vld [vmem:[%s818 + $0x38] sm:$0xf]
        %v834 = vld [vmem:[%s818 + $0x3c] sm:$0xf]
        %v837 = vrot.slane %v567, 1
        %v838 = vrot.slane %v568, 1
        %v839 = vsel %vm452, %v837, %v838
        %v858 = vunpack.c.l.b16 %v819
        %v859 = vunpack.c.l.b16 %v820
        %v860 = vunpack.c.l.b16 %v821
        %v861 = vunpack.c.l.b16 %v822
        %v862 = vunpack.c.l.b16 %v823
        %v863 = vunpack.c.l.b16 %v824
        %v864 = vunpack.c.l.b16 %v825
        %v865 = vunpack.c.l.b16 %v826
        %v866 = vunpack.c.l.b16 %v827
        %v867 = vunpack.c.l.b16 %v828
        %v868 = vunpack.c.l.b16 %v829
        %v869 = vunpack.c.l.b16 %v830
        %v870 = vunpack.c.l.b16 %v831
        %v871 = vunpack.c.l.b16 %v832
        %v872 = vunpack.c.l.b16 %v833
        %v873 = vunpack.c.l.b16 %v834
        %v874 = vpack.c.b16 %v859, %v858
        %v875 = vpack.c.b16 %v861, %v860
        %v876 = vpack.c.b16 %v863, %v862
        %v877 = vpack.c.b16 %v865, %v864
        %v878 = vpack.c.b16 %v867, %v866
        %v879 = vpack.c.b16 %v869, %v868
        %v880 = vpack.c.b16 %v871, %v870
        %v881 = vpack.c.b16 %v873, %v872
        %890 = vmatprep.subr.bf16.mxu0 0
        %891 = vmatpush1.bf16.msra.mxu0 %v874
        %892 = vmatprep.subr.bf16.mxu0 0
        %893 = vmatpush1.bf16.msra.mxu0 %v875
        %894 = vmatprep.subr.bf16.mxu0 0
        %895 = vmatpush1.bf16.msra.mxu0 %v876
        %896 = vmatprep.subr.bf16.mxu0 0
        %897 = vmatpush1.bf16.msra.mxu0 %v877
        %898 = vmatprep.subr.bf16.mxu0 0
        %899 = vmatpush1.bf16.msra.mxu0 %v878
        %900 = vmatprep.subr.bf16.mxu0 0
        %901 = vmatpush1.bf16.msra.mxu0 %v879
        %902 = vmatprep.subr.bf16.mxu0 0
        %903 = vmatpush1.bf16.msra.mxu0 %v880
        %904 = vmatprep.subr.bf16.mxu0 0
        %905 = vmatpush1.bf16.msra.mxu0 %v881
        %906 = vmatprep.subr.bf16.mxu0 0
        %907 = vmatpush1.bf16.msra.mxu0 0
        %908 = vmatprep.subr.bf16.mxu0 0
        %909 = vmatpush1.bf16.msra.mxu0 0
        %910 = vmatprep.subr.bf16.mxu0 0
        %911 = vmatpush1.bf16.msra.mxu0 0
        %912 = vmatprep.subr.bf16.mxu0 0
        %913 = vmatpush1.bf16.msra.mxu0 0
        %914 = vmatprep.subr.bf16.mxu0 0
        %915 = vmatpush1.bf16.msra.mxu0 0
        %916 = vmatprep.subr.bf16.mxu0 0
        %917 = vmatpush1.bf16.msra.mxu0 0
        %918 = vmatprep.subr.bf16.mxu0 0
        %919 = vmatpush1.bf16.msra.mxu0 0
        %920 = vmatprep.subr.bf16.mxu0 0
        %921 = vmatpush1.bf16.msra.mxu0 0
        %922 = vmatprep.mubr.bf16.mxu0 0
        %923 = vmatmul.mubr.bf16.gmra.mrb[0].mxu0 %v839
        %v924 = vpop.f32.mrb[0].mxu0
        %v925 = vadd.f32 0.0, %v924
        %v926 = vpop.f32.mrb[0].mxu0
        %v927 = vpop.f32.mrb[0].mxu0
        %v928 = vadd.f32 0.0, %v927
        %v929 = vpop.f32.mrb[0].mxu0
        %930 = vmatprep.mubr.bf16.mxu0 0
        %931 = vmatmul.mubr.bf16.gmra.mrb[0].mxu0 %v838
        %v932 = vpop.f32.mrb[0].mxu0
        %v933 = vadd.f32 0.0, %v932
        %v934 = vpop.f32.mrb[0].mxu0
        %v935 = vpop.f32.mrb[0].mxu0
        %v936 = vpop.f32.mrb[0].mxu0
        %937 = vdwg.mxu0
        %v938 = vadd.f32 %v815, %v925
        %v939 = vadd.f32 %v816, %v928
        %v940 = vadd.f32 %v817, %v933
        %s941 = sadd.s32 %s174, 2
        %s942 = smul.u32 %s941, 3
        %s943 = smul.addr %s942, 4
        %s944 = scalar_lea.vmem %s165, %s943
        %v945 = vld [vmem:[%s944] sm:$0xf]
        %v946 = vld [vmem:[%s944 + $0x4] sm:$0xf]
        %v947 = vld [vmem:[%s944 + $0x8] sm:$0x3]
        %v948 = vunpack.c.l.bf16 %v945
        %v949 = vunpack.c.l.bf16 %v946
        %v950 = vunpack.c.l.bf16 %v947
        %v951 = vpack.c.bf16 %v949, %v948
        %v952 = vpack.c.bf16 %v950, %v950
        %s953 = scalar_lea.vmem %s1, 384
        %v954 = vld [vmem:[%s953] sm:$0xf]
        %v955 = vld [vmem:[%s953 + $0x4] sm:$0xf]
        %v956 = vld [vmem:[%s953 + $0x8] sm:$0xf]
        %v957 = vld [vmem:[%s953 + $0xc] sm:$0xf]
        %v958 = vld [vmem:[%s953 + $0x10] sm:$0xf]
        %v959 = vld [vmem:[%s953 + $0x14] sm:$0xf]
        %v960 = vld [vmem:[%s953 + $0x18] sm:$0xf]
        %v961 = vld [vmem:[%s953 + $0x1c] sm:$0xf]
        %v962 = vld [vmem:[%s953 + $0x20] sm:$0xf]
        %v963 = vld [vmem:[%s953 + $0x24] sm:$0xf]
        %v964 = vld [vmem:[%s953 + $0x28] sm:$0xf]
        %v965 = vld [vmem:[%s953 + $0x2c] sm:$0xf]
        %v966 = vld [vmem:[%s953 + $0x30] sm:$0xf]
        %v967 = vld [vmem:[%s953 + $0x34] sm:$0xf]
        %v968 = vld [vmem:[%s953 + $0x38] sm:$0xf]
        %v969 = vld [vmem:[%s953 + $0x3c] sm:$0xf]
        %v986 = vunpack.c.l.b16 %v954
        %v987 = vunpack.c.l.b16 %v955
        %v988 = vunpack.c.l.b16 %v956
        %v989 = vunpack.c.l.b16 %v957
        %v990 = vunpack.c.l.b16 %v958
        %v991 = vunpack.c.l.b16 %v959
        %v992 = vunpack.c.l.b16 %v960
        %v993 = vunpack.c.l.b16 %v961
        %v994 = vunpack.c.l.b16 %v962
        %v995 = vunpack.c.l.b16 %v963
        %v996 = vunpack.c.l.b16 %v964
        %v997 = vunpack.c.l.b16 %v965
        %v998 = vunpack.c.l.b16 %v966
        %v999 = vunpack.c.l.b16 %v967
        %v1000 = vunpack.c.l.b16 %v968
        %v1001 = vunpack.c.l.b16 %v969
        %v1002 = vpack.c.b16 %v987, %v986
        %v1003 = vpack.c.b16 %v989, %v988
        %v1004 = vpack.c.b16 %v991, %v990
        %v1005 = vpack.c.b16 %v993, %v992
        %v1006 = vpack.c.b16 %v995, %v994
        %v1007 = vpack.c.b16 %v997, %v996
        %v1008 = vpack.c.b16 %v999, %v998
        %v1009 = vpack.c.b16 %v1001, %v1000
        %1018 = vmatprep.subr.bf16.mxu0 0
        %1019 = vmatpush1.bf16.msra.mxu0 %v1002
        %1020 = vmatprep.subr.bf16.mxu0 0
        %1021 = vmatpush1.bf16.msra.mxu0 %v1003
        %1022 = vmatprep.subr.bf16.mxu0 0
        %1023 = vmatpush1.bf16.msra.mxu0 %v1004
        %1024 = vmatprep.subr.bf16.mxu0 0
        %1025 = vmatpush1.bf16.msra.mxu0 %v1005
        %1026 = vmatprep.subr.bf16.mxu0 0
        %1027 = vmatpush1.bf16.msra.mxu0 %v1006
        %1028 = vmatprep.subr.bf16.mxu0 0
        %1029 = vmatpush1.bf16.msra.mxu0 %v1007
        %1030 = vmatprep.subr.bf16.mxu0 0
        %1031 = vmatpush1.bf16.msra.mxu0 %v1008
        %1032 = vmatprep.subr.bf16.mxu0 0
        %1033 = vmatpush1.bf16.msra.mxu0 %v1009
        %1034 = vmatprep.subr.bf16.mxu0 0
        %1035 = vmatpush1.bf16.msra.mxu0 0
        %1036 = vmatprep.subr.bf16.mxu0 0
        %1037 = vmatpush1.bf16.msra.mxu0 0
        %1038 = vmatprep.subr.bf16.mxu0 0
        %1039 = vmatpush1.bf16.msra.mxu0 0
        %1040 = vmatprep.subr.bf16.mxu0 0
        %1041 = vmatpush1.bf16.msra.mxu0 0
        %1042 = vmatprep.subr.bf16.mxu0 0
        %1043 = vmatpush1.bf16.msra.mxu0 0
        %1044 = vmatprep.subr.bf16.mxu0 0
        %1045 = vmatpush1.bf16.msra.mxu0 0
        %1046 = vmatprep.subr.bf16.mxu0 0
        %1047 = vmatpush1.bf16.msra.mxu0 0
        %1048 = vmatprep.subr.bf16.mxu0 0
        %1049 = vmatpush1.bf16.msra.mxu0 0
        %1050 = vmatprep.mubr.bf16.mxu0 0
        %1051 = vmatmul.mubr.bf16.gmra.mrb[0].mxu0 %v951
        %v1052 = vpop.f32.mrb[0].mxu0
        %v1053 = vadd.f32 0.0, %v1052
        %v1054 = vpop.f32.mrb[0].mxu0
        %v1055 = vpop.f32.mrb[0].mxu0
        %v1056 = vadd.f32 0.0, %v1055
        %v1057 = vpop.f32.mrb[0].mxu0
        %1058 = vmatprep.mubr.bf16.mxu0 0
        %1059 = vmatmul.mubr.bf16.gmra.mrb[0].mxu0 %v952
        %v1060 = vpop.f32.mrb[0].mxu0
        %v1061 = vadd.f32 0.0, %v1060
        %v1062 = vpop.f32.mrb[0].mxu0
        %v1063 = vpop.f32.mrb[0].mxu0
        %v1064 = vpop.f32.mrb[0].mxu0
        %1065 = vdwg.mxu0
        %v1066 = vadd.f32 %v938, %v1053
        %v1067 = vadd.f32 %v939, %v1056
        %v1068 = vadd.f32 %v940, %v1061
        %s1069 = scalar_lea.vmem %s1, 448
        %v1070 = vld [vmem:[%s1069] sm:$0xf]
        %v1071 = vld [vmem:[%s1069 + $0x4] sm:$0xf]
        %v1072 = vld [vmem:[%s1069 + $0x8] sm:$0xf]
        %v1073 = vld [vmem:[%s1069 + $0xc] sm:$0xf]
        %v1074 = vld [vmem:[%s1069 + $0x10] sm:$0xf]
        %v1075 = vld [vmem:[%s1069 + $0x14] sm:$0xf]
        %v1076 = vld [vmem:[%s1069 + $0x18] sm:$0xf]
        %v1077 = vld [vmem:[%s1069 + $0x1c] sm:$0xf]
        %v1078 = vld [vmem:[%s1069 + $0x20] sm:$0xf]
        %v1079 = vld [vmem:[%s1069 + $0x24] sm:$0xf]
        %v1080 = vld [vmem:[%s1069 + $0x28] sm:$0xf]
        %v1081 = vld [vmem:[%s1069 + $0x2c] sm:$0xf]
        %v1082 = vld [vmem:[%s1069 + $0x30] sm:$0xf]
        %v1083 = vld [vmem:[%s1069 + $0x34] sm:$0xf]
        %v1084 = vld [vmem:[%s1069 + $0x38] sm:$0xf]
        %v1085 = vld [vmem:[%s1069 + $0x3c] sm:$0xf]
        %v1087 = vshrl.u32 %v951, 16
        %v1089 = vshll.u32 %v951, 16
        %v1091 = vrot.slane %v1089, 1
        %v1092 = vor.u32 %v1087, %v1091
        %v1094 = vshll.u32 %v952, 16
        %v1096 = vrot.slane %v1094, 1
        %v1097 = vsel %vm223, %v1092, %v1096
        %v1098 = vshrl.u32 %v952, 16
        %v1100 = vor.u32 %v1098, %v1096
        %v1119 = vunpack.c.l.b16 %v1070
        %v1120 = vunpack.c.l.b16 %v1071
        %v1121 = vunpack.c.l.b16 %v1072
        %v1122 = vunpack.c.l.b16 %v1073
        %v1123 = vunpack.c.l.b16 %v1074
        %v1124 = vunpack.c.l.b16 %v1075
        %v1125 = vunpack.c.l.b16 %v1076
        %v1126 = vunpack.c.l.b16 %v1077
        %v1127 = vunpack.c.l.b16 %v1078
        %v1128 = vunpack.c.l.b16 %v1079
        %v1129 = vunpack.c.l.b16 %v1080
        %v1130 = vunpack.c.l.b16 %v1081
        %v1131 = vunpack.c.l.b16 %v1082
        %v1132 = vunpack.c.l.b16 %v1083
        %v1133 = vunpack.c.l.b16 %v1084
        %v1134 = vunpack.c.l.b16 %v1085
        %v1135 = vpack.c.b16 %v1120, %v1119
        %v1136 = vpack.c.b16 %v1122, %v1121
        %v1137 = vpack.c.b16 %v1124, %v1123
        %v1138 = vpack.c.b16 %v1126, %v1125
        %v1139 = vpack.c.b16 %v1128, %v1127
        %v1140 = vpack.c.b16 %v1130, %v1129
        %v1141 = vpack.c.b16 %v1132, %v1131
        %v1142 = vpack.c.b16 %v1134, %v1133
        %1151 = vmatprep.subr.bf16.mxu0 0
        %1152 = vmatpush1.bf16.msra.mxu0 %v1135
        %1153 = vmatprep.subr.bf16.mxu0 0
        %1154 = vmatpush1.bf16.msra.mxu0 %v1136
        %1155 = vmatprep.subr.bf16.mxu0 0
        %1156 = vmatpush1.bf16.msra.mxu0 %v1137
        %1157 = vmatprep.subr.bf16.mxu0 0
        %1158 = vmatpush1.bf16.msra.mxu0 %v1138
        %1159 = vmatprep.subr.bf16.mxu0 0
        %1160 = vmatpush1.bf16.msra.mxu0 %v1139
        %1161 = vmatprep.subr.bf16.mxu0 0
        %1162 = vmatpush1.bf16.msra.mxu0 %v1140
        %1163 = vmatprep.subr.bf16.mxu0 0
        %1164 = vmatpush1.bf16.msra.mxu0 %v1141
        %1165 = vmatprep.subr.bf16.mxu0 0
        %1166 = vmatpush1.bf16.msra.mxu0 %v1142
        %1167 = vmatprep.subr.bf16.mxu0 0
        %1168 = vmatpush1.bf16.msra.mxu0 0
        %1169 = vmatprep.subr.bf16.mxu0 0
        %1170 = vmatpush1.bf16.msra.mxu0 0
        %1171 = vmatprep.subr.bf16.mxu0 0
        %1172 = vmatpush1.bf16.msra.mxu0 0
        %1173 = vmatprep.subr.bf16.mxu0 0
        %1174 = vmatpush1.bf16.msra.mxu0 0
        %1175 = vmatprep.subr.bf16.mxu0 0
        %1176 = vmatpush1.bf16.msra.mxu0 0
        %1177 = vmatprep.subr.bf16.mxu0 0
        %1178 = vmatpush1.bf16.msra.mxu0 0
        %1179 = vmatprep.subr.bf16.mxu0 0
        %1180 = vmatpush1.bf16.msra.mxu0 0
        %1181 = vmatprep.subr.bf16.mxu0 0
        %1182 = vmatpush1.bf16.msra.mxu0 0
        %1183 = vmatprep.mubr.bf16.mxu0 0
        %1184 = vmatmul.mubr.bf16.gmra.mrb[0].mxu0 %v1097
        %v1185 = vpop.f32.mrb[0].mxu0
        %v1186 = vadd.f32 0.0, %v1185
        %v1187 = vpop.f32.mrb[0].mxu0
        %v1188 = vpop.f32.mrb[0].mxu0
        %v1189 = vadd.f32 0.0, %v1188
        %v1190 = vpop.f32.mrb[0].mxu0
        %1191 = vmatprep.mubr.bf16.mxu0 0
        %1192 = vmatmul.mubr.bf16.gmra.mrb[0].mxu0 %v1100
        %v1193 = vpop.f32.mrb[0].mxu0
        %v1194 = vadd.f32 0.0, %v1193
        %v1195 = vpop.f32.mrb[0].mxu0
        %v1196 = vpop.f32.mrb[0].mxu0
        %v1197 = vpop.f32.mrb[0].mxu0
        %1198 = vdwg.mxu0
        %v1199 = vadd.f32 %v1066, %v1186
        %v1200 = vadd.f32 %v1067, %v1189
        %v1201 = vadd.f32 %v1068, %v1194
        %s1202 = scalar_lea.vmem %s1, 512
        %v1203 = vld [vmem:[%s1202] sm:$0xf]
        %v1204 = vld [vmem:[%s1202 + $0x4] sm:$0xf]
        %v1205 = vld [vmem:[%s1202 + $0x8] sm:$0xf]
        %v1206 = vld [vmem:[%s1202 + $0xc] sm:$0xf]
        %v1207 = vld [vmem:[%s1202 + $0x10] sm:$0xf]
        %v1208 = vld [vmem:[%s1202 + $0x14] sm:$0xf]
        %v1209 = vld [vmem:[%s1202 + $0x18] sm:$0xf]
        %v1210 = vld [vmem:[%s1202 + $0x1c] sm:$0xf]
        %v1211 = vld [vmem:[%s1202 + $0x20] sm:$0xf]
        %v1212 = vld [vmem:[%s1202 + $0x24] sm:$0xf]
        %v1213 = vld [vmem:[%s1202 + $0x28] sm:$0xf]
        %v1214 = vld [vmem:[%s1202 + $0x2c] sm:$0xf]
        %v1215 = vld [vmem:[%s1202 + $0x30] sm:$0xf]
        %v1216 = vld [vmem:[%s1202 + $0x34] sm:$0xf]
        %v1217 = vld [vmem:[%s1202 + $0x38] sm:$0xf]
        %v1218 = vld [vmem:[%s1202 + $0x3c] sm:$0xf]
        %v1221 = vrot.slane %v951, 1
        %v1222 = vrot.slane %v952, 1
        %v1223 = vsel %vm452, %v1221, %v1222
        %v1242 = vunpack.c.l.b16 %v1203
        %v1243 = vunpack.c.l.b16 %v1204
        %v1244 = vunpack.c.l.b16 %v1205
        %v1245 = vunpack.c.l.b16 %v1206
        %v1246 = vunpack.c.l.b16 %v1207
        %v1247 = vunpack.c.l.b16 %v1208
        %v1248 = vunpack.c.l.b16 %v1209
        %v1249 = vunpack.c.l.b16 %v1210
        %v1250 = vunpack.c.l.b16 %v1211
        %v1251 = vunpack.c.l.b16 %v1212
        %v1252 = vunpack.c.l.b16 %v1213
        %v1253 = vunpack.c.l.b16 %v1214
        %v1254 = vunpack.c.l.b16 %v1215
        %v1255 = vunpack.c.l.b16 %v1216
        %v1256 = vunpack.c.l.b16 %v1217
        %v1257 = vunpack.c.l.b16 %v1218
        %v1258 = vpack.c.b16 %v1243, %v1242
        %v1259 = vpack.c.b16 %v1245, %v1244
        %v1260 = vpack.c.b16 %v1247, %v1246
        %v1261 = vpack.c.b16 %v1249, %v1248
        %v1262 = vpack.c.b16 %v1251, %v1250
        %v1263 = vpack.c.b16 %v1253, %v1252
        %v1264 = vpack.c.b16 %v1255, %v1254
        %v1265 = vpack.c.b16 %v1257, %v1256
        %1274 = vmatprep.subr.bf16.mxu0 0
        %1275 = vmatpush1.bf16.msra.mxu0 %v1258
        %1276 = vmatprep.subr.bf16.mxu0 0
        %1277 = vmatpush1.bf16.msra.mxu0 %v1259
        %1278 = vmatprep.subr.bf16.mxu0 0
        %1279 = vmatpush1.bf16.msra.mxu0 %v1260
        %1280 = vmatprep.subr.bf16.mxu0 0
        %1281 = vmatpush1.bf16.msra.mxu0 %v1261
        %1282 = vmatprep.subr.bf16.mxu0 0
        %1283 = vmatpush1.bf16.msra.mxu0 %v1262
        %1284 = vmatprep.subr.bf16.mxu0 0
        %1285 = vmatpush1.bf16.msra.mxu0 %v1263
        %1286 = vmatprep.subr.bf16.mxu0 0
        %1287 = vmatpush1.bf16.msra.mxu0 %v1264
        %1288 = vmatprep.subr.bf16.mxu0 0
        %1289 = vmatpush1.bf16.msra.mxu0 %v1265
        %1290 = vmatprep.subr.bf16.mxu0 0
        %1291 = vmatpush1.bf16.msra.mxu0 0
        %1292 = vmatprep.subr.bf16.mxu0 0
        %1293 = vmatpush1.bf16.msra.mxu0 0
        %1294 = vmatprep.subr.bf16.mxu0 0
        %1295 = vmatpush1.bf16.msra.mxu0 0
        %1296 = vmatprep.subr.bf16.mxu0 0
        %1297 = vmatpush1.bf16.msra.mxu0 0
        %1298 = vmatprep.subr.bf16.mxu0 0
        %1299 = vmatpush1.bf16.msra.mxu0 0
        %1300 = vmatprep.subr.bf16.mxu0 0
        %1301 = vmatpush1.bf16.msra.mxu0 0
        %1302 = vmatprep.subr.bf16.mxu0 0
        %1303 = vmatpush1.bf16.msra.mxu0 0
        %1304 = vmatprep.subr.bf16.mxu0 0
        %1305 = vmatpush1.bf16.msra.mxu0 0
        %1306 = vmatprep.mubr.bf16.mxu0 0
        %1307 = vmatmul.mubr.bf16.gmra.mrb[0].mxu0 %v1223
        %v1308 = vpop.f32.mrb[0].mxu0
        %v1309 = vadd.f32 0.0, %v1308
        %v1310 = vpop.f32.mrb[0].mxu0
        %v1311 = vpop.f32.mrb[0].mxu0
        %v1312 = vadd.f32 0.0, %v1311
        %v1313 = vpop.f32.mrb[0].mxu0
        %1314 = vmatprep.mubr.bf16.mxu0 0
        %1315 = vmatmul.mubr.bf16.gmra.mrb[0].mxu0 %v1222
        %v1316 = vpop.f32.mrb[0].mxu0
        %v1317 = vadd.f32 0.0, %v1316
        %v1318 = vpop.f32.mrb[0].mxu0
        %v1319 = vpop.f32.mrb[0].mxu0
        %v1320 = vpop.f32.mrb[0].mxu0
        %1321 = vdwg.mxu0
        %v1322 = vadd.f32 %v1199, %v1309
        %v1323 = vadd.f32 %v1200, %v1312
        %v1324 = vadd.f32 %v1201, %v1317
        %v1326 = vlaneseq
        %v1327 = vshrl.u32 %v1326, 7
        %v1328 = vsub.s32 0, %v1327
        %v1329 = vrot.slane %v172, %v1328
        %v1331 = vadd.f32 %v1322, %v1329
        %v1332 = vadd.f32 %v1323, %v1329
        %v1333 = vadd.f32 %v1324, %v1329
        %v1334 = vmax.f32 %v1331, 0.0
        %v1335 = vmax.f32 %v1332, 0.0
        %v1336 = vmax.f32 %v1333, 0.0
        %v1337 = vpack.c.bf16 %v1335, %v1334
        %v1338 = vpack.c.bf16 %v1336, %v1336
        %v1341 = vunpack.c.l.b16 %v1337
        %v1342 = vunpack.c.h.b16 %v1337
        %v1343 = vunpack.c.l.b16 %v1338
        %v1344 = vpack.c.b16 %v1341, %v1341
        %v1345 = vpack.c.b16 %v1342, %v1342
        %v1346 = vpack.c.b16 %v1343, %v1343
        %s1350 = smul.addr %s179, 4
        %s1351 = scalar_lea.vmem %s170, %s1350
        %1352 = vst [vmem:[%s1351] sm:$0xf] %v1344
        %1353 = vst [vmem:[%s1351 + $0x4] sm:$0xf] %v1345
        %1354 = vst [vmem:[%s1351 + $0x8] sm:$0x1] %v1346
      $region37: #{net_forward.11} parent=31 // loop_footer
        %s178 = sadd.s32 1, %s174
      $region38: #{net_forward.11} parent=31 // loop_footer_branch
        %173 = sbr.rel target = $region34
      $region39: #{net_forward.11} parent=31 // loop_exit
        _
      %p1355 = scmp.lt.s32.totalorder %s14, 1
      %s1356 = scalar_select %p1355, %s14, 1
      %s1357 = smul.addr %s1356, 54
      %s1358 = smul.addr %s1357, 4
      %s1359 = scalar_lea.vmem %s3, %s1358
      // Predicated region
      $region40: #{net_forward.11} parent=31 // pred_check
        %p1360 = pneg %p100
      $region41: #{net_forward.11} parent=31 // pred_check_branch
        %1362 = sbr.rel (%p1360) target = $region43
      $region42: #{net_forward.11} parent=31 // pred_region
        _
      $region43: #{net_forward.11} parent=31 // pred_fallthru
        _
    $region32: #{net_forward.11} parent=5 // pred_fallthru
      _
    %p1363 = scmp.le.s32.totalorder 2, %s9
    // Predicated region
    $region44: #{net_forward.11} parent=5 // pred_check
      %p1364 = pneg %p1363
    $region45: #{net_forward.11} parent=5 // pred_check_branch
      %1366 = sbr.rel (%p1364) target = $region47
    $region46: #{net_forward.11} parent=5 // pred_region
      %s1367 = ssub.s32 %s9, 2
      // Predicated region
      $region48: #{net_forward.11} parent=46 // pred_check
        %p1368 = pneg %p106
      $region49: #{net_forward.11} parent=46 // pred_check_branch
        %1370 = sbr.rel (%p1368) target = $region51
      $region50: #{net_forward.11} parent=46 // pred_region
        %p1371 = scmp.lt.s32.totalorder %s15, 1
        %s1372 = scalar_select %p1371, %s15, 1
        %s1373 = smul.addr %s1372, 54
        %s1374 = smul.addr %s1373, 4
        %s1375 = scalar_lea.vmem %s3, %s1374
      $region51: #{net_forward.11} parent=46 // pred_fallthru
        _
    $region47: #{net_forward.11} parent=5 // pred_fallthru
      _
  $region6: #{net_forward.11} parent=0 // loop_footer
    %s13 = sadd.s32 1, %s9
  $region7: #{net_forward.11} parent=0 // loop_footer_branch
    %8 = sbr.rel target = $region3
  $region8: #{net_forward.11} parent=0 // loop_exit
    _

// kernel: net_forward.13
$region0: #{net_forward.13}
  #allocation0 [shape = 'u32[]', space=smem, size = 0x4, offset = 0x4, fixed_abs, tag = 'smem constant byte address 0x4 - core index']
  #allocation1 [shape = 'u32[144,128]{1,0:T(1,128)}', space=vmem, size = 0x12000, scoped, tag = 'internal scratch']
  %s0 = inlined_call_operand.vmem [shape: bf16[2,16,8,256], index: 0, kind: input, shape index: {}]
  %s1 = inlined_call_operand.vmem [shape: bf16[2,16,8,256], index: 1, kind: output, shape index: {}]
  %s2 = sld [smem:[#allocation0]]
  $region44: #{net_forward.13} parent=0
    _
  %s4 = ssub.s32 1, %s2
  %s5 = scalar_select 0, %s4, %s2
  loop: start=0, step=1, limit=4
  $region2: #{net_forward.13} parent=0 // loop_pre_header
    _
  $region3: #{net_forward.13} parent=0 // loop_header
    %s7 = sphi 0, %s11
    %p8 = scmp.ge.s32.totalorder %s7, 4
    %s17 = sphi 0, %s19
    %s20 = sphi 0, %s17
    %s21 = sphi 0, %s20
    %s37 = sphi 0, %s21
    %s43 = sphi 0, %s45
    %s46 = sphi 0, %s43
    %s47 = sphi 0, %s46
    %s63 = sphi 0, %s47
  $region4: #{net_forward.13} parent=0 // loop_header_branch
    %10 = sbr.rel (%p8) target = $region8
  $region5: #{net_forward.13} parent=0 // loop_body
    %s12 = ssub.s32 %s7, 1
    %s13 = ssub.s32 %s7, 2
    %s14 = sadd.s32 %s7, 1
    %s15 = ssub.s32 %s7, %s14
    %p16 = scmp.eq.s32.totalorder %s15, 0
    %s18 = sadd.s32 %s17, 1
    %s19 = scalar_select %p16, %s17, %s18
    %p22 = pneg %p16
    %p23 = scmp.eq.s32.totalorder %s7, 1
    %p24 = por %p22, %p23
    %p25 = scmp.ne.s32.totalorder %s17, %s20
    %p26 = scmp.eq.s32.totalorder %s7, 0
    %p27 = por %p25, %p26
    %p28 = scmp.ne.s32.totalorder %s17, %s20
    %p29 = scmp.eq.s32.totalorder %s12, 1
    %p30 = por %p28, %p29
    %p31 = scmp.ne.s32.totalorder %s20, %s21
    %p32 = scmp.eq.s32.totalorder %s12, 0
    %p33 = por %p31, %p32
    %p34 = scmp.ne.s32.totalorder %s20, %s21
    %p35 = scmp.eq.s32.totalorder %s13, 1
    %p36 = por %p34, %p35
    %p38 = scmp.ne.s32.totalorder %s21, %s37
    %p39 = scmp.eq.s32.totalorder %s13, 0
    %p40 = por %p38, %p39
    %s41 = ssub.s32 %s7, %s14
    %p42 = scmp.eq.s32.totalorder %s41, 0
    %s44 = sadd.s32 %s43, 1
    %s45 = scalar_select %p42, %s43, %s44
    %p48 = pneg %p42
    %p49 = scmp.eq.s32.totalorder %s7, 1
    %p50 = por %p48, %p49
    %p51 = scmp.ne.s32.totalorder %s43, %s46
    %p52 = scmp.eq.s32.totalorder %s7, 0
    %p53 = por %p51, %p52
    %p54 = scmp.ne.s32.totalorder %s43, %s46
    %p55 = scmp.eq.s32.totalorder %s12, 1
    %p56 = por %p54, %p55
    %p57 = scmp.ne.s32.totalorder %s46, %s47
    %p58 = scmp.eq.s32.totalorder %s12, 0
    %p59 = por %p57, %p58
    %p60 = scmp.ne.s32.totalorder %s46, %s47
    %p61 = scmp.eq.s32.totalorder %s13, 1
    %p62 = por %p60, %p61
    %p64 = scmp.ne.s32.totalorder %s47, %s63
    %p65 = scmp.eq.s32.totalorder %s13, 0
    %p66 = por %p64, %p65
    %p67 = scmp.le.s32.totalorder 1, %s7
    %p68 = scmp.lt.s32.totalorder %s7, 3
    %p69 = pnand %p67, %p68
    %p70 = pneg %p69
    // Predicated region
    $region9: #{net_forward.13} parent=5 // pred_check
      _
    $region10: #{net_forward.13} parent=5 // pred_check_branch
      %72 = sbr.rel (%p69) target = $region12
    $region11: #{net_forward.13} parent=5 // pred_region
      %s73 = ssub.s32 %s7, 1
    $region12: #{net_forward.13} parent=5 // pred_fallthru
      _
    %p74 = scmp.lt.s32.totalorder %s7, 2
    // Predicated region
    $region13: #{net_forward.13} parent=5 // pred_check
      %p75 = pneg %p74
    $region14: #{net_forward.13} parent=5 // pred_check_branch
      %77 = sbr.rel (%p75) target = $region16
    $region15: #{net_forward.13} parent=5 // pred_region
      // Predicated region
      $region17: #{net_forward.13} parent=15 // pred_check
        %p78 = pneg %p27
      $region18: #{net_forward.13} parent=15 // pred_check_branch
        %80 = sbr.rel (%p78) target = $region20
      $region19: #{net_forward.13} parent=15 // pred_region
        %p81 = scmp.lt.s32.totalorder %s7, 1
        %s82 = scalar_select %p81, %s7, 1
        %s83 = smul.addr %s82, 32
        %s84 = smul.addr %s83, 4
        %s85 = scalar_lea.vmem %s0, %s84
      $region20: #{net_forward.13} parent=15 // pred_fallthru
        _
    $region16: #{net_forward.13} parent=5 // pred_fallthru
      _
    %p86 = scmp.le.s32.totalorder 1, %s7
    %p87 = scmp.lt.s32.totalorder %s7, 3
    %p88 = pnand %p86, %p87
    %p89 = pneg %p88
    // Predicated region
    $region21: #{net_forward.13} parent=5 // pred_check
      _
    $region22: #{net_forward.13} parent=5 // pred_check_branch
      %91 = sbr.rel (%p88) target = $region24
    $region23: #{net_forward.13} parent=5 // pred_region
      %s92 = ssub.s32 %s7, 1
      %p93 = scmp.lt.s32.totalorder %s12, 1
      %s94 = scalar_select %p93, %s12, 1
      %s95 = smul.addr %s94, 32
      %s96 = smul.addr %s95, 4
      %s97 = scalar_lea.vmem %s0, %s96
      %p98 = pneg %p33
      %p99 = pneg %p30
      %p100 = pneg %p59
      %p101 = pneg %p56
      %p102 = scmp.lt.s32.totalorder %s12, 1
      %s103 = scalar_select %p102, %s12, 1
      %s104 = smul.addr %s103, 32
      %s105 = smul.addr %s104, 4
      %s106 = scalar_lea.vmem %s1, %s105
      %p107 = scmp.lt.s32.totalorder %s12, 1
      %s108 = scalar_select %p107, %s12, 1
      %s109 = smul.addr %s108, 32
      %s110 = smul.addr %s109, 4
      %s111 = scalar_lea.vmem %s0, %s110
      %p112 = scmp.lt.s32.totalorder %s12, 1
      %s113 = scalar_select %p112, %s12, 1
      %s114 = smul.addr %s113, 32
      %s115 = smul.addr %s114, 4
      %s116 = scalar_lea.vmem %s1, %s115
      loop: start=0, step=1, limit=8
      $region25: #{net_forward.13} parent=23 // loop_pre_header
        _
      $region26: #{net_forward.13} parent=23 // loop_header
        %s119 = sphi 0, %s123
        %p120 = scmp.ge.s32.totalorder %s119, 8
      $region27: #{net_forward.13} parent=23 // loop_header_branch
        %122 = sbr.rel (%p120) target = $region31
      $region28: #{net_forward.13} parent=23 // loop_body
        %s124 = smul.u32 %s119, 2
        %s125 = smul.u32 %s124, 2
        %s126 = smul.addr %s125, 4
        %s127 = scalar_lea.vmem %s111, %s126
        %v128 = vld [vmem:[%s127] sm:$0xff]
        %s129 = sadd.s32 %s124, 1
        %s130 = smul.u32 %s129, 2
        %s131 = smul.addr %s130, 4
        %s132 = scalar_lea.vmem %s111, %s131
        %v133 = vld [vmem:[%s132] sm:$0xff]
        %v135 = vrot.slane %v128, 4
        %v137 = vmax.bf16 %v128, %v135
        %v139 = vrot.slane %v133, 4
        %v141 = vmax.bf16 %v133, %v139
        %v142 = vmax.bf16 %v137, %v141
        %vm143 = vcmp.eq.bf16.partialorder %v128, %v142
        %vm144 = vcmp.eq.bf16.partialorder %v135, %v142
        %vm145 = vmxor %vm143, 1
        %vm146 = vmand %vm144, %vm145
        %vm147 = vcmp.eq.bf16.partialorder %v133, %v142
        %vm148 = vmor %vm143, %vm146
        %vm149 = vmxor %vm148, 1
        %vm150 = vmand %vm147, %vm149
        %vm151 = vcmp.eq.bf16.partialorder %v139, %v142
        %vm152 = vmor %vm148, %vm150
        %vm153 = vmxor %vm152, 1
        %vm154 = vmand %vm151, %vm153
        %v155 = vsel %vm143, %v128, 0
        %v156 = vsel %vm146, %v135, 0
        %v159 = vunpack.c.l.b16 %v155
        %v160 = vunpack.c.l.b16 %v156
        %v161 = vpack.c.b16 %v160, %v159
        %s163 = smul.addr %s125, 4
        %s164 = scalar_lea.vmem %s116, %s163
        %165 = vst [vmem:[%s164] sm:$0xff] %v161
        %v166 = vsel %vm150, %v133, 0
        %v167 = vsel %vm154, %v139, 0
        %v170 = vunpack.c.l.b16 %v166
        %v171 = vunpack.c.l.b16 %v167
        %v172 = vpack.c.b16 %v171, %v170
        %s174 = smul.addr %s130, 4
        %s175 = scalar_lea.vmem %s116, %s174
        %176 = vst [vmem:[%s175] sm:$0xff] %v172
      $region29: #{net_forward.13} parent=23 // loop_footer
        %s123 = sadd.s32 1, %s119
      $region30: #{net_forward.13} parent=23 // loop_footer_branch
        %118 = sbr.rel target = $region26
      $region31: #{net_forward.13} parent=23 // loop_exit
        _
      %p177 = scmp.lt.s32.totalorder %s12, 1
      %s178 = scalar_select %p177, %s12, 1
      %s179 = smul.addr %s178, 32
      %s180 = smul.addr %s179, 4
      %s181 = scalar_lea.vmem %s1, %s180
      // Predicated region
      $region32: #{net_forward.13} parent=23 // pred_check
        %p182 = pneg %p56
      $region33: #{net_forward.13} parent=23 // pred_check_branch
        %184 = sbr.rel (%p182) target = $region35
      $region34: #{net_forward.13} parent=23 // pred_region
        _
      $region35: #{net_forward.13} parent=23 // pred_fallthru
        _
    $region24: #{net_forward.13} parent=5 // pred_fallthru
      _
    %p185 = scmp.le.s32.totalorder 2, %s7
    // Predicated region
    $region36: #{net_forward.13} parent=5 // pred_check
      %p186 = pneg %p185
    $region37: #{net_forward.13} parent=5 // pred_check_branch
      %188 = sbr.rel (%p186) target = $region39
    $region38: #{net_forward.13} parent=5 // pred_region
      %s189 = ssub.s32 %s7, 2
      // Predicated region
      $region40: #{net_forward.13} parent=38 // pred_check
        %p190 = pneg %p62
      $region41: #{net_forward.13} parent=38 // pred_check_branch
        %192 = sbr.rel (%p190) target = $region43
      $region42: #{net_forward.13} parent=38 // pred_region
        %p193 = scmp.lt.s32.totalorder %s13, 1
        %s194 = scalar_select %p193, %s13, 1
        %s195 = smul.addr %s194, 32
        %s196 = smul.addr %s195, 4
        %s197 = scalar_lea.vmem %s1, %s196
      $region43: #{net_forward.13} parent=38 // pred_fallthru
        _
    $region39: #{net_forward.13} parent=5 // pred_fallthru
      _
  $region6: #{net_forward.13} parent=0 // loop_footer
    %s11 = sadd.s32 1, %s7
  $region7: #{net_forward.13} parent=0 // loop_footer_branch
    %6 = sbr.rel target = $region3
  $region8: #{net_forward.13} parent=0 // loop_exit
    _

// kernel: net_forward.12
$region0: #{net_forward.12}
  #allocation0 [shape = 'u32[]', space=smem, size = 0x4, offset = 0x4, fixed_abs, tag = 'smem constant byte address 0x4 - core index']
  #allocation1 [shape = 'u32[144,128]{1,0:T(1,128)}', space=vmem, size = 0x12000, scoped, tag = 'internal scratch']
  %s0 = inlined_call_operand.vmem [shape: bf16[2,18,18,128], index: 0, kind: input, shape index: {}]
  %s1 = inlined_call_operand.vmem [shape: bf16[9,128,128], index: 1, kind: input, shape index: {}]
  %s2 = inlined_call_operand.vmem [shape: f32[1,128], index: 2, kind: input, shape index: {}]
  %s3 = inlined_call_operand.vmem [shape: bf16[2,16,16,128], index: 3, kind: output, shape index: {}]
  %s4 = sld [smem:[#allocation0]]
  $region52: #{net_forward.12} parent=0
    _
  %s6 = ssub.s32 1, %s4
  %s7 = scalar_select 0, %s6, %s4
  loop: start=0, step=1, limit=4
  $region2: #{net_forward.12} parent=0 // loop_pre_header
    _
  $region3: #{net_forward.12} parent=0 // loop_header
    %s9 = sphi 0, %s13
    %p10 = scmp.ge.s32.totalorder %s9, 4
    %s19 = sphi 0, %s21
    %s22 = sphi 0, %s19
    %s23 = sphi 0, %s22
    %s39 = sphi 0, %s23
    %s43 = sphi 0, %s43
    %s45 = sphi 0, %s43
    %s46 = sphi 0, %s45
    %s60 = sphi 0, %s46
    %s64 = sphi 0, %s64
    %s66 = sphi 0, %s64
    %s67 = sphi 0, %s66
    %s81 = sphi 0, %s67
    %s87 = sphi 0, %s89
    %s90 = sphi 0, %s87
    %s91 = sphi 0, %s90
    %s107 = sphi 0, %s91
  $region4: #{net_forward.12} parent=0 // loop_header_branch
    %12 = sbr.rel (%p10) target = $region8
  $region5: #{net_forward.12} parent=0 // loop_body
    %s14 = ssub.s32 %s9, 1
    %s15 = ssub.s32 %s9, 2
    %s16 = sadd.s32 %s9, 1
    %s17 = ssub.s32 %s9, %s16
    %p18 = scmp.eq.s32.totalorder %s17, 0
    %s20 = sadd.s32 %s19, 1
    %s21 = scalar_select %p18, %s19, %s20
    %p24 = pneg %p18
    %p25 = scmp.eq.s32.totalorder %s9, 1
    %p26 = por %p24, %p25
    %p27 = scmp.ne.s32.totalorder %s19, %s22
    %p28 = scmp.eq.s32.totalorder %s9, 0
    %p29 = por %p27, %p28
    %p30 = scmp.ne.s32.totalorder %s19, %s22
    %p31 = scmp.eq.s32.totalorder %s14, 1
    %p32 = por %p30, %p31
    %p33 = scmp.ne.s32.totalorder %s22, %s23
    %p34 = scmp.eq.s32.totalorder %s14, 0
    %p35 = por %p33, %p34
    %p36 = scmp.ne.s32.totalorder %s22, %s23
    %p37 = scmp.eq.s32.totalorder %s15, 1
    %p38 = por %p36, %p37
    %p40 = scmp.ne.s32.totalorder %s23, %s39
    %p41 = scmp.eq.s32.totalorder %s15, 0
    %p42 = por %p40, %p41
    %s44 = sadd.s32 %s43, 1
    %p47 = scmp.eq.s32.totalorder %s9, 1
    %p48 = scmp.ne.s32.totalorder %s43, %s45
    %p49 = scmp.eq.s32.totalorder %s9, 0
    %p50 = por %p48, %p49
    %p51 = scmp.ne.s32.totalorder %s43, %s45
    %p52 = scmp.eq.s32.totalorder %s14, 1
    %p53 = por %p51, %p52
    %p54 = scmp.ne.s32.totalorder %s45, %s46
    %p55 = scmp.eq.s32.totalorder %s14, 0
    %p56 = por %p54, %p55
    %p57 = scmp.ne.s32.totalorder %s45, %s46
    %p58 = scmp.eq.s32.totalorder %s15, 1
    %p59 = por %p57, %p58
    %p61 = scmp.ne.s32.totalorder %s46, %s60
    %p62 = scmp.eq.s32.totalorder %s15, 0
    %p63 = por %p61, %p62
    %s65 = sadd.s32 %s64, 1
    %p68 = scmp.eq.s32.totalorder %s9, 1
    %p69 = scmp.ne.s32.totalorder %s64, %s66
    %p70 = scmp.eq.s32.totalorder %s9, 0
    %p71 = por %p69, %p70
    %p72 = scmp.ne.s32.totalorder %s64, %s66
    %p73 = scmp.eq.s32.totalorder %s14, 1
    %p74 = por %p72, %p73
    %p75 = scmp.ne.s32.totalorder %s66, %s67
    %p76 = scmp.eq.s32.totalorder %s14, 0
    %p77 = por %p75, %p76
    %p78 = scmp.ne.s32.totalorder %s66, %s67
    %p79 = scmp.eq.s32.totalorder %s15, 1
    %p80 = por %p78, %p79
    %p82 = scmp.ne.s32.totalorder %s67, %s81
    %p83 = scmp.eq.s32.totalorder %s15, 0
    %p84 = por %p82, %p83
    %s85 = ssub.s32 %s9, %s16
    %p86 = scmp.eq.s32.totalorder %s85, 0
    %s88 = sadd.s32 %s87, 1
    %s89 = scalar_select %p86, %s87, %s88
    %p92 = pneg %p86
    %p93 = scmp.eq.s32.totalorder %s9, 1
    %p94 = por %p92, %p93
    %p95 = scmp.ne.s32.totalorder %s87, %s90
    %p96 = scmp.eq.s32.totalorder %s9, 0
    %p97 = por %p95, %p96
    %p98 = scmp.ne.s32.totalorder %s87, %s90
    %p99 = scmp.eq.s32.totalorder %s14, 1
    %p100 = por %p98, %p99
    %p101 = scmp.ne.s32.totalorder %s90, %s91
    %p102 = scmp.eq.s32.totalorder %s14, 0
    %p103 = por %p101, %p102
    %p104 = scmp.ne.s32.totalorder %s90, %s91
    %p105 = scmp.eq.s32.totalorder %s15, 1
    %p106 = por %p104, %p105
    %p108 = scmp.ne.s32.totalorder %s91, %s107
    %p109 = scmp.eq.s32.totalorder %s15, 0
    %p110 = por %p108, %p109
    %p111 = scmp.le.s32.totalorder 1, %s9
    %p112 = scmp.lt.s32.totalorder %s9, 3
    %p113 = pnand %p111, %p112
    %p114 = pneg %p113
    // Predicated region
    $region9: #{net_forward.12} parent=5 // pred_check
      _
    $region10: #{net_forward.12} parent=5 // pred_check_branch
      %116 = sbr.rel (%p113) target = $region12
    $region11: #{net_forward.12} parent=5 // pred_region
      %s117 = ssub.s32 %s9, 1
      // Predicated region
      $region13: #{net_forward.12} parent=11 // pred_check
        %p118 = pneg %p56
      $region14: #{net_forward.12} parent=11 // pred_check_branch
        %120 = sbr.rel (%p118) target = $region16
      $region15: #{net_forward.12} parent=11 // pred_region
        _
      $region16: #{net_forward.12} parent=11 // pred_fallthru
        _
      // Predicated region
      $region17: #{net_forward.12} parent=11 // pred_check
        %p121 = pneg %p77
      $region18: #{net_forward.12} parent=11 // pred_check_branch
        %123 = sbr.rel (%p121) target = $region20
      $region19: #{net_forward.12} parent=11 // pred_region
        _
      $region20: #{net_forward.12} parent=11 // pred_fallthru
        _
    $region12: #{net_forward.12} parent=5 // pred_fallthru
      _
    %p124 = scmp.lt.s32.totalorder %s9, 2
    // Predicated region
    $region21: #{net_forward.12} parent=5 // pred_check
      %p125 = pneg %p124
    $region22: #{net_forward.12} parent=5 // pred_check_branch
      %127 = sbr.rel (%p125) target = $region24
    $region23: #{net_forward.12} parent=5 // pred_region
      // Predicated region
      $region25: #{net_forward.12} parent=23 // pred_check
        %p128 = pneg %p29
      $region26: #{net_forward.12} parent=23 // pred_check_branch
        %130 = sbr.rel (%p128) target = $region28
      $region27: #{net_forward.12} parent=23 // pred_region
        %p131 = scmp.lt.s32.totalorder %s9, 1
        %s132 = scalar_select %p131, %s9, 1
        %s133 = smul.addr %s132, 54
        %s134 = smul.addr %s133, 4
        %s135 = scalar_lea.vmem %s0, %s134
      $region28: #{net_forward.12} parent=23 // pred_fallthru
        _
    $region24: #{net_forward.12} parent=5 // pred_fallthru
      _
    %p136 = scmp.le.s32.totalorder 1, %s9
    %p137 = scmp.lt.s32.totalorder %s9, 3
    %p138 = pnand %p136, %p137
    %p139 = pneg %p138
    // Predicated region
    $region29: #{net_forward.12} parent=5 // pred_check
      _
    $region30: #{net_forward.12} parent=5 // pred_check_branch
      %141 = sbr.rel (%p138) target = $region32
    $region31: #{net_forward.12} parent=5 // pred_region
      %s142 = ssub.s32 %s9, 1
      %p143 = scmp.lt.s32.totalorder %s14, 1
      %s144 = scalar_select %p143, %s14, 1
      %s145 = smul.addr %s144, 54
      %s146 = smul.addr %s145, 4
      %s147 = scalar_lea.vmem %s0, %s146
      %p148 = pneg %p35
      %p149 = pneg %p32
      %p150 = pneg %p56
      %p151 = pneg %p53
      %p152 = pneg %p77
      %p153 = pneg %p74
      %p154 = pneg %p103
      %p155 = pneg %p100
      %p156 = scmp.lt.s32.totalorder %s14, 1
      %s157 = scalar_select %p156, %s14, 1
      %s158 = smul.addr %s157, 32
      %s159 = smul.addr %s158, 4
      %s160 = scalar_lea.vmem %s3, %s159
      %p161 = scmp.lt.s32.totalorder %s14, 1
      %s162 = scalar_select %p161, %s14, 1
      %s163 = smul.addr %s162, 54
      %s164 = smul.addr %s163, 4
      %s165 = scalar_lea.vmem %s0, %s164
      %p166 = scmp.lt.s32.totalorder %s14, 1
      %s167 = scalar_select %p166, %s14, 1
      %s168 = smul.addr %s167, 32
      %s169 = smul.addr %s168, 4
      %s170 = scalar_lea.vmem %s3, %s169
      %v172 = vld [vmem:[%s2] sm:$0x1]
      loop: start=0, step=1, limit=16
      $region33: #{net_forward.12} parent=31 // loop_pre_header
        _
      $region34: #{net_forward.12} parent=31 // loop_header
        %s174 = sphi 0, %s178
        %p175 = scmp.ge.s32.totalorder %s174, 16
      $region35: #{net_forward.12} parent=31 // loop_header_branch
        %177 = sbr.rel (%p175) target = $region39
      $region36: #{net_forward.12} parent=31 // loop_body
        %s179 = smul.u32 %s174, 3
        %s180 = smul.addr %s179, 4
        %s181 = scalar_lea.vmem %s165, %s180
        %v182 = vld [vmem:[%s181] sm:$0xf]
        %v183 = vld [vmem:[%s181 + $0x4] sm:$0xf]
        %v184 = vld [vmem:[%s181 + $0x8] sm:$0x1]
        %v185 = vunpack.c.l.bf16 %v182
        %v186 = vunpack.c.l.bf16 %v183
        %v187 = vunpack.c.l.bf16 %v184
        %v188 = vpack.c.bf16 %v186, %v185
        %v189 = vld [vmem:[%s1] sm:$0xf]
        %v190 = vld [vmem:[%s1 + $0x4] sm:$0xf]
        %v191 = vld [vmem:[%s1 + $0x8] sm:$0xf]
        %v192 = vld [vmem:[%s1 + $0xc] sm:$0xf]
        %v193 = vld [vmem:[%s1 + $0x10] sm:$0xf]
        %v194 = vld [vmem:[%s1 + $0x14] sm:$0xf]
        %v195 = vld [vmem:[%s1 + $0x18] sm:$0xf]
        %v196 = vld [vmem:[%s1 + $0x1c] sm:$0xf]
        %v197 = vld [vmem:[%s1 + $0x20] sm:$0xf]
        %v198 = vld [vmem:[%s1 + $0x24] sm:$0xf]
        %v199 = vld [vmem:[%s1 + $0x28] sm:$0xf]
        %v200 = vld [vmem:[%s1 + $0x2c] sm:$0xf]
        %v201 = vld [vmem:[%s1 + $0x30] sm:$0xf]
        %v202 = vld [vmem:[%s1 + $0x34] sm:$0xf]
        %v203 = vld [vmem:[%s1 + $0x38] sm:$0xf]
        %v204 = vld [vmem:[%s1 + $0x3c] sm:$0xf]
        %v205 = vpack.c.bf16 %v187, %v187
        %s206 = scalar_lea.vmem %s1, 64
        %v207 = vld [vmem:[%s206] sm:$0xf]
        %v208 = vld [vmem:[%s206 + $0x4] sm:$0xf]
        %v209 = vld [vmem:[%s206 + $0x8] sm:$0xf]
        %v210 = vld [vmem:[%s206 + $0xc] sm:$0xf]
        %v211 = vld [vmem:[%s206 + $0x10] sm:$0xf]
        %v212 = vld [vmem:[%s206 + $0x14] sm:$0xf]
        %v213 = vld [vmem:[%s206 + $0x18] sm:$0xf]
        %v214 = vld [vmem:[%s206 + $0x1c] sm:$0xf]
        %v215 = vld [vmem:[%s206 + $0x20] sm:$0xf]
        %v216 = vld [vmem:[%s206 + $0x24] sm:$0xf]
        %v217 = vld [vmem:[%s206 + $0x28] sm:$0xf]
        %v218 = vld [vmem:[%s206 + $0x2c] sm:$0xf]
        %v219 = vld [vmem:[%s206 + $0x30] sm:$0xf]
        %v220 = vld [vmem:[%s206 + $0x34] sm:$0xf]
        %v221 = vld [vmem:[%s206 + $0x38] sm:$0xf]
        %v222 = vld [vmem:[%s206 + $0x3c] sm:$0xf]
        %vm223 = vsmask.f32 7424
        %v225 = vshrl.u32 %v188, 16
        %v227 = vshll.u32 %v188, 16
        %v229 = vrot.slane %v227, 1
        %v230 = vor.u32 %v225, %v229
        %v232 = vshll.u32 %v205, 16
        %v234 = vrot.slane %v232, 1
        %v235 = vsel %vm223, %v230, %v234
        %v253 = vunpack.c.l.b16 %v207
        %v254 = vunpack.c.l.b16 %v208
        %v255 = vunpack.c.l.b16 %v209
        %v256 = vunpack.c.l.b16 %v210
        %v257 = vunpack.c.l.b16 %v211
        %v258 = vunpack.c.l.b16 %v212
        %v259 = vunpack.c.l.b16 %v213
        %v260 = vunpack.c.l.b16 %v214
        %v261 = vunpack.c.l.b16 %v215
        %v262 = vunpack.c.l.b16 %v216
        %v263 = vunpack.c.l.b16 %v217
        %v264 = vunpack.c.l.b16 %v218
        %v265 = vunpack.c.l.b16 %v219
        %v266 = vunpack.c.l.b16 %v220
        %v267 = vunpack.c.l.b16 %v221
        %v268 = vunpack.c.l.b16 %v222
        %v269 = vpack.c.b16 %v254, %v253
        %v270 = vpack.c.b16 %v256, %v255
        %v271 = vpack.c.b16 %v258, %v257
        %v272 = vpack.c.b16 %v260, %v259
        %v273 = vpack.c.b16 %v262, %v261
        %v274 = vpack.c.b16 %v264, %v263
        %v275 = vpack.c.b16 %v266, %v265
        %v276 = vpack.c.b16 %v268, %v267
        %285 = vmatprep.subr.bf16.mxu0 0
        %286 = vmatpush1.bf16.msra.mxu0 %v269
        %287 = vmatprep.subr.bf16.mxu0 0
        %288 = vmatpush1.bf16.msra.mxu0 %v270
        %289 = vmatprep.subr.bf16.mxu0 0
        %290 = vmatpush1.bf16.msra.mxu0 %v271
        %291 = vmatprep.subr.bf16.mxu0 0
        %292 = vmatpush1.bf16.msra.mxu0 %v272
        %293 = vmatprep.subr.bf16.mxu0 0
        %294 = vmatpush1.bf16.msra.mxu0 %v273
        %295 = vmatprep.subr.bf16.mxu0 0
        %296 = vmatpush1.bf16.msra.mxu0 %v274
        %297 = vmatprep.subr.bf16.mxu0 0
        %298 = vmatpush1.bf16.msra.mxu0 %v275
        %299 = vmatprep.subr.bf16.mxu0 0
        %300 = vmatpush1.bf16.msra.mxu0 %v276
        %301 = vmatprep.subr.bf16.mxu0 0
        %302 = vmatpush1.bf16.msra.mxu0 0
        %303 = vmatprep.subr.bf16.mxu0 0
        %304 = vmatpush1.bf16.msra.mxu0 0
        %305 = vmatprep.subr.bf16.mxu0 0
        %306 = vmatpush1.bf16.msra.mxu0 0
        %307 = vmatprep.subr.bf16.mxu0 0
        %308 = vmatpush1.bf16.msra.mxu0 0
        %309 = vmatprep.subr.bf16.mxu0 0
        %310 = vmatpush1.bf16.msra.mxu0 0
        %311 = vmatprep.subr.bf16.mxu0 0
        %312 = vmatpush1.bf16.msra.mxu0 0
        %313 = vmatprep.subr.bf16.mxu0 0
        %314 = vmatpush1.bf16.msra.mxu0 0
        %315 = vmatprep.subr.bf16.mxu0 0
        %316 = vmatpush1.bf16.msra.mxu0 0
        %317 = vmatprep.mubr.bf16.mxu0 0
        %318 = vmatmul.mubr.bf16.gmra.mrb[0].mxu0 %v235
        %v319 = vpop.f32.mrb[0].mxu0
        %v320 = vadd.f32 0.0, %v319
        %v321 = vpop.f32.mrb[0].mxu0
        %v322 = vpop.f32.mrb[0].mxu0
        %v323 = vadd.f32 0.0, %v322
        %v324 = vpop.f32.mrb[0].mxu0
        %325 = vdwg.mxu0
        %v342 = vunpack.c.l.b16 %v189
        %v343 = vunpack.c.l.b16 %v190
        %v344 = vunpack.c.l.b16 %v191
        %v345 = vunpack.c.l.b16 %v192
        %v346 = vunpack.c.l.b16 %v193
        %v347 = vunpack.c.l.b16 %v194
        %v348 = vunpack.c.l.b16 %v195
        %v349 = vunpack.c.l.b16 %v196
        %v350 = vunpack.c.l.b16 %v197
        %v351 = vunpack.c.l.b16 %v198
        %v352 = vunpack.c.l.b16 %v199
        %v353 = vunpack.c.l.b16 %v200
        %v354 = vunpack.c.l.b16 %v201
        %v355 = vunpack.c.l.b16 %v202
        %v356 = vunpack.c.l.b16 %v203
        %v357 = vunpack.c.l.b16 %v204
        %v358 = vpack.c.b16 %v343, %v342
        %v359 = vpack.c.b16 %v345, %v344
        %v360 = vpack.c.b16 %v347, %v346
        %v361 = vpack.c.b16 %v349, %v348
        %v362 = vpack.c.b16 %v351, %v350
        %v363 = vpack.c.b16 %v353, %v352
        %v364 = vpack.c.b16 %v355, %v354
        %v365 = vpack.c.b16 %v357, %v356
        %374 = vmatprep.subr.bf16.mxu0 0
        %375 = vmatpush1.bf16.msra.mxu0 %v358
        %376 = vmatprep.subr.bf16.mxu0 0
        %377 = vmatpush1.bf16.msra.mxu0 %v359
        %378 = vmatprep.subr.bf16.mxu0 0
        %379 = vmatpush1.bf16.msra.mxu0 %v360
        %380 = vmatprep.subr.bf16.mxu0 0
        %381 = vmatpush1.bf16.msra.mxu0 %v361
        %382 = vmatprep.subr.bf16.mxu0 0
        %383 = vmatpush1.bf16.msra.mxu0 %v362
        %384 = vmatprep.subr.bf16.mxu0 0
        %385 = vmatpush1.bf16.msra.mxu0 %v363
        %386 = vmatprep.subr.bf16.mxu0 0
        %387 = vmatpush1.bf16.msra.mxu0 %v364
        %388 = vmatprep.subr.bf16.mxu0 0
        %389 = vmatpush1.bf16.msra.mxu0 %v365
        %390 = vmatprep.subr.bf16.mxu0 0
        %391 = vmatpush1.bf16.msra.mxu0 0
        %392 = vmatprep.subr.bf16.mxu0 0
        %393 = vmatpush1.bf16.msra.mxu0 0
        %394 = vmatprep.subr.bf16.mxu0 0
        %395 = vmatpush1.bf16.msra.mxu0 0
        %396 = vmatprep.subr.bf16.mxu0 0
        %397 = vmatpush1.bf16.msra.mxu0 0
        %398 = vmatprep.subr.bf16.mxu0 0
        %399 = vmatpush1.bf16.msra.mxu0 0
        %400 = vmatprep.subr.bf16.mxu0 0
        %401 = vmatpush1.bf16.msra.mxu0 0
        %402 = vmatprep.subr.bf16.mxu0 0
        %403 = vmatpush1.bf16.msra.mxu0 0
        %404 = vmatprep.subr.bf16.mxu0 0
        %405 = vmatpush1.bf16.msra.mxu0 0
        %406 = vmatprep.mubr.bf16.mxu0 0
        %407 = vmatmul.mubr.bf16.gmra.mrb[0].mxu0 %v188
        %v408 = vpop.f32.mrb[0].mxu0
        %v409 = vadd.f32 %v320, %v408
        %v410 = vpop.f32.mrb[0].mxu0
        %v411 = vpop.f32.mrb[0].mxu0
        %v412 = vadd.f32 %v323, %v411
        %v413 = vpop.f32.mrb[0].mxu0
        %414 = vdwg.mxu0
        %s415 = scalar_lea.vmem %s1, 128
        %v416 = vld [vmem:[%s415] sm:$0xf]
        %v417 = vld [vmem:[%s415 + $0x4] sm:$0xf]
        %v418 = vld [vmem:[%s415 + $0x8] sm:$0xf]
        %v419 = vld [vmem:[%s415 + $0xc] sm:$0xf]
        %v420 = vld [vmem:[%s415 + $0x10] sm:$0xf]
        %v421 = vld [vmem:[%s415 + $0x14] sm:$0xf]
        %v422 = vld [vmem:[%s415 + $0x18] sm:$0xf]
        %v423 = vld [vmem:[%s415 + $0x1c] sm:$0xf]
        %v424 = vld [vmem:[%s415 + $0x20] sm:$0xf]
        %v425 = vld [vmem:[%s415 + $0x24] sm:$0xf]
        %v426 = vld [vmem:[%s415 + $0x28] sm:$0xf]
        %v427 = vld [vmem:[%s415 + $0x2c] sm:$0xf]
        %v428 = vld [vmem:[%s415 + $0x30] sm:$0xf]
        %v429 = vld [vmem:[%s415 + $0x34] sm:$0xf]
        %v430 = vld [vmem:[%s415 + $0x38] sm:$0xf]
        %v431 = vld [vmem:[%s415 + $0x3c] sm:$0xf]
        %vm434 = vcmask 1046528
        %v435 = vrot.slane %v188, 1
        %v436 = vrot.slane %v205, 1
        %v437 = vsel %vm434, %v435, %v436
        %v455 = vunpack.c.l.b16 %v416
        %v456 = vunpack.c.l.b16 %v417
        %v457 = vunpack.c.l.b16 %v418
        %v458 = vunpack.c.l.b16 %v419
        %v459 = vunpack.c.l.b16 %v420
        %v460 = vunpack.c.l.b16 %v421
        %v461 = vunpack.c.l.b16 %v422
        %v462 = vunpack.c.l.b16 %v423
        %v463 = vunpack.c.l.b16 %v424
        %v464 = vunpack.c.l.b16 %v425
        %v465 = vunpack.c.l.b16 %v426
        %v466 = vunpack.c.l.b16 %v427
        %v467 = vunpack.c.l.b16 %v428
        %v468 = vunpack.c.l.b16 %v429
        %v469 = vunpack.c.l.b16 %v430
        %v470 = vunpack.c.l.b16 %v431
        %v471 = vpack.c.b16 %v456, %v455
        %v472 = vpack.c.b16 %v458, %v457
        %v473 = vpack.c.b16 %v460, %v459
        %v474 = vpack.c.b16 %v462, %v461
        %v475 = vpack.c.b16 %v464, %v463
        %v476 = vpack.c.b16 %v466, %v465
        %v477 = vpack.c.b16 %v468, %v467
        %v478 = vpack.c.b16 %v470, %v469
        %487 = vmatprep.subr.bf16.mxu0 0
        %488 = vmatpush1.bf16.msra.mxu0 %v471
        %489 = vmatprep.subr.bf16.mxu0 0
        %490 = vmatpush1.bf16.msra.mxu0 %v472
        %491 = vmatprep.subr.bf16.mxu0 0
        %492 = vmatpush1.bf16.msra.mxu0 %v473
        %493 = vmatprep.subr.bf16.mxu0 0
        %494 = vmatpush1.bf16.msra.mxu0 %v474
        %495 = vmatprep.subr.bf16.mxu0 0
        %496 = vmatpush1.bf16.msra.mxu0 %v475
        %497 = vmatprep.subr.bf16.mxu0 0
        %498 = vmatpush1.bf16.msra.mxu0 %v476
        %499 = vmatprep.subr.bf16.mxu0 0
        %500 = vmatpush1.bf16.msra.mxu0 %v477
        %501 = vmatprep.subr.bf16.mxu0 0
        %502 = vmatpush1.bf16.msra.mxu0 %v478
        %503 = vmatprep.subr.bf16.mxu0 0
        %504 = vmatpush1.bf16.msra.mxu0 0
        %505 = vmatprep.subr.bf16.mxu0 0
        %506 = vmatpush1.bf16.msra.mxu0 0
        %507 = vmatprep.subr.bf16.mxu0 0
        %508 = vmatpush1.bf16.msra.mxu0 0
        %509 = vmatprep.subr.bf16.mxu0 0
        %510 = vmatpush1.bf16.msra.mxu0 0
        %511 = vmatprep.subr.bf16.mxu0 0
        %512 = vmatpush1.bf16.msra.mxu0 0
        %513 = vmatprep.subr.bf16.mxu0 0
        %514 = vmatpush1.bf16.msra.mxu0 0
        %515 = vmatprep.subr.bf16.mxu0 0
        %516 = vmatpush1.bf16.msra.mxu0 0
        %517 = vmatprep.subr.bf16.mxu0 0
        %518 = vmatpush1.bf16.msra.mxu0 0
        %519 = vmatprep.mubr.bf16.mxu0 0
        %520 = vmatmul.mubr.bf16.gmra.mrb[0].mxu0 %v437
        %v521 = vpop.f32.mrb[0].mxu0
        %v522 = vadd.f32 0.0, %v521
        %v523 = vpop.f32.mrb[0].mxu0
        %v524 = vpop.f32.mrb[0].mxu0
        %v525 = vadd.f32 0.0, %v524
        %v526 = vpop.f32.mrb[0].mxu0
        %527 = vdwg.mxu0
        %v528 = vadd.f32 %v409, %v522
        %v529 = vadd.f32 %v412, %v525
        %s530 = sadd.s32 %s174, 1
        %s531 = smul.u32 %s530, 3
        %s532 = smul.addr %s531, 4
        %s533 = scalar_lea.vmem %s165, %s532
        %v534 = vld [vmem:[%s533] sm:$0xf]
        %v535 = vld [vmem:[%s533 + $0x4] sm:$0xf]
        %v536 = vld [vmem:[%s533 + $0x8] sm:$0x1]
        %v537 = vunpack.c.l.bf16 %v534
        %v538 = vunpack.c.l.bf16 %v535
        %v539 = vunpack.c.l.bf16 %v536
        %v540 = vpack.c.bf16 %v538, %v537
        %s541 = scalar_lea.vmem %s1, 192
        %v542 = vld [vmem:[%s541] sm:$0xf]
        %v543 = vld [vmem:[%s541 + $0x4] sm:$0xf]
        %v544 = vld [vmem:[%s541 + $0x8] sm:$0xf]
        %v545 = vld [vmem:[%s541 + $0xc] sm:$0xf]
        %v546 = vld [vmem:[%s541 + $0x10] sm:$0xf]
        %v547 = vld [vmem:[%s541 + $0x14] sm:$0xf]
        %v548 = vld [vmem:[%s541 + $0x18] sm:$0xf]
        %v549 = vld [vmem:[%s541 + $0x1c] sm:$0xf]
        %v550 = vld [vmem:[%s541 + $0x20] sm:$0xf]
        %v551 = vld [vmem:[%s541 + $0x24] sm:$0xf]
        %v552 = vld [vmem:[%s541 + $0x28] sm:$0xf]
        %v553 = vld [vmem:[%s541 + $0x2c] sm:$0xf]
        %v554 = vld [vmem:[%s541 + $0x30] sm:$0xf]
        %v555 = vld [vmem:[%s541 + $0x34] sm:$0xf]
        %v556 = vld [vmem:[%s541 + $0x38] sm:$0xf]
        %v557 = vld [vmem:[%s541 + $0x3c] sm:$0xf]
        %v574 = vunpack.c.l.b16 %v542
        %v575 = vunpack.c.l.b16 %v543
        %v576 = vunpack.c.l.b16 %v544
        %v577 = vunpack.c.l.b16 %v545
        %v578 = vunpack.c.l.b16 %v546
        %v579 = vunpack.c.l.b16 %v547
        %v580 = vunpack.c.l.b16 %v548
        %v581 = vunpack.c.l.b16 %v549
        %v582 = vunpack.c.l.b16 %v550
        %v583 = vunpack.c.l.b16 %v551
        %v584 = vunpack.c.l.b16 %v552
        %v585 = vunpack.c.l.b16 %v553
        %v586 = vunpack.c.l.b16 %v554
        %v587 = vunpack.c.l.b16 %v555
        %v588 = vunpack.c.l.b16 %v556
        %v589 = vunpack.c.l.b16 %v557
        %v590 = vpack.c.b16 %v575, %v574
        %v591 = vpack.c.b16 %v577, %v576
        %v592 = vpack.c.b16 %v579, %v578
        %v593 = vpack.c.b16 %v581, %v580
        %v594 = vpack.c.b16 %v583, %v582
        %v595 = vpack.c.b16 %v585, %v584
        %v596 = vpack.c.b16 %v587, %v586
        %v597 = vpack.c.b16 %v589, %v588
        %606 = vmatprep.subr.bf16.mxu0 0
        %607 = vmatpush1.bf16.msra.mxu0 %v590
        %608 = vmatprep.subr.bf16.mxu0 0
        %609 = vmatpush1.bf16.msra.mxu0 %v591
        %610 = vmatprep.subr.bf16.mxu0 0
        %611 = vmatpush1.bf16.msra.mxu0 %v592
        %612 = vmatprep.subr.bf16.mxu0 0
        %613 = vmatpush1.bf16.msra.mxu0 %v593
        %614 = vmatprep.subr.bf16.mxu0 0
        %615 = vmatpush1.bf16.msra.mxu0 %v594
        %616 = vmatprep.subr.bf16.mxu0 0
        %617 = vmatpush1.bf16.msra.mxu0 %v595
        %618 = vmatprep.subr.bf16.mxu0 0
        %619 = vmatpush1.bf16.msra.mxu0 %v596
        %620 = vmatprep.subr.bf16.mxu0 0
        %621 = vmatpush1.bf16.msra.mxu0 %v597
        %622 = vmatprep.subr.bf16.mxu0 0
        %623 = vmatpush1.bf16.msra.mxu0 0
        %624 = vmatprep.subr.bf16.mxu0 0
        %625 = vmatpush1.bf16.msra.mxu0 0
        %626 = vmatprep.subr.bf16.mxu0 0
        %627 = vmatpush1.bf16.msra.mxu0 0
        %628 = vmatprep.subr.bf16.mxu0 0
        %629 = vmatpush1.bf16.msra.mxu0 0
        %630 = vmatprep.subr.bf16.mxu0 0
        %631 = vmatpush1.bf16.msra.mxu0 0
        %632 = vmatprep.subr.bf16.mxu0 0
        %633 = vmatpush1.bf16.msra.mxu0 0
        %634 = vmatprep.subr.bf16.mxu0 0
        %635 = vmatpush1.bf16.msra.mxu0 0
        %636 = vmatprep.subr.bf16.mxu0 0
        %637 = vmatpush1.bf16.msra.mxu0 0
        %638 = vmatprep.mubr.bf16.mxu0 0
        %639 = vmatmul.mubr.bf16.gmra.mrb[0].mxu0 %v540
        %v640 = vpop.f32.mrb[0].mxu0
        %v641 = vadd.f32 0.0, %v640
        %v642 = vpop.f32.mrb[0].mxu0
        %v643 = vpop.f32.mrb[0].mxu0
        %v644 = vadd.f32 0.0, %v643
        %v645 = vpop.f32.mrb[0].mxu0
        %646 = vdwg.mxu0
        %v647 = vadd.f32 %v528, %v641
        %v648 = vadd.f32 %v529, %v644
        %v649 = vpack.c.bf16 %v539, %v539
        %s650 = scalar_lea.vmem %s1, 256
        %v651 = vld [vmem:[%s650] sm:$0xf]
        %v652 = vld [vmem:[%s650 + $0x4] sm:$0xf]
        %v653 = vld [vmem:[%s650 + $0x8] sm:$0xf]
        %v654 = vld [vmem:[%s650 + $0xc] sm:$0xf]
        %v655 = vld [vmem:[%s650 + $0x10] sm:$0xf]
        %v656 = vld [vmem:[%s650 + $0x14] sm:$0xf]
        %v657 = vld [vmem:[%s650 + $0x18] sm:$0xf]
        %v658 = vld [vmem:[%s650 + $0x1c] sm:$0xf]
        %v659 = vld [vmem:[%s650 + $0x20] sm:$0xf]
        %v660 = vld [vmem:[%s650 + $0x24] sm:$0xf]
        %v661 = vld [vmem:[%s650 + $0x28] sm:$0xf]
        %v662 = vld [vmem:[%s650 + $0x2c] sm:$0xf]
        %v663 = vld [vmem:[%s650 + $0x30] sm:$0xf]
        %v664 = vld [vmem:[%s650 + $0x34] sm:$0xf]
        %v665 = vld [vmem:[%s650 + $0x38] sm:$0xf]
        %v666 = vld [vmem:[%s650 + $0x3c] sm:$0xf]
        %v668 = vshrl.u32 %v540, 16
        %v670 = vshll.u32 %v540, 16
        %v672 = vrot.slane %v670, 1
        %v673 = vor.u32 %v668, %v672
        %v675 = vshll.u32 %v649, 16
        %v677 = vrot.slane %v675, 1
        %v678 = vsel %vm223, %v673, %v677
        %v696 = vunpack.c.l.b16 %v651
        %v697 = vunpack.c.l.b16 %v652
        %v698 = vunpack.c.l.b16 %v653
        %v699 = vunpack.c.l.b16 %v654
        %v700 = vunpack.c.l.b16 %v655
        %v701 = vunpack.c.l.b16 %v656
        %v702 = vunpack.c.l.b16 %v657
        %v703 = vunpack.c.l.b16 %v658
        %v704 = vunpack.c.l.b16 %v659
        %v705 = vunpack.c.l.b16 %v660
        %v706 = vunpack.c.l.b16 %v661
        %v707 = vunpack.c.l.b16 %v662
        %v708 = vunpack.c.l.b16 %v663
        %v709 = vunpack.c.l.b16 %v664
        %v710 = vunpack.c.l.b16 %v665
        %v711 = vunpack.c.l.b16 %v666
        %v712 = vpack.c.b16 %v697, %v696
        %v713 = vpack.c.b16 %v699, %v698
        %v714 = vpack.c.b16 %v701, %v700
        %v715 = vpack.c.b16 %v703, %v702
        %v716 = vpack.c.b16 %v705, %v704
        %v717 = vpack.c.b16 %v707, %v706
        %v718 = vpack.c.b16 %v709, %v708
        %v719 = vpack.c.b16 %v711, %v710
        %728 = vmatprep.subr.bf16.mxu0 0
        %729 = vmatpush1.bf16.msra.mxu0 %v712
        %730 = vmatprep.subr.bf16.mxu0 0
        %731 = vmatpush1.bf16.msra.mxu0 %v713
        %732 = vmatprep.subr.bf16.mxu0 0
        %733 = vmatpush1.bf16.msra.mxu0 %v714
        %734 = vmatprep.subr.bf16.mxu0 0
        %735 = vmatpush1.bf16.msra.mxu0 %v715
        %736 = vmatprep.subr.bf16.mxu0 0
        %737 = vmatpush1.bf16.msra.mxu0 %v716
        %738 = vmatprep.subr.bf16.mxu0 0
        %739 = vmatpush1.bf16.msra.mxu0 %v717
        %740 = vmatprep.subr.bf16.mxu0 0
        %741 = vmatpush1.bf16.msra.mxu0 %v718
        %742 = vmatprep.subr.bf16.mxu0 0
        %743 = vmatpush1.bf16.msra.mxu0 %v719
        %744 = vmatprep.subr.bf16.mxu0 0
        %745 = vmatpush1.bf16.msra.mxu0 0
        %746 = vmatprep.subr.bf16.mxu0 0
        %747 = vmatpush1.bf16.msra.mxu0 0
        %748 = vmatprep.subr.bf16.mxu0 0
        %749 = vmatpush1.bf16.msra.mxu0 0
        %750 = vmatprep.subr.bf16.mxu0 0
        %751 = vmatpush1.bf16.msra.mxu0 0
        %752 = vmatprep.subr.bf16.mxu0 0
        %753 = vmatpush1.bf16.msra.mxu0 0
        %754 = vmatprep.subr.bf16.mxu0 0
        %755 = vmatpush1.bf16.msra.mxu0 0
        %756 = vmatprep.subr.bf16.mxu0 0
        %757 = vmatpush1.bf16.msra.mxu0 0
        %758 = vmatprep.subr.bf16.mxu0 0
        %759 = vmatpush1.bf16.msra.mxu0 0
        %760 = vmatprep.mubr.bf16.mxu0 0
        %761 = vmatmul.mubr.bf16.gmra.mrb[0].mxu0 %v678
        %v762 = vpop.f32.mrb[0].mxu0
        %v763 = vadd.f32 0.0, %v762
        %v764 = vpop.f32.mrb[0].mxu0
        %v765 = vpop.f32.mrb[0].mxu0
        %v766 = vadd.f32 0.0, %v765
        %v767 = vpop.f32.mrb[0].mxu0
        %768 = vdwg.mxu0
        %v769 = vadd.f32 %v647, %v763
        %v770 = vadd.f32 %v648, %v766
        %s771 = scalar_lea.vmem %s1, 320
        %v772 = vld [vmem:[%s771] sm:$0xf]
        %v773 = vld [vmem:[%s771 + $0x4] sm:$0xf]
        %v774 = vld [vmem:[%s771 + $0x8] sm:$0xf]
        %v775 = vld [vmem:[%s771 + $0xc] sm:$0xf]
        %v776 = vld [vmem:[%s771 + $0x10] sm:$0xf]
        %v777 = vld [vmem:[%s771 + $0x14] sm:$0xf]
        %v778 = vld [vmem:[%s771 + $0x18] sm:$0xf]
        %v779 = vld [vmem:[%s771 + $0x1c] sm:$0xf]
        %v780 = vld [vmem:[%s771 + $0x20] sm:$0xf]
        %v781 = vld [vmem:[%s771 + $0x24] sm:$0xf]
        %v782 = vld [vmem:[%s771 + $0x28] sm:$0xf]
        %v783 = vld [vmem:[%s771 + $0x2c] sm:$0xf]
        %v784 = vld [vmem:[%s771 + $0x30] sm:$0xf]
        %v785 = vld [vmem:[%s771 + $0x34] sm:$0xf]
        %v786 = vld [vmem:[%s771 + $0x38] sm:$0xf]
        %v787 = vld [vmem:[%s771 + $0x3c] sm:$0xf]
        %v790 = vrot.slane %v540, 1
        %v791 = vrot.slane %v649, 1
        %v792 = vsel %vm434, %v790, %v791
        %v810 = vunpack.c.l.b16 %v772
        %v811 = vunpack.c.l.b16 %v773
        %v812 = vunpack.c.l.b16 %v774
        %v813 = vunpack.c.l.b16 %v775
        %v814 = vunpack.c.l.b16 %v776
        %v815 = vunpack.c.l.b16 %v777
        %v816 = vunpack.c.l.b16 %v778
        %v817 = vunpack.c.l.b16 %v779
        %v818 = vunpack.c.l.b16 %v780
        %v819 = vunpack.c.l.b16 %v781
        %v820 = vunpack.c.l.b16 %v782
        %v821 = vunpack.c.l.b16 %v783
        %v822 = vunpack.c.l.b16 %v784
        %v823 = vunpack.c.l.b16 %v785
        %v824 = vunpack.c.l.b16 %v786
        %v825 = vunpack.c.l.b16 %v787
        %v826 = vpack.c.b16 %v811, %v810
        %v827 = vpack.c.b16 %v813, %v812
        %v828 = vpack.c.b16 %v815, %v814
        %v829 = vpack.c.b16 %v817, %v816
        %v830 = vpack.c.b16 %v819, %v818
        %v831 = vpack.c.b16 %v821, %v820
        %v832 = vpack.c.b16 %v823, %v822
        %v833 = vpack.c.b16 %v825, %v824
        %842 = vmatprep.subr.bf16.mxu0 0
        %843 = vmatpush1.bf16.msra.mxu0 %v826
        %844 = vmatprep.subr.bf16.mxu0 0
        %845 = vmatpush1.bf16.msra.mxu0 %v827
        %846 = vmatprep.subr.bf16.mxu0 0
        %847 = vmatpush1.bf16.msra.mxu0 %v828
        %848 = vmatprep.subr.bf16.mxu0 0
        %849 = vmatpush1.bf16.msra.mxu0 %v829
        %850 = vmatprep.subr.bf16.mxu0 0
        %851 = vmatpush1.bf16.msra.mxu0 %v830
        %852 = vmatprep.subr.bf16.mxu0 0
        %853 = vmatpush1.bf16.msra.mxu0 %v831
        %854 = vmatprep.subr.bf16.mxu0 0
        %855 = vmatpush1.bf16.msra.mxu0 %v832
        %856 = vmatprep.subr.bf16.mxu0 0
        %857 = vmatpush1.bf16.msra.mxu0 %v833
        %858 = vmatprep.subr.bf16.mxu0 0
        %859 = vmatpush1.bf16.msra.mxu0 0
        %860 = vmatprep.subr.bf16.mxu0 0
        %861 = vmatpush1.bf16.msra.mxu0 0
        %862 = vmatprep.subr.bf16.mxu0 0
        %863 = vmatpush1.bf16.msra.mxu0 0
        %864 = vmatprep.subr.bf16.mxu0 0
        %865 = vmatpush1.bf16.msra.mxu0 0
        %866 = vmatprep.subr.bf16.mxu0 0
        %867 = vmatpush1.bf16.msra.mxu0 0
        %868 = vmatprep.subr.bf16.mxu0 0
        %869 = vmatpush1.bf16.msra.mxu0 0
        %870 = vmatprep.subr.bf16.mxu0 0
        %871 = vmatpush1.bf16.msra.mxu0 0
        %872 = vmatprep.subr.bf16.mxu0 0
        %873 = vmatpush1.bf16.msra.mxu0 0
        %874 = vmatprep.mubr.bf16.mxu0 0
        %875 = vmatmul.mubr.bf16.gmra.mrb[0].mxu0 %v792
        %v876 = vpop.f32.mrb[0].mxu0
        %v877 = vadd.f32 0.0, %v876
        %v878 = vpop.f32.mrb[0].mxu0
        %v879 = vpop.f32.mrb[0].mxu0
        %v880 = vadd.f32 0.0, %v879
        %v881 = vpop.f32.mrb[0].mxu0
        %882 = vdwg.mxu0
        %v883 = vadd.f32 %v769, %v877
        %v884 = vadd.f32 %v770, %v880
        %s885 = sadd.s32 %s174, 2
        %s886 = smul.u32 %s885, 3
        %s887 = smul.addr %s886, 4
        %s888 = scalar_lea.vmem %s165, %s887
        %v889 = vld [vmem:[%s888] sm:$0xf]
        %v890 = vld [vmem:[%s888 + $0x4] sm:$0xf]
        %v891 = vld [vmem:[%s888 + $0x8] sm:$0x1]
        %v892 = vunpack.c.l.bf16 %v889
        %v893 = vunpack.c.l.bf16 %v890
        %v894 = vunpack.c.l.bf16 %v891
        %v895 = vpack.c.bf16 %v893, %v892
        %s896 = scalar_lea.vmem %s1, 384
        %v897 = vld [vmem:[%s896] sm:$0xf]
        %v898 = vld [vmem:[%s896 + $0x4] sm:$0xf]
        %v899 = vld [vmem:[%s896 + $0x8] sm:$0xf]
        %v900 = vld [vmem:[%s896 + $0xc] sm:$0xf]
        %v901 = vld [vmem:[%s896 + $0x10] sm:$0xf]
        %v902 = vld [vmem:[%s896 + $0x14] sm:$0xf]
        %v903 = vld [vmem:[%s896 + $0x18] sm:$0xf]
        %v904 = vld [vmem:[%s896 + $0x1c] sm:$0xf]
        %v905 = vld [vmem:[%s896 + $0x20] sm:$0xf]
        %v906 = vld [vmem:[%s896 + $0x24] sm:$0xf]
        %v907 = vld [vmem:[%s896 + $0x28] sm:$0xf]
        %v908 = vld [vmem:[%s896 + $0x2c] sm:$0xf]
        %v909 = vld [vmem:[%s896 + $0x30] sm:$0xf]
        %v910 = vld [vmem:[%s896 + $0x34] sm:$0xf]
        %v911 = vld [vmem:[%s896 + $0x38] sm:$0xf]
        %v912 = vld [vmem:[%s896 + $0x3c] sm:$0xf]
        %v929 = vunpack.c.l.b16 %v897
        %v930 = vunpack.c.l.b16 %v898
        %v931 = vunpack.c.l.b16 %v899
        %v932 = vunpack.c.l.b16 %v900
        %v933 = vunpack.c.l.b16 %v901
        %v934 = vunpack.c.l.b16 %v902
        %v935 = vunpack.c.l.b16 %v903
        %v936 = vunpack.c.l.b16 %v904
        %v937 = vunpack.c.l.b16 %v905
        %v938 = vunpack.c.l.b16 %v906
        %v939 = vunpack.c.l.b16 %v907
        %v940 = vunpack.c.l.b16 %v908
        %v941 = vunpack.c.l.b16 %v909
        %v942 = vunpack.c.l.b16 %v910
        %v943 = vunpack.c.l.b16 %v911
        %v944 = vunpack.c.l.b16 %v912
        %v945 = vpack.c.b16 %v930, %v929
        %v946 = vpack.c.b16 %v932, %v931
        %v947 = vpack.c.b16 %v934, %v933
        %v948 = vpack.c.b16 %v936, %v935
        %v949 = vpack.c.b16 %v938, %v937
        %v950 = vpack.c.b16 %v940, %v939
        %v951 = vpack.c.b16 %v942, %v941
        %v952 = vpack.c.b16 %v944, %v943
        %961 = vmatprep.subr.bf16.mxu0 0
        %962 = vmatpush1.bf16.msra.mxu0 %v945
        %963 = vmatprep.subr.bf16.mxu0 0
        %964 = vmatpush1.bf16.msra.mxu0 %v946
        %965 = vmatprep.subr.bf16.mxu0 0
        %966 = vmatpush1.bf16.msra.mxu0 %v947
        %967 = vmatprep.subr.bf16.mxu0 0
        %968 = vmatpush1.bf16.msra.mxu0 %v948
        %969 = vmatprep.subr.bf16.mxu0 0
        %970 = vmatpush1.bf16.msra.mxu0 %v949
        %971 = vmatprep.subr.bf16.mxu0 0
        %972 = vmatpush1.bf16.msra.mxu0 %v950
        %973 = vmatprep.subr.bf16.mxu0 0
        %974 = vmatpush1.bf16.msra.mxu0 %v951
        %975 = vmatprep.subr.bf16.mxu0 0
        %976 = vmatpush1.bf16.msra.mxu0 %v952
        %977 = vmatprep.subr.bf16.mxu0 0
        %978 = vmatpush1.bf16.msra.mxu0 0
        %979 = vmatprep.subr.bf16.mxu0 0
        %980 = vmatpush1.bf16.msra.mxu0 0
        %981 = vmatprep.subr.bf16.mxu0 0
        %982 = vmatpush1.bf16.msra.mxu0 0
        %983 = vmatprep.subr.bf16.mxu0 0
        %984 = vmatpush1.bf16.msra.mxu0 0
        %985 = vmatprep.subr.bf16.mxu0 0
        %986 = vmatpush1.bf16.msra.mxu0 0
        %987 = vmatprep.subr.bf16.mxu0 0
        %988 = vmatpush1.bf16.msra.mxu0 0
        %989 = vmatprep.subr.bf16.mxu0 0
        %990 = vmatpush1.bf16.msra.mxu0 0
        %991 = vmatprep.subr.bf16.mxu0 0
        %992 = vmatpush1.bf16.msra.mxu0 0
        %993 = vmatprep.mubr.bf16.mxu0 0
        %994 = vmatmul.mubr.bf16.gmra.mrb[0].mxu0 %v895
        %v995 = vpop.f32.mrb[0].mxu0
        %v996 = vadd.f32 0.0, %v995
        %v997 = vpop.f32.mrb[0].mxu0
        %v998 = vpop.f32.mrb[0].mxu0
        %v999 = vadd.f32 0.0, %v998
        %v1000 = vpop.f32.mrb[0].mxu0
        %1001 = vdwg.mxu0
        %v1002 = vadd.f32 %v883, %v996
        %v1003 = vadd.f32 %v884, %v999
        %v1004 = vpack.c.bf16 %v894, %v894
        %s1005 = scalar_lea.vmem %s1, 448
        %v1006 = vld [vmem:[%s1005] sm:$0xf]
        %v1007 = vld [vmem:[%s1005 + $0x4] sm:$0xf]
        %v1008 = vld [vmem:[%s1005 + $0x8] sm:$0xf]
        %v1009 = vld [vmem:[%s1005 + $0xc] sm:$0xf]
        %v1010 = vld [vmem:[%s1005 + $0x10] sm:$0xf]
        %v1011 = vld [vmem:[%s1005 + $0x14] sm:$0xf]
        %v1012 = vld [vmem:[%s1005 + $0x18] sm:$0xf]
        %v1013 = vld [vmem:[%s1005 + $0x1c] sm:$0xf]
        %v1014 = vld [vmem:[%s1005 + $0x20] sm:$0xf]
        %v1015 = vld [vmem:[%s1005 + $0x24] sm:$0xf]
        %v1016 = vld [vmem:[%s1005 + $0x28] sm:$0xf]
        %v1017 = vld [vmem:[%s1005 + $0x2c] sm:$0xf]
        %v1018 = vld [vmem:[%s1005 + $0x30] sm:$0xf]
        %v1019 = vld [vmem:[%s1005 + $0x34] sm:$0xf]
        %v1020 = vld [vmem:[%s1005 + $0x38] sm:$0xf]
        %v1021 = vld [vmem:[%s1005 + $0x3c] sm:$0xf]
        %v1023 = vshrl.u32 %v895, 16
        %v1025 = vshll.u32 %v895, 16
        %v1027 = vrot.slane %v1025, 1
        %v1028 = vor.u32 %v1023, %v1027
        %v1030 = vshll.u32 %v1004, 16
        %v1032 = vrot.slane %v1030, 1
        %v1033 = vsel %vm223, %v1028, %v1032
        %v1051 = vunpack.c.l.b16 %v1006
        %v1052 = vunpack.c.l.b16 %v1007
        %v1053 = vunpack.c.l.b16 %v1008
        %v1054 = vunpack.c.l.b16 %v1009
        %v1055 = vunpack.c.l.b16 %v1010
        %v1056 = vunpack.c.l.b16 %v1011
        %v1057 = vunpack.c.l.b16 %v1012
        %v1058 = vunpack.c.l.b16 %v1013
        %v1059 = vunpack.c.l.b16 %v1014
        %v1060 = vunpack.c.l.b16 %v1015
        %v1061 = vunpack.c.l.b16 %v1016
        %v1062 = vunpack.c.l.b16 %v1017
        %v1063 = vunpack.c.l.b16 %v1018
        %v1064 = vunpack.c.l.b16 %v1019
        %v1065 = vunpack.c.l.b16 %v1020
        %v1066 = vunpack.c.l.b16 %v1021
        %v1067 = vpack.c.b16 %v1052, %v1051
        %v1068 = vpack.c.b16 %v1054, %v1053
        %v1069 = vpack.c.b16 %v1056, %v1055
        %v1070 = vpack.c.b16 %v1058, %v1057
        %v1071 = vpack.c.b16 %v1060, %v1059
        %v1072 = vpack.c.b16 %v1062, %v1061
        %v1073 = vpack.c.b16 %v1064, %v1063
        %v1074 = vpack.c.b16 %v1066, %v1065
        %1083 = vmatprep.subr.bf16.mxu0 0
        %1084 = vmatpush1.bf16.msra.mxu0 %v1067
        %1085 = vmatprep.subr.bf16.mxu0 0
        %1086 = vmatpush1.bf16.msra.mxu0 %v1068
        %1087 = vmatprep.subr.bf16.mxu0 0
        %1088 = vmatpush1.bf16.msra.mxu0 %v1069
        %1089 = vmatprep.subr.bf16.mxu0 0
        %1090 = vmatpush1.bf16.msra.mxu0 %v1070
        %1091 = vmatprep.subr.bf16.mxu0 0
        %1092 = vmatpush1.bf16.msra.mxu0 %v1071
        %1093 = vmatprep.subr.bf16.mxu0 0
        %1094 = vmatpush1.bf16.msra.mxu0 %v1072
        %1095 = vmatprep.subr.bf16.mxu0 0
        %1096 = vmatpush1.bf16.msra.mxu0 %v1073
        %1097 = vmatprep.subr.bf16.mxu0 0
        %1098 = vmatpush1.bf16.msra.mxu0 %v1074
        %1099 = vmatprep.subr.bf16.mxu0 0
        %1100 = vmatpush1.bf16.msra.mxu0 0
        %1101 = vmatprep.subr.bf16.mxu0 0
        %1102 = vmatpush1.bf16.msra.mxu0 0
        %1103 = vmatprep.subr.bf16.mxu0 0
        %1104 = vmatpush1.bf16.msra.mxu0 0
        %1105 = vmatprep.subr.bf16.mxu0 0
        %1106 = vmatpush1.bf16.msra.mxu0 0
        %1107 = vmatprep.subr.bf16.mxu0 0
        %1108 = vmatpush1.bf16.msra.mxu0 0
        %1109 = vmatprep.subr.bf16.mxu0 0
        %1110 = vmatpush1.bf16.msra.mxu0 0
        %1111 = vmatprep.subr.bf16.mxu0 0
        %1112 = vmatpush1.bf16.msra.mxu0 0
        %1113 = vmatprep.subr.bf16.mxu0 0
        %1114 = vmatpush1.bf16.msra.mxu0 0
        %1115 = vmatprep.mubr.bf16.mxu0 0
        %1116 = vmatmul.mubr.bf16.gmra.mrb[0].mxu0 %v1033
        %v1117 = vpop.f32.mrb[0].mxu0
        %v1118 = vadd.f32 0.0, %v1117
        %v1119 = vpop.f32.mrb[0].mxu0
        %v1120 = vpop.f32.mrb[0].mxu0
        %v1121 = vadd.f32 0.0, %v1120
        %v1122 = vpop.f32.mrb[0].mxu0
        %1123 = vdwg.mxu0
        %v1124 = vadd.f32 %v1002, %v1118
        %v1125 = vadd.f32 %v1003, %v1121
        %s1126 = scalar_lea.vmem %s1, 512
        %v1127 = vld [vmem:[%s1126] sm:$0xf]
        %v1128 = vld [vmem:[%s1126 + $0x4] sm:$0xf]
        %v1129 = vld [vmem:[%s1126 + $0x8] sm:$0xf]
        %v1130 = vld [vmem:[%s1126 + $0xc] sm:$0xf]
        %v1131 = vld [vmem:[%s1126 + $0x10] sm:$0xf]
        %v1132 = vld [vmem:[%s1126 + $0x14] sm:$0xf]
        %v1133 = vld [vmem:[%s1126 + $0x18] sm:$0xf]
        %v1134 = vld [vmem:[%s1126 + $0x1c] sm:$0xf]
        %v1135 = vld [vmem:[%s1126 + $0x20] sm:$0xf]
        %v1136 = vld [vmem:[%s1126 + $0x24] sm:$0xf]
        %v1137 = vld [vmem:[%s1126 + $0x28] sm:$0xf]
        %v1138 = vld [vmem:[%s1126 + $0x2c] sm:$0xf]
        %v1139 = vld [vmem:[%s1126 + $0x30] sm:$0xf]
        %v1140 = vld [vmem:[%s1126 + $0x34] sm:$0xf]
        %v1141 = vld [vmem:[%s1126 + $0x38] sm:$0xf]
        %v1142 = vld [vmem:[%s1126 + $0x3c] sm:$0xf]
        %v1145 = vrot.slane %v895, 1
        %v1146 = vrot.slane %v1004, 1
        %v1147 = vsel %vm434, %v1145, %v1146
        %v1165 = vunpack.c.l.b16 %v1127
        %v1166 = vunpack.c.l.b16 %v1128
        %v1167 = vunpack.c.l.b16 %v1129
        %v1168 = vunpack.c.l.b16 %v1130
        %v1169 = vunpack.c.l.b16 %v1131
        %v1170 = vunpack.c.l.b16 %v1132
        %v1171 = vunpack.c.l.b16 %v1133
        %v1172 = vunpack.c.l.b16 %v1134
        %v1173 = vunpack.c.l.b16 %v1135
        %v1174 = vunpack.c.l.b16 %v1136
        %v1175 = vunpack.c.l.b16 %v1137
        %v1176 = vunpack.c.l.b16 %v1138
        %v1177 = vunpack.c.l.b16 %v1139
        %v1178 = vunpack.c.l.b16 %v1140
        %v1179 = vunpack.c.l.b16 %v1141
        %v1180 = vunpack.c.l.b16 %v1142
        %v1181 = vpack.c.b16 %v1166, %v1165
        %v1182 = vpack.c.b16 %v1168, %v1167
        %v1183 = vpack.c.b16 %v1170, %v1169
        %v1184 = vpack.c.b16 %v1172, %v1171
        %v1185 = vpack.c.b16 %v1174, %v1173
        %v1186 = vpack.c.b16 %v1176, %v1175
        %v1187 = vpack.c.b16 %v1178, %v1177
        %v1188 = vpack.c.b16 %v1180, %v1179
        %1197 = vmatprep.subr.bf16.mxu0 0
        %1198 = vmatpush1.bf16.msra.mxu0 %v1181
        %1199 = vmatprep.subr.bf16.mxu0 0
        %1200 = vmatpush1.bf16.msra.mxu0 %v1182
        %1201 = vmatprep.subr.bf16.mxu0 0
        %1202 = vmatpush1.bf16.msra.mxu0 %v1183
        %1203 = vmatprep.subr.bf16.mxu0 0
        %1204 = vmatpush1.bf16.msra.mxu0 %v1184
        %1205 = vmatprep.subr.bf16.mxu0 0
        %1206 = vmatpush1.bf16.msra.mxu0 %v1185
        %1207 = vmatprep.subr.bf16.mxu0 0
        %1208 = vmatpush1.bf16.msra.mxu0 %v1186
        %1209 = vmatprep.subr.bf16.mxu0 0
        %1210 = vmatpush1.bf16.msra.mxu0 %v1187
        %1211 = vmatprep.subr.bf16.mxu0 0
        %1212 = vmatpush1.bf16.msra.mxu0 %v1188
        %1213 = vmatprep.subr.bf16.mxu0 0
        %1214 = vmatpush1.bf16.msra.mxu0 0
        %1215 = vmatprep.subr.bf16.mxu0 0
        %1216 = vmatpush1.bf16.msra.mxu0 0
        %1217 = vmatprep.subr.bf16.mxu0 0
        %1218 = vmatpush1.bf16.msra.mxu0 0
        %1219 = vmatprep.subr.bf16.mxu0 0
        %1220 = vmatpush1.bf16.msra.mxu0 0
        %1221 = vmatprep.subr.bf16.mxu0 0
        %1222 = vmatpush1.bf16.msra.mxu0 0
        %1223 = vmatprep.subr.bf16.mxu0 0
        %1224 = vmatpush1.bf16.msra.mxu0 0
        %1225 = vmatprep.subr.bf16.mxu0 0
        %1226 = vmatpush1.bf16.msra.mxu0 0
        %1227 = vmatprep.subr.bf16.mxu0 0
        %1228 = vmatpush1.bf16.msra.mxu0 0
        %1229 = vmatprep.mubr.bf16.mxu0 0
        %1230 = vmatmul.mubr.bf16.gmra.mrb[0].mxu0 %v1147
        %v1231 = vpop.f32.mrb[0].mxu0
        %v1232 = vadd.f32 0.0, %v1231
        %v1233 = vpop.f32.mrb[0].mxu0
        %v1234 = vpop.f32.mrb[0].mxu0
        %v1235 = vadd.f32 0.0, %v1234
        %v1236 = vpop.f32.mrb[0].mxu0
        %1237 = vdwg.mxu0
        %v1238 = vadd.f32 %v1124, %v1232
        %v1239 = vadd.f32 %v1125, %v1235
        %v1241 = vlaneseq
        %v1242 = vshrl.u32 %v1241, 7
        %v1243 = vsub.s32 0, %v1242
        %v1244 = vrot.slane %v172, %v1243
        %v1246 = vadd.f32 %v1238, %v1244
        %v1247 = vadd.f32 %v1239, %v1244
        %v1248 = vmax.f32 %v1246, 0.0
        %v1249 = vmax.f32 %v1247, 0.0
        %v1250 = vpack.c.bf16 %v1249, %v1248
        %v1252 = vunpack.c.l.b16 %v1250
        %v1253 = vunpack.c.h.b16 %v1250
        %v1254 = vpack.c.b16 %v1252, %v1252
        %v1255 = vpack.c.b16 %v1253, %v1253
        %s1258 = smul.u32 %s174, 2
        %s1259 = smul.addr %s1258, 4
        %s1260 = scalar_lea.vmem %s170, %s1259
        %1261 = vst [vmem:[%s1260] sm:$0xf] %v1254
        %1262 = vst [vmem:[%s1260 + $0x4] sm:$0xf] %v1255
      $region37: #{net_forward.12} parent=31 // loop_footer
        %s178 = sadd.s32 1, %s174
      $region38: #{net_forward.12} parent=31 // loop_footer_branch
        %173 = sbr.rel target = $region34
      $region39: #{net_forward.12} parent=31 // loop_exit
        _
      %p1263 = scmp.lt.s32.totalorder %s14, 1
      %s1264 = scalar_select %p1263, %s14, 1
      %s1265 = smul.addr %s1264, 32
      %s1266 = smul.addr %s1265, 4
      %s1267 = scalar_lea.vmem %s3, %s1266
      // Predicated region
      $region40: #{net_forward.12} parent=31 // pred_check
        %p1268 = pneg %p100
      $region41: #{net_forward.12} parent=31 // pred_check_branch
        %1270 = sbr.rel (%p1268) target = $region43
      $region42: #{net_forward.12} parent=31 // pred_region
        _
      $region43: #{net_forward.12} parent=31 // pred_fallthru
        _
    $region32: #{net_forward.12} parent=5 // pred_fallthru
      _
    %p1271 = scmp.le.s32.totalorder 2, %s9
    // Predicated region
    $region44: #{net_forward.12} parent=5 // pred_check
      %p1272 = pneg %p1271
    $region45: #{net_forward.12} parent=5 // pred_check_branch
      %1274 = sbr.rel (%p1272) target = $region47
    $region46: #{net_forward.12} parent=5 // pred_region
      %s1275 = ssub.s32 %s9, 2
      // Predicated region
      $region48: #{net_forward.12} parent=46 // pred_check
        %p1276 = pneg %p106
      $region49: #{net_forward.12} parent=46 // pred_check_branch
        %1278 = sbr.rel (%p1276) target = $region51
      $region50: #{net_forward.12} parent=46 // pred_region
        %p1279 = scmp.lt.s32.totalorder %s15, 1
        %s1280 = scalar_select %p1279, %s15, 1
        %s1281 = smul.addr %s1280, 32
        %s1282 = smul.addr %s1281, 4
        %s1283 = scalar_lea.vmem %s3, %s1282
      $region51: #{net_forward.12} parent=46 // pred_fallthru
        _
    $region47: #{net_forward.12} parent=5 // pred_fallthru
      _
  $region6: #{net_forward.12} parent=0 // loop_footer
    %s13 = sadd.s32 1, %s9
  $region7: #{net_forward.12} parent=0 // loop_footer_branch
    %8 = sbr.rel target = $region3
  $region8: #{net_forward.12} parent=0 // loop_exit
    _

// kernel: net_forward.14
$region0: #{net_forward.14}
  #allocation0 [shape = 'u32[]', space=smem, size = 0x4, offset = 0x4, fixed_abs, tag = 'smem constant byte address 0x4 - core index']
  #allocation1 [shape = 'u32[144,128]{1,0:T(1,128)}', space=vmem, size = 0x12000, scoped, tag = 'internal scratch']
  %s0 = inlined_call_operand.vmem [shape: bf16[2,16,16,128], index: 0, kind: input, shape index: {}]
  %s1 = inlined_call_operand.vmem [shape: bf16[9,128,128], index: 1, kind: input, shape index: {}]
  %s2 = inlined_call_operand.vmem [shape: f32[1,128], index: 2, kind: input, shape index: {}]
  %s3 = inlined_call_operand.vmem [shape: bf16[2,14,14,128], index: 3, kind: output, shape index: {}]
  %s4 = sld [smem:[#allocation0]]
  $region52: #{net_forward.14} parent=0
    _
  %s6 = ssub.s32 1, %s4
  %s7 = scalar_select 0, %s6, %s4
  loop: start=0, step=1, limit=4
  $region2: #{net_forward.14} parent=0 // loop_pre_header
    _
  $region3: #{net_forward.14} parent=0 // loop_header
    %s9 = sphi 0, %s13
    %p10 = scmp.ge.s32.totalorder %s9, 4
    %s19 = sphi 0, %s21
    %s22 = sphi 0, %s19
    %s23 = sphi 0, %s22
    %s39 = sphi 0, %s23
    %s43 = sphi 0, %s43
    %s45 = sphi 0, %s43
    %s46 = sphi 0, %s45
    %s60 = sphi 0, %s46
    %s64 = sphi 0, %s64
    %s66 = sphi 0, %s64
    %s67 = sphi 0, %s66
    %s81 = sphi 0, %s67
    %s87 = sphi 0, %s89
    %s90 = sphi 0, %s87
    %s91 = sphi 0, %s90
    %s107 = sphi 0, %s91
  $region4: #{net_forward.14} parent=0 // loop_header_branch
    %12 = sbr.rel (%p10) target = $region8
  $region5: #{net_forward.14} parent=0 // loop_body
    %s14 = ssub.s32 %s9, 1
    %s15 = ssub.s32 %s9, 2
    %s16 = sadd.s32 %s9, 1
    %s17 = ssub.s32 %s9, %s16
    %p18 = scmp.eq.s32.totalorder %s17, 0
    %s20 = sadd.s32 %s19, 1
    %s21 = scalar_select %p18, %s19, %s20
    %p24 = pneg %p18
    %p25 = scmp.eq.s32.totalorder %s9, 1
    %p26 = por %p24, %p25
    %p27 = scmp.ne.s32.totalorder %s19, %s22
    %p28 = scmp.eq.s32.totalorder %s9, 0
    %p29 = por %p27, %p28
    %p30 = scmp.ne.s32.totalorder %s19, %s22
    %p31 = scmp.eq.s32.totalorder %s14, 1
    %p32 = por %p30, %p31
    %p33 = scmp.ne.s32.totalorder %s22, %s23
    %p34 = scmp.eq.s32.totalorder %s14, 0
    %p35 = por %p33, %p34
    %p36 = scmp.ne.s32.totalorder %s22, %s23
    %p37 = scmp.eq.s32.totalorder %s15, 1
    %p38 = por %p36, %p37
    %p40 = scmp.ne.s32.totalorder %s23, %s39
    %p41 = scmp.eq.s32.totalorder %s15, 0
    %p42 = por %p40, %p41
    %s44 = sadd.s32 %s43, 1
    %p47 = scmp.eq.s32.totalorder %s9, 1
    %p48 = scmp.ne.s32.totalorder %s43, %s45
    %p49 = scmp.eq.s32.totalorder %s9, 0
    %p50 = por %p48, %p49
    %p51 = scmp.ne.s32.totalorder %s43, %s45
    %p52 = scmp.eq.s32.totalorder %s14, 1
    %p53 = por %p51, %p52
    %p54 = scmp.ne.s32.totalorder %s45, %s46
    %p55 = scmp.eq.s32.totalorder %s14, 0
    %p56 = por %p54, %p55
    %p57 = scmp.ne.s32.totalorder %s45, %s46
    %p58 = scmp.eq.s32.totalorder %s15, 1
    %p59 = por %p57, %p58
    %p61 = scmp.ne.s32.totalorder %s46, %s60
    %p62 = scmp.eq.s32.totalorder %s15, 0
    %p63 = por %p61, %p62
    %s65 = sadd.s32 %s64, 1
    %p68 = scmp.eq.s32.totalorder %s9, 1
    %p69 = scmp.ne.s32.totalorder %s64, %s66
    %p70 = scmp.eq.s32.totalorder %s9, 0
    %p71 = por %p69, %p70
    %p72 = scmp.ne.s32.totalorder %s64, %s66
    %p73 = scmp.eq.s32.totalorder %s14, 1
    %p74 = por %p72, %p73
    %p75 = scmp.ne.s32.totalorder %s66, %s67
    %p76 = scmp.eq.s32.totalorder %s14, 0
    %p77 = por %p75, %p76
    %p78 = scmp.ne.s32.totalorder %s66, %s67
    %p79 = scmp.eq.s32.totalorder %s15, 1
    %p80 = por %p78, %p79
    %p82 = scmp.ne.s32.totalorder %s67, %s81
    %p83 = scmp.eq.s32.totalorder %s15, 0
    %p84 = por %p82, %p83
    %s85 = ssub.s32 %s9, %s16
    %p86 = scmp.eq.s32.totalorder %s85, 0
    %s88 = sadd.s32 %s87, 1
    %s89 = scalar_select %p86, %s87, %s88
    %p92 = pneg %p86
    %p93 = scmp.eq.s32.totalorder %s9, 1
    %p94 = por %p92, %p93
    %p95 = scmp.ne.s32.totalorder %s87, %s90
    %p96 = scmp.eq.s32.totalorder %s9, 0
    %p97 = por %p95, %p96
    %p98 = scmp.ne.s32.totalorder %s87, %s90
    %p99 = scmp.eq.s32.totalorder %s14, 1
    %p100 = por %p98, %p99
    %p101 = scmp.ne.s32.totalorder %s90, %s91
    %p102 = scmp.eq.s32.totalorder %s14, 0
    %p103 = por %p101, %p102
    %p104 = scmp.ne.s32.totalorder %s90, %s91
    %p105 = scmp.eq.s32.totalorder %s15, 1
    %p106 = por %p104, %p105
    %p108 = scmp.ne.s32.totalorder %s91, %s107
    %p109 = scmp.eq.s32.totalorder %s15, 0
    %p110 = por %p108, %p109
    %p111 = scmp.le.s32.totalorder 1, %s9
    %p112 = scmp.lt.s32.totalorder %s9, 3
    %p113 = pnand %p111, %p112
    %p114 = pneg %p113
    // Predicated region
    $region9: #{net_forward.14} parent=5 // pred_check
      _
    $region10: #{net_forward.14} parent=5 // pred_check_branch
      %116 = sbr.rel (%p113) target = $region12
    $region11: #{net_forward.14} parent=5 // pred_region
      %s117 = ssub.s32 %s9, 1
      // Predicated region
      $region13: #{net_forward.14} parent=11 // pred_check
        %p118 = pneg %p56
      $region14: #{net_forward.14} parent=11 // pred_check_branch
        %120 = sbr.rel (%p118) target = $region16
      $region15: #{net_forward.14} parent=11 // pred_region
        _
      $region16: #{net_forward.14} parent=11 // pred_fallthru
        _
      // Predicated region
      $region17: #{net_forward.14} parent=11 // pred_check
        %p121 = pneg %p77
      $region18: #{net_forward.14} parent=11 // pred_check_branch
        %123 = sbr.rel (%p121) target = $region20
      $region19: #{net_forward.14} parent=11 // pred_region
        _
      $region20: #{net_forward.14} parent=11 // pred_fallthru
        _
    $region12: #{net_forward.14} parent=5 // pred_fallthru
      _
    %p124 = scmp.lt.s32.totalorder %s9, 2
    // Predicated region
    $region21: #{net_forward.14} parent=5 // pred_check
      %p125 = pneg %p124
    $region22: #{net_forward.14} parent=5 // pred_check_branch
      %127 = sbr.rel (%p125) target = $region24
    $region23: #{net_forward.14} parent=5 // pred_region
      // Predicated region
      $region25: #{net_forward.14} parent=23 // pred_check
        %p128 = pneg %p29
      $region26: #{net_forward.14} parent=23 // pred_check_branch
        %130 = sbr.rel (%p128) target = $region28
      $region27: #{net_forward.14} parent=23 // pred_region
        %p131 = scmp.lt.s32.totalorder %s9, 1
        %s132 = scalar_select %p131, %s9, 1
        %s133 = smul.addr %s132, 32
        %s134 = smul.addr %s133, 4
        %s135 = scalar_lea.vmem %s0, %s134
      $region28: #{net_forward.14} parent=23 // pred_fallthru
        _
    $region24: #{net_forward.14} parent=5 // pred_fallthru
      _
    %p136 = scmp.le.s32.totalorder 1, %s9
    %p137 = scmp.lt.s32.totalorder %s9, 3
    %p138 = pnand %p136, %p137
    %p139 = pneg %p138
    // Predicated region
    $region29: #{net_forward.14} parent=5 // pred_check
      _
    $region30: #{net_forward.14} parent=5 // pred_check_branch
      %141 = sbr.rel (%p138) target = $region32
    $region31: #{net_forward.14} parent=5 // pred_region
      %s142 = ssub.s32 %s9, 1
      %p143 = scmp.lt.s32.totalorder %s14, 1
      %s144 = scalar_select %p143, %s14, 1
      %s145 = smul.addr %s144, 32
      %s146 = smul.addr %s145, 4
      %s147 = scalar_lea.vmem %s0, %s146
      %p148 = pneg %p35
      %p149 = pneg %p32
      %p150 = pneg %p56
      %p151 = pneg %p53
      %p152 = pneg %p77
      %p153 = pneg %p74
      %p154 = pneg %p103
      %p155 = pneg %p100
      %p156 = scmp.lt.s32.totalorder %s14, 1
      %s157 = scalar_select %p156, %s14, 1
      %s158 = smul.addr %s157, 28
      %s159 = smul.addr %s158, 4
      %s160 = scalar_lea.vmem %s3, %s159
      %p161 = scmp.lt.s32.totalorder %s14, 1
      %s162 = scalar_select %p161, %s14, 1
      %s163 = smul.addr %s162, 32
      %s164 = smul.addr %s163, 4
      %s165 = scalar_lea.vmem %s0, %s164
      %p166 = scmp.lt.s32.totalorder %s14, 1
      %s167 = scalar_select %p166, %s14, 1
      %s168 = smul.addr %s167, 28
      %s169 = smul.addr %s168, 4
      %s170 = scalar_lea.vmem %s3, %s169
      %v172 = vld [vmem:[%s2] sm:$0x1]
      loop: start=0, step=1, limit=14
      $region33: #{net_forward.14} parent=31 // loop_pre_header
        _
      $region34: #{net_forward.14} parent=31 // loop_header
        %s174 = sphi 0, %s178
        %p175 = scmp.ge.s32.totalorder %s174, 14
      $region35: #{net_forward.14} parent=31 // loop_header_branch
        %177 = sbr.rel (%p175) target = $region39
      $region36: #{net_forward.14} parent=31 // loop_body
        %s179 = smul.u32 %s174, 2
        %s180 = smul.addr %s179, 4
        %s181 = scalar_lea.vmem %s165, %s180
        %v182 = vld [vmem:[%s181] sm:$0xf]
        %v183 = vld [vmem:[%s181 + $0x4] sm:$0xf]
        %v184 = vunpack.c.l.bf16 %v182
        %v185 = vunpack.c.l.bf16 %v183
        %v186 = vpack.c.bf16 %v185, %v184
        %v187 = vld [vmem:[%s1] sm:$0xf]
        %v188 = vld [vmem:[%s1 + $0x4] sm:$0xf]
        %v189 = vld [vmem:[%s1 + $0x8] sm:$0xf]
        %v190 = vld [vmem:[%s1 + $0xc] sm:$0xf]
        %v191 = vld [vmem:[%s1 + $0x10] sm:$0xf]
        %v192 = vld [vmem:[%s1 + $0x14] sm:$0xf]
        %v193 = vld [vmem:[%s1 + $0x18] sm:$0xf]
        %v194 = vld [vmem:[%s1 + $0x1c] sm:$0xf]
        %v195 = vld [vmem:[%s1 + $0x20] sm:$0xf]
        %v196 = vld [vmem:[%s1 + $0x24] sm:$0xf]
        %v197 = vld [vmem:[%s1 + $0x28] sm:$0xf]
        %v198 = vld [vmem:[%s1 + $0x2c] sm:$0xf]
        %v199 = vld [vmem:[%s1 + $0x30] sm:$0xf]
        %v200 = vld [vmem:[%s1 + $0x34] sm:$0xf]
        %v201 = vld [vmem:[%s1 + $0x38] sm:$0xf]
        %v202 = vld [vmem:[%s1 + $0x3c] sm:$0xf]
        %s203 = scalar_lea.vmem %s1, 64
        %v204 = vld [vmem:[%s203] sm:$0xf]
        %v205 = vld [vmem:[%s203 + $0x4] sm:$0xf]
        %v206 = vld [vmem:[%s203 + $0x8] sm:$0xf]
        %v207 = vld [vmem:[%s203 + $0xc] sm:$0xf]
        %v208 = vld [vmem:[%s203 + $0x10] sm:$0xf]
        %v209 = vld [vmem:[%s203 + $0x14] sm:$0xf]
        %v210 = vld [vmem:[%s203 + $0x18] sm:$0xf]
        %v211 = vld [vmem:[%s203 + $0x1c] sm:$0xf]
        %v212 = vld [vmem:[%s203 + $0x20] sm:$0xf]
        %v213 = vld [vmem:[%s203 + $0x24] sm:$0xf]
        %v214 = vld [vmem:[%s203 + $0x28] sm:$0xf]
        %v215 = vld [vmem:[%s203 + $0x2c] sm:$0xf]
        %v216 = vld [vmem:[%s203 + $0x30] sm:$0xf]
        %v217 = vld [vmem:[%s203 + $0x34] sm:$0xf]
        %v218 = vld [vmem:[%s203 + $0x38] sm:$0xf]
        %v219 = vld [vmem:[%s203 + $0x3c] sm:$0xf]
        %v221 = vshrl.u32 %v186, 16
        %v223 = vshll.u32 %v186, 16
        %v225 = vrot.slane %v223, 1
        %v226 = vor.u32 %v221, %v225
        %v244 = vunpack.c.l.b16 %v204
        %v245 = vunpack.c.l.b16 %v205
        %v246 = vunpack.c.l.b16 %v206
        %v247 = vunpack.c.l.b16 %v207
        %v248 = vunpack.c.l.b16 %v208
        %v249 = vunpack.c.l.b16 %v209
        %v250 = vunpack.c.l.b16 %v210
        %v251 = vunpack.c.l.b16 %v211
        %v252 = vunpack.c.l.b16 %v212
        %v253 = vunpack.c.l.b16 %v213
        %v254 = vunpack.c.l.b16 %v214
        %v255 = vunpack.c.l.b16 %v215
        %v256 = vunpack.c.l.b16 %v216
        %v257 = vunpack.c.l.b16 %v217
        %v258 = vunpack.c.l.b16 %v218
        %v259 = vunpack.c.l.b16 %v219
        %v260 = vpack.c.b16 %v245, %v244
        %v261 = vpack.c.b16 %v247, %v246
        %v262 = vpack.c.b16 %v249, %v248
        %v263 = vpack.c.b16 %v251, %v250
        %v264 = vpack.c.b16 %v253, %v252
        %v265 = vpack.c.b16 %v255, %v254
        %v266 = vpack.c.b16 %v257, %v256
        %v267 = vpack.c.b16 %v259, %v258
        %276 = vmatprep.subr.bf16.mxu0 0
        %277 = vmatpush1.bf16.msra.mxu0 %v260
        %278 = vmatprep.subr.bf16.mxu0 0
        %279 = vmatpush1.bf16.msra.mxu0 %v261
        %280 = vmatprep.subr.bf16.mxu0 0
        %281 = vmatpush1.bf16.msra.mxu0 %v262
        %282 = vmatprep.subr.bf16.mxu0 0
        %283 = vmatpush1.bf16.msra.mxu0 %v263
        %284 = vmatprep.subr.bf16.mxu0 0
        %285 = vmatpush1.bf16.msra.mxu0 %v264
        %286 = vmatprep.subr.bf16.mxu0 0
        %287 = vmatpush1.bf16.msra.mxu0 %v265
        %288 = vmatprep.subr.bf16.mxu0 0
        %289 = vmatpush1.bf16.msra.mxu0 %v266
        %290 = vmatprep.subr.bf16.mxu0 0
        %291 = vmatpush1.bf16.msra.mxu0 %v267
        %292 = vmatprep.subr.bf16.mxu0 0
        %293 = vmatpush1.bf16.msra.mxu0 0
        %294 = vmatprep.subr.bf16.mxu0 0
        %295 = vmatpush1.bf16.msra.mxu0 0
        %296 = vmatprep.subr.bf16.mxu0 0
        %297 = vmatpush1.bf16.msra.mxu0 0
        %298 = vmatprep.subr.bf16.mxu0 0
        %299 = vmatpush1.bf16.msra.mxu0 0
        %300 = vmatprep.subr.bf16.mxu0 0
        %301 = vmatpush1.bf16.msra.mxu0 0
        %302 = vmatprep.subr.bf16.mxu0 0
        %303 = vmatpush1.bf16.msra.mxu0 0
        %304 = vmatprep.subr.bf16.mxu0 0
        %305 = vmatpush1.bf16.msra.mxu0 0
        %306 = vmatprep.subr.bf16.mxu0 0
        %307 = vmatpush1.bf16.msra.mxu0 0
        %308 = vmatprep.mubr.bf16.mxu0 0
        %309 = vmatmul.mubr.bf16.gmra.mrb[0].mxu0 %v226
        %v310 = vpop.f32.mrb[0].mxu0
        %v311 = vadd.f32 0.0, %v310
        %v312 = vpop.f32.mrb[0].mxu0
        %v313 = vpop.f32.mrb[0].mxu0
        %v314 = vadd.f32 0.0, %v313
        %v315 = vpop.f32.mrb[0].mxu0
        %316 = vdwg.mxu0
        %v333 = vunpack.c.l.b16 %v187
        %v334 = vunpack.c.l.b16 %v188
        %v335 = vunpack.c.l.b16 %v189
        %v336 = vunpack.c.l.b16 %v190
        %v337 = vunpack.c.l.b16 %v191
        %v338 = vunpack.c.l.b16 %v192
        %v339 = vunpack.c.l.b16 %v193
        %v340 = vunpack.c.l.b16 %v194
        %v341 = vunpack.c.l.b16 %v195
        %v342 = vunpack.c.l.b16 %v196
        %v343 = vunpack.c.l.b16 %v197
        %v344 = vunpack.c.l.b16 %v198
        %v345 = vunpack.c.l.b16 %v199
        %v346 = vunpack.c.l.b16 %v200
        %v347 = vunpack.c.l.b16 %v201
        %v348 = vunpack.c.l.b16 %v202
        %v349 = vpack.c.b16 %v334, %v333
        %v350 = vpack.c.b16 %v336, %v335
        %v351 = vpack.c.b16 %v338, %v337
        %v352 = vpack.c.b16 %v340, %v339
        %v353 = vpack.c.b16 %v342, %v341
        %v354 = vpack.c.b16 %v344, %v343
        %v355 = vpack.c.b16 %v346, %v345
        %v356 = vpack.c.b16 %v348, %v347
        %365 = vmatprep.subr.bf16.mxu0 0
        %366 = vmatpush1.bf16.msra.mxu0 %v349
        %367 = vmatprep.subr.bf16.mxu0 0
        %368 = vmatpush1.bf16.msra.mxu0 %v350
        %369 = vmatprep.subr.bf16.mxu0 0
        %370 = vmatpush1.bf16.msra.mxu0 %v351
        %371 = vmatprep.subr.bf16.mxu0 0
        %372 = vmatpush1.bf16.msra.mxu0 %v352
        %373 = vmatprep.subr.bf16.mxu0 0
        %374 = vmatpush1.bf16.msra.mxu0 %v353
        %375 = vmatprep.subr.bf16.mxu0 0
        %376 = vmatpush1.bf16.msra.mxu0 %v354
        %377 = vmatprep.subr.bf16.mxu0 0
        %378 = vmatpush1.bf16.msra.mxu0 %v355
        %379 = vmatprep.subr.bf16.mxu0 0
        %380 = vmatpush1.bf16.msra.mxu0 %v356
        %381 = vmatprep.subr.bf16.mxu0 0
        %382 = vmatpush1.bf16.msra.mxu0 0
        %383 = vmatprep.subr.bf16.mxu0 0
        %384 = vmatpush1.bf16.msra.mxu0 0
        %385 = vmatprep.subr.bf16.mxu0 0
        %386 = vmatpush1.bf16.msra.mxu0 0
        %387 = vmatprep.subr.bf16.mxu0 0
        %388 = vmatpush1.bf16.msra.mxu0 0
        %389 = vmatprep.subr.bf16.mxu0 0
        %390 = vmatpush1.bf16.msra.mxu0 0
        %391 = vmatprep.subr.bf16.mxu0 0
        %392 = vmatpush1.bf16.msra.mxu0 0
        %393 = vmatprep.subr.bf16.mxu0 0
        %394 = vmatpush1.bf16.msra.mxu0 0
        %395 = vmatprep.subr.bf16.mxu0 0
        %396 = vmatpush1.bf16.msra.mxu0 0
        %397 = vmatprep.mubr.bf16.mxu0 0
        %398 = vmatmul.mubr.bf16.gmra.mrb[0].mxu0 %v186
        %v399 = vpop.f32.mrb[0].mxu0
        %v400 = vadd.f32 %v311, %v399
        %v401 = vpop.f32.mrb[0].mxu0
        %v402 = vpop.f32.mrb[0].mxu0
        %v403 = vadd.f32 %v314, %v402
        %v404 = vpop.f32.mrb[0].mxu0
        %405 = vdwg.mxu0
        %s406 = scalar_lea.vmem %s1, 128
        %v407 = vld [vmem:[%s406] sm:$0xf]
        %v408 = vld [vmem:[%s406 + $0x4] sm:$0xf]
        %v409 = vld [vmem:[%s406 + $0x8] sm:$0xf]
        %v410 = vld [vmem:[%s406 + $0xc] sm:$0xf]
        %v411 = vld [vmem:[%s406 + $0x10] sm:$0xf]
        %v412 = vld [vmem:[%s406 + $0x14] sm:$0xf]
        %v413 = vld [vmem:[%s406 + $0x18] sm:$0xf]
        %v414 = vld [vmem:[%s406 + $0x1c] sm:$0xf]
        %v415 = vld [vmem:[%s406 + $0x20] sm:$0xf]
        %v416 = vld [vmem:[%s406 + $0x24] sm:$0xf]
        %v417 = vld [vmem:[%s406 + $0x28] sm:$0xf]
        %v418 = vld [vmem:[%s406 + $0x2c] sm:$0xf]
        %v419 = vld [vmem:[%s406 + $0x30] sm:$0xf]
        %v420 = vld [vmem:[%s406 + $0x34] sm:$0xf]
        %v421 = vld [vmem:[%s406 + $0x38] sm:$0xf]
        %v422 = vld [vmem:[%s406 + $0x3c] sm:$0xf]
        %v424 = vrot.slane %v186, 1
        %v442 = vunpack.c.l.b16 %v407
        %v443 = vunpack.c.l.b16 %v408
        %v444 = vunpack.c.l.b16 %v409
        %v445 = vunpack.c.l.b16 %v410
        %v446 = vunpack.c.l.b16 %v411
        %v447 = vunpack.c.l.b16 %v412
        %v448 = vunpack.c.l.b16 %v413
        %v449 = vunpack.c.l.b16 %v414
        %v450 = vunpack.c.l.b16 %v415
        %v451 = vunpack.c.l.b16 %v416
        %v452 = vunpack.c.l.b16 %v417
        %v453 = vunpack.c.l.b16 %v418
        %v454 = vunpack.c.l.b16 %v419
        %v455 = vunpack.c.l.b16 %v420
        %v456 = vunpack.c.l.b16 %v421
        %v457 = vunpack.c.l.b16 %v422
        %v458 = vpack.c.b16 %v443, %v442
        %v459 = vpack.c.b16 %v445, %v444
        %v460 = vpack.c.b16 %v447, %v446
        %v461 = vpack.c.b16 %v449, %v448
        %v462 = vpack.c.b16 %v451, %v450
        %v463 = vpack.c.b16 %v453, %v452
        %v464 = vpack.c.b16 %v455, %v454
        %v465 = vpack.c.b16 %v457, %v456
        %474 = vmatprep.subr.bf16.mxu0 0
        %475 = vmatpush1.bf16.msra.mxu0 %v458
        %476 = vmatprep.subr.bf16.mxu0 0
        %477 = vmatpush1.bf16.msra.mxu0 %v459
        %478 = vmatprep.subr.bf16.mxu0 0
        %479 = vmatpush1.bf16.msra.mxu0 %v460
        %480 = vmatprep.subr.bf16.mxu0 0
        %481 = vmatpush1.bf16.msra.mxu0 %v461
        %482 = vmatprep.subr.bf16.mxu0 0
        %483 = vmatpush1.bf16.msra.mxu0 %v462
        %484 = vmatprep.subr.bf16.mxu0 0
        %485 = vmatpush1.bf16.msra.mxu0 %v463
        %486 = vmatprep.subr.bf16.mxu0 0
        %487 = vmatpush1.bf16.msra.mxu0 %v464
        %488 = vmatprep.subr.bf16.mxu0 0
        %489 = vmatpush1.bf16.msra.mxu0 %v465
        %490 = vmatprep.subr.bf16.mxu0 0
        %491 = vmatpush1.bf16.msra.mxu0 0
        %492 = vmatprep.subr.bf16.mxu0 0
        %493 = vmatpush1.bf16.msra.mxu0 0
        %494 = vmatprep.subr.bf16.mxu0 0
        %495 = vmatpush1.bf16.msra.mxu0 0
        %496 = vmatprep.subr.bf16.mxu0 0
        %497 = vmatpush1.bf16.msra.mxu0 0
        %498 = vmatprep.subr.bf16.mxu0 0
        %499 = vmatpush1.bf16.msra.mxu0 0
        %500 = vmatprep.subr.bf16.mxu0 0
        %501 = vmatpush1.bf16.msra.mxu0 0
        %502 = vmatprep.subr.bf16.mxu0 0
        %503 = vmatpush1.bf16.msra.mxu0 0
        %504 = vmatprep.subr.bf16.mxu0 0
        %505 = vmatpush1.bf16.msra.mxu0 0
        %506 = vmatprep.mubr.bf16.mxu0 0
        %507 = vmatmul.mubr.bf16.gmra.mrb[0].mxu0 %v424
        %v508 = vpop.f32.mrb[0].mxu0
        %v509 = vadd.f32 0.0, %v508
        %v510 = vpop.f32.mrb[0].mxu0
        %v511 = vpop.f32.mrb[0].mxu0
        %v512 = vadd.f32 0.0, %v511
        %v513 = vpop.f32.mrb[0].mxu0
        %514 = vdwg.mxu0
        %v515 = vadd.f32 %v400, %v509
        %v516 = vadd.f32 %v403, %v512
        %s517 = sadd.s32 %s174, 1
        %s518 = smul.u32 %s517, 2
        %s519 = smul.addr %s518, 4
        %s520 = scalar_lea.vmem %s165, %s519
        %v521 = vld [vmem:[%s520] sm:$0xf]
        %v522 = vld [vmem:[%s520 + $0x4] sm:$0xf]
        %v523 = vunpack.c.l.bf16 %v521
        %v524 = vunpack.c.l.bf16 %v522
        %v525 = vpack.c.bf16 %v524, %v523
        %s526 = scalar_lea.vmem %s1, 192
        %v527 = vld [vmem:[%s526] sm:$0xf]
        %v528 = vld [vmem:[%s526 + $0x4] sm:$0xf]
        %v529 = vld [vmem:[%s526 + $0x8] sm:$0xf]
        %v530 = vld [vmem:[%s526 + $0xc] sm:$0xf]
        %v531 = vld [vmem:[%s526 + $0x10] sm:$0xf]
        %v532 = vld [vmem:[%s526 + $0x14] sm:$0xf]
        %v533 = vld [vmem:[%s526 + $0x18] sm:$0xf]
        %v534 = vld [vmem:[%s526 + $0x1c] sm:$0xf]
        %v535 = vld [vmem:[%s526 + $0x20] sm:$0xf]
        %v536 = vld [vmem:[%s526 + $0x24] sm:$0xf]
        %v537 = vld [vmem:[%s526 + $0x28] sm:$0xf]
        %v538 = vld [vmem:[%s526 + $0x2c] sm:$0xf]
        %v539 = vld [vmem:[%s526 + $0x30] sm:$0xf]
        %v540 = vld [vmem:[%s526 + $0x34] sm:$0xf]
        %v541 = vld [vmem:[%s526 + $0x38] sm:$0xf]
        %v542 = vld [vmem:[%s526 + $0x3c] sm:$0xf]
        %v559 = vunpack.c.l.b16 %v527
        %v560 = vunpack.c.l.b16 %v528
        %v561 = vunpack.c.l.b16 %v529
        %v562 = vunpack.c.l.b16 %v530
        %v563 = vunpack.c.l.b16 %v531
        %v564 = vunpack.c.l.b16 %v532
        %v565 = vunpack.c.l.b16 %v533
        %v566 = vunpack.c.l.b16 %v534
        %v567 = vunpack.c.l.b16 %v535
        %v568 = vunpack.c.l.b16 %v536
        %v569 = vunpack.c.l.b16 %v537
        %v570 = vunpack.c.l.b16 %v538
        %v571 = vunpack.c.l.b16 %v539
        %v572 = vunpack.c.l.b16 %v540
        %v573 = vunpack.c.l.b16 %v541
        %v574 = vunpack.c.l.b16 %v542
        %v575 = vpack.c.b16 %v560, %v559
        %v576 = vpack.c.b16 %v562, %v561
        %v577 = vpack.c.b16 %v564, %v563
        %v578 = vpack.c.b16 %v566, %v565
        %v579 = vpack.c.b16 %v568, %v567
        %v580 = vpack.c.b16 %v570, %v569
        %v581 = vpack.c.b16 %v572, %v571
        %v582 = vpack.c.b16 %v574, %v573
        %591 = vmatprep.subr.bf16.mxu0 0
        %592 = vmatpush1.bf16.msra.mxu0 %v575
        %593 = vmatprep.subr.bf16.mxu0 0
        %594 = vmatpush1.bf16.msra.mxu0 %v576
        %595 = vmatprep.subr.bf16.mxu0 0
        %596 = vmatpush1.bf16.msra.mxu0 %v577
        %597 = vmatprep.subr.bf16.mxu0 0
        %598 = vmatpush1.bf16.msra.mxu0 %v578
        %599 = vmatprep.subr.bf16.mxu0 0
        %600 = vmatpush1.bf16.msra.mxu0 %v579
        %601 = vmatprep.subr.bf16.mxu0 0
        %602 = vmatpush1.bf16.msra.mxu0 %v580
        %603 = vmatprep.subr.bf16.mxu0 0
        %604 = vmatpush1.bf16.msra.mxu0 %v581
        %605 = vmatprep.subr.bf16.mxu0 0
        %606 = vmatpush1.bf16.msra.mxu0 %v582
        %607 = vmatprep.subr.bf16.mxu0 0
        %608 = vmatpush1.bf16.msra.mxu0 0
        %609 = vmatprep.subr.bf16.mxu0 0
        %610 = vmatpush1.bf16.msra.mxu0 0
        %611 = vmatprep.subr.bf16.mxu0 0
        %612 = vmatpush1.bf16.msra.mxu0 0
        %613 = vmatprep.subr.bf16.mxu0 0
        %614 = vmatpush1.bf16.msra.mxu0 0
        %615 = vmatprep.subr.bf16.mxu0 0
        %616 = vmatpush1.bf16.msra.mxu0 0
        %617 = vmatprep.subr.bf16.mxu0 0
        %618 = vmatpush1.bf16.msra.mxu0 0
        %619 = vmatprep.subr.bf16.mxu0 0
        %620 = vmatpush1.bf16.msra.mxu0 0
        %621 = vmatprep.subr.bf16.mxu0 0
        %622 = vmatpush1.bf16.msra.mxu0 0
        %623 = vmatprep.mubr.bf16.mxu0 0
        %624 = vmatmul.mubr.bf16.gmra.mrb[0].mxu0 %v525
        %v625 = vpop.f32.mrb[0].mxu0
        %v626 = vadd.f32 0.0, %v625
        %v627 = vpop.f32.mrb[0].mxu0
        %v628 = vpop.f32.mrb[0].mxu0
        %v629 = vadd.f32 0.0, %v628
        %v630 = vpop.f32.mrb[0].mxu0
        %631 = vdwg.mxu0
        %v632 = vadd.f32 %v515, %v626
        %v633 = vadd.f32 %v516, %v629
        %s634 = scalar_lea.vmem %s1, 256
        %v635 = vld [vmem:[%s634] sm:$0xf]
        %v636 = vld [vmem:[%s634 + $0x4] sm:$0xf]
        %v637 = vld [vmem:[%s634 + $0x8] sm:$0xf]
        %v638 = vld [vmem:[%s634 + $0xc] sm:$0xf]
        %v639 = vld [vmem:[%s634 + $0x10] sm:$0xf]
        %v640 = vld [vmem:[%s634 + $0x14] sm:$0xf]
        %v641 = vld [vmem:[%s634 + $0x18] sm:$0xf]
        %v642 = vld [vmem:[%s634 + $0x1c] sm:$0xf]
        %v643 = vld [vmem:[%s634 + $0x20] sm:$0xf]
        %v644 = vld [vmem:[%s634 + $0x24] sm:$0xf]
        %v645 = vld [vmem:[%s634 + $0x28] sm:$0xf]
        %v646 = vld [vmem:[%s634 + $0x2c] sm:$0xf]
        %v647 = vld [vmem:[%s634 + $0x30] sm:$0xf]
        %v648 = vld [vmem:[%s634 + $0x34] sm:$0xf]
        %v649 = vld [vmem:[%s634 + $0x38] sm:$0xf]
        %v650 = vld [vmem:[%s634 + $0x3c] sm:$0xf]
        %v652 = vshrl.u32 %v525, 16
        %v654 = vshll.u32 %v525, 16
        %v656 = vrot.slane %v654, 1
        %v657 = vor.u32 %v652, %v656
        %v675 = vunpack.c.l.b16 %v635
        %v676 = vunpack.c.l.b16 %v636
        %v677 = vunpack.c.l.b16 %v637
        %v678 = vunpack.c.l.b16 %v638
        %v679 = vunpack.c.l.b16 %v639
        %v680 = vunpack.c.l.b16 %v640
        %v681 = vunpack.c.l.b16 %v641
        %v682 = vunpack.c.l.b16 %v642
        %v683 = vunpack.c.l.b16 %v643
        %v684 = vunpack.c.l.b16 %v644
        %v685 = vunpack.c.l.b16 %v645
        %v686 = vunpack.c.l.b16 %v646
        %v687 = vunpack.c.l.b16 %v647
        %v688 = vunpack.c.l.b16 %v648
        %v689 = vunpack.c.l.b16 %v649
        %v690 = vunpack.c.l.b16 %v650
        %v691 = vpack.c.b16 %v676, %v675
        %v692 = vpack.c.b16 %v678, %v677
        %v693 = vpack.c.b16 %v680, %v679
        %v694 = vpack.c.b16 %v682, %v681
        %v695 = vpack.c.b16 %v684, %v683
        %v696 = vpack.c.b16 %v686, %v685
        %v697 = vpack.c.b16 %v688, %v687
        %v698 = vpack.c.b16 %v690, %v689
        %707 = vmatprep.subr.bf16.mxu0 0
        %708 = vmatpush1.bf16.msra.mxu0 %v691
        %709 = vmatprep.subr.bf16.mxu0 0
        %710 = vmatpush1.bf16.msra.mxu0 %v692
        %711 = vmatprep.subr.bf16.mxu0 0
        %712 = vmatpush1.bf16.msra.mxu0 %v693
        %713 = vmatprep.subr.bf16.mxu0 0
        %714 = vmatpush1.bf16.msra.mxu0 %v694
        %715 = vmatprep.subr.bf16.mxu0 0
        %716 = vmatpush1.bf16.msra.mxu0 %v695
        %717 = vmatprep.subr.bf16.mxu0 0
        %718 = vmatpush1.bf16.msra.mxu0 %v696
        %719 = vmatprep.subr.bf16.mxu0 0
        %720 = vmatpush1.bf16.msra.mxu0 %v697
        %721 = vmatprep.subr.bf16.mxu0 0
        %722 = vmatpush1.bf16.msra.mxu0 %v698
        %723 = vmatprep.subr.bf16.mxu0 0
        %724 = vmatpush1.bf16.msra.mxu0 0
        %725 = vmatprep.subr.bf16.mxu0 0
        %726 = vmatpush1.bf16.msra.mxu0 0
        %727 = vmatprep.subr.bf16.mxu0 0
        %728 = vmatpush1.bf16.msra.mxu0 0
        %729 = vmatprep.subr.bf16.mxu0 0
        %730 = vmatpush1.bf16.msra.mxu0 0
        %731 = vmatprep.subr.bf16.mxu0 0
        %732 = vmatpush1.bf16.msra.mxu0 0
        %733 = vmatprep.subr.bf16.mxu0 0
        %734 = vmatpush1.bf16.msra.mxu0 0
        %735 = vmatprep.subr.bf16.mxu0 0
        %736 = vmatpush1.bf16.msra.mxu0 0
        %737 = vmatprep.subr.bf16.mxu0 0
        %738 = vmatpush1.bf16.msra.mxu0 0
        %739 = vmatprep.mubr.bf16.mxu0 0
        %740 = vmatmul.mubr.bf16.gmra.mrb[0].mxu0 %v657
        %v741 = vpop.f32.mrb[0].mxu0
        %v742 = vadd.f32 0.0, %v741
        %v743 = vpop.f32.mrb[0].mxu0
        %v744 = vpop.f32.mrb[0].mxu0
        %v745 = vadd.f32 0.0, %v744
        %v746 = vpop.f32.mrb[0].mxu0
        %747 = vdwg.mxu0
        %v748 = vadd.f32 %v632, %v742
        %v749 = vadd.f32 %v633, %v745
        %s750 = scalar_lea.vmem %s1, 320
        %v751 = vld [vmem:[%s750] sm:$0xf]
        %v752 = vld [vmem:[%s750 + $0x4] sm:$0xf]
        %v753 = vld [vmem:[%s750 + $0x8] sm:$0xf]
        %v754 = vld [vmem:[%s750 + $0xc] sm:$0xf]
        %v755 = vld [vmem:[%s750 + $0x10] sm:$0xf]
        %v756 = vld [vmem:[%s750 + $0x14] sm:$0xf]
        %v757 = vld [vmem:[%s750 + $0x18] sm:$0xf]
        %v758 = vld [vmem:[%s750 + $0x1c] sm:$0xf]
        %v759 = vld [vmem:[%s750 + $0x20] sm:$0xf]
        %v760 = vld [vmem:[%s750 + $0x24] sm:$0xf]
        %v761 = vld [vmem:[%s750 + $0x28] sm:$0xf]
        %v762 = vld [vmem:[%s750 + $0x2c] sm:$0xf]
        %v763 = vld [vmem:[%s750 + $0x30] sm:$0xf]
        %v764 = vld [vmem:[%s750 + $0x34] sm:$0xf]
        %v765 = vld [vmem:[%s750 + $0x38] sm:$0xf]
        %v766 = vld [vmem:[%s750 + $0x3c] sm:$0xf]
        %v768 = vrot.slane %v525, 1
        %v786 = vunpack.c.l.b16 %v751
        %v787 = vunpack.c.l.b16 %v752
        %v788 = vunpack.c.l.b16 %v753
        %v789 = vunpack.c.l.b16 %v754
        %v790 = vunpack.c.l.b16 %v755
        %v791 = vunpack.c.l.b16 %v756
        %v792 = vunpack.c.l.b16 %v757
        %v793 = vunpack.c.l.b16 %v758
        %v794 = vunpack.c.l.b16 %v759
        %v795 = vunpack.c.l.b16 %v760
        %v796 = vunpack.c.l.b16 %v761
        %v797 = vunpack.c.l.b16 %v762
        %v798 = vunpack.c.l.b16 %v763
        %v799 = vunpack.c.l.b16 %v764
        %v800 = vunpack.c.l.b16 %v765
        %v801 = vunpack.c.l.b16 %v766
        %v802 = vpack.c.b16 %v787, %v786
        %v803 = vpack.c.b16 %v789, %v788
        %v804 = vpack.c.b16 %v791, %v790
        %v805 = vpack.c.b16 %v793, %v792
        %v806 = vpack.c.b16 %v795, %v794
        %v807 = vpack.c.b16 %v797, %v796
        %v808 = vpack.c.b16 %v799, %v798
        %v809 = vpack.c.b16 %v801, %v800
        %818 = vmatprep.subr.bf16.mxu0 0
        %819 = vmatpush1.bf16.msra.mxu0 %v802
        %820 = vmatprep.subr.bf16.mxu0 0
        %821 = vmatpush1.bf16.msra.mxu0 %v803
        %822 = vmatprep.subr.bf16.mxu0 0
        %823 = vmatpush1.bf16.msra.mxu0 %v804
        %824 = vmatprep.subr.bf16.mxu0 0
        %825 = vmatpush1.bf16.msra.mxu0 %v805
        %826 = vmatprep.subr.bf16.mxu0 0
        %827 = vmatpush1.bf16.msra.mxu0 %v806
        %828 = vmatprep.subr.bf16.mxu0 0
        %829 = vmatpush1.bf16.msra.mxu0 %v807
        %830 = vmatprep.subr.bf16.mxu0 0
        %831 = vmatpush1.bf16.msra.mxu0 %v808
        %832 = vmatprep.subr.bf16.mxu0 0
        %833 = vmatpush1.bf16.msra.mxu0 %v809
        %834 = vmatprep.subr.bf16.mxu0 0
        %835 = vmatpush1.bf16.msra.mxu0 0
        %836 = vmatprep.subr.bf16.mxu0 0
        %837 = vmatpush1.bf16.msra.mxu0 0
        %838 = vmatprep.subr.bf16.mxu0 0
        %839 = vmatpush1.bf16.msra.mxu0 0
        %840 = vmatprep.subr.bf16.mxu0 0
        %841 = vmatpush1.bf16.msra.mxu0 0
        %842 = vmatprep.subr.bf16.mxu0 0
        %843 = vmatpush1.bf16.msra.mxu0 0
        %844 = vmatprep.subr.bf16.mxu0 0
        %845 = vmatpush1.bf16.msra.mxu0 0
        %846 = vmatprep.subr.bf16.mxu0 0
        %847 = vmatpush1.bf16.msra.mxu0 0
        %848 = vmatprep.subr.bf16.mxu0 0
        %849 = vmatpush1.bf16.msra.mxu0 0
        %850 = vmatprep.mubr.bf16.mxu0 0
        %851 = vmatmul.mubr.bf16.gmra.mrb[0].mxu0 %v768
        %v852 = vpop.f32.mrb[0].mxu0
        %v853 = vadd.f32 0.0, %v852
        %v854 = vpop.f32.mrb[0].mxu0
        %v855 = vpop.f32.mrb[0].mxu0
        %v856 = vadd.f32 0.0, %v855
        %v857 = vpop.f32.mrb[0].mxu0
        %858 = vdwg.mxu0
        %v859 = vadd.f32 %v748, %v853
        %v860 = vadd.f32 %v749, %v856
        %s861 = sadd.s32 %s174, 2
        %s862 = smul.u32 %s861, 2
        %s863 = smul.addr %s862, 4
        %s864 = scalar_lea.vmem %s165, %s863
        %v865 = vld [vmem:[%s864] sm:$0xf]
        %v866 = vld [vmem:[%s864 + $0x4] sm:$0xf]
        %v867 = vunpack.c.l.bf16 %v865
        %v868 = vunpack.c.l.bf16 %v866
        %v869 = vpack.c.bf16 %v868, %v867
        %s870 = scalar_lea.vmem %s1, 384
        %v871 = vld [vmem:[%s870] sm:$0xf]
        %v872 = vld [vmem:[%s870 + $0x4] sm:$0xf]
        %v873 = vld [vmem:[%s870 + $0x8] sm:$0xf]
        %v874 = vld [vmem:[%s870 + $0xc] sm:$0xf]
        %v875 = vld [vmem:[%s870 + $0x10] sm:$0xf]
        %v876 = vld [vmem:[%s870 + $0x14] sm:$0xf]
        %v877 = vld [vmem:[%s870 + $0x18] sm:$0xf]
        %v878 = vld [vmem:[%s870 + $0x1c] sm:$0xf]
        %v879 = vld [vmem:[%s870 + $0x20] sm:$0xf]
        %v880 = vld [vmem:[%s870 + $0x24] sm:$0xf]
        %v881 = vld [vmem:[%s870 + $0x28] sm:$0xf]
        %v882 = vld [vmem:[%s870 + $0x2c] sm:$0xf]
        %v883 = vld [vmem:[%s870 + $0x30] sm:$0xf]
        %v884 = vld [vmem:[%s870 + $0x34] sm:$0xf]
        %v885 = vld [vmem:[%s870 + $0x38] sm:$0xf]
        %v886 = vld [vmem:[%s870 + $0x3c] sm:$0xf]
        %v903 = vunpack.c.l.b16 %v871
        %v904 = vunpack.c.l.b16 %v872
        %v905 = vunpack.c.l.b16 %v873
        %v906 = vunpack.c.l.b16 %v874
        %v907 = vunpack.c.l.b16 %v875
        %v908 = vunpack.c.l.b16 %v876
        %v909 = vunpack.c.l.b16 %v877
        %v910 = vunpack.c.l.b16 %v878
        %v911 = vunpack.c.l.b16 %v879
        %v912 = vunpack.c.l.b16 %v880
        %v913 = vunpack.c.l.b16 %v881
        %v914 = vunpack.c.l.b16 %v882
        %v915 = vunpack.c.l.b16 %v883
        %v916 = vunpack.c.l.b16 %v884
        %v917 = vunpack.c.l.b16 %v885
        %v918 = vunpack.c.l.b16 %v886
        %v919 = vpack.c.b16 %v904, %v903
        %v920 = vpack.c.b16 %v906, %v905
        %v921 = vpack.c.b16 %v908, %v907
        %v922 = vpack.c.b16 %v910, %v909
        %v923 = vpack.c.b16 %v912, %v911
        %v924 = vpack.c.b16 %v914, %v913
        %v925 = vpack.c.b16 %v916, %v915
        %v926 = vpack.c.b16 %v918, %v917
        %935 = vmatprep.subr.bf16.mxu0 0
        %936 = vmatpush1.bf16.msra.mxu0 %v919
        %937 = vmatprep.subr.bf16.mxu0 0
        %938 = vmatpush1.bf16.msra.mxu0 %v920
        %939 = vmatprep.subr.bf16.mxu0 0
        %940 = vmatpush1.bf16.msra.mxu0 %v921
        %941 = vmatprep.subr.bf16.mxu0 0
        %942 = vmatpush1.bf16.msra.mxu0 %v922
        %943 = vmatprep.subr.bf16.mxu0 0
        %944 = vmatpush1.bf16.msra.mxu0 %v923
        %945 = vmatprep.subr.bf16.mxu0 0
        %946 = vmatpush1.bf16.msra.mxu0 %v924
        %947 = vmatprep.subr.bf16.mxu0 0
        %948 = vmatpush1.bf16.msra.mxu0 %v925
        %949 = vmatprep.subr.bf16.mxu0 0
        %950 = vmatpush1.bf16.msra.mxu0 %v926
        %951 = vmatprep.subr.bf16.mxu0 0
        %952 = vmatpush1.bf16.msra.mxu0 0
        %953 = vmatprep.subr.bf16.mxu0 0
        %954 = vmatpush1.bf16.msra.mxu0 0
        %955 = vmatprep.subr.bf16.mxu0 0
        %956 = vmatpush1.bf16.msra.mxu0 0
        %957 = vmatprep.subr.bf16.mxu0 0
        %958 = vmatpush1.bf16.msra.mxu0 0
        %959 = vmatprep.subr.bf16.mxu0 0
        %960 = vmatpush1.bf16.msra.mxu0 0
        %961 = vmatprep.subr.bf16.mxu0 0
        %962 = vmatpush1.bf16.msra.mxu0 0
        %963 = vmatprep.subr.bf16.mxu0 0
        %964 = vmatpush1.bf16.msra.mxu0 0
        %965 = vmatprep.subr.bf16.mxu0 0
        %966 = vmatpush1.bf16.msra.mxu0 0
        %967 = vmatprep.mubr.bf16.mxu0 0
        %968 = vmatmul.mubr.bf16.gmra.mrb[0].mxu0 %v869
        %v969 = vpop.f32.mrb[0].mxu0
        %v970 = vadd.f32 0.0, %v969
        %v971 = vpop.f32.mrb[0].mxu0
        %v972 = vpop.f32.mrb[0].mxu0
        %v973 = vadd.f32 0.0, %v972
        %v974 = vpop.f32.mrb[0].mxu0
        %975 = vdwg.mxu0
        %v976 = vadd.f32 %v859, %v970
        %v977 = vadd.f32 %v860, %v973
        %s978 = scalar_lea.vmem %s1, 448
        %v979 = vld [vmem:[%s978] sm:$0xf]
        %v980 = vld [vmem:[%s978 + $0x4] sm:$0xf]
        %v981 = vld [vmem:[%s978 + $0x8] sm:$0xf]
        %v982 = vld [vmem:[%s978 + $0xc] sm:$0xf]
        %v983 = vld [vmem:[%s978 + $0x10] sm:$0xf]
        %v984 = vld [vmem:[%s978 + $0x14] sm:$0xf]
        %v985 = vld [vmem:[%s978 + $0x18] sm:$0xf]
        %v986 = vld [vmem:[%s978 + $0x1c] sm:$0xf]
        %v987 = vld [vmem:[%s978 + $0x20] sm:$0xf]
        %v988 = vld [vmem:[%s978 + $0x24] sm:$0xf]
        %v989 = vld [vmem:[%s978 + $0x28] sm:$0xf]
        %v990 = vld [vmem:[%s978 + $0x2c] sm:$0xf]
        %v991 = vld [vmem:[%s978 + $0x30] sm:$0xf]
        %v992 = vld [vmem:[%s978 + $0x34] sm:$0xf]
        %v993 = vld [vmem:[%s978 + $0x38] sm:$0xf]
        %v994 = vld [vmem:[%s978 + $0x3c] sm:$0xf]
        %v996 = vshrl.u32 %v869, 16
        %v998 = vshll.u32 %v869, 16
        %v1000 = vrot.slane %v998, 1
        %v1001 = vor.u32 %v996, %v1000
        %v1019 = vunpack.c.l.b16 %v979
        %v1020 = vunpack.c.l.b16 %v980
        %v1021 = vunpack.c.l.b16 %v981
        %v1022 = vunpack.c.l.b16 %v982
        %v1023 = vunpack.c.l.b16 %v983
        %v1024 = vunpack.c.l.b16 %v984
        %v1025 = vunpack.c.l.b16 %v985
        %v1026 = vunpack.c.l.b16 %v986
        %v1027 = vunpack.c.l.b16 %v987
        %v1028 = vunpack.c.l.b16 %v988
        %v1029 = vunpack.c.l.b16 %v989
        %v1030 = vunpack.c.l.b16 %v990
        %v1031 = vunpack.c.l.b16 %v991
        %v1032 = vunpack.c.l.b16 %v992
        %v1033 = vunpack.c.l.b16 %v993
        %v1034 = vunpack.c.l.b16 %v994
        %v1035 = vpack.c.b16 %v1020, %v1019
        %v1036 = vpack.c.b16 %v1022, %v1021
        %v1037 = vpack.c.b16 %v1024, %v1023
        %v1038 = vpack.c.b16 %v1026, %v1025
        %v1039 = vpack.c.b16 %v1028, %v1027
        %v1040 = vpack.c.b16 %v1030, %v1029
        %v1041 = vpack.c.b16 %v1032, %v1031
        %v1042 = vpack.c.b16 %v1034, %v1033
        %1051 = vmatprep.subr.bf16.mxu0 0
        %1052 = vmatpush1.bf16.msra.mxu0 %v1035
        %1053 = vmatprep.subr.bf16.mxu0 0
        %1054 = vmatpush1.bf16.msra.mxu0 %v1036
        %1055 = vmatprep.subr.bf16.mxu0 0
        %1056 = vmatpush1.bf16.msra.mxu0 %v1037
        %1057 = vmatprep.subr.bf16.mxu0 0
        %1058 = vmatpush1.bf16.msra.mxu0 %v1038
        %1059 = vmatprep.subr.bf16.mxu0 0
        %1060 = vmatpush1.bf16.msra.mxu0 %v1039
        %1061 = vmatprep.subr.bf16.mxu0 0
        %1062 = vmatpush1.bf16.msra.mxu0 %v1040
        %1063 = vmatprep.subr.bf16.mxu0 0
        %1064 = vmatpush1.bf16.msra.mxu0 %v1041
        %1065 = vmatprep.subr.bf16.mxu0 0
        %1066 = vmatpush1.bf16.msra.mxu0 %v1042
        %1067 = vmatprep.subr.bf16.mxu0 0
        %1068 = vmatpush1.bf16.msra.mxu0 0
        %1069 = vmatprep.subr.bf16.mxu0 0
        %1070 = vmatpush1.bf16.msra.mxu0 0
        %1071 = vmatprep.subr.bf16.mxu0 0
        %1072 = vmatpush1.bf16.msra.mxu0 0
        %1073 = vmatprep.subr.bf16.mxu0 0
        %1074 = vmatpush1.bf16.msra.mxu0 0
        %1075 = vmatprep.subr.bf16.mxu0 0
        %1076 = vmatpush1.bf16.msra.mxu0 0
        %1077 = vmatprep.subr.bf16.mxu0 0
        %1078 = vmatpush1.bf16.msra.mxu0 0
        %1079 = vmatprep.subr.bf16.mxu0 0
        %1080 = vmatpush1.bf16.msra.mxu0 0
        %1081 = vmatprep.subr.bf16.mxu0 0
        %1082 = vmatpush1.bf16.msra.mxu0 0
        %1083 = vmatprep.mubr.bf16.mxu0 0
        %1084 = vmatmul.mubr.bf16.gmra.mrb[0].mxu0 %v1001
        %v1085 = vpop.f32.mrb[0].mxu0
        %v1086 = vadd.f32 0.0, %v1085
        %v1087 = vpop.f32.mrb[0].mxu0
        %v1088 = vpop.f32.mrb[0].mxu0
        %v1089 = vadd.f32 0.0, %v1088
        %v1090 = vpop.f32.mrb[0].mxu0
        %1091 = vdwg.mxu0
        %v1092 = vadd.f32 %v976, %v1086
        %v1093 = vadd.f32 %v977, %v1089
        %s1094 = scalar_lea.vmem %s1, 512
        %v1095 = vld [vmem:[%s1094] sm:$0xf]
        %v1096 = vld [vmem:[%s1094 + $0x4] sm:$0xf]
        %v1097 = vld [vmem:[%s1094 + $0x8] sm:$0xf]
        %v1098 = vld [vmem:[%s1094 + $0xc] sm:$0xf]
        %v1099 = vld [vmem:[%s1094 + $0x10] sm:$0xf]
        %v1100 = vld [vmem:[%s1094 + $0x14] sm:$0xf]
        %v1101 = vld [vmem:[%s1094 + $0x18] sm:$0xf]
        %v1102 = vld [vmem:[%s1094 + $0x1c] sm:$0xf]
        %v1103 = vld [vmem:[%s1094 + $0x20] sm:$0xf]
        %v1104 = vld [vmem:[%s1094 + $0x24] sm:$0xf]
        %v1105 = vld [vmem:[%s1094 + $0x28] sm:$0xf]
        %v1106 = vld [vmem:[%s1094 + $0x2c] sm:$0xf]
        %v1107 = vld [vmem:[%s1094 + $0x30] sm:$0xf]
        %v1108 = vld [vmem:[%s1094 + $0x34] sm:$0xf]
        %v1109 = vld [vmem:[%s1094 + $0x38] sm:$0xf]
        %v1110 = vld [vmem:[%s1094 + $0x3c] sm:$0xf]
        %v1112 = vrot.slane %v869, 1
        %v1130 = vunpack.c.l.b16 %v1095
        %v1131 = vunpack.c.l.b16 %v1096
        %v1132 = vunpack.c.l.b16 %v1097
        %v1133 = vunpack.c.l.b16 %v1098
        %v1134 = vunpack.c.l.b16 %v1099
        %v1135 = vunpack.c.l.b16 %v1100
        %v1136 = vunpack.c.l.b16 %v1101
        %v1137 = vunpack.c.l.b16 %v1102
        %v1138 = vunpack.c.l.b16 %v1103
        %v1139 = vunpack.c.l.b16 %v1104
        %v1140 = vunpack.c.l.b16 %v1105
        %v1141 = vunpack.c.l.b16 %v1106
        %v1142 = vunpack.c.l.b16 %v1107
        %v1143 = vunpack.c.l.b16 %v1108
        %v1144 = vunpack.c.l.b16 %v1109
        %v1145 = vunpack.c.l.b16 %v1110
        %v1146 = vpack.c.b16 %v1131, %v1130
        %v1147 = vpack.c.b16 %v1133, %v1132
        %v1148 = vpack.c.b16 %v1135, %v1134
        %v1149 = vpack.c.b16 %v1137, %v1136
        %v1150 = vpack.c.b16 %v1139, %v1138
        %v1151 = vpack.c.b16 %v1141, %v1140
        %v1152 = vpack.c.b16 %v1143, %v1142
        %v1153 = vpack.c.b16 %v1145, %v1144
        %1162 = vmatprep.subr.bf16.mxu0 0
        %1163 = vmatpush1.bf16.msra.mxu0 %v1146
        %1164 = vmatprep.subr.bf16.mxu0 0
        %1165 = vmatpush1.bf16.msra.mxu0 %v1147
        %1166 = vmatprep.subr.bf16.mxu0 0
        %1167 = vmatpush1.bf16.msra.mxu0 %v1148
        %1168 = vmatprep.subr.bf16.mxu0 0
        %1169 = vmatpush1.bf16.msra.mxu0 %v1149
        %1170 = vmatprep.subr.bf16.mxu0 0
        %1171 = vmatpush1.bf16.msra.mxu0 %v1150
        %1172 = vmatprep.subr.bf16.mxu0 0
        %1173 = vmatpush1.bf16.msra.mxu0 %v1151
        %1174 = vmatprep.subr.bf16.mxu0 0
        %1175 = vmatpush1.bf16.msra.mxu0 %v1152
        %1176 = vmatprep.subr.bf16.mxu0 0
        %1177 = vmatpush1.bf16.msra.mxu0 %v1153
        %1178 = vmatprep.subr.bf16.mxu0 0
        %1179 = vmatpush1.bf16.msra.mxu0 0
        %1180 = vmatprep.subr.bf16.mxu0 0
        %1181 = vmatpush1.bf16.msra.mxu0 0
        %1182 = vmatprep.subr.bf16.mxu0 0
        %1183 = vmatpush1.bf16.msra.mxu0 0
        %1184 = vmatprep.subr.bf16.mxu0 0
        %1185 = vmatpush1.bf16.msra.mxu0 0
        %1186 = vmatprep.subr.bf16.mxu0 0
        %1187 = vmatpush1.bf16.msra.mxu0 0
        %1188 = vmatprep.subr.bf16.mxu0 0
        %1189 = vmatpush1.bf16.msra.mxu0 0
        %1190 = vmatprep.subr.bf16.mxu0 0
        %1191 = vmatpush1.bf16.msra.mxu0 0
        %1192 = vmatprep.subr.bf16.mxu0 0
        %1193 = vmatpush1.bf16.msra.mxu0 0
        %1194 = vmatprep.mubr.bf16.mxu0 0
        %1195 = vmatmul.mubr.bf16.gmra.mrb[0].mxu0 %v1112
        %v1196 = vpop.f32.mrb[0].mxu0
        %v1197 = vadd.f32 0.0, %v1196
        %v1198 = vpop.f32.mrb[0].mxu0
        %v1199 = vpop.f32.mrb[0].mxu0
        %v1200 = vadd.f32 0.0, %v1199
        %v1201 = vpop.f32.mrb[0].mxu0
        %1202 = vdwg.mxu0
        %v1203 = vadd.f32 %v1092, %v1197
        %v1204 = vadd.f32 %v1093, %v1200
        %v1206 = vlaneseq
        %v1207 = vshrl.u32 %v1206, 7
        %v1208 = vsub.s32 0, %v1207
        %v1209 = vrot.slane %v172, %v1208
        %v1211 = vadd.f32 %v1203, %v1209
        %v1212 = vadd.f32 %v1204, %v1209
        %v1213 = vmax.f32 %v1211, 0.0
        %v1214 = vmax.f32 %v1212, 0.0
        %v1215 = vpack.c.bf16 %v1214, %v1213
        %v1217 = vunpack.c.l.b16 %v1215
        %v1218 = vunpack.c.h.b16 %v1215
        %v1219 = vpack.c.b16 %v1217, %v1217
        %v1220 = vpack.c.b16 %v1218, %v1218
        %s1223 = smul.addr %s179, 4
        %s1224 = scalar_lea.vmem %s170, %s1223
        %1225 = vst [vmem:[%s1224] sm:$0xf] %v1219
        %1226 = vst [vmem:[%s1224 + $0x4] sm:$0x7] %v1220
      $region37: #{net_forward.14} parent=31 // loop_footer
        %s178 = sadd.s32 1, %s174
      $region38: #{net_forward.14} parent=31 // loop_footer_branch
        %173 = sbr.rel target = $region34
      $region39: #{net_forward.14} parent=31 // loop_exit
        _
      %p1227 = scmp.lt.s32.totalorder %s14, 1
      %s1228 = scalar_select %p1227, %s14, 1
      %s1229 = smul.addr %s1228, 28
      %s1230 = smul.addr %s1229, 4
      %s1231 = scalar_lea.vmem %s3, %s1230
      // Predicated region
      $region40: #{net_forward.14} parent=31 // pred_check
        %p1232 = pneg %p100
      $region41: #{net_forward.14} parent=31 // pred_check_branch
        %1234 = sbr.rel (%p1232) target = $region43
      $region42: #{net_forward.14} parent=31 // pred_region
        _
      $region43: #{net_forward.14} parent=31 // pred_fallthru
        _
    $region32: #{net_forward.14} parent=5 // pred_fallthru
      _
    %p1235 = scmp.le.s32.totalorder 2, %s9
    // Predicated region
    $region44: #{net_forward.14} parent=5 // pred_check
      %p1236 = pneg %p1235
    $region45: #{net_forward.14} parent=5 // pred_check_branch
      %1238 = sbr.rel (%p1236) target = $region47
    $region46: #{net_forward.14} parent=5 // pred_region
      %s1239 = ssub.s32 %s9, 2
      // Predicated region
      $region48: #{net_forward.14} parent=46 // pred_check
        %p1240 = pneg %p106
      $region49: #{net_forward.14} parent=46 // pred_check_branch
        %1242 = sbr.rel (%p1240) target = $region51
      $region50: #{net_forward.14} parent=46 // pred_region
        %p1243 = scmp.lt.s32.totalorder %s15, 1
        %s1244 = scalar_select %p1243, %s15, 1
        %s1245 = smul.addr %s1244, 28
        %s1246 = smul.addr %s1245, 4
        %s1247 = scalar_lea.vmem %s3, %s1246
      $region51: #{net_forward.14} parent=46 // pred_fallthru
        _
    $region47: #{net_forward.14} parent=5 // pred_fallthru
      _
  $region6: #{net_forward.14} parent=0 // loop_footer
    %s13 = sadd.s32 1, %s9
  $region7: #{net_forward.14} parent=0 // loop_footer_branch
    %8 = sbr.rel target = $region3
  $region8: #{net_forward.14} parent=0 // loop_exit
    _

// kernel: net_forward.15
$region0: #{net_forward.15}
  #allocation0 [shape = 'u32[]', space=smem, size = 0x4, offset = 0x4, fixed_abs, tag = 'smem constant byte address 0x4 - core index']
  #allocation1 [shape = 'u32[144,128]{1,0:T(1,128)}', space=vmem, size = 0x12000, scoped, tag = 'internal scratch']
  %s0 = inlined_call_operand.vmem [shape: bf16[2,14,14,128], index: 0, kind: input, shape index: {}]
  %s1 = inlined_call_operand.vmem [shape: bf16[9,128,128], index: 1, kind: input, shape index: {}]
  %s2 = inlined_call_operand.vmem [shape: f32[1,128], index: 2, kind: input, shape index: {}]
  %s3 = inlined_call_operand.vmem [shape: f32[2,12,12,128], index: 3, kind: output, shape index: {}]
  %s4 = sld [smem:[#allocation0]]
  $region52: #{net_forward.15} parent=0
    _
  %s6 = ssub.s32 1, %s4
  %s7 = scalar_select 0, %s6, %s4
  loop: start=0, step=1, limit=4
  $region2: #{net_forward.15} parent=0 // loop_pre_header
    _
  $region3: #{net_forward.15} parent=0 // loop_header
    %s9 = sphi 0, %s13
    %p10 = scmp.ge.s32.totalorder %s9, 4
    %s19 = sphi 0, %s21
    %s22 = sphi 0, %s19
    %s23 = sphi 0, %s22
    %s39 = sphi 0, %s23
    %s43 = sphi 0, %s43
    %s45 = sphi 0, %s43
    %s46 = sphi 0, %s45
    %s60 = sphi 0, %s46
    %s64 = sphi 0, %s64
    %s66 = sphi 0, %s64
    %s67 = sphi 0, %s66
    %s81 = sphi 0, %s67
    %s87 = sphi 0, %s89
    %s90 = sphi 0, %s87
    %s91 = sphi 0, %s90
    %s107 = sphi 0, %s91
  $region4: #{net_forward.15} parent=0 // loop_header_branch
    %12 = sbr.rel (%p10) target = $region8
  $region5: #{net_forward.15} parent=0 // loop_body
    %s14 = ssub.s32 %s9, 1
    %s15 = ssub.s32 %s9, 2
    %s16 = sadd.s32 %s9, 1
    %s17 = ssub.s32 %s9, %s16
    %p18 = scmp.eq.s32.totalorder %s17, 0
    %s20 = sadd.s32 %s19, 1
    %s21 = scalar_select %p18, %s19, %s20
    %p24 = pneg %p18
    %p25 = scmp.eq.s32.totalorder %s9, 1
    %p26 = por %p24, %p25
    %p27 = scmp.ne.s32.totalorder %s19, %s22
    %p28 = scmp.eq.s32.totalorder %s9, 0
    %p29 = por %p27, %p28
    %p30 = scmp.ne.s32.totalorder %s19, %s22
    %p31 = scmp.eq.s32.totalorder %s14, 1
    %p32 = por %p30, %p31
    %p33 = scmp.ne.s32.totalorder %s22, %s23
    %p34 = scmp.eq.s32.totalorder %s14, 0
    %p35 = por %p33, %p34
    %p36 = scmp.ne.s32.totalorder %s22, %s23
    %p37 = scmp.eq.s32.totalorder %s15, 1
    %p38 = por %p36, %p37
    %p40 = scmp.ne.s32.totalorder %s23, %s39
    %p41 = scmp.eq.s32.totalorder %s15, 0
    %p42 = por %p40, %p41
    %s44 = sadd.s32 %s43, 1
    %p47 = scmp.eq.s32.totalorder %s9, 1
    %p48 = scmp.ne.s32.totalorder %s43, %s45
    %p49 = scmp.eq.s32.totalorder %s9, 0
    %p50 = por %p48, %p49
    %p51 = scmp.ne.s32.totalorder %s43, %s45
    %p52 = scmp.eq.s32.totalorder %s14, 1
    %p53 = por %p51, %p52
    %p54 = scmp.ne.s32.totalorder %s45, %s46
    %p55 = scmp.eq.s32.totalorder %s14, 0
    %p56 = por %p54, %p55
    %p57 = scmp.ne.s32.totalorder %s45, %s46
    %p58 = scmp.eq.s32.totalorder %s15, 1
    %p59 = por %p57, %p58
    %p61 = scmp.ne.s32.totalorder %s46, %s60
    %p62 = scmp.eq.s32.totalorder %s15, 0
    %p63 = por %p61, %p62
    %s65 = sadd.s32 %s64, 1
    %p68 = scmp.eq.s32.totalorder %s9, 1
    %p69 = scmp.ne.s32.totalorder %s64, %s66
    %p70 = scmp.eq.s32.totalorder %s9, 0
    %p71 = por %p69, %p70
    %p72 = scmp.ne.s32.totalorder %s64, %s66
    %p73 = scmp.eq.s32.totalorder %s14, 1
    %p74 = por %p72, %p73
    %p75 = scmp.ne.s32.totalorder %s66, %s67
    %p76 = scmp.eq.s32.totalorder %s14, 0
    %p77 = por %p75, %p76
    %p78 = scmp.ne.s32.totalorder %s66, %s67
    %p79 = scmp.eq.s32.totalorder %s15, 1
    %p80 = por %p78, %p79
    %p82 = scmp.ne.s32.totalorder %s67, %s81
    %p83 = scmp.eq.s32.totalorder %s15, 0
    %p84 = por %p82, %p83
    %s85 = ssub.s32 %s9, %s16
    %p86 = scmp.eq.s32.totalorder %s85, 0
    %s88 = sadd.s32 %s87, 1
    %s89 = scalar_select %p86, %s87, %s88
    %p92 = pneg %p86
    %p93 = scmp.eq.s32.totalorder %s9, 1
    %p94 = por %p92, %p93
    %p95 = scmp.ne.s32.totalorder %s87, %s90
    %p96 = scmp.eq.s32.totalorder %s9, 0
    %p97 = por %p95, %p96
    %p98 = scmp.ne.s32.totalorder %s87, %s90
    %p99 = scmp.eq.s32.totalorder %s14, 1
    %p100 = por %p98, %p99
    %p101 = scmp.ne.s32.totalorder %s90, %s91
    %p102 = scmp.eq.s32.totalorder %s14, 0
    %p103 = por %p101, %p102
    %p104 = scmp.ne.s32.totalorder %s90, %s91
    %p105 = scmp.eq.s32.totalorder %s15, 1
    %p106 = por %p104, %p105
    %p108 = scmp.ne.s32.totalorder %s91, %s107
    %p109 = scmp.eq.s32.totalorder %s15, 0
    %p110 = por %p108, %p109
    %p111 = scmp.le.s32.totalorder 1, %s9
    %p112 = scmp.lt.s32.totalorder %s9, 3
    %p113 = pnand %p111, %p112
    %p114 = pneg %p113
    // Predicated region
    $region9: #{net_forward.15} parent=5 // pred_check
      _
    $region10: #{net_forward.15} parent=5 // pred_check_branch
      %116 = sbr.rel (%p113) target = $region12
    $region11: #{net_forward.15} parent=5 // pred_region
      %s117 = ssub.s32 %s9, 1
      // Predicated region
      $region13: #{net_forward.15} parent=11 // pred_check
        %p118 = pneg %p56
      $region14: #{net_forward.15} parent=11 // pred_check_branch
        %120 = sbr.rel (%p118) target = $region16
      $region15: #{net_forward.15} parent=11 // pred_region
        _
      $region16: #{net_forward.15} parent=11 // pred_fallthru
        _
      // Predicated region
      $region17: #{net_forward.15} parent=11 // pred_check
        %p121 = pneg %p77
      $region18: #{net_forward.15} parent=11 // pred_check_branch
        %123 = sbr.rel (%p121) target = $region20
      $region19: #{net_forward.15} parent=11 // pred_region
        _
      $region20: #{net_forward.15} parent=11 // pred_fallthru
        _
    $region12: #{net_forward.15} parent=5 // pred_fallthru
      _
    %p124 = scmp.lt.s32.totalorder %s9, 2
    // Predicated region
    $region21: #{net_forward.15} parent=5 // pred_check
      %p125 = pneg %p124
    $region22: #{net_forward.15} parent=5 // pred_check_branch
      %127 = sbr.rel (%p125) target = $region24
    $region23: #{net_forward.15} parent=5 // pred_region
      // Predicated region
      $region25: #{net_forward.15} parent=23 // pred_check
        %p128 = pneg %p29
      $region26: #{net_forward.15} parent=23 // pred_check_branch
        %130 = sbr.rel (%p128) target = $region28
      $region27: #{net_forward.15} parent=23 // pred_region
        %p131 = scmp.lt.s32.totalorder %s9, 1
        %s132 = scalar_select %p131, %s9, 1
        %s133 = smul.addr %s132, 28
        %s134 = smul.addr %s133, 4
        %s135 = scalar_lea.vmem %s0, %s134
      $region28: #{net_forward.15} parent=23 // pred_fallthru
        _
    $region24: #{net_forward.15} parent=5 // pred_fallthru
      _
    %p136 = scmp.le.s32.totalorder 1, %s9
    %p137 = scmp.lt.s32.totalorder %s9, 3
    %p138 = pnand %p136, %p137
    %p139 = pneg %p138
    // Predicated region
    $region29: #{net_forward.15} parent=5 // pred_check
      _
    $region30: #{net_forward.15} parent=5 // pred_check_branch
      %141 = sbr.rel (%p138) target = $region32
    $region31: #{net_forward.15} parent=5 // pred_region
      %s142 = ssub.s32 %s9, 1
      %p143 = scmp.lt.s32.totalorder %s14, 1
      %s144 = scalar_select %p143, %s14, 1
      %s145 = smul.addr %s144, 28
      %s146 = smul.addr %s145, 4
      %s147 = scalar_lea.vmem %s0, %s146
      %p148 = pneg %p35
      %p149 = pneg %p32
      %p150 = pneg %p56
      %p151 = pneg %p53
      %p152 = pneg %p77
      %p153 = pneg %p74
      %p154 = pneg %p103
      %p155 = pneg %p100
      %p156 = scmp.lt.s32.totalorder %s14, 1
      %s157 = scalar_select %p156, %s14, 1
      %s158 = smul.addr %s157, 24
      %s159 = smul.addr %s158, 8
      %s160 = scalar_lea.vmem %s3, %s159
      %p161 = scmp.lt.s32.totalorder %s14, 1
      %s162 = scalar_select %p161, %s14, 1
      %s163 = smul.addr %s162, 28
      %s164 = smul.addr %s163, 4
      %s165 = scalar_lea.vmem %s0, %s164
      %p166 = scmp.lt.s32.totalorder %s14, 1
      %s167 = scalar_select %p166, %s14, 1
      %s168 = smul.addr %s167, 24
      %s169 = smul.addr %s168, 8
      %s170 = scalar_lea.vmem %s3, %s169
      %v172 = vld [vmem:[%s2] sm:$0x1]
      loop: start=0, step=1, limit=12
      $region33: #{net_forward.15} parent=31 // loop_pre_header
        _
      $region34: #{net_forward.15} parent=31 // loop_header
        %s174 = sphi 0, %s178
        %p175 = scmp.ge.s32.totalorder %s174, 12
      $region35: #{net_forward.15} parent=31 // loop_header_branch
        %177 = sbr.rel (%p175) target = $region39
      $region36: #{net_forward.15} parent=31 // loop_body
        %s179 = smul.u32 %s174, 2
        %s180 = smul.addr %s179, 4
        %s181 = scalar_lea.vmem %s165, %s180
        %v182 = vld [vmem:[%s181] sm:$0xf]
        %v183 = vld [vmem:[%s181 + $0x4] sm:$0x7]
        %v184 = vunpack.c.l.bf16 %v182
        %v185 = vunpack.c.l.bf16 %v183
        %v186 = vpack.c.bf16 %v185, %v184
        %v187 = vld [vmem:[%s1] sm:$0xf]
        %v188 = vld [vmem:[%s1 + $0x4] sm:$0xf]
        %v189 = vld [vmem:[%s1 + $0x8] sm:$0xf]
        %v190 = vld [vmem:[%s1 + $0xc] sm:$0xf]
        %v191 = vld [vmem:[%s1 + $0x10] sm:$0xf]
        %v192 = vld [vmem:[%s1 + $0x14] sm:$0xf]
        %v193 = vld [vmem:[%s1 + $0x18] sm:$0xf]
        %v194 = vld [vmem:[%s1 + $0x1c] sm:$0xf]
        %v195 = vld [vmem:[%s1 + $0x20] sm:$0xf]
        %v196 = vld [vmem:[%s1 + $0x24] sm:$0xf]
        %v197 = vld [vmem:[%s1 + $0x28] sm:$0xf]
        %v198 = vld [vmem:[%s1 + $0x2c] sm:$0xf]
        %v199 = vld [vmem:[%s1 + $0x30] sm:$0xf]
        %v200 = vld [vmem:[%s1 + $0x34] sm:$0xf]
        %v201 = vld [vmem:[%s1 + $0x38] sm:$0xf]
        %v202 = vld [vmem:[%s1 + $0x3c] sm:$0xf]
        %s203 = scalar_lea.vmem %s1, 64
        %v204 = vld [vmem:[%s203] sm:$0xf]
        %v205 = vld [vmem:[%s203 + $0x4] sm:$0xf]
        %v206 = vld [vmem:[%s203 + $0x8] sm:$0xf]
        %v207 = vld [vmem:[%s203 + $0xc] sm:$0xf]
        %v208 = vld [vmem:[%s203 + $0x10] sm:$0xf]
        %v209 = vld [vmem:[%s203 + $0x14] sm:$0xf]
        %v210 = vld [vmem:[%s203 + $0x18] sm:$0xf]
        %v211 = vld [vmem:[%s203 + $0x1c] sm:$0xf]
        %v212 = vld [vmem:[%s203 + $0x20] sm:$0xf]
        %v213 = vld [vmem:[%s203 + $0x24] sm:$0xf]
        %v214 = vld [vmem:[%s203 + $0x28] sm:$0xf]
        %v215 = vld [vmem:[%s203 + $0x2c] sm:$0xf]
        %v216 = vld [vmem:[%s203 + $0x30] sm:$0xf]
        %v217 = vld [vmem:[%s203 + $0x34] sm:$0xf]
        %v218 = vld [vmem:[%s203 + $0x38] sm:$0xf]
        %v219 = vld [vmem:[%s203 + $0x3c] sm:$0xf]
        %v221 = vshrl.u32 %v186, 16
        %v223 = vshll.u32 %v186, 16
        %v225 = vrot.slane %v223, 1
        %v226 = vor.u32 %v221, %v225
        %v244 = vunpack.c.l.b16 %v204
        %v245 = vunpack.c.l.b16 %v205
        %v246 = vunpack.c.l.b16 %v206
        %v247 = vunpack.c.l.b16 %v207
        %v248 = vunpack.c.l.b16 %v208
        %v249 = vunpack.c.l.b16 %v209
        %v250 = vunpack.c.l.b16 %v210
        %v251 = vunpack.c.l.b16 %v211
        %v252 = vunpack.c.l.b16 %v212
        %v253 = vunpack.c.l.b16 %v213
        %v254 = vunpack.c.l.b16 %v214
        %v255 = vunpack.c.l.b16 %v215
        %v256 = vunpack.c.l.b16 %v216
        %v257 = vunpack.c.l.b16 %v217
        %v258 = vunpack.c.l.b16 %v218
        %v259 = vunpack.c.l.b16 %v219
        %v260 = vpack.c.b16 %v245, %v244
        %v261 = vpack.c.b16 %v247, %v246
        %v262 = vpack.c.b16 %v249, %v248
        %v263 = vpack.c.b16 %v251, %v250
        %v264 = vpack.c.b16 %v253, %v252
        %v265 = vpack.c.b16 %v255, %v254
        %v266 = vpack.c.b16 %v257, %v256
        %v267 = vpack.c.b16 %v259, %v258
        %276 = vmatprep.subr.bf16.mxu0 0
        %277 = vmatpush1.bf16.msra.mxu0 %v260
        %278 = vmatprep.subr.bf16.mxu0 0
        %279 = vmatpush1.bf16.msra.mxu0 %v261
        %280 = vmatprep.subr.bf16.mxu0 0
        %281 = vmatpush1.bf16.msra.mxu0 %v262
        %282 = vmatprep.subr.bf16.mxu0 0
        %283 = vmatpush1.bf16.msra.mxu0 %v263
        %284 = vmatprep.subr.bf16.mxu0 0
        %285 = vmatpush1.bf16.msra.mxu0 %v264
        %286 = vmatprep.subr.bf16.mxu0 0
        %287 = vmatpush1.bf16.msra.mxu0 %v265
        %288 = vmatprep.subr.bf16.mxu0 0
        %289 = vmatpush1.bf16.msra.mxu0 %v266
        %290 = vmatprep.subr.bf16.mxu0 0
        %291 = vmatpush1.bf16.msra.mxu0 %v267
        %292 = vmatprep.subr.bf16.mxu0 0
        %293 = vmatpush1.bf16.msra.mxu0 0
        %294 = vmatprep.subr.bf16.mxu0 0
        %295 = vmatpush1.bf16.msra.mxu0 0
        %296 = vmatprep.subr.bf16.mxu0 0
        %297 = vmatpush1.bf16.msra.mxu0 0
        %298 = vmatprep.subr.bf16.mxu0 0
        %299 = vmatpush1.bf16.msra.mxu0 0
        %300 = vmatprep.subr.bf16.mxu0 0
        %301 = vmatpush1.bf16.msra.mxu0 0
        %302 = vmatprep.subr.bf16.mxu0 0
        %303 = vmatpush1.bf16.msra.mxu0 0
        %304 = vmatprep.subr.bf16.mxu0 0
        %305 = vmatpush1.bf16.msra.mxu0 0
        %306 = vmatprep.subr.bf16.mxu0 0
        %307 = vmatpush1.bf16.msra.mxu0 0
        %308 = vmatprep.mubr.bf16.mxu0 0
        %309 = vmatmul.mubr.bf16.gmra.mrb[0].mxu0 %v226
        %v310 = vpop.f32.mrb[0].mxu0
        %v311 = vadd.f32 0.0, %v310
        %v312 = vpop.f32.mrb[0].mxu0
        %v313 = vpop.f32.mrb[0].mxu0
        %v314 = vadd.f32 0.0, %v313
        %v315 = vpop.f32.mrb[0].mxu0
        %316 = vdwg.mxu0
        %v333 = vunpack.c.l.b16 %v187
        %v334 = vunpack.c.l.b16 %v188
        %v335 = vunpack.c.l.b16 %v189
        %v336 = vunpack.c.l.b16 %v190
        %v337 = vunpack.c.l.b16 %v191
        %v338 = vunpack.c.l.b16 %v192
        %v339 = vunpack.c.l.b16 %v193
        %v340 = vunpack.c.l.b16 %v194
        %v341 = vunpack.c.l.b16 %v195
        %v342 = vunpack.c.l.b16 %v196
        %v343 = vunpack.c.l.b16 %v197
        %v344 = vunpack.c.l.b16 %v198
        %v345 = vunpack.c.l.b16 %v199
        %v346 = vunpack.c.l.b16 %v200
        %v347 = vunpack.c.l.b16 %v201
        %v348 = vunpack.c.l.b16 %v202
        %v349 = vpack.c.b16 %v334, %v333
        %v350 = vpack.c.b16 %v336, %v335
        %v351 = vpack.c.b16 %v338, %v337
        %v352 = vpack.c.b16 %v340, %v339
        %v353 = vpack.c.b16 %v342, %v341
        %v354 = vpack.c.b16 %v344, %v343
        %v355 = vpack.c.b16 %v346, %v345
        %v356 = vpack.c.b16 %v348, %v347
        %365 = vmatprep.subr.bf16.mxu0 0
        %366 = vmatpush1.bf16.msra.mxu0 %v349
        %367 = vmatprep.subr.bf16.mxu0 0
        %368 = vmatpush1.bf16.msra.mxu0 %v350
        %369 = vmatprep.subr.bf16.mxu0 0
        %370 = vmatpush1.bf16.msra.mxu0 %v351
        %371 = vmatprep.subr.bf16.mxu0 0
        %372 = vmatpush1.bf16.msra.mxu0 %v352
        %373 = vmatprep.subr.bf16.mxu0 0
        %374 = vmatpush1.bf16.msra.mxu0 %v353
        %375 = vmatprep.subr.bf16.mxu0 0
        %376 = vmatpush1.bf16.msra.mxu0 %v354
        %377 = vmatprep.subr.bf16.mxu0 0
        %378 = vmatpush1.bf16.msra.mxu0 %v355
        %379 = vmatprep.subr.bf16.mxu0 0
        %380 = vmatpush1.bf16.msra.mxu0 %v356
        %381 = vmatprep.subr.bf16.mxu0 0
        %382 = vmatpush1.bf16.msra.mxu0 0
        %383 = vmatprep.subr.bf16.mxu0 0
        %384 = vmatpush1.bf16.msra.mxu0 0
        %385 = vmatprep.subr.bf16.mxu0 0
        %386 = vmatpush1.bf16.msra.mxu0 0
        %387 = vmatprep.subr.bf16.mxu0 0
        %388 = vmatpush1.bf16.msra.mxu0 0
        %389 = vmatprep.subr.bf16.mxu0 0
        %390 = vmatpush1.bf16.msra.mxu0 0
        %391 = vmatprep.subr.bf16.mxu0 0
        %392 = vmatpush1.bf16.msra.mxu0 0
        %393 = vmatprep.subr.bf16.mxu0 0
        %394 = vmatpush1.bf16.msra.mxu0 0
        %395 = vmatprep.subr.bf16.mxu0 0
        %396 = vmatpush1.bf16.msra.mxu0 0
        %397 = vmatprep.mubr.bf16.mxu0 0
        %398 = vmatmul.mubr.bf16.gmra.mrb[0].mxu0 %v186
        %v399 = vpop.f32.mrb[0].mxu0
        %v400 = vadd.f32 %v311, %v399
        %v401 = vpop.f32.mrb[0].mxu0
        %v402 = vpop.f32.mrb[0].mxu0
        %v403 = vadd.f32 %v314, %v402
        %v404 = vpop.f32.mrb[0].mxu0
        %405 = vdwg.mxu0
        %s406 = scalar_lea.vmem %s1, 128
        %v407 = vld [vmem:[%s406] sm:$0xf]
        %v408 = vld [vmem:[%s406 + $0x4] sm:$0xf]
        %v409 = vld [vmem:[%s406 + $0x8] sm:$0xf]
        %v410 = vld [vmem:[%s406 + $0xc] sm:$0xf]
        %v411 = vld [vmem:[%s406 + $0x10] sm:$0xf]
        %v412 = vld [vmem:[%s406 + $0x14] sm:$0xf]
        %v413 = vld [vmem:[%s406 + $0x18] sm:$0xf]
        %v414 = vld [vmem:[%s406 + $0x1c] sm:$0xf]
        %v415 = vld [vmem:[%s406 + $0x20] sm:$0xf]
        %v416 = vld [vmem:[%s406 + $0x24] sm:$0xf]
        %v417 = vld [vmem:[%s406 + $0x28] sm:$0xf]
        %v418 = vld [vmem:[%s406 + $0x2c] sm:$0xf]
        %v419 = vld [vmem:[%s406 + $0x30] sm:$0xf]
        %v420 = vld [vmem:[%s406 + $0x34] sm:$0xf]
        %v421 = vld [vmem:[%s406 + $0x38] sm:$0xf]
        %v422 = vld [vmem:[%s406 + $0x3c] sm:$0xf]
        %v424 = vrot.slane %v186, 1
        %v442 = vunpack.c.l.b16 %v407
        %v443 = vunpack.c.l.b16 %v408
        %v444 = vunpack.c.l.b16 %v409
        %v445 = vunpack.c.l.b16 %v410
        %v446 = vunpack.c.l.b16 %v411
        %v447 = vunpack.c.l.b16 %v412
        %v448 = vunpack.c.l.b16 %v413
        %v449 = vunpack.c.l.b16 %v414
        %v450 = vunpack.c.l.b16 %v415
        %v451 = vunpack.c.l.b16 %v416
        %v452 = vunpack.c.l.b16 %v417
        %v453 = vunpack.c.l.b16 %v418
        %v454 = vunpack.c.l.b16 %v419
        %v455 = vunpack.c.l.b16 %v420
        %v456 = vunpack.c.l.b16 %v421
        %v457 = vunpack.c.l.b16 %v422
        %v458 = vpack.c.b16 %v443, %v442
        %v459 = vpack.c.b16 %v445, %v444
        %v460 = vpack.c.b16 %v447, %v446
        %v461 = vpack.c.b16 %v449, %v448
        %v462 = vpack.c.b16 %v451, %v450
        %v463 = vpack.c.b16 %v453, %v452
        %v464 = vpack.c.b16 %v455, %v454
        %v465 = vpack.c.b16 %v457, %v456
        %474 = vmatprep.subr.bf16.mxu0 0
        %475 = vmatpush1.bf16.msra.mxu0 %v458
        %476 = vmatprep.subr.bf16.mxu0 0
        %477 = vmatpush1.bf16.msra.mxu0 %v459
        %478 = vmatprep.subr.bf16.mxu0 0
        %479 = vmatpush1.bf16.msra.mxu0 %v460
        %480 = vmatprep.subr.bf16.mxu0 0
        %481 = vmatpush1.bf16.msra.mxu0 %v461
        %482 = vmatprep.subr.bf16.mxu0 0
        %483 = vmatpush1.bf16.msra.mxu0 %v462
        %484 = vmatprep.subr.bf16.mxu0 0
        %485 = vmatpush1.bf16.msra.mxu0 %v463
        %486 = vmatprep.subr.bf16.mxu0 0
        %487 = vmatpush1.bf16.msra.mxu0 %v464
        %488 = vmatprep.subr.bf16.mxu0 0
        %489 = vmatpush1.bf16.msra.mxu0 %v465
        %490 = vmatprep.subr.bf16.mxu0 0
        %491 = vmatpush1.bf16.msra.mxu0 0
        %492 = vmatprep.subr.bf16.mxu0 0
        %493 = vmatpush1.bf16.msra.mxu0 0
        %494 = vmatprep.subr.bf16.mxu0 0
        %495 = vmatpush1.bf16.msra.mxu0 0
        %496 = vmatprep.subr.bf16.mxu0 0
        %497 = vmatpush1.bf16.msra.mxu0 0
        %498 = vmatprep.subr.bf16.mxu0 0
        %499 = vmatpush1.bf16.msra.mxu0 0
        %500 = vmatprep.subr.bf16.mxu0 0
        %501 = vmatpush1.bf16.msra.mxu0 0
        %502 = vmatprep.subr.bf16.mxu0 0
        %503 = vmatpush1.bf16.msra.mxu0 0
        %504 = vmatprep.subr.bf16.mxu0 0
        %505 = vmatpush1.bf16.msra.mxu0 0
        %506 = vmatprep.mubr.bf16.mxu0 0
        %507 = vmatmul.mubr.bf16.gmra.mrb[0].mxu0 %v424
        %v508 = vpop.f32.mrb[0].mxu0
        %v509 = vadd.f32 0.0, %v508
        %v510 = vpop.f32.mrb[0].mxu0
        %v511 = vpop.f32.mrb[0].mxu0
        %v512 = vadd.f32 0.0, %v511
        %v513 = vpop.f32.mrb[0].mxu0
        %514 = vdwg.mxu0
        %v515 = vadd.f32 %v400, %v509
        %v516 = vadd.f32 %v403, %v512
        %s517 = sadd.s32 %s174, 1
        %s518 = smul.u32 %s517, 2
        %s519 = smul.addr %s518, 4
        %s520 = scalar_lea.vmem %s165, %s519
        %v521 = vld [vmem:[%s520] sm:$0xf]
        %v522 = vld [vmem:[%s520 + $0x4] sm:$0x7]
        %v523 = vunpack.c.l.bf16 %v521
        %v524 = vunpack.c.l.bf16 %v522
        %v525 = vpack.c.bf16 %v524, %v523
        %s526 = scalar_lea.vmem %s1, 192
        %v527 = vld [vmem:[%s526] sm:$0xf]
        %v528 = vld [vmem:[%s526 + $0x4] sm:$0xf]
        %v529 = vld [vmem:[%s526 + $0x8] sm:$0xf]
        %v530 = vld [vmem:[%s526 + $0xc] sm:$0xf]
        %v531 = vld [vmem:[%s526 + $0x10] sm:$0xf]
        %v532 = vld [vmem:[%s526 + $0x14] sm:$0xf]
        %v533 = vld [vmem:[%s526 + $0x18] sm:$0xf]
        %v534 = vld [vmem:[%s526 + $0x1c] sm:$0xf]
        %v535 = vld [vmem:[%s526 + $0x20] sm:$0xf]
        %v536 = vld [vmem:[%s526 + $0x24] sm:$0xf]
        %v537 = vld [vmem:[%s526 + $0x28] sm:$0xf]
        %v538 = vld [vmem:[%s526 + $0x2c] sm:$0xf]
        %v539 = vld [vmem:[%s526 + $0x30] sm:$0xf]
        %v540 = vld [vmem:[%s526 + $0x34] sm:$0xf]
        %v541 = vld [vmem:[%s526 + $0x38] sm:$0xf]
        %v542 = vld [vmem:[%s526 + $0x3c] sm:$0xf]
        %v559 = vunpack.c.l.b16 %v527
        %v560 = vunpack.c.l.b16 %v528
        %v561 = vunpack.c.l.b16 %v529
        %v562 = vunpack.c.l.b16 %v530
        %v563 = vunpack.c.l.b16 %v531
        %v564 = vunpack.c.l.b16 %v532
        %v565 = vunpack.c.l.b16 %v533
        %v566 = vunpack.c.l.b16 %v534
        %v567 = vunpack.c.l.b16 %v535
        %v568 = vunpack.c.l.b16 %v536
        %v569 = vunpack.c.l.b16 %v537
        %v570 = vunpack.c.l.b16 %v538
        %v571 = vunpack.c.l.b16 %v539
        %v572 = vunpack.c.l.b16 %v540
        %v573 = vunpack.c.l.b16 %v541
        %v574 = vunpack.c.l.b16 %v542
        %v575 = vpack.c.b16 %v560, %v559
        %v576 = vpack.c.b16 %v562, %v561
        %v577 = vpack.c.b16 %v564, %v563
        %v578 = vpack.c.b16 %v566, %v565
        %v579 = vpack.c.b16 %v568, %v567
        %v580 = vpack.c.b16 %v570, %v569
        %v581 = vpack.c.b16 %v572, %v571
        %v582 = vpack.c.b16 %v574, %v573
        %591 = vmatprep.subr.bf16.mxu0 0
        %592 = vmatpush1.bf16.msra.mxu0 %v575
        %593 = vmatprep.subr.bf16.mxu0 0
        %594 = vmatpush1.bf16.msra.mxu0 %v576
        %595 = vmatprep.subr.bf16.mxu0 0
        %596 = vmatpush1.bf16.msra.mxu0 %v577
        %597 = vmatprep.subr.bf16.mxu0 0
        %598 = vmatpush1.bf16.msra.mxu0 %v578
        %599 = vmatprep.subr.bf16.mxu0 0
        %600 = vmatpush1.bf16.msra.mxu0 %v579
        %601 = vmatprep.subr.bf16.mxu0 0
        %602 = vmatpush1.bf16.msra.mxu0 %v580
        %603 = vmatprep.subr.bf16.mxu0 0
        %604 = vmatpush1.bf16.msra.mxu0 %v581
        %605 = vmatprep.subr.bf16.mxu0 0
        %606 = vmatpush1.bf16.msra.mxu0 %v582
        %607 = vmatprep.subr.bf16.mxu0 0
        %608 = vmatpush1.bf16.msra.mxu0 0
        %609 = vmatprep.subr.bf16.mxu0 0
        %610 = vmatpush1.bf16.msra.mxu0 0
        %611 = vmatprep.subr.bf16.mxu0 0
        %612 = vmatpush1.bf16.msra.mxu0 0
        %613 = vmatprep.subr.bf16.mxu0 0
        %614 = vmatpush1.bf16.msra.mxu0 0
        %615 = vmatprep.subr.bf16.mxu0 0
        %616 = vmatpush1.bf16.msra.mxu0 0
        %617 = vmatprep.subr.bf16.mxu0 0
        %618 = vmatpush1.bf16.msra.mxu0 0
        %619 = vmatprep.subr.bf16.mxu0 0
        %620 = vmatpush1.bf16.msra.mxu0 0
        %621 = vmatprep.subr.bf16.mxu0 0
        %622 = vmatpush1.bf16.msra.mxu0 0
        %623 = vmatprep.mubr.bf16.mxu0 0
        %624 = vmatmul.mubr.bf16.gmra.mrb[0].mxu0 %v525
        %v625 = vpop.f32.mrb[0].mxu0
        %v626 = vadd.f32 0.0, %v625
        %v627 = vpop.f32.mrb[0].mxu0
        %v628 = vpop.f32.mrb[0].mxu0
        %v629 = vadd.f32 0.0, %v628
        %v630 = vpop.f32.mrb[0].mxu0
        %631 = vdwg.mxu0
        %v632 = vadd.f32 %v515, %v626
        %v633 = vadd.f32 %v516, %v629
        %s634 = scalar_lea.vmem %s1, 256
        %v635 = vld [vmem:[%s634] sm:$0xf]
        %v636 = vld [vmem:[%s634 + $0x4] sm:$0xf]
        %v637 = vld [vmem:[%s634 + $0x8] sm:$0xf]
        %v638 = vld [vmem:[%s634 + $0xc] sm:$0xf]
        %v639 = vld [vmem:[%s634 + $0x10] sm:$0xf]
        %v640 = vld [vmem:[%s634 + $0x14] sm:$0xf]
        %v641 = vld [vmem:[%s634 + $0x18] sm:$0xf]
        %v642 = vld [vmem:[%s634 + $0x1c] sm:$0xf]
        %v643 = vld [vmem:[%s634 + $0x20] sm:$0xf]
        %v644 = vld [vmem:[%s634 + $0x24] sm:$0xf]
        %v645 = vld [vmem:[%s634 + $0x28] sm:$0xf]
        %v646 = vld [vmem:[%s634 + $0x2c] sm:$0xf]
        %v647 = vld [vmem:[%s634 + $0x30] sm:$0xf]
        %v648 = vld [vmem:[%s634 + $0x34] sm:$0xf]
        %v649 = vld [vmem:[%s634 + $0x38] sm:$0xf]
        %v650 = vld [vmem:[%s634 + $0x3c] sm:$0xf]
        %v652 = vshrl.u32 %v525, 16
        %v654 = vshll.u32 %v525, 16
        %v656 = vrot.slane %v654, 1
        %v657 = vor.u32 %v652, %v656
        %v675 = vunpack.c.l.b16 %v635
        %v676 = vunpack.c.l.b16 %v636
        %v677 = vunpack.c.l.b16 %v637
        %v678 = vunpack.c.l.b16 %v638
        %v679 = vunpack.c.l.b16 %v639
        %v680 = vunpack.c.l.b16 %v640
        %v681 = vunpack.c.l.b16 %v641
        %v682 = vunpack.c.l.b16 %v642
        %v683 = vunpack.c.l.b16 %v643
        %v684 = vunpack.c.l.b16 %v644
        %v685 = vunpack.c.l.b16 %v645
        %v686 = vunpack.c.l.b16 %v646
        %v687 = vunpack.c.l.b16 %v647
        %v688 = vunpack.c.l.b16 %v648
        %v689 = vunpack.c.l.b16 %v649
        %v690 = vunpack.c.l.b16 %v650
        %v691 = vpack.c.b16 %v676, %v675
        %v692 = vpack.c.b16 %v678, %v677
        %v693 = vpack.c.b16 %v680, %v679
        %v694 = vpack.c.b16 %v682, %v681
        %v695 = vpack.c.b16 %v684, %v683
        %v696 = vpack.c.b16 %v686, %v685
        %v697 = vpack.c.b16 %v688, %v687
        %v698 = vpack.c.b16 %v690, %v689
        %707 = vmatprep.subr.bf16.mxu0 0
        %708 = vmatpush1.bf16.msra.mxu0 %v691
        %709 = vmatprep.subr.bf16.mxu0 0
        %710 = vmatpush1.bf16.msra.mxu0 %v692
        %711 = vmatprep.subr.bf16.mxu0 0
        %712 = vmatpush1.bf16.msra.mxu0 %v693
        %713 = vmatprep.subr.bf16.mxu0 0
        %714 = vmatpush1.bf16.msra.mxu0 %v694
        %715 = vmatprep.subr.bf16.mxu0 0
        %716 = vmatpush1.bf16.msra.mxu0 %v695
        %717 = vmatprep.subr.bf16.mxu0 0
        %718 = vmatpush1.bf16.msra.mxu0 %v696
        %719 = vmatprep.subr.bf16.mxu0 0
        %720 = vmatpush1.bf16.msra.mxu0 %v697
        %721 = vmatprep.subr.bf16.mxu0 0
        %722 = vmatpush1.bf16.msra.mxu0 %v698
        %723 = vmatprep.subr.bf16.mxu0 0
        %724 = vmatpush1.bf16.msra.mxu0 0
        %725 = vmatprep.subr.bf16.mxu0 0
        %726 = vmatpush1.bf16.msra.mxu0 0
        %727 = vmatprep.subr.bf16.mxu0 0
        %728 = vmatpush1.bf16.msra.mxu0 0
        %729 = vmatprep.subr.bf16.mxu0 0
        %730 = vmatpush1.bf16.msra.mxu0 0
        %731 = vmatprep.subr.bf16.mxu0 0
        %732 = vmatpush1.bf16.msra.mxu0 0
        %733 = vmatprep.subr.bf16.mxu0 0
        %734 = vmatpush1.bf16.msra.mxu0 0
        %735 = vmatprep.subr.bf16.mxu0 0
        %736 = vmatpush1.bf16.msra.mxu0 0
        %737 = vmatprep.subr.bf16.mxu0 0
        %738 = vmatpush1.bf16.msra.mxu0 0
        %739 = vmatprep.mubr.bf16.mxu0 0
        %740 = vmatmul.mubr.bf16.gmra.mrb[0].mxu0 %v657
        %v741 = vpop.f32.mrb[0].mxu0
        %v742 = vadd.f32 0.0, %v741
        %v743 = vpop.f32.mrb[0].mxu0
        %v744 = vpop.f32.mrb[0].mxu0
        %v745 = vadd.f32 0.0, %v744
        %v746 = vpop.f32.mrb[0].mxu0
        %747 = vdwg.mxu0
        %v748 = vadd.f32 %v632, %v742
        %v749 = vadd.f32 %v633, %v745
        %s750 = scalar_lea.vmem %s1, 320
        %v751 = vld [vmem:[%s750] sm:$0xf]
        %v752 = vld [vmem:[%s750 + $0x4] sm:$0xf]
        %v753 = vld [vmem:[%s750 + $0x8] sm:$0xf]
        %v754 = vld [vmem:[%s750 + $0xc] sm:$0xf]
        %v755 = vld [vmem:[%s750 + $0x10] sm:$0xf]
        %v756 = vld [vmem:[%s750 + $0x14] sm:$0xf]
        %v757 = vld [vmem:[%s750 + $0x18] sm:$0xf]
        %v758 = vld [vmem:[%s750 + $0x1c] sm:$0xf]
        %v759 = vld [vmem:[%s750 + $0x20] sm:$0xf]
        %v760 = vld [vmem:[%s750 + $0x24] sm:$0xf]
        %v761 = vld [vmem:[%s750 + $0x28] sm:$0xf]
        %v762 = vld [vmem:[%s750 + $0x2c] sm:$0xf]
        %v763 = vld [vmem:[%s750 + $0x30] sm:$0xf]
        %v764 = vld [vmem:[%s750 + $0x34] sm:$0xf]
        %v765 = vld [vmem:[%s750 + $0x38] sm:$0xf]
        %v766 = vld [vmem:[%s750 + $0x3c] sm:$0xf]
        %v768 = vrot.slane %v525, 1
        %v786 = vunpack.c.l.b16 %v751
        %v787 = vunpack.c.l.b16 %v752
        %v788 = vunpack.c.l.b16 %v753
        %v789 = vunpack.c.l.b16 %v754
        %v790 = vunpack.c.l.b16 %v755
        %v791 = vunpack.c.l.b16 %v756
        %v792 = vunpack.c.l.b16 %v757
        %v793 = vunpack.c.l.b16 %v758
        %v794 = vunpack.c.l.b16 %v759
        %v795 = vunpack.c.l.b16 %v760
        %v796 = vunpack.c.l.b16 %v761
        %v797 = vunpack.c.l.b16 %v762
        %v798 = vunpack.c.l.b16 %v763
        %v799 = vunpack.c.l.b16 %v764
        %v800 = vunpack.c.l.b16 %v765
        %v801 = vunpack.c.l.b16 %v766
        %v802 = vpack.c.b16 %v787, %v786
        %v803 = vpack.c.b16 %v789, %v788
        %v804 = vpack.c.b16 %v791, %v790
        %v805 = vpack.c.b16 %v793, %v792
        %v806 = vpack.c.b16 %v795, %v794
        %v807 = vpack.c.b16 %v797, %v796
        %v808 = vpack.c.b16 %v799, %v798
        %v809 = vpack.c.b16 %v801, %v800
        %818 = vmatprep.subr.bf16.mxu0 0
        %819 = vmatpush1.bf16.msra.mxu0 %v802
        %820 = vmatprep.subr.bf16.mxu0 0
        %821 = vmatpush1.bf16.msra.mxu0 %v803
        %822 = vmatprep.subr.bf16.mxu0 0
        %823 = vmatpush1.bf16.msra.mxu0 %v804
        %824 = vmatprep.subr.bf16.mxu0 0
        %825 = vmatpush1.bf16.msra.mxu0 %v805
        %826 = vmatprep.subr.bf16.mxu0 0
        %827 = vmatpush1.bf16.msra.mxu0 %v806
        %828 = vmatprep.subr.bf16.mxu0 0
        %829 = vmatpush1.bf16.msra.mxu0 %v807
        %830 = vmatprep.subr.bf16.mxu0 0
        %831 = vmatpush1.bf16.msra.mxu0 %v808
        %832 = vmatprep.subr.bf16.mxu0 0
        %833 = vmatpush1.bf16.msra.mxu0 %v809
        %834 = vmatprep.subr.bf16.mxu0 0
        %835 = vmatpush1.bf16.msra.mxu0 0
        %836 = vmatprep.subr.bf16.mxu0 0
        %837 = vmatpush1.bf16.msra.mxu0 0
        %838 = vmatprep.subr.bf16.mxu0 0
        %839 = vmatpush1.bf16.msra.mxu0 0
        %840 = vmatprep.subr.bf16.mxu0 0
        %841 = vmatpush1.bf16.msra.mxu0 0
        %842 = vmatprep.subr.bf16.mxu0 0
        %843 = vmatpush1.bf16.msra.mxu0 0
        %844 = vmatprep.subr.bf16.mxu0 0
        %845 = vmatpush1.bf16.msra.mxu0 0
        %846 = vmatprep.subr.bf16.mxu0 0
        %847 = vmatpush1.bf16.msra.mxu0 0
        %848 = vmatprep.subr.bf16.mxu0 0
        %849 = vmatpush1.bf16.msra.mxu0 0
        %850 = vmatprep.mubr.bf16.mxu0 0
        %851 = vmatmul.mubr.bf16.gmra.mrb[0].mxu0 %v768
        %v852 = vpop.f32.mrb[0].mxu0
        %v853 = vadd.f32 0.0, %v852
        %v854 = vpop.f32.mrb[0].mxu0
        %v855 = vpop.f32.mrb[0].mxu0
        %v856 = vadd.f32 0.0, %v855
        %v857 = vpop.f32.mrb[0].mxu0
        %858 = vdwg.mxu0
        %v859 = vadd.f32 %v748, %v853
        %v860 = vadd.f32 %v749, %v856
        %s861 = sadd.s32 %s174, 2
        %s862 = smul.u32 %s861, 2
        %s863 = smul.addr %s862, 4
        %s864 = scalar_lea.vmem %s165, %s863
        %v865 = vld [vmem:[%s864] sm:$0xf]
        %v866 = vld [vmem:[%s864 + $0x4] sm:$0x7]
        %v867 = vunpack.c.l.bf16 %v865
        %v868 = vunpack.c.l.bf16 %v866
        %v869 = vpack.c.bf16 %v868, %v867
        %s870 = scalar_lea.vmem %s1, 384
        %v871 = vld [vmem:[%s870] sm:$0xf]
        %v872 = vld [vmem:[%s870 + $0x4] sm:$0xf]
        %v873 = vld [vmem:[%s870 + $0x8] sm:$0xf]
        %v874 = vld [vmem:[%s870 + $0xc] sm:$0xf]
        %v875 = vld [vmem:[%s870 + $0x10] sm:$0xf]
        %v876 = vld [vmem:[%s870 + $0x14] sm:$0xf]
        %v877 = vld [vmem:[%s870 + $0x18] sm:$0xf]
        %v878 = vld [vmem:[%s870 + $0x1c] sm:$0xf]
        %v879 = vld [vmem:[%s870 + $0x20] sm:$0xf]
        %v880 = vld [vmem:[%s870 + $0x24] sm:$0xf]
        %v881 = vld [vmem:[%s870 + $0x28] sm:$0xf]
        %v882 = vld [vmem:[%s870 + $0x2c] sm:$0xf]
        %v883 = vld [vmem:[%s870 + $0x30] sm:$0xf]
        %v884 = vld [vmem:[%s870 + $0x34] sm:$0xf]
        %v885 = vld [vmem:[%s870 + $0x38] sm:$0xf]
        %v886 = vld [vmem:[%s870 + $0x3c] sm:$0xf]
        %v903 = vunpack.c.l.b16 %v871
        %v904 = vunpack.c.l.b16 %v872
        %v905 = vunpack.c.l.b16 %v873
        %v906 = vunpack.c.l.b16 %v874
        %v907 = vunpack.c.l.b16 %v875
        %v908 = vunpack.c.l.b16 %v876
        %v909 = vunpack.c.l.b16 %v877
        %v910 = vunpack.c.l.b16 %v878
        %v911 = vunpack.c.l.b16 %v879
        %v912 = vunpack.c.l.b16 %v880
        %v913 = vunpack.c.l.b16 %v881
        %v914 = vunpack.c.l.b16 %v882
        %v915 = vunpack.c.l.b16 %v883
        %v916 = vunpack.c.l.b16 %v884
        %v917 = vunpack.c.l.b16 %v885
        %v918 = vunpack.c.l.b16 %v886
        %v919 = vpack.c.b16 %v904, %v903
        %v920 = vpack.c.b16 %v906, %v905
        %v921 = vpack.c.b16 %v908, %v907
        %v922 = vpack.c.b16 %v910, %v909
        %v923 = vpack.c.b16 %v912, %v911
        %v924 = vpack.c.b16 %v914, %v913
        %v925 = vpack.c.b16 %v916, %v915
        %v926 = vpack.c.b16 %v918, %v917
        %935 = vmatprep.subr.bf16.mxu0 0
        %936 = vmatpush1.bf16.msra.mxu0 %v919
        %937 = vmatprep.subr.bf16.mxu0 0
        %938 = vmatpush1.bf16.msra.mxu0 %v920
        %939 = vmatprep.subr.bf16.mxu0 0
        %940 = vmatpush1.bf16.msra.mxu0 %v921
        %941 = vmatprep.subr.bf16.mxu0 0
        %942 = vmatpush1.bf16.msra.mxu0 %v922
        %943 = vmatprep.subr.bf16.mxu0 0
        %944 = vmatpush1.bf16.msra.mxu0 %v923
        %945 = vmatprep.subr.bf16.mxu0 0
        %946 = vmatpush1.bf16.msra.mxu0 %v924
        %947 = vmatprep.subr.bf16.mxu0 0
        %948 = vmatpush1.bf16.msra.mxu0 %v925
        %949 = vmatprep.subr.bf16.mxu0 0
        %950 = vmatpush1.bf16.msra.mxu0 %v926
        %951 = vmatprep.subr.bf16.mxu0 0
        %952 = vmatpush1.bf16.msra.mxu0 0
        %953 = vmatprep.subr.bf16.mxu0 0
        %954 = vmatpush1.bf16.msra.mxu0 0
        %955 = vmatprep.subr.bf16.mxu0 0
        %956 = vmatpush1.bf16.msra.mxu0 0
        %957 = vmatprep.subr.bf16.mxu0 0
        %958 = vmatpush1.bf16.msra.mxu0 0
        %959 = vmatprep.subr.bf16.mxu0 0
        %960 = vmatpush1.bf16.msra.mxu0 0
        %961 = vmatprep.subr.bf16.mxu0 0
        %962 = vmatpush1.bf16.msra.mxu0 0
        %963 = vmatprep.subr.bf16.mxu0 0
        %964 = vmatpush1.bf16.msra.mxu0 0
        %965 = vmatprep.subr.bf16.mxu0 0
        %966 = vmatpush1.bf16.msra.mxu0 0
        %967 = vmatprep.mubr.bf16.mxu0 0
        %968 = vmatmul.mubr.bf16.gmra.mrb[0].mxu0 %v869
        %v969 = vpop.f32.mrb[0].mxu0
        %v970 = vadd.f32 0.0, %v969
        %v971 = vpop.f32.mrb[0].mxu0
        %v972 = vpop.f32.mrb[0].mxu0
        %v973 = vadd.f32 0.0, %v972
        %v974 = vpop.f32.mrb[0].mxu0
        %975 = vdwg.mxu0
        %v976 = vadd.f32 %v859, %v970
        %v977 = vadd.f32 %v860, %v973
        %s978 = scalar_lea.vmem %s1, 448
        %v979 = vld [vmem:[%s978] sm:$0xf]
        %v980 = vld [vmem:[%s978 + $0x4] sm:$0xf]
        %v981 = vld [vmem:[%s978 + $0x8] sm:$0xf]
        %v982 = vld [vmem:[%s978 + $0xc] sm:$0xf]
        %v983 = vld [vmem:[%s978 + $0x10] sm:$0xf]
        %v984 = vld [vmem:[%s978 + $0x14] sm:$0xf]
        %v985 = vld [vmem:[%s978 + $0x18] sm:$0xf]
        %v986 = vld [vmem:[%s978 + $0x1c] sm:$0xf]
        %v987 = vld [vmem:[%s978 + $0x20] sm:$0xf]
        %v988 = vld [vmem:[%s978 + $0x24] sm:$0xf]
        %v989 = vld [vmem:[%s978 + $0x28] sm:$0xf]
        %v990 = vld [vmem:[%s978 + $0x2c] sm:$0xf]
        %v991 = vld [vmem:[%s978 + $0x30] sm:$0xf]
        %v992 = vld [vmem:[%s978 + $0x34] sm:$0xf]
        %v993 = vld [vmem:[%s978 + $0x38] sm:$0xf]
        %v994 = vld [vmem:[%s978 + $0x3c] sm:$0xf]
        %v996 = vshrl.u32 %v869, 16
        %v998 = vshll.u32 %v869, 16
        %v1000 = vrot.slane %v998, 1
        %v1001 = vor.u32 %v996, %v1000
        %v1019 = vunpack.c.l.b16 %v979
        %v1020 = vunpack.c.l.b16 %v980
        %v1021 = vunpack.c.l.b16 %v981
        %v1022 = vunpack.c.l.b16 %v982
        %v1023 = vunpack.c.l.b16 %v983
        %v1024 = vunpack.c.l.b16 %v984
        %v1025 = vunpack.c.l.b16 %v985
        %v1026 = vunpack.c.l.b16 %v986
        %v1027 = vunpack.c.l.b16 %v987
        %v1028 = vunpack.c.l.b16 %v988
        %v1029 = vunpack.c.l.b16 %v989
        %v1030 = vunpack.c.l.b16 %v990
        %v1031 = vunpack.c.l.b16 %v991
        %v1032 = vunpack.c.l.b16 %v992
        %v1033 = vunpack.c.l.b16 %v993
        %v1034 = vunpack.c.l.b16 %v994
        %v1035 = vpack.c.b16 %v1020, %v1019
        %v1036 = vpack.c.b16 %v1022, %v1021
        %v1037 = vpack.c.b16 %v1024, %v1023
        %v1038 = vpack.c.b16 %v1026, %v1025
        %v1039 = vpack.c.b16 %v1028, %v1027
        %v1040 = vpack.c.b16 %v1030, %v1029
        %v1041 = vpack.c.b16 %v1032, %v1031
        %v1042 = vpack.c.b16 %v1034, %v1033
        %1051 = vmatprep.subr.bf16.mxu0 0
        %1052 = vmatpush1.bf16.msra.mxu0 %v1035
        %1053 = vmatprep.subr.bf16.mxu0 0
        %1054 = vmatpush1.bf16.msra.mxu0 %v1036
        %1055 = vmatprep.subr.bf16.mxu0 0
        %1056 = vmatpush1.bf16.msra.mxu0 %v1037
        %1057 = vmatprep.subr.bf16.mxu0 0
        %1058 = vmatpush1.bf16.msra.mxu0 %v1038
        %1059 = vmatprep.subr.bf16.mxu0 0
        %1060 = vmatpush1.bf16.msra.mxu0 %v1039
        %1061 = vmatprep.subr.bf16.mxu0 0
        %1062 = vmatpush1.bf16.msra.mxu0 %v1040
        %1063 = vmatprep.subr.bf16.mxu0 0
        %1064 = vmatpush1.bf16.msra.mxu0 %v1041
        %1065 = vmatprep.subr.bf16.mxu0 0
        %1066 = vmatpush1.bf16.msra.mxu0 %v1042
        %1067 = vmatprep.subr.bf16.mxu0 0
        %1068 = vmatpush1.bf16.msra.mxu0 0
        %1069 = vmatprep.subr.bf16.mxu0 0
        %1070 = vmatpush1.bf16.msra.mxu0 0
        %1071 = vmatprep.subr.bf16.mxu0 0
        %1072 = vmatpush1.bf16.msra.mxu0 0
        %1073 = vmatprep.subr.bf16.mxu0 0
        %1074 = vmatpush1.bf16.msra.mxu0 0
        %1075 = vmatprep.subr.bf16.mxu0 0
        %1076 = vmatpush1.bf16.msra.mxu0 0
        %1077 = vmatprep.subr.bf16.mxu0 0
        %1078 = vmatpush1.bf16.msra.mxu0 0
        %1079 = vmatprep.subr.bf16.mxu0 0
        %1080 = vmatpush1.bf16.msra.mxu0 0
        %1081 = vmatprep.subr.bf16.mxu0 0
        %1082 = vmatpush1.bf16.msra.mxu0 0
        %1083 = vmatprep.mubr.bf16.mxu0 0
        %1084 = vmatmul.mubr.bf16.gmra.mrb[0].mxu0 %v1001
        %v1085 = vpop.f32.mrb[0].mxu0
        %v1086 = vadd.f32 0.0, %v1085
        %v1087 = vpop.f32.mrb[0].mxu0
        %v1088 = vpop.f32.mrb[0].mxu0
        %v1089 = vadd.f32 0.0, %v1088
        %v1090 = vpop.f32.mrb[0].mxu0
        %1091 = vdwg.mxu0
        %v1092 = vadd.f32 %v976, %v1086
        %v1093 = vadd.f32 %v977, %v1089
        %s1094 = scalar_lea.vmem %s1, 512
        %v1095 = vld [vmem:[%s1094] sm:$0xf]
        %v1096 = vld [vmem:[%s1094 + $0x4] sm:$0xf]
        %v1097 = vld [vmem:[%s1094 + $0x8] sm:$0xf]
        %v1098 = vld [vmem:[%s1094 + $0xc] sm:$0xf]
        %v1099 = vld [vmem:[%s1094 + $0x10] sm:$0xf]
        %v1100 = vld [vmem:[%s1094 + $0x14] sm:$0xf]
        %v1101 = vld [vmem:[%s1094 + $0x18] sm:$0xf]
        %v1102 = vld [vmem:[%s1094 + $0x1c] sm:$0xf]
        %v1103 = vld [vmem:[%s1094 + $0x20] sm:$0xf]
        %v1104 = vld [vmem:[%s1094 + $0x24] sm:$0xf]
        %v1105 = vld [vmem:[%s1094 + $0x28] sm:$0xf]
        %v1106 = vld [vmem:[%s1094 + $0x2c] sm:$0xf]
        %v1107 = vld [vmem:[%s1094 + $0x30] sm:$0xf]
        %v1108 = vld [vmem:[%s1094 + $0x34] sm:$0xf]
        %v1109 = vld [vmem:[%s1094 + $0x38] sm:$0xf]
        %v1110 = vld [vmem:[%s1094 + $0x3c] sm:$0xf]
        %v1112 = vrot.slane %v869, 1
        %v1130 = vunpack.c.l.b16 %v1095
        %v1131 = vunpack.c.l.b16 %v1096
        %v1132 = vunpack.c.l.b16 %v1097
        %v1133 = vunpack.c.l.b16 %v1098
        %v1134 = vunpack.c.l.b16 %v1099
        %v1135 = vunpack.c.l.b16 %v1100
        %v1136 = vunpack.c.l.b16 %v1101
        %v1137 = vunpack.c.l.b16 %v1102
        %v1138 = vunpack.c.l.b16 %v1103
        %v1139 = vunpack.c.l.b16 %v1104
        %v1140 = vunpack.c.l.b16 %v1105
        %v1141 = vunpack.c.l.b16 %v1106
        %v1142 = vunpack.c.l.b16 %v1107
        %v1143 = vunpack.c.l.b16 %v1108
        %v1144 = vunpack.c.l.b16 %v1109
        %v1145 = vunpack.c.l.b16 %v1110
        %v1146 = vpack.c.b16 %v1131, %v1130
        %v1147 = vpack.c.b16 %v1133, %v1132
        %v1148 = vpack.c.b16 %v1135, %v1134
        %v1149 = vpack.c.b16 %v1137, %v1136
        %v1150 = vpack.c.b16 %v1139, %v1138
        %v1151 = vpack.c.b16 %v1141, %v1140
        %v1152 = vpack.c.b16 %v1143, %v1142
        %v1153 = vpack.c.b16 %v1145, %v1144
        %1162 = vmatprep.subr.bf16.mxu0 0
        %1163 = vmatpush1.bf16.msra.mxu0 %v1146
        %1164 = vmatprep.subr.bf16.mxu0 0
        %1165 = vmatpush1.bf16.msra.mxu0 %v1147
        %1166 = vmatprep.subr.bf16.mxu0 0
        %1167 = vmatpush1.bf16.msra.mxu0 %v1148
        %1168 = vmatprep.subr.bf16.mxu0 0
        %1169 = vmatpush1.bf16.msra.mxu0 %v1149
        %1170 = vmatprep.subr.bf16.mxu0 0
        %1171 = vmatpush1.bf16.msra.mxu0 %v1150
        %1172 = vmatprep.subr.bf16.mxu0 0
        %1173 = vmatpush1.bf16.msra.mxu0 %v1151
        %1174 = vmatprep.subr.bf16.mxu0 0
        %1175 = vmatpush1.bf16.msra.mxu0 %v1152
        %1176 = vmatprep.subr.bf16.mxu0 0
        %1177 = vmatpush1.bf16.msra.mxu0 %v1153
        %1178 = vmatprep.subr.bf16.mxu0 0
        %1179 = vmatpush1.bf16.msra.mxu0 0
        %1180 = vmatprep.subr.bf16.mxu0 0
        %1181 = vmatpush1.bf16.msra.mxu0 0
        %1182 = vmatprep.subr.bf16.mxu0 0
        %1183 = vmatpush1.bf16.msra.mxu0 0
        %1184 = vmatprep.subr.bf16.mxu0 0
        %1185 = vmatpush1.bf16.msra.mxu0 0
        %1186 = vmatprep.subr.bf16.mxu0 0
        %1187 = vmatpush1.bf16.msra.mxu0 0
        %1188 = vmatprep.subr.bf16.mxu0 0
        %1189 = vmatpush1.bf16.msra.mxu0 0
        %1190 = vmatprep.subr.bf16.mxu0 0
        %1191 = vmatpush1.bf16.msra.mxu0 0
        %1192 = vmatprep.subr.bf16.mxu0 0
        %1193 = vmatpush1.bf16.msra.mxu0 0
        %1194 = vmatprep.mubr.bf16.mxu0 0
        %1195 = vmatmul.mubr.bf16.gmra.mrb[0].mxu0 %v1112
        %v1196 = vpop.f32.mrb[0].mxu0
        %v1197 = vadd.f32 0.0, %v1196
        %v1198 = vpop.f32.mrb[0].mxu0
        %v1199 = vpop.f32.mrb[0].mxu0
        %v1200 = vadd.f32 0.0, %v1199
        %v1201 = vpop.f32.mrb[0].mxu0
        %1202 = vdwg.mxu0
        %v1203 = vadd.f32 %v1092, %v1197
        %v1204 = vadd.f32 %v1093, %v1200
        %v1206 = vlaneseq
        %v1207 = vshrl.u32 %v1206, 7
        %v1208 = vsub.s32 0, %v1207
        %v1209 = vrot.slane %v172, %v1208
        %v1211 = vadd.f32 %v1203, %v1209
        %v1212 = vadd.f32 %v1204, %v1209
        %v1213 = vmax.f32 %v1211, 0.0
        %v1214 = vmax.f32 %v1212, 0.0
        %s1215 = smul.u32 %s174, 16
        %s1216 = scalar_lea.vmem %s170, %s1215
        %1217 = vst [vmem:[%s1216] sm:$0xff] %v1213
        %1218 = vst [vmem:[%s1216 + $0x8] sm:$0xf] %v1214
      $region37: #{net_forward.15} parent=31 // loop_footer
        %s178 = sadd.s32 1, %s174
      $region38: #{net_forward.15} parent=31 // loop_footer_branch
        %173 = sbr.rel target = $region34
      $region39: #{net_forward.15} parent=31 // loop_exit
        _
      %p1219 = scmp.lt.s32.totalorder %s14, 1
      %s1220 = scalar_select %p1219, %s14, 1
      %s1221 = smul.addr %s1220, 24
      %s1222 = smul.addr %s1221, 8
      %s1223 = scalar_lea.vmem %s3, %s1222
      // Predicated region
      $region40: #{net_forward.15} parent=31 // pred_check
        %p1224 = pneg %p100
      $region41: #{net_forward.15} parent=31 // pred_check_branch
        %1226 = sbr.rel (%p1224) target = $region43
      $region42: #{net_forward.15} parent=31 // pred_region
        _
      $region43: #{net_forward.15} parent=31 // pred_fallthru
        _
    $region32: #{net_forward.15} parent=5 // pred_fallthru
      _
    %p1227 = scmp.le.s32.totalorder 2, %s9
    // Predicated region
    $region44: #{net_forward.15} parent=5 // pred_check
      %p1228 = pneg %p1227
    $region45: #{net_forward.15} parent=5 // pred_check_branch
      %1230 = sbr.rel (%p1228) target = $region47
    $region46: #{net_forward.15} parent=5 // pred_region
      %s1231 = ssub.s32 %s9, 2
      // Predicated region
      $region48: #{net_forward.15} parent=46 // pred_check
        %p1232 = pneg %p106
      $region49: #{net_forward.15} parent=46 // pred_check_branch
        %1234 = sbr.rel (%p1232) target = $region51
      $region50: #{net_forward.15} parent=46 // pred_region
        %p1235 = scmp.lt.s32.totalorder %s15, 1
        %s1236 = scalar_select %p1235, %s15, 1
        %s1237 = smul.addr %s1236, 24
        %s1238 = smul.addr %s1237, 8
        %s1239 = scalar_lea.vmem %s3, %s1238
      $region51: #{net_forward.15} parent=46 // pred_fallthru
        _
    $region47: #{net_forward.15} parent=5 // pred_fallthru
      _
  $region6: #{net_forward.15} parent=0 // loop_footer
    %s13 = sadd.s32 1, %s9
  $region7: #{net_forward.15} parent=0 // loop_footer_branch
    %8 = sbr.rel target = $region3
  $region8: #{net_forward.15} parent=0 // loop_exit
    _

</llo_original>
